<compile_context>
chip_gen: v6e
topology: v6e:2x2x1
jax: 0.10.0
libtpu: 0.0.40
codegen_flags: <defaults>
</compile_context>

<pallas_src>
import jax
import jax.numpy as jnp
from jax.experimental import pallas as pl
from jax.experimental.pallas import tpu as pltpu


def pointfilter_kernel(x_ref,
                       w1, b1, w2, b2, w3, b3, w4, b4, w5, b5,
                       f1w, f1b, f2w, f2b, f3w, f3b,
                       out_ref):
    """One grid step == TB patches of N points each."""
    TB, N, C = x_ref.shape
    h = x_ref[...].reshape(TB * N, C)                    # (TB*N, 3) f32

    # ---- layer 1: K=3 contraction as 3 VPU broadcast-FMAs (skip the MXU) ----
    w1v = w1[...]                                        # (3, 64) f32
    y = (h[:, 0:1] * w1v[0:1, :]
         + h[:, 1:2] * w1v[1:2, :]
         + h[:, 2:3] * w1v[2:3, :]) + b1[...]
    h = jnp.maximum(y, 0.0)                              # (TB*N, 64) f32

    def lin_relu(h, w_ref, b_ref):
        # MXU operands in the weight dtype (bf16), f32 accumulate; bias/ReLU f32.
        y = jnp.dot(h.astype(w_ref.dtype), w_ref[...],
                    preferred_element_type=jnp.float32) + b_ref[...]
        return jnp.maximum(y, 0.0)

    # ---- encoder layers 2..5 (1x1 conv -> BN(folded) -> ReLU) ----
    h = lin_relu(h, w2, b2)                              # (TB*N, 128)
    h = lin_relu(h, w3, b3)                              # (TB*N, 256)
    h = lin_relu(h, w4, b4)                              # (TB*N, 512)
    h = lin_relu(h, w5, b5)                              # (TB*N, 1024)

    # ---- symmetric op: per-patch max over the point axis ----
    g = jnp.max(h.reshape(TB, N, h.shape[-1]), axis=1)   # (TB, 1024)

    # ---- decoder: fc->BN(folded)->ReLU, fc->BN(folded)->ReLU, fc->tanh ----
    g = lin_relu(g, f1w, f1b)                            # (TB, 512)
    g = lin_relu(g, f2w, f2b)                            # (TB, 256)
    y = jnp.tanh(jnp.dot(g.astype(f3w.dtype), f3w[...],
                         preferred_element_type=jnp.float32) + f3b[...])
    out_ref[...] = y.reshape(1, TB, 3)


def fold_bn(w_t, b, gamma, beta, mean, var, eps=1e-5):
    """Fold eval-mode BatchNorm1d into the preceding linear (w_t is (C_in, C_out))."""
    scale = gamma / jnp.sqrt(var + eps)
    shift = beta - mean * scale
    return w_t * scale[None, :], b * scale + shift


def make_params(key):
    """Deterministic synthetic parameters, shapes per the PyTorch module __init__."""
    dims_enc = [3, 64, 128, 256, 512, 1024]
    dims_dec = [1024, 512, 256, 3]
    params = []
    keys = jax.random.split(key, 64)
    k = 0

    def nxt():
        nonlocal k
        kk = keys[k]
        k += 1
        return kk

    def bn_params(c):
        g = 1.0 + 0.05 * jax.random.normal(nxt(), (c,), jnp.float32)
        bt = 0.05 * jax.random.normal(nxt(), (c,), jnp.float32)
        mu = 0.05 * jax.random.normal(nxt(), (c,), jnp.float32)
        var = 1.0 + 0.05 * jnp.abs(jax.random.normal(nxt(), (c,), jnp.float32))
        return g, bt, mu, var

    # encoder: conv_i weight (C_out, C_in, 1) -> use transposed (C_in, C_out)
    for i in range(5):
        cin, cout = dims_enc[i], dims_enc[i + 1]
        w_t = 0.1 * jax.random.normal(nxt(), (cin, cout), jnp.float32)
        b = 0.1 * jax.random.normal(nxt(), (cout,), jnp.float32)
        w_t, b = fold_bn(w_t, b, *bn_params(cout))
        w_dtype = jnp.float32 if i == 0 else jnp.bfloat16   # layer 1 stays f32 (VPU path)
        params += [w_t.astype(w_dtype), b.reshape(1, cout).astype(jnp.float32)]

    # decoder fc1, fc2 (with BN), fc3 (no BN)
    for i in range(2):
        cin, cout = dims_dec[i], dims_dec[i + 1]
        w_t = 0.05 * jax.random.normal(nxt(), (cin, cout), jnp.float32)
        b = 0.05 * jax.random.normal(nxt(), (cout,), jnp.float32)
        w_t, b = fold_bn(w_t, b, *bn_params(cout))
        params += [w_t.astype(jnp.bfloat16), b.reshape(1, cout).astype(jnp.float32)]
    w_t = 0.05 * jax.random.normal(nxt(), (256, 3), jnp.float32)
    b = 0.05 * jax.random.normal(nxt(), (3,), jnp.float32)
    params += [w_t.astype(jnp.bfloat16), b.reshape(1, 3).astype(jnp.float32)]
    return params


@jax.jit
def pointfilter_forward(x, *params):
    x = x.astype(jnp.float32)
    B, N, C = x.shape

    # TB patches per grid step to fill the MXU M dimension and amortize
    # per-step pipeline overhead; keep grid extent >= 2 when B allows so
    # both v7x TensorCores get work.
    tb = min(4, B)
    b_pad = pl.cdiv(B, tb) * tb
    n_pad = pl.cdiv(N, 8) * 8
    if b_pad != B:
        x = jnp.pad(x, ((0, b_pad - B), (0, 0), (0, 0)))
    if n_pad != N:
        # Duplicate the last point: a max over a multiset is unchanged by duplicates.
        pad = jnp.broadcast_to(x[:, -1:, :], (b_pad, n_pad - N, C))
        x = jnp.concatenate([x, pad], axis=1)
    num_tiles = b_pad // tb

    # Constant weight/bias operands: resident in VMEM (no per-step pipelining).
    weight_spec = pl.BlockSpec(memory_space=pltpu.MemorySpace.VMEM)

    out = pl.pallas_call(
        pointfilter_kernel,
        out_shape=jax.ShapeDtypeStruct((num_tiles, tb, 3), jnp.float32),
        grid=(num_tiles,),
        in_specs=[pl.BlockSpec((tb, n_pad, C), lambda b: (b, 0, 0))]
                + [weight_spec] * len(params),
        out_specs=pl.BlockSpec((1, tb, 3), lambda b: (b, 0, 0)),
        compiler_params=pltpu.CompilerParams(
            dimension_semantics=("parallel",),
            vmem_limit_bytes=32 * 1024 * 1024,   # <= v7x 64 MiB physical VMEM
        ),
    )(x, *params)
    return out.reshape(b_pad, 3)[:B]


def reference_forward(x, *params):
    """Pure-JAX reference with the same folded params / mixed-precision recipe."""
    B, N, C = x.shape
    h = x.reshape(B * N, C).astype(jnp.float32)

    def lin_relu(h, w, b):
        y = jnp.dot(h.astype(w.dtype), w, preferred_element_type=jnp.float32) + b
        return jnp.maximum(y, 0.0)

    for i in range(5):
        h = lin_relu(h, params[2 * i], params[2 * i + 1])
    g = jnp.max(h.reshape(B, N, -1), axis=1)
    g = lin_relu(g, params[10], params[11])
    g = lin_relu(g, params[12], params[13])
    y = jnp.dot(g.astype(params[14].dtype), params[14],
                preferred_element_type=jnp.float32) + params[15]
    return jnp.tanh(y)


if __name__ == "__main__":
    key = jax.random.PRNGKey(0)
    kx, kp = jax.random.split(key)

    B, N, C_IN = 8, 64, 3          # small patches (module default patch_nums=500)
    x = jax.random.normal(kx, (B, N, C_IN), jnp.float32)
    params = make_params(kp)

    out = pointfilter_forward(x, *params)
    out = jax.block_until_ready(out)

    ref = reference_forward(x, *params)
    assert out.shape == (B, 3)
    assert jnp.allclose(out, ref, rtol=5e-3, atol=5e-3), (out, ref)

    print("KERNEL_OK")
</pallas_src>

<mosaic_0001>
module attributes {stable_mosaic.version = 11 : i64} {
  func.func @pointfilter_kernel(%arg0: i32, %arg1: memref<4x64x3xf32, #tpu.memory_space<vmem>>, %arg2: memref<3x64xf32, #tpu.memory_space<vmem>>, %arg3: memref<1x64xf32, #tpu.memory_space<vmem>>, %arg4: memref<64x128xbf16, #tpu.memory_space<vmem>>, %arg5: memref<1x128xf32, #tpu.memory_space<vmem>>, %arg6: memref<128x256xbf16, #tpu.memory_space<vmem>>, %arg7: memref<1x256xf32, #tpu.memory_space<vmem>>, %arg8: memref<256x512xbf16, #tpu.memory_space<vmem>>, %arg9: memref<1x512xf32, #tpu.memory_space<vmem>>, %arg10: memref<512x1024xbf16, #tpu.memory_space<vmem>>, %arg11: memref<1x1024xf32, #tpu.memory_space<vmem>>, %arg12: memref<1024x512xbf16, #tpu.memory_space<vmem>>, %arg13: memref<1x512xf32, #tpu.memory_space<vmem>>, %arg14: memref<512x256xbf16, #tpu.memory_space<vmem>>, %arg15: memref<1x256xf32, #tpu.memory_space<vmem>>, %arg16: memref<256x3xbf16, #tpu.memory_space<vmem>>, %arg17: memref<1x3xf32, #tpu.memory_space<vmem>>, %arg18: memref<1x4x3xf32, #tpu.memory_space<vmem>>) attributes {dimension_semantics = [#tpu.dimension_semantics<parallel>], iteration_bounds = array<i64: 2>, scalar_prefetch = 0 : i64, scratch_operands = 0 : i64, tpu.core_type = #tpu.core_type<tc>, window_params = [{transform_indices = @transform_0, window_bounds = array<i64: 4, 64, 3>}, {pipeline_mode = #tpu.pipeline_mode<synchronous>, transform_indices = @transform_1, window_bounds = array<i64: 3, 64>}, {pipeline_mode = #tpu.pipeline_mode<synchronous>, transform_indices = @transform_2, window_bounds = array<i64: 1, 64>}, {pipeline_mode = #tpu.pipeline_mode<synchronous>, transform_indices = @transform_3, window_bounds = array<i64: 64, 128>}, {pipeline_mode = #tpu.pipeline_mode<synchronous>, transform_indices = @transform_4, window_bounds = array<i64: 1, 128>}, {pipeline_mode = #tpu.pipeline_mode<synchronous>, transform_indices = @transform_5, window_bounds = array<i64: 128, 256>}, {pipeline_mode = #tpu.pipeline_mode<synchronous>, transform_indices = @transform_6, window_bounds = array<i64: 1, 256>}, {pipeline_mode = #tpu.pipeline_mode<synchronous>, transform_indices = @transform_7, window_bounds = array<i64: 256, 512>}, {pipeline_mode = #tpu.pipeline_mode<synchronous>, transform_indices = @transform_8, window_bounds = array<i64: 1, 512>}, {pipeline_mode = #tpu.pipeline_mode<synchronous>, transform_indices = @transform_9, window_bounds = array<i64: 512, 1024>}, {pipeline_mode = #tpu.pipeline_mode<synchronous>, transform_indices = @transform_10, window_bounds = array<i64: 1, 1024>}, {pipeline_mode = #tpu.pipeline_mode<synchronous>, transform_indices = @transform_11, window_bounds = array<i64: 1024, 512>}, {pipeline_mode = #tpu.pipeline_mode<synchronous>, transform_indices = @transform_12, window_bounds = array<i64: 1, 512>}, {pipeline_mode = #tpu.pipeline_mode<synchronous>, transform_indices = @transform_13, window_bounds = array<i64: 512, 256>}, {pipeline_mode = #tpu.pipeline_mode<synchronous>, transform_indices = @transform_14, window_bounds = array<i64: 1, 256>}, {pipeline_mode = #tpu.pipeline_mode<synchronous>, transform_indices = @transform_15, window_bounds = array<i64: 256, 3>}, {pipeline_mode = #tpu.pipeline_mode<synchronous>, transform_indices = @transform_16, window_bounds = array<i64: 1, 3>}, {transform_indices = @transform_17, window_bounds = array<i64: 1, 4, 3>}]} {
    %c0 = arith.constant 0 : index
    %c0_0 = arith.constant 0 : index
    %c0_1 = arith.constant 0 : index
    %0 = vector.load %arg1[%c0, %c0_0, %c0_1] : memref<4x64x3xf32, #tpu.memory_space<vmem>>, vector<4x64x3xf32>
    %1 = vector.shape_cast %0 : vector<4x64x3xf32> to vector<256x3xf32>
    %c0_2 = arith.constant 0 : index
    %c0_3 = arith.constant 0 : index
    %2 = vector.load %arg2[%c0_2, %c0_3] : memref<3x64xf32, #tpu.memory_space<vmem>>, vector<3x64xf32>
    %3 = vector.extract_strided_slice %1 {offsets = [0, 0], sizes = [256, 1], strides = [1, 1]} : vector<256x3xf32> to vector<256x1xf32>
    %4 = vector.extract_strided_slice %2 {offsets = [0, 0], sizes = [1, 64], strides = [1, 1]} : vector<3x64xf32> to vector<1x64xf32>
    %5 = vector.broadcast %3 : vector<256x1xf32> to vector<256x64xf32>
    %6 = vector.broadcast %4 : vector<1x64xf32> to vector<256x64xf32>
    %7 = arith.mulf %5, %6 : vector<256x64xf32>
    %8 = vector.extract_strided_slice %1 {offsets = [0, 1], sizes = [256, 1], strides = [1, 1]} : vector<256x3xf32> to vector<256x1xf32>
    %9 = vector.extract_strided_slice %2 {offsets = [1, 0], sizes = [1, 64], strides = [1, 1]} : vector<3x64xf32> to vector<1x64xf32>
    %10 = vector.broadcast %8 : vector<256x1xf32> to vector<256x64xf32>
    %11 = vector.broadcast %9 : vector<1x64xf32> to vector<256x64xf32>
    %12 = arith.mulf %10, %11 : vector<256x64xf32>
    %13 = arith.addf %7, %12 : vector<256x64xf32>
    %14 = vector.extract_strided_slice %1 {offsets = [0, 2], sizes = [256, 1], strides = [1, 1]} : vector<256x3xf32> to vector<256x1xf32>
    %15 = vector.extract_strided_slice %2 {offsets = [2, 0], sizes = [1, 64], strides = [1, 1]} : vector<3x64xf32> to vector<1x64xf32>
    %16 = vector.broadcast %14 : vector<256x1xf32> to vector<256x64xf32>
    %17 = vector.broadcast %15 : vector<1x64xf32> to vector<256x64xf32>
    %18 = arith.mulf %16, %17 : vector<256x64xf32>
    %19 = arith.addf %13, %18 : vector<256x64xf32>
    %c0_4 = arith.constant 0 : index
    %c0_5 = arith.constant 0 : index
    %20 = vector.load %arg3[%c0_4, %c0_5] : memref<1x64xf32, #tpu.memory_space<vmem>>, vector<1x64xf32>
    %21 = vector.broadcast %20 : vector<1x64xf32> to vector<256x64xf32>
    %22 = arith.addf %19, %21 : vector<256x64xf32>
    %cst = arith.constant 0.000000e+00 : f32
    %23 = vector.broadcast %cst : f32 to vector<256x64xf32>
    %24 = arith.maximumf %22, %23 : vector<256x64xf32>
    %25 = arith.truncf %24 : vector<256x64xf32> to vector<256x64xbf16>
    %c0_6 = arith.constant 0 : index
    %c0_7 = arith.constant 0 : index
    %26 = vector.load %arg4[%c0_6, %c0_7] : memref<64x128xbf16, #tpu.memory_space<vmem>>, vector<64x128xbf16>
    %cst_8 = arith.constant dense<0.000000e+00> : vector<256x128xf32>
    %27 = tpu.matmul %25, %26, %cst_8 {dimension_numbers = #tpu.dot_dimension_numbers<[1], [0], [0], [1], [0, 0, 1, 1], [], []>} : vector<256x64xbf16>, vector<64x128xbf16>, vector<256x128xf32> -> vector<256x128xf32>
    %c0_9 = arith.constant 0 : index
    %c0_10 = arith.constant 0 : index
    %28 = vector.load %arg5[%c0_9, %c0_10] : memref<1x128xf32, #tpu.memory_space<vmem>>, vector<1x128xf32>
    %29 = vector.broadcast %28 : vector<1x128xf32> to vector<256x128xf32>
    %30 = arith.addf %27, %29 : vector<256x128xf32>
    %cst_11 = arith.constant 0.000000e+00 : f32
    %31 = vector.broadcast %cst_11 : f32 to vector<256x128xf32>
    %32 = arith.maximumf %30, %31 : vector<256x128xf32>
    %33 = arith.truncf %32 : vector<256x128xf32> to vector<256x128xbf16>
    %c0_12 = arith.constant 0 : index
    %c0_13 = arith.constant 0 : index
    %34 = vector.load %arg6[%c0_12, %c0_13] : memref<128x256xbf16, #tpu.memory_space<vmem>>, vector<128x256xbf16>
    %cst_14 = arith.constant dense<0.000000e+00> : vector<256x256xf32>
    %35 = tpu.matmul %33, %34, %cst_14 {dimension_numbers = #tpu.dot_dimension_numbers<[1], [0], [0], [1], [0, 0, 1, 1], [], []>} : vector<256x128xbf16>, vector<128x256xbf16>, vector<256x256xf32> -> vector<256x256xf32>
    %c0_15 = arith.constant 0 : index
    %c0_16 = arith.constant 0 : index
    %36 = vector.load %arg7[%c0_15, %c0_16] : memref<1x256xf32, #tpu.memory_space<vmem>>, vector<1x256xf32>
    %37 = vector.broadcast %36 : vector<1x256xf32> to vector<256x256xf32>
    %38 = arith.addf %35, %37 : vector<256x256xf32>
    %cst_17 = arith.constant 0.000000e+00 : f32
    %39 = vector.broadcast %cst_17 : f32 to vector<256x256xf32>
    %40 = arith.maximumf %38, %39 : vector<256x256xf32>
    %41 = arith.truncf %40 : vector<256x256xf32> to vector<256x256xbf16>
    %c0_18 = arith.constant 0 : index
    %c0_19 = arith.constant 0 : index
    %42 = vector.load %arg8[%c0_18, %c0_19] : memref<256x512xbf16, #tpu.memory_space<vmem>>, vector<256x512xbf16>
    %cst_20 = arith.constant dense<0.000000e+00> : vector<256x512xf32>
    %43 = tpu.matmul %41, %42, %cst_20 {dimension_numbers = #tpu.dot_dimension_numbers<[1], [0], [0], [1], [0, 0, 1, 1], [], []>} : vector<256x256xbf16>, vector<256x512xbf16>, vector<256x512xf32> -> vector<256x512xf32>
    %c0_21 = arith.constant 0 : index
    %c0_22 = arith.constant 0 : index
    %44 = vector.load %arg9[%c0_21, %c0_22] : memref<1x512xf32, #tpu.memory_space<vmem>>, vector<1x512xf32>
    %45 = vector.broadcast %44 : vector<1x512xf32> to vector<256x512xf32>
    %46 = arith.addf %43, %45 : vector<256x512xf32>
    %cst_23 = arith.constant 0.000000e+00 : f32
    %47 = vector.broadcast %cst_23 : f32 to vector<256x512xf32>
    %48 = arith.maximumf %46, %47 : vector<256x512xf32>
    %49 = arith.truncf %48 : vector<256x512xf32> to vector<256x512xbf16>
    %c0_24 = arith.constant 0 : index
    %c0_25 = arith.constant 0 : index
    %50 = vector.load %arg10[%c0_24, %c0_25] : memref<512x1024xbf16, #tpu.memory_space<vmem>>, vector<512x1024xbf16>
    %cst_26 = arith.constant dense<0.000000e+00> : vector<256x1024xf32>
    %51 = tpu.matmul %49, %50, %cst_26 {dimension_numbers = #tpu.dot_dimension_numbers<[1], [0], [0], [1], [0, 0, 1, 1], [], []>} : vector<256x512xbf16>, vector<512x1024xbf16>, vector<256x1024xf32> -> vector<256x1024xf32>
    %c0_27 = arith.constant 0 : index
    %c0_28 = arith.constant 0 : index
    %52 = vector.load %arg11[%c0_27, %c0_28] : memref<1x1024xf32, #tpu.memory_space<vmem>>, vector<1x1024xf32>
    %53 = vector.broadcast %52 : vector<1x1024xf32> to vector<256x1024xf32>
    %54 = arith.addf %51, %53 : vector<256x1024xf32>
    %cst_29 = arith.constant 0.000000e+00 : f32
    %55 = vector.broadcast %cst_29 : f32 to vector<256x1024xf32>
    %56 = arith.maximumf %54, %55 : vector<256x1024xf32>
    %57 = vector.shape_cast %56 : vector<256x1024xf32> to vector<4x64x1024xf32>
    %cst_30 = arith.constant dense<0xFF800000> : vector<4x1024xf32>
    %58 = vector.multi_reduction <maximumf>, %57, %cst_30 [1] : vector<4x64x1024xf32> to vector<4x1024xf32>
    %59 = arith.truncf %58 : vector<4x1024xf32> to vector<4x1024xbf16>
    %c0_31 = arith.constant 0 : index
    %c0_32 = arith.constant 0 : index
    %60 = vector.load %arg12[%c0_31, %c0_32] : memref<1024x512xbf16, #tpu.memory_space<vmem>>, vector<1024x512xbf16>
    %cst_33 = arith.constant dense<0.000000e+00> : vector<4x512xf32>
    %61 = tpu.matmul %59, %60, %cst_33 {dimension_numbers = #tpu.dot_dimension_numbers<[1], [0], [0], [1], [0, 0, 1, 1], [], []>} : vector<4x1024xbf16>, vector<1024x512xbf16>, vector<4x512xf32> -> vector<4x512xf32>
    %c0_34 = arith.constant 0 : index
    %c0_35 = arith.constant 0 : index
    %62 = vector.load %arg13[%c0_34, %c0_35] : memref<1x512xf32, #tpu.memory_space<vmem>>, vector<1x512xf32>
    %63 = vector.broadcast %62 : vector<1x512xf32> to vector<4x512xf32>
    %64 = arith.addf %61, %63 : vector<4x512xf32>
    %cst_36 = arith.constant 0.000000e+00 : f32
    %65 = vector.broadcast %cst_36 : f32 to vector<4x512xf32>
    %66 = arith.maximumf %64, %65 : vector<4x512xf32>
    %67 = arith.truncf %66 : vector<4x512xf32> to vector<4x512xbf16>
    %c0_37 = arith.constant 0 : index
    %c0_38 = arith.constant 0 : index
    %68 = vector.load %arg14[%c0_37, %c0_38] : memref<512x256xbf16, #tpu.memory_space<vmem>>, vector<512x256xbf16>
    %cst_39 = arith.constant dense<0.000000e+00> : vector<4x256xf32>
    %69 = tpu.matmul %67, %68, %cst_39 {dimension_numbers = #tpu.dot_dimension_numbers<[1], [0], [0], [1], [0, 0, 1, 1], [], []>} : vector<4x512xbf16>, vector<512x256xbf16>, vector<4x256xf32> -> vector<4x256xf32>
    %c0_40 = arith.constant 0 : index
    %c0_41 = arith.constant 0 : index
    %70 = vector.load %arg15[%c0_40, %c0_41] : memref<1x256xf32, #tpu.memory_space<vmem>>, vector<1x256xf32>
    %71 = vector.broadcast %70 : vector<1x256xf32> to vector<4x256xf32>
    %72 = arith.addf %69, %71 : vector<4x256xf32>
    %cst_42 = arith.constant 0.000000e+00 : f32
    %73 = vector.broadcast %cst_42 : f32 to vector<4x256xf32>
    %74 = arith.maximumf %72, %73 : vector<4x256xf32>
    %75 = arith.truncf %74 : vector<4x256xf32> to vector<4x256xbf16>
    %c0_43 = arith.constant 0 : index
    %c0_44 = arith.constant 0 : index
    %76 = vector.load %arg16[%c0_43, %c0_44] : memref<256x3xbf16, #tpu.memory_space<vmem>>, vector<256x3xbf16>
    %cst_45 = arith.constant dense<0.000000e+00> : vector<4x3xf32>
    %77 = tpu.matmul %75, %76, %cst_45 {dimension_numbers = #tpu.dot_dimension_numbers<[1], [0], [0], [1], [0, 0, 1, 1], [], []>} : vector<4x256xbf16>, vector<256x3xbf16>, vector<4x3xf32> -> vector<4x3xf32>
    %c0_46 = arith.constant 0 : index
    %c0_47 = arith.constant 0 : index
    %78 = vector.load %arg17[%c0_46, %c0_47] : memref<1x3xf32, #tpu.memory_space<vmem>>, vector<1x3xf32>
    %79 = vector.broadcast %78 : vector<1x3xf32> to vector<4x3xf32>
    %80 = arith.addf %77, %79 : vector<4x3xf32>
    %81 = math.tanh %80 : vector<4x3xf32>
    %82 = vector.shape_cast %81 : vector<4x3xf32> to vector<1x4x3xf32>
    %c0_48 = arith.constant 0 : index
    %c0_49 = arith.constant 0 : index
    %c0_50 = arith.constant 0 : index
    %83 = vector.load %arg18[%c0_48, %c0_49, %c0_50] : memref<1x4x3xf32, #tpu.memory_space<vmem>>, vector<1x4x3xf32>
    tpu.vector_store %arg18[%c0_48, %c0_49, %c0_50], %82 {strides = array<i32>} : memref<1x4x3xf32, #tpu.memory_space<vmem>>, vector<1x4x3xf32>,
    return
  }
  func.func @transform_0(%arg0: i32) -> (i32, i32, i32) {
    %c0_i32 = arith.constant 0 : i32
    %c0_i32_0 = arith.constant 0 : i32
    %c0_i32_1 = arith.constant 0 : i32
    return %arg0, %c0_i32, %c0_i32_0 : i32, i32, i32
  }
  func.func @transform_1(%arg0: i32) -> (i32, i32) {
    %c0_i32 = arith.constant 0 : i32
    %c0_i32_0 = arith.constant 0 : i32
    %c0_i32_1 = arith.constant 0 : i32
    return %c0_i32, %c0_i32_0 : i32, i32
  }
  func.func @transform_2(%arg0: i32) -> (i32, i32) {
    %c0_i32 = arith.constant 0 : i32
    %c0_i32_0 = arith.constant 0 : i32
    %c0_i32_1 = arith.constant 0 : i32
    return %c0_i32, %c0_i32_0 : i32, i32
  }
  func.func @transform_3(%arg0: i32) -> (i32, i32) {
    %c0_i32 = arith.constant 0 : i32
    %c0_i32_0 = arith.constant 0 : i32
    %c0_i32_1 = arith.constant 0 : i32
    return %c0_i32, %c0_i32_0 : i32, i32
  }
  func.func @transform_4(%arg0: i32) -> (i32, i32) {
    %c0_i32 = arith.constant 0 : i32
    %c0_i32_0 = arith.constant 0 : i32
    %c0_i32_1 = arith.constant 0 : i32
    return %c0_i32, %c0_i32_0 : i32, i32
  }
  func.func @transform_5(%arg0: i32) -> (i32, i32) {
    %c0_i32 = arith.constant 0 : i32
    %c0_i32_0 = arith.constant 0 : i32
    %c0_i32_1 = arith.constant 0 : i32
    return %c0_i32, %c0_i32_0 : i32, i32
  }
  func.func @transform_6(%arg0: i32) -> (i32, i32) {
    %c0_i32 = arith.constant 0 : i32
    %c0_i32_0 = arith.constant 0 : i32
    %c0_i32_1 = arith.constant 0 : i32
    return %c0_i32, %c0_i32_0 : i32, i32
  }
  func.func @transform_7(%arg0: i32) -> (i32, i32) {
    %c0_i32 = arith.constant 0 : i32
    %c0_i32_0 = arith.constant 0 : i32
    %c0_i32_1 = arith.constant 0 : i32
    return %c0_i32, %c0_i32_0 : i32, i32
  }
  func.func @transform_8(%arg0: i32) -> (i32, i32) {
    %c0_i32 = arith.constant 0 : i32
    %c0_i32_0 = arith.constant 0 : i32
    %c0_i32_1 = arith.constant 0 : i32
    return %c0_i32, %c0_i32_0 : i32, i32
  }
  func.func @transform_9(%arg0: i32) -> (i32, i32) {
    %c0_i32 = arith.constant 0 : i32
    %c0_i32_0 = arith.constant 0 : i32
    %c0_i32_1 = arith.constant 0 : i32
    return %c0_i32, %c0_i32_0 : i32, i32
  }
  func.func @transform_10(%arg0: i32) -> (i32, i32) {
    %c0_i32 = arith.constant 0 : i32
    %c0_i32_0 = arith.constant 0 : i32
    %c0_i32_1 = arith.constant 0 : i32
    return %c0_i32, %c0_i32_0 : i32, i32
  }
  func.func @transform_11(%arg0: i32) -> (i32, i32) {
    %c0_i32 = arith.constant 0 : i32
    %c0_i32_0 = arith.constant 0 : i32
    %c0_i32_1 = arith.constant 0 : i32
    return %c0_i32, %c0_i32_0 : i32, i32
  }
  func.func @transform_12(%arg0: i32) -> (i32, i32) {
    %c0_i32 = arith.constant 0 : i32
    %c0_i32_0 = arith.constant 0 : i32
    %c0_i32_1 = arith.constant 0 : i32
    return %c0_i32, %c0_i32_0 : i32, i32
  }
  func.func @transform_13(%arg0: i32) -> (i32, i32) {
    %c0_i32 = arith.constant 0 : i32
    %c0_i32_0 = arith.constant 0 : i32
    %c0_i32_1 = arith.constant 0 : i32
    return %c0_i32, %c0_i32_0 : i32, i32
  }
  func.func @transform_14(%arg0: i32) -> (i32, i32) {
    %c0_i32 = arith.constant 0 : i32
    %c0_i32_0 = arith.constant 0 : i32
    %c0_i32_1 = arith.constant 0 : i32
    return %c0_i32, %c0_i32_0 : i32, i32
  }
  func.func @transform_15(%arg0: i32) -> (i32, i32) {
    %c0_i32 = arith.constant 0 : i32
    %c0_i32_0 = arith.constant 0 : i32
    %c0_i32_1 = arith.constant 0 : i32
    return %c0_i32, %c0_i32_0 : i32, i32
  }
  func.func @transform_16(%arg0: i32) -> (i32, i32) {
    %c0_i32 = arith.constant 0 : i32
    %c0_i32_0 = arith.constant 0 : i32
    %c0_i32_1 = arith.constant 0 : i32
    return %c0_i32, %c0_i32_0 : i32, i32
  }
  func.func @transform_17(%arg0: i32) -> (i32, i32, i32) {
    %c0_i32 = arith.constant 0 : i32
    %c0_i32_0 = arith.constant 0 : i32
    %c0_i32_1 = arith.constant 0 : i32
    return %arg0, %c0_i32, %c0_i32_0 : i32, i32, i32
  }
}

</mosaic_0001>

<llo_original>
// kernel: pointfilter_forward.1
$region0: #{pointfilter_forward.1}
  #allocation0 [shape = 'u32[]', space=smem, size = 0x4, offset = 0x4, fixed_abs, tag = 'smem constant byte address 0x4 - core index']
  #allocation1 [shape = 'u32[144,128]{1,0:T(1,128)}', space=vmem, size = 0x12000, scoped, tag = 'internal scratch']
  %s0 = inlined_call_operand.vmem [shape: f32[8,64,3], index: 0, kind: input, shape index: {}]
  %s1 = inlined_call_operand.hbm [shape: f32[3,64], index: 1, kind: input, shape index: {}]
  %s2 = inlined_call_operand.hbm [shape: f32[1,64], index: 2, kind: input, shape index: {}]
  %s3 = inlined_call_operand.vmem [shape: bf16[64,128], index: 3, kind: input, shape index: {}]
  %s4 = inlined_call_operand.hbm [shape: f32[1,128], index: 4, kind: input, shape index: {}]
  %s5 = inlined_call_operand.vmem [shape: bf16[128,256], index: 5, kind: input, shape index: {}]
  %s6 = inlined_call_operand.hbm [shape: f32[1,256], index: 6, kind: input, shape index: {}]
  %s7 = inlined_call_operand.vmem [shape: bf16[256,512], index: 7, kind: input, shape index: {}]
  %s8 = inlined_call_operand.hbm [shape: f32[1,512], index: 8, kind: input, shape index: {}]
  %s9 = inlined_call_operand.hbm [shape: bf16[512,1024], index: 9, kind: input, shape index: {}]
  %s10 = inlined_call_operand.vmem [shape: f32[1,1024], index: 10, kind: input, shape index: {}]
  %s11 = inlined_call_operand.hbm [shape: bf16[1024,512], index: 11, kind: input, shape index: {}]
  %s12 = inlined_call_operand.vmem [shape: f32[1,512], index: 12, kind: input, shape index: {}]
  %s13 = inlined_call_operand.hbm [shape: bf16[512,256], index: 13, kind: input, shape index: {}]
  %s14 = inlined_call_operand.hbm [shape: f32[1,256], index: 14, kind: input, shape index: {}]
  %s15 = inlined_call_operand.vmem [shape: bf16[256,3], index: 15, kind: input, shape index: {}]
  %s16 = inlined_call_operand.vmem [shape: f32[1,3], index: 16, kind: input, shape index: {}]
  %s17 = inlined_call_operand.vmem [shape: f32[2,4,3], index: 17, kind: output, shape index: {}]
  %s18 = sld [smem:[#allocation0]]
  $region137: #{pointfilter_forward.1} parent=0
    _
  %s20 = ssub.s32 1, %s18
  %s21 = scalar_select 0, %s20, %s18
  $region1: #{pointfilter_forward.1} parent=0
    #allocation2 [shape = 'u8[2048]{0}', space=vmem, size = 0x800, scoped, tag = 'input window, operand 1, single buffered']
    #allocation3 [shape = 's32[2]{0}', space=sflag, size = 0x8, scoped, tag = 'scoped memory for pointfilter_forward.1']
    #allocation4 [shape = 'u8[512]{0}', space=vmem, size = 0x400, scoped, tag = 'input window, operand 2, single buffered']
    #allocation5 [shape = 's32[1]{0}', space=sflag, size = 0x4, scoped, tag = 'scoped memory for pointfilter_forward.1']
    #allocation6 [shape = 'u8[512]{0}', space=vmem, size = 0x400, scoped, tag = 'input window, operand 4, single buffered']
    #allocation7 [shape = 'u8[1024]{0}', space=vmem, size = 0x400, scoped, tag = 'input window, operand 6, single buffered']
    #allocation8 [shape = 's32[1]{0}', space=sflag, size = 0x4, scoped, tag = 'scoped memory for pointfilter_forward.1']
    #allocation9 [shape = 'u8[2048]{0}', space=vmem, size = 0x800, scoped, tag = 'input window, operand 8, single buffered']
    #allocation10 [shape = 'u8[1048576]{0}', space=vmem, size = 0x100000, scoped, tag = 'input window, operand 9, single buffered']
    #allocation11 [shape = 's32[1]{0}', space=sflag, size = 0x4, scoped, tag = 'scoped memory for pointfilter_forward.1']
    #allocation12 [shape = 'u8[1048576]{0}', space=vmem, size = 0x100000, scoped, tag = 'input window, operand 11, single buffered']
    #allocation13 [shape = 'u8[262144]{0}', space=vmem, size = 0x40000, scoped, tag = 'input window, operand 13, single buffered']
    #allocation14 [shape = 's32[1]{0}', space=sflag, size = 0x4, scoped, tag = 'scoped memory for pointfilter_forward.1']
    #allocation15 [shape = 'u8[1024]{0}', space=vmem, size = 0x400, scoped, tag = 'input window, operand 14, single buffered']
    %22 = vsyncpa [#allocation3], 0
    %23 = vsyncpa [#allocation5], 0
    %24 = vsyncpa [#allocation8], 0
    %25 = vsyncpa [#allocation11], 0
    %26 = vsyncpa [#allocation14], 0
    loop: start=0, step=1, limit=4
    $region2: #{pointfilter_forward.1} parent=1 // loop_pre_header
      _
    $region3: #{pointfilter_forward.1} parent=1 // loop_header
      %s28 = sphi 0, %s32
      %p29 = scmp.ge.s32.totalorder %s28, 4
      %s38 = sphi 0, %s40
      %s41 = sphi 0, %s38
      %s42 = sphi 0, %s41
      %s58 = sphi 0, %s42
      %s62 = sphi 0, %s62
      %s64 = sphi 0, %s62
      %s65 = sphi 0, %s64
      %s79 = sphi 0, %s65
      %s83 = sphi 0, %s83
      %s85 = sphi 0, %s83
      %s86 = sphi 0, %s85
      %s100 = sphi 0, %s86
      %s104 = sphi 0, %s104
      %s106 = sphi 0, %s104
      %s107 = sphi 0, %s106
      %s121 = sphi 0, %s107
      %s125 = sphi 0, %s125
      %s127 = sphi 0, %s125
      %s128 = sphi 0, %s127
      %s142 = sphi 0, %s128
      %s146 = sphi 0, %s146
      %s148 = sphi 0, %s146
      %s149 = sphi 0, %s148
      %s163 = sphi 0, %s149
      %s167 = sphi 0, %s167
      %s169 = sphi 0, %s167
      %s170 = sphi 0, %s169
      %s184 = sphi 0, %s170
      %s188 = sphi 0, %s188
      %s190 = sphi 0, %s188
      %s191 = sphi 0, %s190
      %s205 = sphi 0, %s191
      %s209 = sphi 0, %s209
      %s211 = sphi 0, %s209
      %s212 = sphi 0, %s211
      %s226 = sphi 0, %s212
      %s230 = sphi 0, %s230
      %s232 = sphi 0, %s230
      %s233 = sphi 0, %s232
      %s247 = sphi 0, %s233
      %s251 = sphi 0, %s251
      %s253 = sphi 0, %s251
      %s254 = sphi 0, %s253
      %s268 = sphi 0, %s254
      %s272 = sphi 0, %s272
      %s274 = sphi 0, %s272
      %s275 = sphi 0, %s274
      %s289 = sphi 0, %s275
      %s293 = sphi 0, %s293
      %s295 = sphi 0, %s293
      %s296 = sphi 0, %s295
      %s310 = sphi 0, %s296
      %s314 = sphi 0, %s314
      %s316 = sphi 0, %s314
      %s317 = sphi 0, %s316
      %s331 = sphi 0, %s317
      %s335 = sphi 0, %s335
      %s337 = sphi 0, %s335
      %s338 = sphi 0, %s337
      %s352 = sphi 0, %s338
      %s356 = sphi 0, %s356
      %s358 = sphi 0, %s356
      %s359 = sphi 0, %s358
      %s373 = sphi 0, %s359
      %s377 = sphi 0, %s377
      %s379 = sphi 0, %s377
      %s380 = sphi 0, %s379
      %s394 = sphi 0, %s380
      %s400 = sphi 0, %s402
      %s403 = sphi 0, %s400
      %s404 = sphi 0, %s403
      %s420 = sphi 0, %s404
    $region4: #{pointfilter_forward.1} parent=1 // loop_header_branch
      %31 = sbr.rel (%p29) target = $region8
    $region5: #{pointfilter_forward.1} parent=1 // loop_body
      %s33 = ssub.s32 %s28, 1
      %s34 = ssub.s32 %s28, 2
      %s35 = sadd.s32 %s28, 1
      %s36 = ssub.s32 %s28, %s35
      %p37 = scmp.eq.s32.totalorder %s36, 0
      %s39 = sadd.s32 %s38, 1
      %s40 = scalar_select %p37, %s38, %s39
      %p43 = pneg %p37
      %p44 = scmp.eq.s32.totalorder %s28, 1
      %p45 = por %p43, %p44
      %p46 = scmp.ne.s32.totalorder %s38, %s41
      %p47 = scmp.eq.s32.totalorder %s28, 0
      %p48 = por %p46, %p47
      %p49 = scmp.ne.s32.totalorder %s38, %s41
      %p50 = scmp.eq.s32.totalorder %s33, 1
      %p51 = por %p49, %p50
      %p52 = scmp.ne.s32.totalorder %s41, %s42
      %p53 = scmp.eq.s32.totalorder %s33, 0
      %p54 = por %p52, %p53
      %p55 = scmp.ne.s32.totalorder %s41, %s42
      %p56 = scmp.eq.s32.totalorder %s34, 1
      %p57 = por %p55, %p56
      %p59 = scmp.ne.s32.totalorder %s42, %s58
      %p60 = scmp.eq.s32.totalorder %s34, 0
      %p61 = por %p59, %p60
      %s63 = sadd.s32 %s62, 1
      %p66 = scmp.eq.s32.totalorder %s28, 1
      %p67 = scmp.ne.s32.totalorder %s62, %s64
      %p68 = scmp.eq.s32.totalorder %s28, 0
      %p69 = por %p67, %p68
      %p70 = scmp.ne.s32.totalorder %s62, %s64
      %p71 = scmp.eq.s32.totalorder %s33, 1
      %p72 = por %p70, %p71
      %p73 = scmp.ne.s32.totalorder %s64, %s65
      %p74 = scmp.eq.s32.totalorder %s33, 0
      %p75 = por %p73, %p74
      %p76 = scmp.ne.s32.totalorder %s64, %s65
      %p77 = scmp.eq.s32.totalorder %s34, 1
      %p78 = por %p76, %p77
      %p80 = scmp.ne.s32.totalorder %s65, %s79
      %p81 = scmp.eq.s32.totalorder %s34, 0
      %p82 = por %p80, %p81
      %s84 = sadd.s32 %s83, 1
      %p87 = scmp.eq.s32.totalorder %s28, 1
      %p88 = scmp.ne.s32.totalorder %s83, %s85
      %p89 = scmp.eq.s32.totalorder %s28, 0
      %p90 = por %p88, %p89
      %p91 = scmp.ne.s32.totalorder %s83, %s85
      %p92 = scmp.eq.s32.totalorder %s33, 1
      %p93 = por %p91, %p92
      %p94 = scmp.ne.s32.totalorder %s85, %s86
      %p95 = scmp.eq.s32.totalorder %s33, 0
      %p96 = por %p94, %p95
      %p97 = scmp.ne.s32.totalorder %s85, %s86
      %p98 = scmp.eq.s32.totalorder %s34, 1
      %p99 = por %p97, %p98
      %p101 = scmp.ne.s32.totalorder %s86, %s100
      %p102 = scmp.eq.s32.totalorder %s34, 0
      %p103 = por %p101, %p102
      %s105 = sadd.s32 %s104, 1
      %p108 = scmp.eq.s32.totalorder %s28, 1
      %p109 = scmp.ne.s32.totalorder %s104, %s106
      %p110 = scmp.eq.s32.totalorder %s28, 0
      %p111 = por %p109, %p110
      %p112 = scmp.ne.s32.totalorder %s104, %s106
      %p113 = scmp.eq.s32.totalorder %s33, 1
      %p114 = por %p112, %p113
      %p115 = scmp.ne.s32.totalorder %s106, %s107
      %p116 = scmp.eq.s32.totalorder %s33, 0
      %p117 = por %p115, %p116
      %p118 = scmp.ne.s32.totalorder %s106, %s107
      %p119 = scmp.eq.s32.totalorder %s34, 1
      %p120 = por %p118, %p119
      %p122 = scmp.ne.s32.totalorder %s107, %s121
      %p123 = scmp.eq.s32.totalorder %s34, 0
      %p124 = por %p122, %p123
      %s126 = sadd.s32 %s125, 1
      %p129 = scmp.eq.s32.totalorder %s28, 1
      %p130 = scmp.ne.s32.totalorder %s125, %s127
      %p131 = scmp.eq.s32.totalorder %s28, 0
      %p132 = por %p130, %p131
      %p133 = scmp.ne.s32.totalorder %s125, %s127
      %p134 = scmp.eq.s32.totalorder %s33, 1
      %p135 = por %p133, %p134
      %p136 = scmp.ne.s32.totalorder %s127, %s128
      %p137 = scmp.eq.s32.totalorder %s33, 0
      %p138 = por %p136, %p137
      %p139 = scmp.ne.s32.totalorder %s127, %s128
      %p140 = scmp.eq.s32.totalorder %s34, 1
      %p141 = por %p139, %p140
      %p143 = scmp.ne.s32.totalorder %s128, %s142
      %p144 = scmp.eq.s32.totalorder %s34, 0
      %p145 = por %p143, %p144
      %s147 = sadd.s32 %s146, 1
      %p150 = scmp.eq.s32.totalorder %s28, 1
      %p151 = scmp.ne.s32.totalorder %s146, %s148
      %p152 = scmp.eq.s32.totalorder %s28, 0
      %p153 = por %p151, %p152
      %p154 = scmp.ne.s32.totalorder %s146, %s148
      %p155 = scmp.eq.s32.totalorder %s33, 1
      %p156 = por %p154, %p155
      %p157 = scmp.ne.s32.totalorder %s148, %s149
      %p158 = scmp.eq.s32.totalorder %s33, 0
      %p159 = por %p157, %p158
      %p160 = scmp.ne.s32.totalorder %s148, %s149
      %p161 = scmp.eq.s32.totalorder %s34, 1
      %p162 = por %p160, %p161
      %p164 = scmp.ne.s32.totalorder %s149, %s163
      %p165 = scmp.eq.s32.totalorder %s34, 0
      %p166 = por %p164, %p165
      %s168 = sadd.s32 %s167, 1
      %p171 = scmp.eq.s32.totalorder %s28, 1
      %p172 = scmp.ne.s32.totalorder %s167, %s169
      %p173 = scmp.eq.s32.totalorder %s28, 0
      %p174 = por %p172, %p173
      %p175 = scmp.ne.s32.totalorder %s167, %s169
      %p176 = scmp.eq.s32.totalorder %s33, 1
      %p177 = por %p175, %p176
      %p178 = scmp.ne.s32.totalorder %s169, %s170
      %p179 = scmp.eq.s32.totalorder %s33, 0
      %p180 = por %p178, %p179
      %p181 = scmp.ne.s32.totalorder %s169, %s170
      %p182 = scmp.eq.s32.totalorder %s34, 1
      %p183 = por %p181, %p182
      %p185 = scmp.ne.s32.totalorder %s170, %s184
      %p186 = scmp.eq.s32.totalorder %s34, 0
      %p187 = por %p185, %p186
      %s189 = sadd.s32 %s188, 1
      %p192 = scmp.eq.s32.totalorder %s28, 1
      %p193 = scmp.ne.s32.totalorder %s188, %s190
      %p194 = scmp.eq.s32.totalorder %s28, 0
      %p195 = por %p193, %p194
      %p196 = scmp.ne.s32.totalorder %s188, %s190
      %p197 = scmp.eq.s32.totalorder %s33, 1
      %p198 = por %p196, %p197
      %p199 = scmp.ne.s32.totalorder %s190, %s191
      %p200 = scmp.eq.s32.totalorder %s33, 0
      %p201 = por %p199, %p200
      %p202 = scmp.ne.s32.totalorder %s190, %s191
      %p203 = scmp.eq.s32.totalorder %s34, 1
      %p204 = por %p202, %p203
      %p206 = scmp.ne.s32.totalorder %s191, %s205
      %p207 = scmp.eq.s32.totalorder %s34, 0
      %p208 = por %p206, %p207
      %s210 = sadd.s32 %s209, 1
      %p213 = scmp.eq.s32.totalorder %s28, 1
      %p214 = scmp.ne.s32.totalorder %s209, %s211
      %p215 = scmp.eq.s32.totalorder %s28, 0
      %p216 = por %p214, %p215
      %p217 = scmp.ne.s32.totalorder %s209, %s211
      %p218 = scmp.eq.s32.totalorder %s33, 1
      %p219 = por %p217, %p218
      %p220 = scmp.ne.s32.totalorder %s211, %s212
      %p221 = scmp.eq.s32.totalorder %s33, 0
      %p222 = por %p220, %p221
      %p223 = scmp.ne.s32.totalorder %s211, %s212
      %p224 = scmp.eq.s32.totalorder %s34, 1
      %p225 = por %p223, %p224
      %p227 = scmp.ne.s32.totalorder %s212, %s226
      %p228 = scmp.eq.s32.totalorder %s34, 0
      %p229 = por %p227, %p228
      %s231 = sadd.s32 %s230, 1
      %p234 = scmp.eq.s32.totalorder %s28, 1
      %p235 = scmp.ne.s32.totalorder %s230, %s232
      %p236 = scmp.eq.s32.totalorder %s28, 0
      %p237 = por %p235, %p236
      %p238 = scmp.ne.s32.totalorder %s230, %s232
      %p239 = scmp.eq.s32.totalorder %s33, 1
      %p240 = por %p238, %p239
      %p241 = scmp.ne.s32.totalorder %s232, %s233
      %p242 = scmp.eq.s32.totalorder %s33, 0
      %p243 = por %p241, %p242
      %p244 = scmp.ne.s32.totalorder %s232, %s233
      %p245 = scmp.eq.s32.totalorder %s34, 1
      %p246 = por %p244, %p245
      %p248 = scmp.ne.s32.totalorder %s233, %s247
      %p249 = scmp.eq.s32.totalorder %s34, 0
      %p250 = por %p248, %p249
      %s252 = sadd.s32 %s251, 1
      %p255 = scmp.eq.s32.totalorder %s28, 1
      %p256 = scmp.ne.s32.totalorder %s251, %s253
      %p257 = scmp.eq.s32.totalorder %s28, 0
      %p258 = por %p256, %p257
      %p259 = scmp.ne.s32.totalorder %s251, %s253
      %p260 = scmp.eq.s32.totalorder %s33, 1
      %p261 = por %p259, %p260
      %p262 = scmp.ne.s32.totalorder %s253, %s254
      %p263 = scmp.eq.s32.totalorder %s33, 0
      %p264 = por %p262, %p263
      %p265 = scmp.ne.s32.totalorder %s253, %s254
      %p266 = scmp.eq.s32.totalorder %s34, 1
      %p267 = por %p265, %p266
      %p269 = scmp.ne.s32.totalorder %s254, %s268
      %p270 = scmp.eq.s32.totalorder %s34, 0
      %p271 = por %p269, %p270
      %s273 = sadd.s32 %s272, 1
      %p276 = scmp.eq.s32.totalorder %s28, 1
      %p277 = scmp.ne.s32.totalorder %s272, %s274
      %p278 = scmp.eq.s32.totalorder %s28, 0
      %p279 = por %p277, %p278
      %p280 = scmp.ne.s32.totalorder %s272, %s274
      %p281 = scmp.eq.s32.totalorder %s33, 1
      %p282 = por %p280, %p281
      %p283 = scmp.ne.s32.totalorder %s274, %s275
      %p284 = scmp.eq.s32.totalorder %s33, 0
      %p285 = por %p283, %p284
      %p286 = scmp.ne.s32.totalorder %s274, %s275
      %p287 = scmp.eq.s32.totalorder %s34, 1
      %p288 = por %p286, %p287
      %p290 = scmp.ne.s32.totalorder %s275, %s289
      %p291 = scmp.eq.s32.totalorder %s34, 0
      %p292 = por %p290, %p291
      %s294 = sadd.s32 %s293, 1
      %p297 = scmp.eq.s32.totalorder %s28, 1
      %p298 = scmp.ne.s32.totalorder %s293, %s295
      %p299 = scmp.eq.s32.totalorder %s28, 0
      %p300 = por %p298, %p299
      %p301 = scmp.ne.s32.totalorder %s293, %s295
      %p302 = scmp.eq.s32.totalorder %s33, 1
      %p303 = por %p301, %p302
      %p304 = scmp.ne.s32.totalorder %s295, %s296
      %p305 = scmp.eq.s32.totalorder %s33, 0
      %p306 = por %p304, %p305
      %p307 = scmp.ne.s32.totalorder %s295, %s296
      %p308 = scmp.eq.s32.totalorder %s34, 1
      %p309 = por %p307, %p308
      %p311 = scmp.ne.s32.totalorder %s296, %s310
      %p312 = scmp.eq.s32.totalorder %s34, 0
      %p313 = por %p311, %p312
      %s315 = sadd.s32 %s314, 1
      %p318 = scmp.eq.s32.totalorder %s28, 1
      %p319 = scmp.ne.s32.totalorder %s314, %s316
      %p320 = scmp.eq.s32.totalorder %s28, 0
      %p321 = por %p319, %p320
      %p322 = scmp.ne.s32.totalorder %s314, %s316
      %p323 = scmp.eq.s32.totalorder %s33, 1
      %p324 = por %p322, %p323
      %p325 = scmp.ne.s32.totalorder %s316, %s317
      %p326 = scmp.eq.s32.totalorder %s33, 0
      %p327 = por %p325, %p326
      %p328 = scmp.ne.s32.totalorder %s316, %s317
      %p329 = scmp.eq.s32.totalorder %s34, 1
      %p330 = por %p328, %p329
      %p332 = scmp.ne.s32.totalorder %s317, %s331
      %p333 = scmp.eq.s32.totalorder %s34, 0
      %p334 = por %p332, %p333
      %s336 = sadd.s32 %s335, 1
      %p339 = scmp.eq.s32.totalorder %s28, 1
      %p340 = scmp.ne.s32.totalorder %s335, %s337
      %p341 = scmp.eq.s32.totalorder %s28, 0
      %p342 = por %p340, %p341
      %p343 = scmp.ne.s32.totalorder %s335, %s337
      %p344 = scmp.eq.s32.totalorder %s33, 1
      %p345 = por %p343, %p344
      %p346 = scmp.ne.s32.totalorder %s337, %s338
      %p347 = scmp.eq.s32.totalorder %s33, 0
      %p348 = por %p346, %p347
      %p349 = scmp.ne.s32.totalorder %s337, %s338
      %p350 = scmp.eq.s32.totalorder %s34, 1
      %p351 = por %p349, %p350
      %p353 = scmp.ne.s32.totalorder %s338, %s352
      %p354 = scmp.eq.s32.totalorder %s34, 0
      %p355 = por %p353, %p354
      %s357 = sadd.s32 %s356, 1
      %p360 = scmp.eq.s32.totalorder %s28, 1
      %p361 = scmp.ne.s32.totalorder %s356, %s358
      %p362 = scmp.eq.s32.totalorder %s28, 0
      %p363 = por %p361, %p362
      %p364 = scmp.ne.s32.totalorder %s356, %s358
      %p365 = scmp.eq.s32.totalorder %s33, 1
      %p366 = por %p364, %p365
      %p367 = scmp.ne.s32.totalorder %s358, %s359
      %p368 = scmp.eq.s32.totalorder %s33, 0
      %p369 = por %p367, %p368
      %p370 = scmp.ne.s32.totalorder %s358, %s359
      %p371 = scmp.eq.s32.totalorder %s34, 1
      %p372 = por %p370, %p371
      %p374 = scmp.ne.s32.totalorder %s359, %s373
      %p375 = scmp.eq.s32.totalorder %s34, 0
      %p376 = por %p374, %p375
      %s378 = sadd.s32 %s377, 1
      %p381 = scmp.eq.s32.totalorder %s28, 1
      %p382 = scmp.ne.s32.totalorder %s377, %s379
      %p383 = scmp.eq.s32.totalorder %s28, 0
      %p384 = por %p382, %p383
      %p385 = scmp.ne.s32.totalorder %s377, %s379
      %p386 = scmp.eq.s32.totalorder %s33, 1
      %p387 = por %p385, %p386
      %p388 = scmp.ne.s32.totalorder %s379, %s380
      %p389 = scmp.eq.s32.totalorder %s33, 0
      %p390 = por %p388, %p389
      %p391 = scmp.ne.s32.totalorder %s379, %s380
      %p392 = scmp.eq.s32.totalorder %s34, 1
      %p393 = por %p391, %p392
      %p395 = scmp.ne.s32.totalorder %s380, %s394
      %p396 = scmp.eq.s32.totalorder %s34, 0
      %p397 = por %p395, %p396
      %s398 = ssub.s32 %s28, %s35
      %p399 = scmp.eq.s32.totalorder %s398, 0
      %s401 = sadd.s32 %s400, 1
      %s402 = scalar_select %p399, %s400, %s401
      %p405 = pneg %p399
      %p406 = scmp.eq.s32.totalorder %s28, 1
      %p407 = por %p405, %p406
      %p408 = scmp.ne.s32.totalorder %s400, %s403
      %p409 = scmp.eq.s32.totalorder %s28, 0
      %p410 = por %p408, %p409
      %p411 = scmp.ne.s32.totalorder %s400, %s403
      %p412 = scmp.eq.s32.totalorder %s33, 1
      %p413 = por %p411, %p412
      %p414 = scmp.ne.s32.totalorder %s403, %s404
      %p415 = scmp.eq.s32.totalorder %s33, 0
      %p416 = por %p414, %p415
      %p417 = scmp.ne.s32.totalorder %s403, %s404
      %p418 = scmp.eq.s32.totalorder %s34, 1
      %p419 = por %p417, %p418
      %p421 = scmp.ne.s32.totalorder %s404, %s420
      %p422 = scmp.eq.s32.totalorder %s34, 0
      %p423 = por %p421, %p422
      %p424 = scmp.le.s32.totalorder 1, %s28
      %p425 = scmp.lt.s32.totalorder %s28, 3
      %p426 = pnand %p424, %p425
      %p427 = pneg %p426
      // Predicated region
      $region9: #{pointfilter_forward.1} parent=5 // pred_check
        _
      $region10: #{pointfilter_forward.1} parent=5 // pred_check_branch
        %429 = sbr.rel (%p426) target = $region12
      $region11: #{pointfilter_forward.1} parent=5 // pred_region
        %s430 = ssub.s32 %s28, 1
        // Predicated region
        $region13: #{pointfilter_forward.1} parent=11 // pred_check
          %p431 = pneg %p75
        $region14: #{pointfilter_forward.1} parent=11 // pred_check_branch
          %433 = sbr.rel (%p431) target = $region16
        $region15: #{pointfilter_forward.1} parent=11 // pred_region
          %s435 = ssub.s32 64, 64
          %436 = vsyncadd [#allocation3], %s435
          %s438 = sshll.u32 [#allocation2], 4
          %s439 = int_to_ptr.vmem [resolvable:$true] %s438
          %441 = dma.hbm_to_vmem [thread:$0]  %s1, 64, %s439, [#allocation3]
        $region16: #{pointfilter_forward.1} parent=11 // pred_fallthru
          _
        // Predicated region
        $region17: #{pointfilter_forward.1} parent=11 // pred_check
          %p442 = pneg %p96
        $region18: #{pointfilter_forward.1} parent=11 // pred_check_branch
          %444 = sbr.rel (%p442) target = $region20
        $region19: #{pointfilter_forward.1} parent=11 // pred_region
          %s446 = ssub.s32 16, 16
          %447 = vsyncadd [#allocation5], %s446
          %s449 = sshll.u32 [#allocation4], 4
          %s450 = int_to_ptr.vmem [resolvable:$true] %s449
          %452 = dma.hbm_to_vmem [thread:$0]  %s2, 16, %s450, [#allocation5]
        $region20: #{pointfilter_forward.1} parent=11 // pred_fallthru
          _
        // Predicated region
        $region21: #{pointfilter_forward.1} parent=11 // pred_check
          %p453 = pneg %p117
        $region22: #{pointfilter_forward.1} parent=11 // pred_check_branch
          %455 = sbr.rel (%p453) target = $region24
        $region23: #{pointfilter_forward.1} parent=11 // pred_region
          _
        $region24: #{pointfilter_forward.1} parent=11 // pred_fallthru
          _
        // Predicated region
        $region25: #{pointfilter_forward.1} parent=11 // pred_check
          %p456 = pneg %p138
        $region26: #{pointfilter_forward.1} parent=11 // pred_check_branch
          %458 = sbr.rel (%p456) target = $region28
        $region27: #{pointfilter_forward.1} parent=11 // pred_region
          %s460 = ssub.s32 16, 16
          %461 = vsyncadd [#allocation5], %s460
          %s463 = sshll.u32 [#allocation6], 4
          %s464 = int_to_ptr.vmem [resolvable:$true] %s463
          %466 = dma.hbm_to_vmem [thread:$0]  %s4, 16, %s464, [#allocation5]
        $region28: #{pointfilter_forward.1} parent=11 // pred_fallthru
          _
        // Predicated region
        $region29: #{pointfilter_forward.1} parent=11 // pred_check
          %p467 = pneg %p159
        $region30: #{pointfilter_forward.1} parent=11 // pred_check_branch
          %469 = sbr.rel (%p467) target = $region32
        $region31: #{pointfilter_forward.1} parent=11 // pred_region
          _
        $region32: #{pointfilter_forward.1} parent=11 // pred_fallthru
          _
        // Predicated region
        $region33: #{pointfilter_forward.1} parent=11 // pred_check
          %p470 = pneg %p180
        $region34: #{pointfilter_forward.1} parent=11 // pred_check_branch
          %472 = sbr.rel (%p470) target = $region36
        $region35: #{pointfilter_forward.1} parent=11 // pred_region
          %s474 = ssub.s32 32, 32
          %475 = vsyncadd [#allocation8], %s474
          %s477 = sshll.u32 [#allocation7], 4
          %s478 = int_to_ptr.vmem [resolvable:$true] %s477
          %480 = dma.hbm_to_vmem [thread:$0]  %s6, 32, %s478, [#allocation8]
        $region36: #{pointfilter_forward.1} parent=11 // pred_fallthru
          _
        // Predicated region
        $region37: #{pointfilter_forward.1} parent=11 // pred_check
          %p481 = pneg %p201
        $region38: #{pointfilter_forward.1} parent=11 // pred_check_branch
          %483 = sbr.rel (%p481) target = $region40
        $region39: #{pointfilter_forward.1} parent=11 // pred_region
          _
        $region40: #{pointfilter_forward.1} parent=11 // pred_fallthru
          _
        // Predicated region
        $region41: #{pointfilter_forward.1} parent=11 // pred_check
          %p484 = pneg %p222
        $region42: #{pointfilter_forward.1} parent=11 // pred_check_branch
          %486 = sbr.rel (%p484) target = $region44
        $region43: #{pointfilter_forward.1} parent=11 // pred_region
          %s488 = ssub.s32 64, 64
          %489 = vsyncadd [#allocation8], %s488
          %s491 = sshll.u32 [#allocation9], 4
          %s492 = int_to_ptr.vmem [resolvable:$true] %s491
          %494 = dma.hbm_to_vmem [thread:$0]  %s8, 64, %s492, [#allocation8]
        $region44: #{pointfilter_forward.1} parent=11 // pred_fallthru
          _
        // Predicated region
        $region45: #{pointfilter_forward.1} parent=11 // pred_check
          %p495 = pneg %p243
        $region46: #{pointfilter_forward.1} parent=11 // pred_check_branch
          %497 = sbr.rel (%p495) target = $region48
        $region47: #{pointfilter_forward.1} parent=11 // pred_region
          %s499 = ssub.s32 32768, 32768
          %500 = vsyncadd [#allocation11], %s499
          %s501 = sshll.u32 [#allocation10], 4
          %s502 = int_to_ptr.vmem [resolvable:$true] %s501
          %507 = dma.hbm_to_vmem [thread:$0]  %s9, 32768, %s502, [#allocation11], 512, 512, 32
        $region48: #{pointfilter_forward.1} parent=11 // pred_fallthru
          _
        // Predicated region
        $region49: #{pointfilter_forward.1} parent=11 // pred_check
          %p508 = pneg %p264
        $region50: #{pointfilter_forward.1} parent=11 // pred_check_branch
          %510 = sbr.rel (%p508) target = $region52
        $region51: #{pointfilter_forward.1} parent=11 // pred_region
          _
        $region52: #{pointfilter_forward.1} parent=11 // pred_fallthru
          _
        // Predicated region
        $region53: #{pointfilter_forward.1} parent=11 // pred_check
          %p511 = pneg %p285
        $region54: #{pointfilter_forward.1} parent=11 // pred_check_branch
          %513 = sbr.rel (%p511) target = $region56
        $region55: #{pointfilter_forward.1} parent=11 // pred_region
          %s515 = ssub.s32 32768, 32768
          %516 = vsyncadd [#allocation11], %s515
          %s517 = sshll.u32 [#allocation12], 4
          %s518 = int_to_ptr.vmem [resolvable:$true] %s517
          %523 = dma.hbm_to_vmem [thread:$0]  %s11, 32768, %s518, [#allocation11], 256, 256, 16
        $region56: #{pointfilter_forward.1} parent=11 // pred_fallthru
          _
        // Predicated region
        $region57: #{pointfilter_forward.1} parent=11 // pred_check
          %p524 = pneg %p306
        $region58: #{pointfilter_forward.1} parent=11 // pred_check_branch
          %526 = sbr.rel (%p524) target = $region60
        $region59: #{pointfilter_forward.1} parent=11 // pred_region
          _
        $region60: #{pointfilter_forward.1} parent=11 // pred_fallthru
          _
        // Predicated region
        $region61: #{pointfilter_forward.1} parent=11 // pred_check
          %p527 = pneg %p327
        $region62: #{pointfilter_forward.1} parent=11 // pred_check_branch
          %529 = sbr.rel (%p527) target = $region64
        $region63: #{pointfilter_forward.1} parent=11 // pred_region
          %s531 = ssub.s32 8192, 8192
          %532 = vsyncadd [#allocation14], %s531
          %s533 = sshll.u32 [#allocation13], 4
          %s534 = int_to_ptr.vmem [resolvable:$true] %s533
          %539 = dma.hbm_to_vmem [thread:$0]  %s13, 8192, %s534, [#allocation14], 128, 128, 8
        $region64: #{pointfilter_forward.1} parent=11 // pred_fallthru
          _
        // Predicated region
        $region65: #{pointfilter_forward.1} parent=11 // pred_check
          %p540 = pneg %p348
        $region66: #{pointfilter_forward.1} parent=11 // pred_check_branch
          %542 = sbr.rel (%p540) target = $region68
        $region67: #{pointfilter_forward.1} parent=11 // pred_region
          %s544 = ssub.s32 32, 32
          %545 = vsyncadd [#allocation14], %s544
          %s547 = sshll.u32 [#allocation15], 4
          %s548 = int_to_ptr.vmem [resolvable:$true] %s547
          %550 = dma.hbm_to_vmem [thread:$0]  %s14, 32, %s548, [#allocation14]
        $region68: #{pointfilter_forward.1} parent=11 // pred_fallthru
          _
        // Predicated region
        $region69: #{pointfilter_forward.1} parent=11 // pred_check
          %p551 = pneg %p369
        $region70: #{pointfilter_forward.1} parent=11 // pred_check_branch
          %553 = sbr.rel (%p551) target = $region72
        $region71: #{pointfilter_forward.1} parent=11 // pred_region
          _
        $region72: #{pointfilter_forward.1} parent=11 // pred_fallthru
          _
        // Predicated region
        $region73: #{pointfilter_forward.1} parent=11 // pred_check
          %p554 = pneg %p390
        $region74: #{pointfilter_forward.1} parent=11 // pred_check_branch
          %556 = sbr.rel (%p554) target = $region76
        $region75: #{pointfilter_forward.1} parent=11 // pred_region
          _
        $region76: #{pointfilter_forward.1} parent=11 // pred_fallthru
          _
      $region12: #{pointfilter_forward.1} parent=5 // pred_fallthru
        _
      %p557 = scmp.lt.s32.totalorder %s28, 2
      // Predicated region
      $region77: #{pointfilter_forward.1} parent=5 // pred_check
        %p558 = pneg %p557
      $region78: #{pointfilter_forward.1} parent=5 // pred_check_branch
        %560 = sbr.rel (%p558) target = $region80
      $region79: #{pointfilter_forward.1} parent=5 // pred_region
        // Predicated region
        $region81: #{pointfilter_forward.1} parent=79 // pred_check
          %p561 = pneg %p48
        $region82: #{pointfilter_forward.1} parent=79 // pred_check_branch
          %563 = sbr.rel (%p561) target = $region84
        $region83: #{pointfilter_forward.1} parent=79 // pred_region
          %s564 = smul.u32 4, %s28
          %p565 = scmp.lt.s32.totalorder %s564, 7
          %s566 = scalar_select %p565, %s564, 7
          %s567 = smul.addr %s566, 8
          %s568 = smul.addr %s567, 8
          %s569 = scalar_lea.vmem %s0, %s568
          %s570 = smul.u32 4, %s28
        $region84: #{pointfilter_forward.1} parent=79 // pred_fallthru
          _
      $region80: #{pointfilter_forward.1} parent=5 // pred_fallthru
        _
      %p571 = scmp.le.s32.totalorder 1, %s28
      %p572 = scmp.lt.s32.totalorder %s28, 3
      %p573 = pnand %p571, %p572
      %p574 = pneg %p573
      // Predicated region
      $region85: #{pointfilter_forward.1} parent=5 // pred_check
        _
      $region86: #{pointfilter_forward.1} parent=5 // pred_check_branch
        %576 = sbr.rel (%p573) target = $region88
      $region87: #{pointfilter_forward.1} parent=5 // pred_region
        %s577 = ssub.s32 %s28, 1
        // Predicated region
        $region89: #{pointfilter_forward.1} parent=87 // pred_check
          %p578 = pneg %p75
        $region90: #{pointfilter_forward.1} parent=87 // pred_check_branch
          %580 = sbr.rel (%p578) target = $region92
        $region91: #{pointfilter_forward.1} parent=87 // pred_region
          %581 = dma.done [#allocation3], 64
        $region92: #{pointfilter_forward.1} parent=87 // pred_fallthru
          _
        // Predicated region
        $region93: #{pointfilter_forward.1} parent=87 // pred_check
          %p582 = pneg %p96
        $region94: #{pointfilter_forward.1} parent=87 // pred_check_branch
          %584 = sbr.rel (%p582) target = $region96
        $region95: #{pointfilter_forward.1} parent=87 // pred_region
          %585 = dma.done [#allocation5], 16
        $region96: #{pointfilter_forward.1} parent=87 // pred_fallthru
          _
        // Predicated region
        $region97: #{pointfilter_forward.1} parent=87 // pred_check
          %p586 = pneg %p138
        $region98: #{pointfilter_forward.1} parent=87 // pred_check_branch
          %588 = sbr.rel (%p586) target = $region100
        $region99: #{pointfilter_forward.1} parent=87 // pred_region
          %589 = dma.done [#allocation5], 16
        $region100: #{pointfilter_forward.1} parent=87 // pred_fallthru
          _
        // Predicated region
        $region101: #{pointfilter_forward.1} parent=87 // pred_check
          %p590 = pneg %p180
        $region102: #{pointfilter_forward.1} parent=87 // pred_check_branch
          %592 = sbr.rel (%p590) target = $region104
        $region103: #{pointfilter_forward.1} parent=87 // pred_region
          %593 = dma.done [#allocation8], 32
        $region104: #{pointfilter_forward.1} parent=87 // pred_fallthru
          _
        // Predicated region
        $region105: #{pointfilter_forward.1} parent=87 // pred_check
          %p594 = pneg %p222
        $region106: #{pointfilter_forward.1} parent=87 // pred_check_branch
          %596 = sbr.rel (%p594) target = $region108
        $region107: #{pointfilter_forward.1} parent=87 // pred_region
          %597 = dma.done [#allocation8], 64
        $region108: #{pointfilter_forward.1} parent=87 // pred_fallthru
          _
        // Predicated region
        $region109: #{pointfilter_forward.1} parent=87 // pred_check
          %p598 = pneg %p243
        $region110: #{pointfilter_forward.1} parent=87 // pred_check_branch
          %600 = sbr.rel (%p598) target = $region112
        $region111: #{pointfilter_forward.1} parent=87 // pred_region
          %601 = dma.done [#allocation11], 32768
        $region112: #{pointfilter_forward.1} parent=87 // pred_fallthru
          _
        // Predicated region
        $region113: #{pointfilter_forward.1} parent=87 // pred_check
          %p602 = pneg %p285
        $region114: #{pointfilter_forward.1} parent=87 // pred_check_branch
          %604 = sbr.rel (%p602) target = $region116
        $region115: #{pointfilter_forward.1} parent=87 // pred_region
          %605 = dma.done [#allocation11], 32768
        $region116: #{pointfilter_forward.1} parent=87 // pred_fallthru
          _
        // Predicated region
        $region117: #{pointfilter_forward.1} parent=87 // pred_check
          %p606 = pneg %p327
        $region118: #{pointfilter_forward.1} parent=87 // pred_check_branch
          %608 = sbr.rel (%p606) target = $region120
        $region119: #{pointfilter_forward.1} parent=87 // pred_region
          %609 = dma.done [#allocation14], 8192
        $region120: #{pointfilter_forward.1} parent=87 // pred_fallthru
          _
        // Predicated region
        $region121: #{pointfilter_forward.1} parent=87 // pred_check
          %p610 = pneg %p348
        $region122: #{pointfilter_forward.1} parent=87 // pred_check_branch
          %612 = sbr.rel (%p610) target = $region124
        $region123: #{pointfilter_forward.1} parent=87 // pred_region
          %613 = dma.done [#allocation14], 32
        $region124: #{pointfilter_forward.1} parent=87 // pred_fallthru
          _
        %s614 = smul.u32 4, %s33
        %p615 = scmp.lt.s32.totalorder %s614, 7
        %s616 = scalar_select %p615, %s614, 7
        %s617 = smul.addr %s616, 8
        %s618 = smul.addr %s617, 8
        %s619 = scalar_lea.vmem %s0, %s618
        %p620 = pneg %p54
        %p621 = pneg %p51
        %p622 = pneg %p75
        %p623 = pneg %p72
        %p624 = pneg %p96
        %p625 = pneg %p93
        %p626 = pneg %p117
        %p627 = pneg %p114
        %p628 = pneg %p138
        %p629 = pneg %p135
        %p630 = pneg %p159
        %p631 = pneg %p156
        %p632 = pneg %p180
        %p633 = pneg %p177
        %p634 = pneg %p201
        %p635 = pneg %p198
        %p636 = pneg %p222
        %p637 = pneg %p219
        %p638 = pneg %p243
        %p639 = pneg %p240
        %p640 = pneg %p264
        %p641 = pneg %p261
        %p642 = pneg %p285
        %p643 = pneg %p282
        %p644 = pneg %p306
        %p645 = pneg %p303
        %p646 = pneg %p327
        %p647 = pneg %p324
        %p648 = pneg %p348
        %p649 = pneg %p345
        %p650 = pneg %p369
        %p651 = pneg %p366
        %p652 = pneg %p390
        %p653 = pneg %p387
        %p654 = pneg %p416
        %p655 = pneg %p413
        %p656 = scmp.lt.s32.totalorder %s33, 1
        %s657 = scalar_select %p656, %s33, 1
        %s658 = smul.addr %s657, 4
        %s659 = scalar_lea.vmem %s17, %s658
        %s660 = smul.u32 4, %s33
        %p661 = scmp.lt.s32.totalorder %s660, 7
        %s662 = scalar_select %p661, %s660, 7
        %s663 = smul.addr %s662, 8
        %s664 = smul.addr %s663, 8
        %s665 = scalar_lea.vmem %s0, %s664
        %s666 = smul.u32 4, %s33
        %p667 = scmp.lt.s32.totalorder %s33, 1
        %s668 = scalar_select %p667, %s33, 1
        %s669 = smul.addr %s668, 4
        %s670 = scalar_lea.vmem %s17, %s669
        %v672 = vld [vmem:[%s665] sm:$0xff]
        %v673 = vld [vmem:[%s665 + $0x8] sm:$0xff]
        %v674 = vld [vmem:[%s665 + $0x10] sm:$0xff]
        %v675 = vld [vmem:[%s665 + $0x18] sm:$0xff]
        %v676 = vld [vmem:[%s665 + $0x20] sm:$0xff]
        %v677 = vld [vmem:[%s665 + $0x28] sm:$0xff]
        %v678 = vld [vmem:[%s665 + $0x30] sm:$0xff]
        %v679 = vld [vmem:[%s665 + $0x38] sm:$0xff]
        %v680 = vld [vmem:[%s665 + $0x40] sm:$0xff]
        %v681 = vld [vmem:[%s665 + $0x48] sm:$0xff]
        %v682 = vld [vmem:[%s665 + $0x50] sm:$0xff]
        %v683 = vld [vmem:[%s665 + $0x58] sm:$0xff]
        %v684 = vld [vmem:[%s665 + $0x60] sm:$0xff]
        %v685 = vld [vmem:[%s665 + $0x68] sm:$0xff]
        %v686 = vld [vmem:[%s665 + $0x70] sm:$0xff]
        %v687 = vld [vmem:[%s665 + $0x78] sm:$0xff]
        %v688 = vld [vmem:[%s665 + $0x80] sm:$0xff]
        %v689 = vld [vmem:[%s665 + $0x88] sm:$0xff]
        %v690 = vld [vmem:[%s665 + $0x90] sm:$0xff]
        %v691 = vld [vmem:[%s665 + $0x98] sm:$0xff]
        %v692 = vld [vmem:[%s665 + $0xa0] sm:$0xff]
        %v693 = vld [vmem:[%s665 + $0xa8] sm:$0xff]
        %v694 = vld [vmem:[%s665 + $0xb0] sm:$0xff]
        %v695 = vld [vmem:[%s665 + $0xb8] sm:$0xff]
        %v696 = vld [vmem:[%s665 + $0xc0] sm:$0xff]
        %v697 = vld [vmem:[%s665 + $0xc8] sm:$0xff]
        %v698 = vld [vmem:[%s665 + $0xd0] sm:$0xff]
        %v699 = vld [vmem:[%s665 + $0xd8] sm:$0xff]
        %v700 = vld [vmem:[%s665 + $0xe0] sm:$0xff]
        %v701 = vld [vmem:[%s665 + $0xe8] sm:$0xff]
        %v702 = vld [vmem:[%s665 + $0xf0] sm:$0xff]
        %v703 = vld [vmem:[%s665 + $0xf8] sm:$0xff]
        %v704 = vld [vmem:[#allocation2] sm:$0x7]
        %706 = vset.pattern.permute.xlu0 0
        %707 = vperm.xlu0 %706, %v672
        %v708 = vpop.permute.xlu0 %707
        %711 = vset.pattern.permute.xlu0 0
        %712 = vperm.xlu0 %711, %v673
        %v713 = vpop.permute.xlu0 %712
        %716 = vset.pattern.permute.xlu0 0
        %717 = vperm.xlu0 %716, %v674
        %v718 = vpop.permute.xlu0 %717
        %721 = vset.pattern.permute.xlu0 0
        %722 = vperm.xlu0 %721, %v675
        %v723 = vpop.permute.xlu0 %722
        %726 = vset.pattern.permute.xlu0 0
        %727 = vperm.xlu0 %726, %v676
        %v728 = vpop.permute.xlu0 %727
        %731 = vset.pattern.permute.xlu0 0
        %732 = vperm.xlu0 %731, %v677
        %v733 = vpop.permute.xlu0 %732
        %736 = vset.pattern.permute.xlu0 0
        %737 = vperm.xlu0 %736, %v678
        %v738 = vpop.permute.xlu0 %737
        %741 = vset.pattern.permute.xlu0 0
        %742 = vperm.xlu0 %741, %v679
        %v743 = vpop.permute.xlu0 %742
        %746 = vset.pattern.permute.xlu0 0
        %747 = vperm.xlu0 %746, %v680
        %v748 = vpop.permute.xlu0 %747
        %751 = vset.pattern.permute.xlu0 0
        %752 = vperm.xlu0 %751, %v681
        %v753 = vpop.permute.xlu0 %752
        %756 = vset.pattern.permute.xlu0 0
        %757 = vperm.xlu0 %756, %v682
        %v758 = vpop.permute.xlu0 %757
        %761 = vset.pattern.permute.xlu0 0
        %762 = vperm.xlu0 %761, %v683
        %v763 = vpop.permute.xlu0 %762
        %766 = vset.pattern.permute.xlu0 0
        %767 = vperm.xlu0 %766, %v684
        %v768 = vpop.permute.xlu0 %767
        %771 = vset.pattern.permute.xlu0 0
        %772 = vperm.xlu0 %771, %v685
        %v773 = vpop.permute.xlu0 %772
        %776 = vset.pattern.permute.xlu0 0
        %777 = vperm.xlu0 %776, %v686
        %v778 = vpop.permute.xlu0 %777
        %781 = vset.pattern.permute.xlu0 0
        %782 = vperm.xlu0 %781, %v687
        %v783 = vpop.permute.xlu0 %782
        %786 = vset.pattern.permute.xlu0 0
        %787 = vperm.xlu0 %786, %v688
        %v788 = vpop.permute.xlu0 %787
        %791 = vset.pattern.permute.xlu0 0
        %792 = vperm.xlu0 %791, %v689
        %v793 = vpop.permute.xlu0 %792
        %796 = vset.pattern.permute.xlu0 0
        %797 = vperm.xlu0 %796, %v690
        %v798 = vpop.permute.xlu0 %797
        %801 = vset.pattern.permute.xlu0 0
        %802 = vperm.xlu0 %801, %v691
        %v803 = vpop.permute.xlu0 %802
        %806 = vset.pattern.permute.xlu0 0
        %807 = vperm.xlu0 %806, %v692
        %v808 = vpop.permute.xlu0 %807
        %811 = vset.pattern.permute.xlu0 0
        %812 = vperm.xlu0 %811, %v693
        %v813 = vpop.permute.xlu0 %812
        %816 = vset.pattern.permute.xlu0 0
        %817 = vperm.xlu0 %816, %v694
        %v818 = vpop.permute.xlu0 %817
        %821 = vset.pattern.permute.xlu0 0
        %822 = vperm.xlu0 %821, %v695
        %v823 = vpop.permute.xlu0 %822
        %826 = vset.pattern.permute.xlu0 0
        %827 = vperm.xlu0 %826, %v696
        %v828 = vpop.permute.xlu0 %827
        %831 = vset.pattern.permute.xlu0 0
        %832 = vperm.xlu0 %831, %v697
        %v833 = vpop.permute.xlu0 %832
        %836 = vset.pattern.permute.xlu0 0
        %837 = vperm.xlu0 %836, %v698
        %v838 = vpop.permute.xlu0 %837
        %841 = vset.pattern.permute.xlu0 0
        %842 = vperm.xlu0 %841, %v699
        %v843 = vpop.permute.xlu0 %842
        %846 = vset.pattern.permute.xlu0 0
        %847 = vperm.xlu0 %846, %v700
        %v848 = vpop.permute.xlu0 %847
        %851 = vset.pattern.permute.xlu0 0
        %852 = vperm.xlu0 %851, %v701
        %v853 = vpop.permute.xlu0 %852
        %856 = vset.pattern.permute.xlu0 0
        %857 = vperm.xlu0 %856, %v702
        %v858 = vpop.permute.xlu0 %857
        %861 = vset.pattern.permute.xlu0 0
        %862 = vperm.xlu0 %861, %v703
        %v863 = vpop.permute.xlu0 %862
        %v865 = vlaneseq
        %v866 = vshrl.u32 %v865, 7
        %v867 = vsub.s32 0, %v866
        %v868 = vrot.slane %v704, %v867
        %v869 = vmul.f32 %v708, %v868
        %v870 = vmul.f32 %v713, %v868
        %v871 = vmul.f32 %v718, %v868
        %v872 = vmul.f32 %v723, %v868
        %v873 = vmul.f32 %v728, %v868
        %v874 = vmul.f32 %v733, %v868
        %v875 = vmul.f32 %v738, %v868
        %v876 = vmul.f32 %v743, %v868
        %v877 = vmul.f32 %v748, %v868
        %v878 = vmul.f32 %v753, %v868
        %v879 = vmul.f32 %v758, %v868
        %v880 = vmul.f32 %v763, %v868
        %v881 = vmul.f32 %v768, %v868
        %v882 = vmul.f32 %v773, %v868
        %v883 = vmul.f32 %v778, %v868
        %v884 = vmul.f32 %v783, %v868
        %v885 = vmul.f32 %v788, %v868
        %v886 = vmul.f32 %v793, %v868
        %v887 = vmul.f32 %v798, %v868
        %v888 = vmul.f32 %v803, %v868
        %v889 = vmul.f32 %v808, %v868
        %v890 = vmul.f32 %v813, %v868
        %v891 = vmul.f32 %v818, %v868
        %v892 = vmul.f32 %v823, %v868
        %v893 = vmul.f32 %v828, %v868
        %v894 = vmul.f32 %v833, %v868
        %v895 = vmul.f32 %v838, %v868
        %v896 = vmul.f32 %v843, %v868
        %v897 = vmul.f32 %v848, %v868
        %v898 = vmul.f32 %v853, %v868
        %v899 = vmul.f32 %v858, %v868
        %v900 = vmul.f32 %v863, %v868
        %901 = vset.pattern.permute.xlu0 1
        %902 = vperm.xlu0 %901, %v672
        %v903 = vpop.permute.xlu0 %902
        %905 = vset.pattern.permute.xlu0 1
        %906 = vperm.xlu0 %905, %v673
        %v907 = vpop.permute.xlu0 %906
        %909 = vset.pattern.permute.xlu0 1
        %910 = vperm.xlu0 %909, %v674
        %v911 = vpop.permute.xlu0 %910
        %913 = vset.pattern.permute.xlu0 1
        %914 = vperm.xlu0 %913, %v675
        %v915 = vpop.permute.xlu0 %914
        %917 = vset.pattern.permute.xlu0 1
        %918 = vperm.xlu0 %917, %v676
        %v919 = vpop.permute.xlu0 %918
        %921 = vset.pattern.permute.xlu0 1
        %922 = vperm.xlu0 %921, %v677
        %v923 = vpop.permute.xlu0 %922
        %925 = vset.pattern.permute.xlu0 1
        %926 = vperm.xlu0 %925, %v678
        %v927 = vpop.permute.xlu0 %926
        %929 = vset.pattern.permute.xlu0 1
        %930 = vperm.xlu0 %929, %v679
        %v931 = vpop.permute.xlu0 %930
        %933 = vset.pattern.permute.xlu0 1
        %934 = vperm.xlu0 %933, %v680
        %v935 = vpop.permute.xlu0 %934
        %937 = vset.pattern.permute.xlu0 1
        %938 = vperm.xlu0 %937, %v681
        %v939 = vpop.permute.xlu0 %938
        %941 = vset.pattern.permute.xlu0 1
        %942 = vperm.xlu0 %941, %v682
        %v943 = vpop.permute.xlu0 %942
        %945 = vset.pattern.permute.xlu0 1
        %946 = vperm.xlu0 %945, %v683
        %v947 = vpop.permute.xlu0 %946
        %949 = vset.pattern.permute.xlu0 1
        %950 = vperm.xlu0 %949, %v684
        %v951 = vpop.permute.xlu0 %950
        %953 = vset.pattern.permute.xlu0 1
        %954 = vperm.xlu0 %953, %v685
        %v955 = vpop.permute.xlu0 %954
        %957 = vset.pattern.permute.xlu0 1
        %958 = vperm.xlu0 %957, %v686
        %v959 = vpop.permute.xlu0 %958
        %961 = vset.pattern.permute.xlu0 1
        %962 = vperm.xlu0 %961, %v687
        %v963 = vpop.permute.xlu0 %962
        %965 = vset.pattern.permute.xlu0 1
        %966 = vperm.xlu0 %965, %v688
        %v967 = vpop.permute.xlu0 %966
        %969 = vset.pattern.permute.xlu0 1
        %970 = vperm.xlu0 %969, %v689
        %v971 = vpop.permute.xlu0 %970
        %973 = vset.pattern.permute.xlu0 1
        %974 = vperm.xlu0 %973, %v690
        %v975 = vpop.permute.xlu0 %974
        %977 = vset.pattern.permute.xlu0 1
        %978 = vperm.xlu0 %977, %v691
        %v979 = vpop.permute.xlu0 %978
        %981 = vset.pattern.permute.xlu0 1
        %982 = vperm.xlu0 %981, %v692
        %v983 = vpop.permute.xlu0 %982
        %985 = vset.pattern.permute.xlu0 1
        %986 = vperm.xlu0 %985, %v693
        %v987 = vpop.permute.xlu0 %986
        %989 = vset.pattern.permute.xlu0 1
        %990 = vperm.xlu0 %989, %v694
        %v991 = vpop.permute.xlu0 %990
        %993 = vset.pattern.permute.xlu0 1
        %994 = vperm.xlu0 %993, %v695
        %v995 = vpop.permute.xlu0 %994
        %997 = vset.pattern.permute.xlu0 1
        %998 = vperm.xlu0 %997, %v696
        %v999 = vpop.permute.xlu0 %998
        %1001 = vset.pattern.permute.xlu0 1
        %1002 = vperm.xlu0 %1001, %v697
        %v1003 = vpop.permute.xlu0 %1002
        %1005 = vset.pattern.permute.xlu0 1
        %1006 = vperm.xlu0 %1005, %v698
        %v1007 = vpop.permute.xlu0 %1006
        %1009 = vset.pattern.permute.xlu0 1
        %1010 = vperm.xlu0 %1009, %v699
        %v1011 = vpop.permute.xlu0 %1010
        %1013 = vset.pattern.permute.xlu0 1
        %1014 = vperm.xlu0 %1013, %v700
        %v1015 = vpop.permute.xlu0 %1014
        %1017 = vset.pattern.permute.xlu0 1
        %1018 = vperm.xlu0 %1017, %v701
        %v1019 = vpop.permute.xlu0 %1018
        %1021 = vset.pattern.permute.xlu0 1
        %1022 = vperm.xlu0 %1021, %v702
        %v1023 = vpop.permute.xlu0 %1022
        %1025 = vset.pattern.permute.xlu0 1
        %1026 = vperm.xlu0 %1025, %v703
        %v1027 = vpop.permute.xlu0 %1026
        %v1029 = vlaneseq
        %v1030 = vshrl.u32 %v1029, 7
        %v1031 = vsub.s32 1, %v1030
        %v1032 = vrot.slane %v704, %v1031
        %v1033 = vmul.f32 %v903, %v1032
        %v1034 = vmul.f32 %v907, %v1032
        %v1035 = vmul.f32 %v911, %v1032
        %v1036 = vmul.f32 %v915, %v1032
        %v1037 = vmul.f32 %v919, %v1032
        %v1038 = vmul.f32 %v923, %v1032
        %v1039 = vmul.f32 %v927, %v1032
        %v1040 = vmul.f32 %v931, %v1032
        %v1041 = vmul.f32 %v935, %v1032
        %v1042 = vmul.f32 %v939, %v1032
        %v1043 = vmul.f32 %v943, %v1032
        %v1044 = vmul.f32 %v947, %v1032
        %v1045 = vmul.f32 %v951, %v1032
        %v1046 = vmul.f32 %v955, %v1032
        %v1047 = vmul.f32 %v959, %v1032
        %v1048 = vmul.f32 %v963, %v1032
        %v1049 = vmul.f32 %v967, %v1032
        %v1050 = vmul.f32 %v971, %v1032
        %v1051 = vmul.f32 %v975, %v1032
        %v1052 = vmul.f32 %v979, %v1032
        %v1053 = vmul.f32 %v983, %v1032
        %v1054 = vmul.f32 %v987, %v1032
        %v1055 = vmul.f32 %v991, %v1032
        %v1056 = vmul.f32 %v995, %v1032
        %v1057 = vmul.f32 %v999, %v1032
        %v1058 = vmul.f32 %v1003, %v1032
        %v1059 = vmul.f32 %v1007, %v1032
        %v1060 = vmul.f32 %v1011, %v1032
        %v1061 = vmul.f32 %v1015, %v1032
        %v1062 = vmul.f32 %v1019, %v1032
        %v1063 = vmul.f32 %v1023, %v1032
        %v1064 = vmul.f32 %v1027, %v1032
        %v1065 = vadd.f32 %v869, %v1033
        %v1066 = vadd.f32 %v870, %v1034
        %v1067 = vadd.f32 %v871, %v1035
        %v1068 = vadd.f32 %v872, %v1036
        %v1069 = vadd.f32 %v873, %v1037
        %v1070 = vadd.f32 %v874, %v1038
        %v1071 = vadd.f32 %v875, %v1039
        %v1072 = vadd.f32 %v876, %v1040
        %v1073 = vadd.f32 %v877, %v1041
        %v1074 = vadd.f32 %v878, %v1042
        %v1075 = vadd.f32 %v879, %v1043
        %v1076 = vadd.f32 %v880, %v1044
        %v1077 = vadd.f32 %v881, %v1045
        %v1078 = vadd.f32 %v882, %v1046
        %v1079 = vadd.f32 %v883, %v1047
        %v1080 = vadd.f32 %v884, %v1048
        %v1081 = vadd.f32 %v885, %v1049
        %v1082 = vadd.f32 %v886, %v1050
        %v1083 = vadd.f32 %v887, %v1051
        %v1084 = vadd.f32 %v888, %v1052
        %v1085 = vadd.f32 %v889, %v1053
        %v1086 = vadd.f32 %v890, %v1054
        %v1087 = vadd.f32 %v891, %v1055
        %v1088 = vadd.f32 %v892, %v1056
        %v1089 = vadd.f32 %v893, %v1057
        %v1090 = vadd.f32 %v894, %v1058
        %v1091 = vadd.f32 %v895, %v1059
        %v1092 = vadd.f32 %v896, %v1060
        %v1093 = vadd.f32 %v897, %v1061
        %v1094 = vadd.f32 %v898, %v1062
        %v1095 = vadd.f32 %v899, %v1063
        %v1096 = vadd.f32 %v900, %v1064
        %1097 = vset.pattern.permute.xlu0 2
        %1098 = vperm.xlu0 %1097, %v672
        %v1099 = vpop.permute.xlu0 %1098
        %1101 = vset.pattern.permute.xlu0 2
        %1102 = vperm.xlu0 %1101, %v673
        %v1103 = vpop.permute.xlu0 %1102
        %1105 = vset.pattern.permute.xlu0 2
        %1106 = vperm.xlu0 %1105, %v674
        %v1107 = vpop.permute.xlu0 %1106
        %1109 = vset.pattern.permute.xlu0 2
        %1110 = vperm.xlu0 %1109, %v675
        %v1111 = vpop.permute.xlu0 %1110
        %1113 = vset.pattern.permute.xlu0 2
        %1114 = vperm.xlu0 %1113, %v676
        %v1115 = vpop.permute.xlu0 %1114
        %1117 = vset.pattern.permute.xlu0 2
        %1118 = vperm.xlu0 %1117, %v677
        %v1119 = vpop.permute.xlu0 %1118
        %1121 = vset.pattern.permute.xlu0 2
        %1122 = vperm.xlu0 %1121, %v678
        %v1123 = vpop.permute.xlu0 %1122
        %1125 = vset.pattern.permute.xlu0 2
        %1126 = vperm.xlu0 %1125, %v679
        %v1127 = vpop.permute.xlu0 %1126
        %1129 = vset.pattern.permute.xlu0 2
        %1130 = vperm.xlu0 %1129, %v680
        %v1131 = vpop.permute.xlu0 %1130
        %1133 = vset.pattern.permute.xlu0 2
        %1134 = vperm.xlu0 %1133, %v681
        %v1135 = vpop.permute.xlu0 %1134
        %1137 = vset.pattern.permute.xlu0 2
        %1138 = vperm.xlu0 %1137, %v682
        %v1139 = vpop.permute.xlu0 %1138
        %1141 = vset.pattern.permute.xlu0 2
        %1142 = vperm.xlu0 %1141, %v683
        %v1143 = vpop.permute.xlu0 %1142
        %1145 = vset.pattern.permute.xlu0 2
        %1146 = vperm.xlu0 %1145, %v684
        %v1147 = vpop.permute.xlu0 %1146
        %1149 = vset.pattern.permute.xlu0 2
        %1150 = vperm.xlu0 %1149, %v685
        %v1151 = vpop.permute.xlu0 %1150
        %1153 = vset.pattern.permute.xlu0 2
        %1154 = vperm.xlu0 %1153, %v686
        %v1155 = vpop.permute.xlu0 %1154
        %1157 = vset.pattern.permute.xlu0 2
        %1158 = vperm.xlu0 %1157, %v687
        %v1159 = vpop.permute.xlu0 %1158
        %1161 = vset.pattern.permute.xlu0 2
        %1162 = vperm.xlu0 %1161, %v688
        %v1163 = vpop.permute.xlu0 %1162
        %1165 = vset.pattern.permute.xlu0 2
        %1166 = vperm.xlu0 %1165, %v689
        %v1167 = vpop.permute.xlu0 %1166
        %1169 = vset.pattern.permute.xlu0 2
        %1170 = vperm.xlu0 %1169, %v690
        %v1171 = vpop.permute.xlu0 %1170
        %1173 = vset.pattern.permute.xlu0 2
        %1174 = vperm.xlu0 %1173, %v691
        %v1175 = vpop.permute.xlu0 %1174
        %1177 = vset.pattern.permute.xlu0 2
        %1178 = vperm.xlu0 %1177, %v692
        %v1179 = vpop.permute.xlu0 %1178
        %1181 = vset.pattern.permute.xlu0 2
        %1182 = vperm.xlu0 %1181, %v693
        %v1183 = vpop.permute.xlu0 %1182
        %1185 = vset.pattern.permute.xlu0 2
        %1186 = vperm.xlu0 %1185, %v694
        %v1187 = vpop.permute.xlu0 %1186
        %1189 = vset.pattern.permute.xlu0 2
        %1190 = vperm.xlu0 %1189, %v695
        %v1191 = vpop.permute.xlu0 %1190
        %1193 = vset.pattern.permute.xlu0 2
        %1194 = vperm.xlu0 %1193, %v696
        %v1195 = vpop.permute.xlu0 %1194
        %1197 = vset.pattern.permute.xlu0 2
        %1198 = vperm.xlu0 %1197, %v697
        %v1199 = vpop.permute.xlu0 %1198
        %1201 = vset.pattern.permute.xlu0 2
        %1202 = vperm.xlu0 %1201, %v698
        %v1203 = vpop.permute.xlu0 %1202
        %1205 = vset.pattern.permute.xlu0 2
        %1206 = vperm.xlu0 %1205, %v699
        %v1207 = vpop.permute.xlu0 %1206
        %1209 = vset.pattern.permute.xlu0 2
        %1210 = vperm.xlu0 %1209, %v700
        %v1211 = vpop.permute.xlu0 %1210
        %1213 = vset.pattern.permute.xlu0 2
        %1214 = vperm.xlu0 %1213, %v701
        %v1215 = vpop.permute.xlu0 %1214
        %1217 = vset.pattern.permute.xlu0 2
        %1218 = vperm.xlu0 %1217, %v702
        %v1219 = vpop.permute.xlu0 %1218
        %1221 = vset.pattern.permute.xlu0 2
        %1222 = vperm.xlu0 %1221, %v703
        %v1223 = vpop.permute.xlu0 %1222
        %v1225 = vlaneseq
        %v1226 = vshrl.u32 %v1225, 7
        %v1227 = vsub.s32 2, %v1226
        %v1228 = vrot.slane %v704, %v1227
        %v1229 = vmul.f32 %v1099, %v1228
        %v1230 = vmul.f32 %v1103, %v1228
        %v1231 = vmul.f32 %v1107, %v1228
        %v1232 = vmul.f32 %v1111, %v1228
        %v1233 = vmul.f32 %v1115, %v1228
        %v1234 = vmul.f32 %v1119, %v1228
        %v1235 = vmul.f32 %v1123, %v1228
        %v1236 = vmul.f32 %v1127, %v1228
        %v1237 = vmul.f32 %v1131, %v1228
        %v1238 = vmul.f32 %v1135, %v1228
        %v1239 = vmul.f32 %v1139, %v1228
        %v1240 = vmul.f32 %v1143, %v1228
        %v1241 = vmul.f32 %v1147, %v1228
        %v1242 = vmul.f32 %v1151, %v1228
        %v1243 = vmul.f32 %v1155, %v1228
        %v1244 = vmul.f32 %v1159, %v1228
        %v1245 = vmul.f32 %v1163, %v1228
        %v1246 = vmul.f32 %v1167, %v1228
        %v1247 = vmul.f32 %v1171, %v1228
        %v1248 = vmul.f32 %v1175, %v1228
        %v1249 = vmul.f32 %v1179, %v1228
        %v1250 = vmul.f32 %v1183, %v1228
        %v1251 = vmul.f32 %v1187, %v1228
        %v1252 = vmul.f32 %v1191, %v1228
        %v1253 = vmul.f32 %v1195, %v1228
        %v1254 = vmul.f32 %v1199, %v1228
        %v1255 = vmul.f32 %v1203, %v1228
        %v1256 = vmul.f32 %v1207, %v1228
        %v1257 = vmul.f32 %v1211, %v1228
        %v1258 = vmul.f32 %v1215, %v1228
        %v1259 = vmul.f32 %v1219, %v1228
        %v1260 = vmul.f32 %v1223, %v1228
        %v1261 = vadd.f32 %v1065, %v1229
        %v1262 = vadd.f32 %v1066, %v1230
        %v1263 = vadd.f32 %v1067, %v1231
        %v1264 = vadd.f32 %v1068, %v1232
        %v1265 = vadd.f32 %v1069, %v1233
        %v1266 = vadd.f32 %v1070, %v1234
        %v1267 = vadd.f32 %v1071, %v1235
        %v1268 = vadd.f32 %v1072, %v1236
        %v1269 = vadd.f32 %v1073, %v1237
        %v1270 = vadd.f32 %v1074, %v1238
        %v1271 = vadd.f32 %v1075, %v1239
        %v1272 = vadd.f32 %v1076, %v1240
        %v1273 = vadd.f32 %v1077, %v1241
        %v1274 = vadd.f32 %v1078, %v1242
        %v1275 = vadd.f32 %v1079, %v1243
        %v1276 = vadd.f32 %v1080, %v1244
        %v1277 = vadd.f32 %v1081, %v1245
        %v1278 = vadd.f32 %v1082, %v1246
        %v1279 = vadd.f32 %v1083, %v1247
        %v1280 = vadd.f32 %v1084, %v1248
        %v1281 = vadd.f32 %v1085, %v1249
        %v1282 = vadd.f32 %v1086, %v1250
        %v1283 = vadd.f32 %v1087, %v1251
        %v1284 = vadd.f32 %v1088, %v1252
        %v1285 = vadd.f32 %v1089, %v1253
        %v1286 = vadd.f32 %v1090, %v1254
        %v1287 = vadd.f32 %v1091, %v1255
        %v1288 = vadd.f32 %v1092, %v1256
        %v1289 = vadd.f32 %v1093, %v1257
        %v1290 = vadd.f32 %v1094, %v1258
        %v1291 = vadd.f32 %v1095, %v1259
        %v1292 = vadd.f32 %v1096, %v1260
        %v1293 = vld [vmem:[#allocation4] sm:$0x1]
        %v1295 = vlaneseq
        %v1296 = vshrl.u32 %v1295, 7
        %v1297 = vsub.s32 0, %v1296
        %v1298 = vrot.slane %v1293, %v1297
        %v1300 = vadd.f32 %v1261, %v1298
        %v1301 = vadd.f32 %v1262, %v1298
        %v1302 = vadd.f32 %v1263, %v1298
        %v1303 = vadd.f32 %v1264, %v1298
        %v1304 = vadd.f32 %v1265, %v1298
        %v1305 = vadd.f32 %v1266, %v1298
        %v1306 = vadd.f32 %v1267, %v1298
        %v1307 = vadd.f32 %v1268, %v1298
        %v1308 = vadd.f32 %v1269, %v1298
        %v1309 = vadd.f32 %v1270, %v1298
        %v1310 = vadd.f32 %v1271, %v1298
        %v1311 = vadd.f32 %v1272, %v1298
        %v1312 = vadd.f32 %v1273, %v1298
        %v1313 = vadd.f32 %v1274, %v1298
        %v1314 = vadd.f32 %v1275, %v1298
        %v1315 = vadd.f32 %v1276, %v1298
        %v1316 = vadd.f32 %v1277, %v1298
        %v1317 = vadd.f32 %v1278, %v1298
        %v1318 = vadd.f32 %v1279, %v1298
        %v1319 = vadd.f32 %v1280, %v1298
        %v1320 = vadd.f32 %v1281, %v1298
        %v1321 = vadd.f32 %v1282, %v1298
        %v1322 = vadd.f32 %v1283, %v1298
        %v1323 = vadd.f32 %v1284, %v1298
        %v1324 = vadd.f32 %v1285, %v1298
        %v1325 = vadd.f32 %v1286, %v1298
        %v1326 = vadd.f32 %v1287, %v1298
        %v1327 = vadd.f32 %v1288, %v1298
        %v1328 = vadd.f32 %v1289, %v1298
        %v1329 = vadd.f32 %v1290, %v1298
        %v1330 = vadd.f32 %v1291, %v1298
        %v1331 = vadd.f32 %v1292, %v1298
        %v1332 = vmax.f32 %v1300, 0.0
        %v1333 = vmax.f32 %v1301, 0.0
        %v1334 = vmax.f32 %v1302, 0.0
        %v1335 = vmax.f32 %v1303, 0.0
        %v1336 = vmax.f32 %v1304, 0.0
        %v1337 = vmax.f32 %v1305, 0.0
        %v1338 = vmax.f32 %v1306, 0.0
        %v1339 = vmax.f32 %v1307, 0.0
        %v1340 = vmax.f32 %v1308, 0.0
        %v1341 = vmax.f32 %v1309, 0.0
        %v1342 = vmax.f32 %v1310, 0.0
        %v1343 = vmax.f32 %v1311, 0.0
        %v1344 = vmax.f32 %v1312, 0.0
        %v1345 = vmax.f32 %v1313, 0.0
        %v1346 = vmax.f32 %v1314, 0.0
        %v1347 = vmax.f32 %v1315, 0.0
        %v1348 = vmax.f32 %v1316, 0.0
        %v1349 = vmax.f32 %v1317, 0.0
        %v1350 = vmax.f32 %v1318, 0.0
        %v1351 = vmax.f32 %v1319, 0.0
        %v1352 = vmax.f32 %v1320, 0.0
        %v1353 = vmax.f32 %v1321, 0.0
        %v1354 = vmax.f32 %v1322, 0.0
        %v1355 = vmax.f32 %v1323, 0.0
        %v1356 = vmax.f32 %v1324, 0.0
        %v1357 = vmax.f32 %v1325, 0.0
        %v1358 = vmax.f32 %v1326, 0.0
        %v1359 = vmax.f32 %v1327, 0.0
        %v1360 = vmax.f32 %v1328, 0.0
        %v1361 = vmax.f32 %v1329, 0.0
        %v1362 = vmax.f32 %v1330, 0.0
        %v1363 = vmax.f32 %v1331, 0.0
        %v1364 = vpack.c.bf16 %v1333, %v1332
        %v1365 = vpack.c.bf16 %v1335, %v1334
        %v1366 = vpack.c.bf16 %v1337, %v1336
        %v1367 = vpack.c.bf16 %v1339, %v1338
        %v1368 = vpack.c.bf16 %v1341, %v1340
        %v1369 = vpack.c.bf16 %v1343, %v1342
        %v1370 = vpack.c.bf16 %v1345, %v1344
        %v1371 = vpack.c.bf16 %v1347, %v1346
        %v1372 = vpack.c.bf16 %v1349, %v1348
        %v1373 = vpack.c.bf16 %v1351, %v1350
        %v1374 = vpack.c.bf16 %v1353, %v1352
        %v1375 = vpack.c.bf16 %v1355, %v1354
        %v1376 = vpack.c.bf16 %v1357, %v1356
        %v1377 = vpack.c.bf16 %v1359, %v1358
        %v1378 = vpack.c.bf16 %v1361, %v1360
        %v1379 = vpack.c.bf16 %v1363, %v1362
        %v1380 = vld [vmem:[%s3] sm:$0xf]
        %v1381 = vld [vmem:[%s3 + $0x4] sm:$0xf]
        %v1382 = vld [vmem:[%s3 + $0x8] sm:$0xf]
        %v1383 = vld [vmem:[%s3 + $0xc] sm:$0xf]
        %v1384 = vld [vmem:[%s3 + $0x10] sm:$0xf]
        %v1385 = vld [vmem:[%s3 + $0x14] sm:$0xf]
        %v1386 = vld [vmem:[%s3 + $0x18] sm:$0xf]
        %v1387 = vld [vmem:[%s3 + $0x1c] sm:$0xf]
        %v1388 = vld [vmem:[#allocation6] sm:$0x1]
        %v1390 = vlaneseq
        %v1391 = vshrl.u32 %v1390, 7
        %v1392 = vsub.s32 0, %v1391
        %v1393 = vrot.slane %v1388, %v1392
        %v1403 = vunpack.c.l.b16 %v1380
        %v1404 = vunpack.c.l.b16 %v1381
        %v1405 = vunpack.c.l.b16 %v1382
        %v1406 = vunpack.c.l.b16 %v1383
        %v1407 = vunpack.c.l.b16 %v1384
        %v1408 = vunpack.c.l.b16 %v1385
        %v1409 = vunpack.c.l.b16 %v1386
        %v1410 = vunpack.c.l.b16 %v1387
        %v1411 = vpack.c.b16 %v1404, %v1403
        %v1412 = vpack.c.b16 %v1406, %v1405
        %v1413 = vpack.c.b16 %v1408, %v1407
        %v1414 = vpack.c.b16 %v1410, %v1409
        %vm1419 = vcmask 523264
        %v1421 = vsel %vm1419, %v1364, 0
        %v1424 = vsel %vm1419, %v1365, 0
        %v1427 = vsel %vm1419, %v1366, 0
        %v1430 = vsel %vm1419, %v1367, 0
        %v1433 = vsel %vm1419, %v1368, 0
        %v1436 = vsel %vm1419, %v1369, 0
        %v1439 = vsel %vm1419, %v1370, 0
        %v1442 = vsel %vm1419, %v1371, 0
        %v1445 = vsel %vm1419, %v1372, 0
        %v1448 = vsel %vm1419, %v1373, 0
        %v1451 = vsel %vm1419, %v1374, 0
        %v1454 = vsel %vm1419, %v1375, 0
        %v1457 = vsel %vm1419, %v1376, 0
        %v1460 = vsel %vm1419, %v1377, 0
        %v1463 = vsel %vm1419, %v1378, 0
        %v1466 = vsel %vm1419, %v1379, 0
        %1468 = vmatprep.subr.bf16.mxu0 0
        %1469 = vmatpush1.bf16.msra.mxu0 0
        %1470 = vmatprep.subr.bf16.mxu0 0
        %1471 = vmatpush1.bf16.msra.mxu0 0
        %1472 = vmatprep.subr.bf16.mxu0 0
        %1473 = vmatpush1.bf16.msra.mxu0 0
        %1474 = vmatprep.subr.bf16.mxu0 0
        %1475 = vmatpush1.bf16.msra.mxu0 0
        %1476 = vmatprep.subr.bf16.mxu0 0
        %1477 = vmatpush1.bf16.msra.mxu0 %v1414
        %1478 = vmatprep.subr.bf16.mxu0 0
        %1479 = vmatpush1.bf16.msra.mxu0 %v1413
        %1480 = vmatprep.subr.bf16.mxu0 0
        %1481 = vmatpush1.bf16.msra.mxu0 %v1412
        %1482 = vmatprep.subr.bf16.mxu0 0
        %1483 = vmatpush1.bf16.msra.mxu0 %v1411
        %1484 = vmatprep.subr.bf16.mxu0 0
        %1485 = vmatpush2.bf16.msra.mxu0 0
        %1486 = vmatprep.subr.bf16.mxu0 0
        %1487 = vmatpush2.bf16.msra.mxu0 0
        %1488 = vmatprep.subr.bf16.mxu0 0
        %1489 = vmatpush2.bf16.msra.mxu0 0
        %1490 = vmatprep.subr.bf16.mxu0 0
        %1491 = vmatpush2.bf16.msra.mxu0 0
        %1492 = vmatprep.subr.bf16.mxu0 0
        %1493 = vmatpush2.bf16.msra.mxu0 0
        %1494 = vmatprep.subr.bf16.mxu0 0
        %1495 = vmatpush2.bf16.msra.mxu0 0
        %1496 = vmatprep.subr.bf16.mxu0 0
        %1497 = vmatpush2.bf16.msra.mxu0 0
        %1498 = vmatprep.subr.bf16.mxu0 0
        %1499 = vmatpush2.bf16.msra.mxu0 0
        %1500 = vmatprep.mubr.bf16.mxu0 0
        %1501 = vmatmul.mubr.bf16.gmra.mxu0 %v1421
        %v1502 = vpop.f32.mrf.mxu0
        %v1503 = vadd.f32 %v1393, %v1502
        %v1504 = vpop.f32.mrf.mxu0
        %v1505 = vpop.f32.mrf.mxu0
        %v1506 = vadd.f32 %v1393, %v1505
        %v1507 = vpop.f32.mrf.mxu0
        %1508 = vmatprep.mubr.bf16.mxu0 0
        %1509 = vmatmul.mubr.bf16.gmra.mxu0 %v1424
        %v1510 = vpop.f32.mrf.mxu0
        %v1511 = vadd.f32 %v1393, %v1510
        %v1512 = vpop.f32.mrf.mxu0
        %v1513 = vpop.f32.mrf.mxu0
        %v1514 = vadd.f32 %v1393, %v1513
        %v1515 = vpop.f32.mrf.mxu0
        %1516 = vmatprep.mubr.bf16.mxu0 0
        %1517 = vmatmul.mubr.bf16.gmra.mxu0 %v1427
        %v1518 = vpop.f32.mrf.mxu0
        %v1519 = vadd.f32 %v1393, %v1518
        %v1520 = vpop.f32.mrf.mxu0
        %v1521 = vpop.f32.mrf.mxu0
        %v1522 = vadd.f32 %v1393, %v1521
        %v1523 = vpop.f32.mrf.mxu0
        %1524 = vmatprep.mubr.bf16.mxu0 0
        %1525 = vmatmul.mubr.bf16.gmra.mxu0 %v1430
        %v1526 = vpop.f32.mrf.mxu0
        %v1527 = vadd.f32 %v1393, %v1526
        %v1528 = vpop.f32.mrf.mxu0
        %v1529 = vpop.f32.mrf.mxu0
        %v1530 = vadd.f32 %v1393, %v1529
        %v1531 = vpop.f32.mrf.mxu0
        %1532 = vmatprep.mubr.bf16.mxu0 0
        %1533 = vmatmul.mubr.bf16.gmra.mxu0 %v1433
        %v1534 = vpop.f32.mrf.mxu0
        %v1535 = vadd.f32 %v1393, %v1534
        %v1536 = vpop.f32.mrf.mxu0
        %v1537 = vpop.f32.mrf.mxu0
        %v1538 = vadd.f32 %v1393, %v1537
        %v1539 = vpop.f32.mrf.mxu0
        %1540 = vmatprep.mubr.bf16.mxu0 0
        %1541 = vmatmul.mubr.bf16.gmra.mxu0 %v1436
        %v1542 = vpop.f32.mrf.mxu0
        %v1543 = vadd.f32 %v1393, %v1542
        %v1544 = vpop.f32.mrf.mxu0
        %v1545 = vpop.f32.mrf.mxu0
        %v1546 = vadd.f32 %v1393, %v1545
        %v1547 = vpop.f32.mrf.mxu0
        %1548 = vmatprep.mubr.bf16.mxu0 0
        %1549 = vmatmul.mubr.bf16.gmra.mxu0 %v1439
        %v1550 = vpop.f32.mrf.mxu0
        %v1551 = vadd.f32 %v1393, %v1550
        %v1552 = vpop.f32.mrf.mxu0
        %v1553 = vpop.f32.mrf.mxu0
        %v1554 = vadd.f32 %v1393, %v1553
        %v1555 = vpop.f32.mrf.mxu0
        %1556 = vmatprep.mubr.bf16.mxu0 0
        %1557 = vmatmul.mubr.bf16.gmra.mxu0 %v1442
        %v1558 = vpop.f32.mrf.mxu0
        %v1559 = vadd.f32 %v1393, %v1558
        %v1560 = vpop.f32.mrf.mxu0
        %v1561 = vpop.f32.mrf.mxu0
        %v1562 = vadd.f32 %v1393, %v1561
        %v1563 = vpop.f32.mrf.mxu0
        %1564 = vmatprep.mubr.bf16.mxu0 0
        %1565 = vmatmul.mubr.bf16.gmra.mxu0 %v1445
        %v1566 = vpop.f32.mrf.mxu0
        %v1567 = vadd.f32 %v1393, %v1566
        %v1568 = vpop.f32.mrf.mxu0
        %v1569 = vpop.f32.mrf.mxu0
        %v1570 = vadd.f32 %v1393, %v1569
        %v1571 = vpop.f32.mrf.mxu0
        %1572 = vmatprep.mubr.bf16.mxu0 0
        %1573 = vmatmul.mubr.bf16.gmra.mxu0 %v1448
        %v1574 = vpop.f32.mrf.mxu0
        %v1575 = vadd.f32 %v1393, %v1574
        %v1576 = vpop.f32.mrf.mxu0
        %v1577 = vpop.f32.mrf.mxu0
        %v1578 = vadd.f32 %v1393, %v1577
        %v1579 = vpop.f32.mrf.mxu0
        %1580 = vmatprep.mubr.bf16.mxu0 0
        %1581 = vmatmul.mubr.bf16.gmra.mxu0 %v1451
        %v1582 = vpop.f32.mrf.mxu0
        %v1583 = vadd.f32 %v1393, %v1582
        %v1584 = vpop.f32.mrf.mxu0
        %v1585 = vpop.f32.mrf.mxu0
        %v1586 = vadd.f32 %v1393, %v1585
        %v1587 = vpop.f32.mrf.mxu0
        %1588 = vmatprep.mubr.bf16.mxu0 0
        %1589 = vmatmul.mubr.bf16.gmra.mxu0 %v1454
        %v1590 = vpop.f32.mrf.mxu0
        %v1591 = vadd.f32 %v1393, %v1590
        %v1592 = vpop.f32.mrf.mxu0
        %v1593 = vpop.f32.mrf.mxu0
        %v1594 = vadd.f32 %v1393, %v1593
        %v1595 = vpop.f32.mrf.mxu0
        %1596 = vmatprep.mubr.bf16.mxu0 0
        %1597 = vmatmul.mubr.bf16.gmra.mxu0 %v1457
        %v1598 = vpop.f32.mrf.mxu0
        %v1599 = vadd.f32 %v1393, %v1598
        %v1600 = vpop.f32.mrf.mxu0
        %v1601 = vpop.f32.mrf.mxu0
        %v1602 = vadd.f32 %v1393, %v1601
        %v1603 = vpop.f32.mrf.mxu0
        %1604 = vmatprep.mubr.bf16.mxu0 0
        %1605 = vmatmul.mubr.bf16.gmra.mxu0 %v1460
        %v1606 = vpop.f32.mrf.mxu0
        %v1607 = vadd.f32 %v1393, %v1606
        %v1608 = vpop.f32.mrf.mxu0
        %v1609 = vpop.f32.mrf.mxu0
        %v1610 = vadd.f32 %v1393, %v1609
        %v1611 = vpop.f32.mrf.mxu0
        %1612 = vmatprep.mubr.bf16.mxu0 0
        %1613 = vmatmul.mubr.bf16.gmra.mxu0 %v1463
        %v1614 = vpop.f32.mrf.mxu0
        %v1615 = vadd.f32 %v1393, %v1614
        %v1616 = vpop.f32.mrf.mxu0
        %v1617 = vpop.f32.mrf.mxu0
        %v1618 = vadd.f32 %v1393, %v1617
        %v1619 = vpop.f32.mrf.mxu0
        %1620 = vmatprep.mubr.bf16.mxu0 0
        %1621 = vmatmul.mubr.bf16.gmra.mxu0 %v1466
        %v1622 = vpop.f32.mrf.mxu0
        %v1623 = vadd.f32 %v1393, %v1622
        %v1624 = vpop.f32.mrf.mxu0
        %v1625 = vpop.f32.mrf.mxu0
        %v1626 = vadd.f32 %v1393, %v1625
        %v1627 = vpop.f32.mrf.mxu0
        %1628 = vdwg.mxu0
        %v1629 = vmax.f32 %v1503, 0.0
        %v1630 = vmax.f32 %v1506, 0.0
        %v1631 = vmax.f32 %v1511, 0.0
        %v1632 = vmax.f32 %v1514, 0.0
        %v1633 = vmax.f32 %v1519, 0.0
        %v1634 = vmax.f32 %v1522, 0.0
        %v1635 = vmax.f32 %v1527, 0.0
        %v1636 = vmax.f32 %v1530, 0.0
        %v1637 = vmax.f32 %v1535, 0.0
        %v1638 = vmax.f32 %v1538, 0.0
        %v1639 = vmax.f32 %v1543, 0.0
        %v1640 = vmax.f32 %v1546, 0.0
        %v1641 = vmax.f32 %v1551, 0.0
        %v1642 = vmax.f32 %v1554, 0.0
        %v1643 = vmax.f32 %v1559, 0.0
        %v1644 = vmax.f32 %v1562, 0.0
        %v1645 = vmax.f32 %v1567, 0.0
        %v1646 = vmax.f32 %v1570, 0.0
        %v1647 = vmax.f32 %v1575, 0.0
        %v1648 = vmax.f32 %v1578, 0.0
        %v1649 = vmax.f32 %v1583, 0.0
        %v1650 = vmax.f32 %v1586, 0.0
        %v1651 = vmax.f32 %v1591, 0.0
        %v1652 = vmax.f32 %v1594, 0.0
        %v1653 = vmax.f32 %v1599, 0.0
        %v1654 = vmax.f32 %v1602, 0.0
        %v1655 = vmax.f32 %v1607, 0.0
        %v1656 = vmax.f32 %v1610, 0.0
        %v1657 = vmax.f32 %v1615, 0.0
        %v1658 = vmax.f32 %v1618, 0.0
        %v1659 = vmax.f32 %v1623, 0.0
        %v1660 = vmax.f32 %v1626, 0.0
        %v1661 = vpack.c.bf16 %v1630, %v1629
        %v1662 = vpack.c.bf16 %v1632, %v1631
        %v1663 = vpack.c.bf16 %v1634, %v1633
        %v1664 = vpack.c.bf16 %v1636, %v1635
        %v1665 = vpack.c.bf16 %v1638, %v1637
        %v1666 = vpack.c.bf16 %v1640, %v1639
        %v1667 = vpack.c.bf16 %v1642, %v1641
        %v1668 = vpack.c.bf16 %v1644, %v1643
        %v1669 = vpack.c.bf16 %v1646, %v1645
        %v1670 = vpack.c.bf16 %v1648, %v1647
        %v1671 = vpack.c.bf16 %v1650, %v1649
        %v1672 = vpack.c.bf16 %v1652, %v1651
        %v1673 = vpack.c.bf16 %v1654, %v1653
        %v1674 = vpack.c.bf16 %v1656, %v1655
        %v1675 = vpack.c.bf16 %v1658, %v1657
        %v1676 = vpack.c.bf16 %v1660, %v1659
        %v1677 = vld [vmem:[%s5] sm:$0xff]
        %v1678 = vld [vmem:[%s5 + $0x8] sm:$0xff]
        %v1679 = vld [vmem:[%s5 + $0x10] sm:$0xff]
        %v1680 = vld [vmem:[%s5 + $0x18] sm:$0xff]
        %v1681 = vld [vmem:[%s5 + $0x20] sm:$0xff]
        %v1682 = vld [vmem:[%s5 + $0x28] sm:$0xff]
        %v1683 = vld [vmem:[%s5 + $0x30] sm:$0xff]
        %v1684 = vld [vmem:[%s5 + $0x38] sm:$0xff]
        %v1685 = vld [vmem:[%s5 + $0x40] sm:$0xff]
        %v1686 = vld [vmem:[%s5 + $0x48] sm:$0xff]
        %v1687 = vld [vmem:[%s5 + $0x50] sm:$0xff]
        %v1688 = vld [vmem:[%s5 + $0x58] sm:$0xff]
        %v1689 = vld [vmem:[%s5 + $0x60] sm:$0xff]
        %v1690 = vld [vmem:[%s5 + $0x68] sm:$0xff]
        %v1691 = vld [vmem:[%s5 + $0x70] sm:$0xff]
        %v1692 = vld [vmem:[%s5 + $0x78] sm:$0xff]
        %v1693 = vld [vmem:[#allocation7] sm:$0x3]
        %v1695 = vlaneseq
        %v1696 = vshrl.u32 %v1695, 7
        %v1697 = vsub.s32 0, %v1696
        %v1698 = vrot.slane %v1693, %v1697
        %v1699 = vlaneseq
        %v1700 = vshrl.u32 %v1699, 7
        %v1701 = vsub.s32 1, %v1700
        %v1702 = vrot.slane %v1693, %v1701
        %v1721 = vunpack.c.l.b16 %v1677
        %v1722 = vunpack.c.h.b16 %v1677
        %v1723 = vunpack.c.l.b16 %v1678
        %v1724 = vunpack.c.h.b16 %v1678
        %v1725 = vunpack.c.l.b16 %v1679
        %v1726 = vunpack.c.h.b16 %v1679
        %v1727 = vunpack.c.l.b16 %v1680
        %v1728 = vunpack.c.h.b16 %v1680
        %v1729 = vunpack.c.l.b16 %v1681
        %v1730 = vunpack.c.h.b16 %v1681
        %v1731 = vunpack.c.l.b16 %v1682
        %v1732 = vunpack.c.h.b16 %v1682
        %v1733 = vunpack.c.l.b16 %v1683
        %v1734 = vunpack.c.h.b16 %v1683
        %v1735 = vunpack.c.l.b16 %v1684
        %v1736 = vunpack.c.h.b16 %v1684
        %v1737 = vunpack.c.l.b16 %v1685
        %v1738 = vunpack.c.h.b16 %v1685
        %v1739 = vunpack.c.l.b16 %v1686
        %v1740 = vunpack.c.h.b16 %v1686
        %v1741 = vunpack.c.l.b16 %v1687
        %v1742 = vunpack.c.h.b16 %v1687
        %v1743 = vunpack.c.l.b16 %v1688
        %v1744 = vunpack.c.h.b16 %v1688
        %v1745 = vunpack.c.l.b16 %v1689
        %v1746 = vunpack.c.h.b16 %v1689
        %v1747 = vunpack.c.l.b16 %v1690
        %v1748 = vunpack.c.h.b16 %v1690
        %v1749 = vunpack.c.l.b16 %v1691
        %v1750 = vunpack.c.h.b16 %v1691
        %v1751 = vunpack.c.l.b16 %v1692
        %v1752 = vunpack.c.h.b16 %v1692
        %v1753 = vpack.c.b16 %v1723, %v1721
        %v1754 = vpack.c.b16 %v1724, %v1722
        %v1755 = vpack.c.b16 %v1727, %v1725
        %v1756 = vpack.c.b16 %v1728, %v1726
        %v1757 = vpack.c.b16 %v1731, %v1729
        %v1758 = vpack.c.b16 %v1732, %v1730
        %v1759 = vpack.c.b16 %v1735, %v1733
        %v1760 = vpack.c.b16 %v1736, %v1734
        %v1761 = vpack.c.b16 %v1739, %v1737
        %v1762 = vpack.c.b16 %v1740, %v1738
        %v1763 = vpack.c.b16 %v1743, %v1741
        %v1764 = vpack.c.b16 %v1744, %v1742
        %v1765 = vpack.c.b16 %v1747, %v1745
        %v1766 = vpack.c.b16 %v1748, %v1746
        %v1767 = vpack.c.b16 %v1751, %v1749
        %v1768 = vpack.c.b16 %v1752, %v1750
        %1785 = vmatprep.subr.bf16.mxu0 %v1768
        %1786 = vmatpush1.bf16.msra.mxu0 %v1767
        %1787 = vmatprep.subr.bf16.mxu0 %v1766
        %1788 = vmatpush1.bf16.msra.mxu0 %v1765
        %1789 = vmatprep.subr.bf16.mxu0 %v1764
        %1790 = vmatpush1.bf16.msra.mxu0 %v1763
        %1791 = vmatprep.subr.bf16.mxu0 %v1762
        %1792 = vmatpush1.bf16.msra.mxu0 %v1761
        %1793 = vmatprep.subr.bf16.mxu0 %v1760
        %1794 = vmatpush1.bf16.msra.mxu0 %v1759
        %1795 = vmatprep.subr.bf16.mxu0 %v1758
        %1796 = vmatpush1.bf16.msra.mxu0 %v1757
        %1797 = vmatprep.subr.bf16.mxu0 %v1756
        %1798 = vmatpush1.bf16.msra.mxu0 %v1755
        %1799 = vmatprep.subr.bf16.mxu0 %v1754
        %1800 = vmatpush1.bf16.msra.mxu0 %v1753
        %1801 = vmatprep.subr.bf16.mxu0 0
        %1802 = vmatpush2.bf16.msra.mxu0 0
        %1803 = vmatprep.subr.bf16.mxu0 0
        %1804 = vmatpush2.bf16.msra.mxu0 0
        %1805 = vmatprep.subr.bf16.mxu0 0
        %1806 = vmatpush2.bf16.msra.mxu0 0
        %1807 = vmatprep.subr.bf16.mxu0 0
        %1808 = vmatpush2.bf16.msra.mxu0 0
        %1809 = vmatprep.subr.bf16.mxu0 0
        %1810 = vmatpush2.bf16.msra.mxu0 0
        %1811 = vmatprep.subr.bf16.mxu0 0
        %1812 = vmatpush2.bf16.msra.mxu0 0
        %1813 = vmatprep.subr.bf16.mxu0 0
        %1814 = vmatpush2.bf16.msra.mxu0 0
        %1815 = vmatprep.subr.bf16.mxu0 0
        %1816 = vmatpush2.bf16.msra.mxu0 0
        %1817 = vmatprep.mubr.bf16.mxu0 0
        %1818 = vmatmul.mubr.bf16.gmra.mxu0 %v1661
        %v1819 = vpop.f32.mrf.mxu0
        %v1820 = vadd.f32 %v1698, %v1819
        %v1821 = vpop.f32.mrf.mxu0
        %v1822 = vadd.f32 %v1702, %v1821
        %v1823 = vpop.f32.mrf.mxu0
        %v1824 = vadd.f32 %v1698, %v1823
        %v1825 = vpop.f32.mrf.mxu0
        %v1826 = vadd.f32 %v1702, %v1825
        %1827 = vmatprep.mubr.bf16.mxu0 0
        %1828 = vmatmul.mubr.bf16.gmra.mxu0 %v1662
        %v1829 = vpop.f32.mrf.mxu0
        %v1830 = vadd.f32 %v1698, %v1829
        %v1831 = vpop.f32.mrf.mxu0
        %v1832 = vadd.f32 %v1702, %v1831
        %v1833 = vpop.f32.mrf.mxu0
        %v1834 = vadd.f32 %v1698, %v1833
        %v1835 = vpop.f32.mrf.mxu0
        %v1836 = vadd.f32 %v1702, %v1835
        %1837 = vmatprep.mubr.bf16.mxu0 0
        %1838 = vmatmul.mubr.bf16.gmra.mxu0 %v1663
        %v1839 = vpop.f32.mrf.mxu0
        %v1840 = vadd.f32 %v1698, %v1839
        %v1841 = vpop.f32.mrf.mxu0
        %v1842 = vadd.f32 %v1702, %v1841
        %v1843 = vpop.f32.mrf.mxu0
        %v1844 = vadd.f32 %v1698, %v1843
        %v1845 = vpop.f32.mrf.mxu0
        %v1846 = vadd.f32 %v1702, %v1845
        %1847 = vmatprep.mubr.bf16.mxu0 0
        %1848 = vmatmul.mubr.bf16.gmra.mxu0 %v1664
        %v1849 = vpop.f32.mrf.mxu0
        %v1850 = vadd.f32 %v1698, %v1849
        %v1851 = vpop.f32.mrf.mxu0
        %v1852 = vadd.f32 %v1702, %v1851
        %v1853 = vpop.f32.mrf.mxu0
        %v1854 = vadd.f32 %v1698, %v1853
        %v1855 = vpop.f32.mrf.mxu0
        %v1856 = vadd.f32 %v1702, %v1855
        %1857 = vmatprep.mubr.bf16.mxu0 0
        %1858 = vmatmul.mubr.bf16.gmra.mxu0 %v1665
        %v1859 = vpop.f32.mrf.mxu0
        %v1860 = vadd.f32 %v1698, %v1859
        %v1861 = vpop.f32.mrf.mxu0
        %v1862 = vadd.f32 %v1702, %v1861
        %v1863 = vpop.f32.mrf.mxu0
        %v1864 = vadd.f32 %v1698, %v1863
        %v1865 = vpop.f32.mrf.mxu0
        %v1866 = vadd.f32 %v1702, %v1865
        %1867 = vmatprep.mubr.bf16.mxu0 0
        %1868 = vmatmul.mubr.bf16.gmra.mxu0 %v1666
        %v1869 = vpop.f32.mrf.mxu0
        %v1870 = vadd.f32 %v1698, %v1869
        %v1871 = vpop.f32.mrf.mxu0
        %v1872 = vadd.f32 %v1702, %v1871
        %v1873 = vpop.f32.mrf.mxu0
        %v1874 = vadd.f32 %v1698, %v1873
        %v1875 = vpop.f32.mrf.mxu0
        %v1876 = vadd.f32 %v1702, %v1875
        %1877 = vmatprep.mubr.bf16.mxu0 0
        %1878 = vmatmul.mubr.bf16.gmra.mxu0 %v1667
        %v1879 = vpop.f32.mrf.mxu0
        %v1880 = vadd.f32 %v1698, %v1879
        %v1881 = vpop.f32.mrf.mxu0
        %v1882 = vadd.f32 %v1702, %v1881
        %v1883 = vpop.f32.mrf.mxu0
        %v1884 = vadd.f32 %v1698, %v1883
        %v1885 = vpop.f32.mrf.mxu0
        %v1886 = vadd.f32 %v1702, %v1885
        %1887 = vmatprep.mubr.bf16.mxu0 0
        %1888 = vmatmul.mubr.bf16.gmra.mxu0 %v1668
        %v1889 = vpop.f32.mrf.mxu0
        %v1890 = vadd.f32 %v1698, %v1889
        %v1891 = vpop.f32.mrf.mxu0
        %v1892 = vadd.f32 %v1702, %v1891
        %v1893 = vpop.f32.mrf.mxu0
        %v1894 = vadd.f32 %v1698, %v1893
        %v1895 = vpop.f32.mrf.mxu0
        %v1896 = vadd.f32 %v1702, %v1895
        %1897 = vmatprep.mubr.bf16.mxu0 0
        %1898 = vmatmul.mubr.bf16.gmra.mxu0 %v1669
        %v1899 = vpop.f32.mrf.mxu0
        %v1900 = vadd.f32 %v1698, %v1899
        %v1901 = vpop.f32.mrf.mxu0
        %v1902 = vadd.f32 %v1702, %v1901
        %v1903 = vpop.f32.mrf.mxu0
        %v1904 = vadd.f32 %v1698, %v1903
        %v1905 = vpop.f32.mrf.mxu0
        %v1906 = vadd.f32 %v1702, %v1905
        %1907 = vmatprep.mubr.bf16.mxu0 0
        %1908 = vmatmul.mubr.bf16.gmra.mxu0 %v1670
        %v1909 = vpop.f32.mrf.mxu0
        %v1910 = vadd.f32 %v1698, %v1909
        %v1911 = vpop.f32.mrf.mxu0
        %v1912 = vadd.f32 %v1702, %v1911
        %v1913 = vpop.f32.mrf.mxu0
        %v1914 = vadd.f32 %v1698, %v1913
        %v1915 = vpop.f32.mrf.mxu0
        %v1916 = vadd.f32 %v1702, %v1915
        %1917 = vmatprep.mubr.bf16.mxu0 0
        %1918 = vmatmul.mubr.bf16.gmra.mxu0 %v1671
        %v1919 = vpop.f32.mrf.mxu0
        %v1920 = vadd.f32 %v1698, %v1919
        %v1921 = vpop.f32.mrf.mxu0
        %v1922 = vadd.f32 %v1702, %v1921
        %v1923 = vpop.f32.mrf.mxu0
        %v1924 = vadd.f32 %v1698, %v1923
        %v1925 = vpop.f32.mrf.mxu0
        %v1926 = vadd.f32 %v1702, %v1925
        %1927 = vmatprep.mubr.bf16.mxu0 0
        %1928 = vmatmul.mubr.bf16.gmra.mxu0 %v1672
        %v1929 = vpop.f32.mrf.mxu0
        %v1930 = vadd.f32 %v1698, %v1929
        %v1931 = vpop.f32.mrf.mxu0
        %v1932 = vadd.f32 %v1702, %v1931
        %v1933 = vpop.f32.mrf.mxu0
        %v1934 = vadd.f32 %v1698, %v1933
        %v1935 = vpop.f32.mrf.mxu0
        %v1936 = vadd.f32 %v1702, %v1935
        %1937 = vmatprep.mubr.bf16.mxu0 0
        %1938 = vmatmul.mubr.bf16.gmra.mxu0 %v1673
        %v1939 = vpop.f32.mrf.mxu0
        %v1940 = vadd.f32 %v1698, %v1939
        %v1941 = vpop.f32.mrf.mxu0
        %v1942 = vadd.f32 %v1702, %v1941
        %v1943 = vpop.f32.mrf.mxu0
        %v1944 = vadd.f32 %v1698, %v1943
        %v1945 = vpop.f32.mrf.mxu0
        %v1946 = vadd.f32 %v1702, %v1945
        %1947 = vmatprep.mubr.bf16.mxu0 0
        %1948 = vmatmul.mubr.bf16.gmra.mxu0 %v1674
        %v1949 = vpop.f32.mrf.mxu0
        %v1950 = vadd.f32 %v1698, %v1949
        %v1951 = vpop.f32.mrf.mxu0
        %v1952 = vadd.f32 %v1702, %v1951
        %v1953 = vpop.f32.mrf.mxu0
        %v1954 = vadd.f32 %v1698, %v1953
        %v1955 = vpop.f32.mrf.mxu0
        %v1956 = vadd.f32 %v1702, %v1955
        %1957 = vmatprep.mubr.bf16.mxu0 0
        %1958 = vmatmul.mubr.bf16.gmra.mxu0 %v1675
        %v1959 = vpop.f32.mrf.mxu0
        %v1960 = vadd.f32 %v1698, %v1959
        %v1961 = vpop.f32.mrf.mxu0
        %v1962 = vadd.f32 %v1702, %v1961
        %v1963 = vpop.f32.mrf.mxu0
        %v1964 = vadd.f32 %v1698, %v1963
        %v1965 = vpop.f32.mrf.mxu0
        %v1966 = vadd.f32 %v1702, %v1965
        %1967 = vmatprep.mubr.bf16.mxu0 0
        %1968 = vmatmul.mubr.bf16.gmra.mxu0 %v1676
        %v1969 = vpop.f32.mrf.mxu0
        %v1970 = vadd.f32 %v1698, %v1969
        %v1971 = vpop.f32.mrf.mxu0
        %v1972 = vadd.f32 %v1702, %v1971
        %v1973 = vpop.f32.mrf.mxu0
        %v1974 = vadd.f32 %v1698, %v1973
        %v1975 = vpop.f32.mrf.mxu0
        %v1976 = vadd.f32 %v1702, %v1975
        %1977 = vdwg.mxu0
        %v1978 = vmax.f32 %v1820, 0.0
        %v1979 = vmax.f32 %v1822, 0.0
        %v1980 = vmax.f32 %v1824, 0.0
        %v1981 = vmax.f32 %v1826, 0.0
        %v1982 = vmax.f32 %v1830, 0.0
        %v1983 = vmax.f32 %v1832, 0.0
        %v1984 = vmax.f32 %v1834, 0.0
        %v1985 = vmax.f32 %v1836, 0.0
        %v1986 = vmax.f32 %v1840, 0.0
        %v1987 = vmax.f32 %v1842, 0.0
        %v1988 = vmax.f32 %v1844, 0.0
        %v1989 = vmax.f32 %v1846, 0.0
        %v1990 = vmax.f32 %v1850, 0.0
        %v1991 = vmax.f32 %v1852, 0.0
        %v1992 = vmax.f32 %v1854, 0.0
        %v1993 = vmax.f32 %v1856, 0.0
        %v1994 = vmax.f32 %v1860, 0.0
        %v1995 = vmax.f32 %v1862, 0.0
        %v1996 = vmax.f32 %v1864, 0.0
        %v1997 = vmax.f32 %v1866, 0.0
        %v1998 = vmax.f32 %v1870, 0.0
        %v1999 = vmax.f32 %v1872, 0.0
        %v2000 = vmax.f32 %v1874, 0.0
        %v2001 = vmax.f32 %v1876, 0.0
        %v2002 = vmax.f32 %v1880, 0.0
        %v2003 = vmax.f32 %v1882, 0.0
        %v2004 = vmax.f32 %v1884, 0.0
        %v2005 = vmax.f32 %v1886, 0.0
        %v2006 = vmax.f32 %v1890, 0.0
        %v2007 = vmax.f32 %v1892, 0.0
        %v2008 = vmax.f32 %v1894, 0.0
        %v2009 = vmax.f32 %v1896, 0.0
        %v2010 = vmax.f32 %v1900, 0.0
        %v2011 = vmax.f32 %v1902, 0.0
        %v2012 = vmax.f32 %v1904, 0.0
        %v2013 = vmax.f32 %v1906, 0.0
        %v2014 = vmax.f32 %v1910, 0.0
        %v2015 = vmax.f32 %v1912, 0.0
        %v2016 = vmax.f32 %v1914, 0.0
        %v2017 = vmax.f32 %v1916, 0.0
        %v2018 = vmax.f32 %v1920, 0.0
        %v2019 = vmax.f32 %v1922, 0.0
        %v2020 = vmax.f32 %v1924, 0.0
        %v2021 = vmax.f32 %v1926, 0.0
        %v2022 = vmax.f32 %v1930, 0.0
        %v2023 = vmax.f32 %v1932, 0.0
        %v2024 = vmax.f32 %v1934, 0.0
        %v2025 = vmax.f32 %v1936, 0.0
        %v2026 = vmax.f32 %v1940, 0.0
        %v2027 = vmax.f32 %v1942, 0.0
        %v2028 = vmax.f32 %v1944, 0.0
        %v2029 = vmax.f32 %v1946, 0.0
        %v2030 = vmax.f32 %v1950, 0.0
        %v2031 = vmax.f32 %v1952, 0.0
        %v2032 = vmax.f32 %v1954, 0.0
        %v2033 = vmax.f32 %v1956, 0.0
        %v2034 = vmax.f32 %v1960, 0.0
        %v2035 = vmax.f32 %v1962, 0.0
        %v2036 = vmax.f32 %v1964, 0.0
        %v2037 = vmax.f32 %v1966, 0.0
        %v2038 = vmax.f32 %v1970, 0.0
        %v2039 = vmax.f32 %v1972, 0.0
        %v2040 = vmax.f32 %v1974, 0.0
        %v2041 = vmax.f32 %v1976, 0.0
        %v2042 = vpack.c.bf16 %v1980, %v1978
        %v2043 = vpack.c.bf16 %v1981, %v1979
        %v2044 = vpack.c.bf16 %v1984, %v1982
        %v2045 = vpack.c.bf16 %v1985, %v1983
        %v2046 = vpack.c.bf16 %v1988, %v1986
        %v2047 = vpack.c.bf16 %v1989, %v1987
        %v2048 = vpack.c.bf16 %v1992, %v1990
        %v2049 = vpack.c.bf16 %v1993, %v1991
        %v2050 = vpack.c.bf16 %v1996, %v1994
        %v2051 = vpack.c.bf16 %v1997, %v1995
        %v2052 = vpack.c.bf16 %v2000, %v1998
        %v2053 = vpack.c.bf16 %v2001, %v1999
        %v2054 = vpack.c.bf16 %v2004, %v2002
        %v2055 = vpack.c.bf16 %v2005, %v2003
        %v2056 = vpack.c.bf16 %v2008, %v2006
        %v2057 = vpack.c.bf16 %v2009, %v2007
        %v2058 = vpack.c.bf16 %v2012, %v2010
        %v2059 = vpack.c.bf16 %v2013, %v2011
        %v2060 = vpack.c.bf16 %v2016, %v2014
        %v2061 = vpack.c.bf16 %v2017, %v2015
        %v2062 = vpack.c.bf16 %v2020, %v2018
        %v2063 = vpack.c.bf16 %v2021, %v2019
        %v2064 = vpack.c.bf16 %v2024, %v2022
        %v2065 = vpack.c.bf16 %v2025, %v2023
        %v2066 = vpack.c.bf16 %v2028, %v2026
        %v2067 = vpack.c.bf16 %v2029, %v2027
        %v2068 = vpack.c.bf16 %v2032, %v2030
        %v2069 = vpack.c.bf16 %v2033, %v2031
        %v2070 = vpack.c.bf16 %v2036, %v2034
        %v2071 = vpack.c.bf16 %v2037, %v2035
        %v2072 = vpack.c.bf16 %v2040, %v2038
        %v2073 = vpack.c.bf16 %v2041, %v2039
        %v2074 = vld [vmem:[%s7] sm:$0xff]
        %v2075 = vld [vmem:[%s7 + $0x8] sm:$0xff]
        %v2076 = vld [vmem:[%s7 + $0x10] sm:$0xff]
        %v2077 = vld [vmem:[%s7 + $0x18] sm:$0xff]
        %v2078 = vld [vmem:[%s7 + $0x20] sm:$0xff]
        %v2079 = vld [vmem:[%s7 + $0x28] sm:$0xff]
        %v2080 = vld [vmem:[%s7 + $0x30] sm:$0xff]
        %v2081 = vld [vmem:[%s7 + $0x38] sm:$0xff]
        %v2082 = vld [vmem:[%s7 + $0x40] sm:$0xff]
        %v2083 = vld [vmem:[%s7 + $0x48] sm:$0xff]
        %v2084 = vld [vmem:[%s7 + $0x50] sm:$0xff]
        %v2085 = vld [vmem:[%s7 + $0x58] sm:$0xff]
        %v2086 = vld [vmem:[%s7 + $0x60] sm:$0xff]
        %v2087 = vld [vmem:[%s7 + $0x68] sm:$0xff]
        %v2088 = vld [vmem:[%s7 + $0x70] sm:$0xff]
        %v2089 = vld [vmem:[%s7 + $0x78] sm:$0xff]
        %v2090 = vld [vmem:[%s7 + $0x80] sm:$0xff]
        %v2091 = vld [vmem:[%s7 + $0x88] sm:$0xff]
        %v2092 = vld [vmem:[%s7 + $0x90] sm:$0xff]
        %v2093 = vld [vmem:[%s7 + $0x98] sm:$0xff]
        %v2094 = vld [vmem:[%s7 + $0xa0] sm:$0xff]
        %v2095 = vld [vmem:[%s7 + $0xa8] sm:$0xff]
        %v2096 = vld [vmem:[%s7 + $0xb0] sm:$0xff]
        %v2097 = vld [vmem:[%s7 + $0xb8] sm:$0xff]
        %v2098 = vld [vmem:[%s7 + $0xc0] sm:$0xff]
        %v2099 = vld [vmem:[%s7 + $0xc8] sm:$0xff]
        %v2100 = vld [vmem:[%s7 + $0xd0] sm:$0xff]
        %v2101 = vld [vmem:[%s7 + $0xd8] sm:$0xff]
        %v2102 = vld [vmem:[%s7 + $0xe0] sm:$0xff]
        %v2103 = vld [vmem:[%s7 + $0xe8] sm:$0xff]
        %v2104 = vld [vmem:[%s7 + $0xf0] sm:$0xff]
        %v2105 = vld [vmem:[%s7 + $0xf8] sm:$0xff]
        %v2106 = vld [vmem:[%s7 + $0x100] sm:$0xff]
        %v2107 = vld [vmem:[%s7 + $0x108] sm:$0xff]
        %v2108 = vld [vmem:[%s7 + $0x110] sm:$0xff]
        %v2109 = vld [vmem:[%s7 + $0x118] sm:$0xff]
        %v2110 = vld [vmem:[%s7 + $0x120] sm:$0xff]
        %v2111 = vld [vmem:[%s7 + $0x128] sm:$0xff]
        %v2112 = vld [vmem:[%s7 + $0x130] sm:$0xff]
        %v2113 = vld [vmem:[%s7 + $0x138] sm:$0xff]
        %v2114 = vld [vmem:[%s7 + $0x140] sm:$0xff]
        %v2115 = vld [vmem:[%s7 + $0x148] sm:$0xff]
        %v2116 = vld [vmem:[%s7 + $0x150] sm:$0xff]
        %v2117 = vld [vmem:[%s7 + $0x158] sm:$0xff]
        %v2118 = vld [vmem:[%s7 + $0x160] sm:$0xff]
        %v2119 = vld [vmem:[%s7 + $0x168] sm:$0xff]
        %v2120 = vld [vmem:[%s7 + $0x170] sm:$0xff]
        %v2121 = vld [vmem:[%s7 + $0x178] sm:$0xff]
        %v2122 = vld [vmem:[%s7 + $0x180] sm:$0xff]
        %v2123 = vld [vmem:[%s7 + $0x188] sm:$0xff]
        %v2124 = vld [vmem:[%s7 + $0x190] sm:$0xff]
        %v2125 = vld [vmem:[%s7 + $0x198] sm:$0xff]
        %v2126 = vld [vmem:[%s7 + $0x1a0] sm:$0xff]
        %v2127 = vld [vmem:[%s7 + $0x1a8] sm:$0xff]
        %v2128 = vld [vmem:[%s7 + $0x1b0] sm:$0xff]
        %v2129 = vld [vmem:[%s7 + $0x1b8] sm:$0xff]
        %v2130 = vld [vmem:[%s7 + $0x1c0] sm:$0xff]
        %v2131 = vld [vmem:[%s7 + $0x1c8] sm:$0xff]
        %v2132 = vld [vmem:[%s7 + $0x1d0] sm:$0xff]
        %v2133 = vld [vmem:[%s7 + $0x1d8] sm:$0xff]
        %v2134 = vld [vmem:[%s7 + $0x1e0] sm:$0xff]
        %v2135 = vld [vmem:[%s7 + $0x1e8] sm:$0xff]
        %v2136 = vld [vmem:[%s7 + $0x1f0] sm:$0xff]
        %v2137 = vld [vmem:[%s7 + $0x1f8] sm:$0xff]
        %v2138 = vld [vmem:[#allocation9] sm:$0xf]
        %v2140 = vlaneseq
        %v2141 = vshrl.u32 %v2140, 7
        %v2142 = vsub.s32 0, %v2141
        %v2143 = vrot.slane %v2138, %v2142
        %v2144 = vlaneseq
        %v2145 = vshrl.u32 %v2144, 7
        %v2146 = vsub.s32 1, %v2145
        %v2147 = vrot.slane %v2138, %v2146
        %v2148 = vlaneseq
        %v2149 = vshrl.u32 %v2148, 7
        %v2150 = vsub.s32 2, %v2149
        %v2151 = vrot.slane %v2138, %v2150
        %v2152 = vlaneseq
        %v2153 = vshrl.u32 %v2152, 7
        %v2154 = vsub.s32 3, %v2153
        %v2155 = vrot.slane %v2138, %v2154
        %v2224 = vunpack.c.l.b16 %v2074
        %v2225 = vunpack.c.h.b16 %v2074
        %v2226 = vunpack.c.l.b16 %v2075
        %v2227 = vunpack.c.h.b16 %v2075
        %v2228 = vunpack.c.l.b16 %v2076
        %v2229 = vunpack.c.h.b16 %v2076
        %v2230 = vunpack.c.l.b16 %v2077
        %v2231 = vunpack.c.h.b16 %v2077
        %v2232 = vunpack.c.l.b16 %v2078
        %v2233 = vunpack.c.h.b16 %v2078
        %v2234 = vunpack.c.l.b16 %v2079
        %v2235 = vunpack.c.h.b16 %v2079
        %v2236 = vunpack.c.l.b16 %v2080
        %v2237 = vunpack.c.h.b16 %v2080
        %v2238 = vunpack.c.l.b16 %v2081
        %v2239 = vunpack.c.h.b16 %v2081
        %v2240 = vunpack.c.l.b16 %v2082
        %v2241 = vunpack.c.h.b16 %v2082
        %v2242 = vunpack.c.l.b16 %v2083
        %v2243 = vunpack.c.h.b16 %v2083
        %v2244 = vunpack.c.l.b16 %v2084
        %v2245 = vunpack.c.h.b16 %v2084
        %v2246 = vunpack.c.l.b16 %v2085
        %v2247 = vunpack.c.h.b16 %v2085
        %v2248 = vunpack.c.l.b16 %v2086
        %v2249 = vunpack.c.h.b16 %v2086
        %v2250 = vunpack.c.l.b16 %v2087
        %v2251 = vunpack.c.h.b16 %v2087
        %v2252 = vunpack.c.l.b16 %v2088
        %v2253 = vunpack.c.h.b16 %v2088
        %v2254 = vunpack.c.l.b16 %v2089
        %v2255 = vunpack.c.h.b16 %v2089
        %v2256 = vunpack.c.l.b16 %v2090
        %v2257 = vunpack.c.h.b16 %v2090
        %v2258 = vunpack.c.l.b16 %v2091
        %v2259 = vunpack.c.h.b16 %v2091
        %v2260 = vunpack.c.l.b16 %v2092
        %v2261 = vunpack.c.h.b16 %v2092
        %v2262 = vunpack.c.l.b16 %v2093
        %v2263 = vunpack.c.h.b16 %v2093
        %v2264 = vunpack.c.l.b16 %v2094
        %v2265 = vunpack.c.h.b16 %v2094
        %v2266 = vunpack.c.l.b16 %v2095
        %v2267 = vunpack.c.h.b16 %v2095
        %v2268 = vunpack.c.l.b16 %v2096
        %v2269 = vunpack.c.h.b16 %v2096
        %v2270 = vunpack.c.l.b16 %v2097
        %v2271 = vunpack.c.h.b16 %v2097
        %v2272 = vunpack.c.l.b16 %v2098
        %v2273 = vunpack.c.h.b16 %v2098
        %v2274 = vunpack.c.l.b16 %v2099
        %v2275 = vunpack.c.h.b16 %v2099
        %v2276 = vunpack.c.l.b16 %v2100
        %v2277 = vunpack.c.h.b16 %v2100
        %v2278 = vunpack.c.l.b16 %v2101
        %v2279 = vunpack.c.h.b16 %v2101
        %v2280 = vunpack.c.l.b16 %v2102
        %v2281 = vunpack.c.h.b16 %v2102
        %v2282 = vunpack.c.l.b16 %v2103
        %v2283 = vunpack.c.h.b16 %v2103
        %v2284 = vunpack.c.l.b16 %v2104
        %v2285 = vunpack.c.h.b16 %v2104
        %v2286 = vunpack.c.l.b16 %v2105
        %v2287 = vunpack.c.h.b16 %v2105
        %v2288 = vunpack.c.l.b16 %v2106
        %v2289 = vunpack.c.h.b16 %v2106
        %v2290 = vunpack.c.l.b16 %v2107
        %v2291 = vunpack.c.h.b16 %v2107
        %v2292 = vunpack.c.l.b16 %v2108
        %v2293 = vunpack.c.h.b16 %v2108
        %v2294 = vunpack.c.l.b16 %v2109
        %v2295 = vunpack.c.h.b16 %v2109
        %v2296 = vunpack.c.l.b16 %v2110
        %v2297 = vunpack.c.h.b16 %v2110
        %v2298 = vunpack.c.l.b16 %v2111
        %v2299 = vunpack.c.h.b16 %v2111
        %v2300 = vunpack.c.l.b16 %v2112
        %v2301 = vunpack.c.h.b16 %v2112
        %v2302 = vunpack.c.l.b16 %v2113
        %v2303 = vunpack.c.h.b16 %v2113
        %v2304 = vunpack.c.l.b16 %v2114
        %v2305 = vunpack.c.h.b16 %v2114
        %v2306 = vunpack.c.l.b16 %v2115
        %v2307 = vunpack.c.h.b16 %v2115
        %v2308 = vunpack.c.l.b16 %v2116
        %v2309 = vunpack.c.h.b16 %v2116
        %v2310 = vunpack.c.l.b16 %v2117
        %v2311 = vunpack.c.h.b16 %v2117
        %v2312 = vunpack.c.l.b16 %v2118
        %v2313 = vunpack.c.h.b16 %v2118
        %v2314 = vunpack.c.l.b16 %v2119
        %v2315 = vunpack.c.h.b16 %v2119
        %v2316 = vunpack.c.l.b16 %v2120
        %v2317 = vunpack.c.h.b16 %v2120
        %v2318 = vunpack.c.l.b16 %v2121
        %v2319 = vunpack.c.h.b16 %v2121
        %v2320 = vunpack.c.l.b16 %v2122
        %v2321 = vunpack.c.h.b16 %v2122
        %v2322 = vunpack.c.l.b16 %v2123
        %v2323 = vunpack.c.h.b16 %v2123
        %v2324 = vunpack.c.l.b16 %v2124
        %v2325 = vunpack.c.h.b16 %v2124
        %v2326 = vunpack.c.l.b16 %v2125
        %v2327 = vunpack.c.h.b16 %v2125
        %v2328 = vunpack.c.l.b16 %v2126
        %v2329 = vunpack.c.h.b16 %v2126
        %v2330 = vunpack.c.l.b16 %v2127
        %v2331 = vunpack.c.h.b16 %v2127
        %v2332 = vunpack.c.l.b16 %v2128
        %v2333 = vunpack.c.h.b16 %v2128
        %v2334 = vunpack.c.l.b16 %v2129
        %v2335 = vunpack.c.h.b16 %v2129
        %v2336 = vunpack.c.l.b16 %v2130
        %v2337 = vunpack.c.h.b16 %v2130
        %v2338 = vunpack.c.l.b16 %v2131
        %v2339 = vunpack.c.h.b16 %v2131
        %v2340 = vunpack.c.l.b16 %v2132
        %v2341 = vunpack.c.h.b16 %v2132
        %v2342 = vunpack.c.l.b16 %v2133
        %v2343 = vunpack.c.h.b16 %v2133
        %v2344 = vunpack.c.l.b16 %v2134
        %v2345 = vunpack.c.h.b16 %v2134
        %v2346 = vunpack.c.l.b16 %v2135
        %v2347 = vunpack.c.h.b16 %v2135
        %v2348 = vunpack.c.l.b16 %v2136
        %v2349 = vunpack.c.h.b16 %v2136
        %v2350 = vunpack.c.l.b16 %v2137
        %v2351 = vunpack.c.h.b16 %v2137
        %v2352 = vpack.c.b16 %v2228, %v2224
        %v2353 = vpack.c.b16 %v2229, %v2225
        %v2354 = vpack.c.b16 %v2230, %v2226
        %v2355 = vpack.c.b16 %v2231, %v2227
        %v2356 = vpack.c.b16 %v2236, %v2232
        %v2357 = vpack.c.b16 %v2237, %v2233
        %v2358 = vpack.c.b16 %v2238, %v2234
        %v2359 = vpack.c.b16 %v2239, %v2235
        %v2360 = vpack.c.b16 %v2244, %v2240
        %v2361 = vpack.c.b16 %v2245, %v2241
        %v2362 = vpack.c.b16 %v2246, %v2242
        %v2363 = vpack.c.b16 %v2247, %v2243
        %v2364 = vpack.c.b16 %v2252, %v2248
        %v2365 = vpack.c.b16 %v2253, %v2249
        %v2366 = vpack.c.b16 %v2254, %v2250
        %v2367 = vpack.c.b16 %v2255, %v2251
        %v2368 = vpack.c.b16 %v2260, %v2256
        %v2369 = vpack.c.b16 %v2261, %v2257
        %v2370 = vpack.c.b16 %v2262, %v2258
        %v2371 = vpack.c.b16 %v2263, %v2259
        %v2372 = vpack.c.b16 %v2268, %v2264
        %v2373 = vpack.c.b16 %v2269, %v2265
        %v2374 = vpack.c.b16 %v2270, %v2266
        %v2375 = vpack.c.b16 %v2271, %v2267
        %v2376 = vpack.c.b16 %v2276, %v2272
        %v2377 = vpack.c.b16 %v2277, %v2273
        %v2378 = vpack.c.b16 %v2278, %v2274
        %v2379 = vpack.c.b16 %v2279, %v2275
        %v2380 = vpack.c.b16 %v2284, %v2280
        %v2381 = vpack.c.b16 %v2285, %v2281
        %v2382 = vpack.c.b16 %v2286, %v2282
        %v2383 = vpack.c.b16 %v2287, %v2283
        %v2384 = vpack.c.b16 %v2292, %v2288
        %v2385 = vpack.c.b16 %v2293, %v2289
        %v2386 = vpack.c.b16 %v2294, %v2290
        %v2387 = vpack.c.b16 %v2295, %v2291
        %v2388 = vpack.c.b16 %v2300, %v2296
        %v2389 = vpack.c.b16 %v2301, %v2297
        %v2390 = vpack.c.b16 %v2302, %v2298
        %v2391 = vpack.c.b16 %v2303, %v2299
        %v2392 = vpack.c.b16 %v2308, %v2304
        %v2393 = vpack.c.b16 %v2309, %v2305
        %v2394 = vpack.c.b16 %v2310, %v2306
        %v2395 = vpack.c.b16 %v2311, %v2307
        %v2396 = vpack.c.b16 %v2316, %v2312
        %v2397 = vpack.c.b16 %v2317, %v2313
        %v2398 = vpack.c.b16 %v2318, %v2314
        %v2399 = vpack.c.b16 %v2319, %v2315
        %v2400 = vpack.c.b16 %v2324, %v2320
        %v2401 = vpack.c.b16 %v2325, %v2321
        %v2402 = vpack.c.b16 %v2326, %v2322
        %v2403 = vpack.c.b16 %v2327, %v2323
        %v2404 = vpack.c.b16 %v2332, %v2328
        %v2405 = vpack.c.b16 %v2333, %v2329
        %v2406 = vpack.c.b16 %v2334, %v2330
        %v2407 = vpack.c.b16 %v2335, %v2331
        %v2408 = vpack.c.b16 %v2340, %v2336
        %v2409 = vpack.c.b16 %v2341, %v2337
        %v2410 = vpack.c.b16 %v2342, %v2338
        %v2411 = vpack.c.b16 %v2343, %v2339
        %v2412 = vpack.c.b16 %v2348, %v2344
        %v2413 = vpack.c.b16 %v2349, %v2345
        %v2414 = vpack.c.b16 %v2350, %v2346
        %v2415 = vpack.c.b16 %v2351, %v2347
        %2480 = vmatprep.subr.bf16.mxu0 %v2381
        %2481 = vmatpush1.bf16.msra.mxu0 %v2380
        %2482 = vmatprep.subr.bf16.mxu0 %v2377
        %2483 = vmatpush1.bf16.msra.mxu0 %v2376
        %2484 = vmatprep.subr.bf16.mxu0 %v2373
        %2485 = vmatpush1.bf16.msra.mxu0 %v2372
        %2486 = vmatprep.subr.bf16.mxu0 %v2369
        %2487 = vmatpush1.bf16.msra.mxu0 %v2368
        %2488 = vmatprep.subr.bf16.mxu0 %v2365
        %2489 = vmatpush1.bf16.msra.mxu0 %v2364
        %2490 = vmatprep.subr.bf16.mxu0 %v2361
        %2491 = vmatpush1.bf16.msra.mxu0 %v2360
        %2492 = vmatprep.subr.bf16.mxu0 %v2357
        %2493 = vmatpush1.bf16.msra.mxu0 %v2356
        %2494 = vmatprep.subr.bf16.mxu0 %v2353
        %2495 = vmatpush1.bf16.msra.mxu0 %v2352
        %2496 = vmatprep.subr.bf16.mxu0 %v2413
        %2497 = vmatpush2.bf16.msra.mxu0 %v2412
        %2498 = vmatprep.subr.bf16.mxu0 %v2409
        %2499 = vmatpush2.bf16.msra.mxu0 %v2408
        %2500 = vmatprep.subr.bf16.mxu0 %v2405
        %2501 = vmatpush2.bf16.msra.mxu0 %v2404
        %2502 = vmatprep.subr.bf16.mxu0 %v2401
        %2503 = vmatpush2.bf16.msra.mxu0 %v2400
        %2504 = vmatprep.subr.bf16.mxu0 %v2397
        %2505 = vmatpush2.bf16.msra.mxu0 %v2396
        %2506 = vmatprep.subr.bf16.mxu0 %v2393
        %2507 = vmatpush2.bf16.msra.mxu0 %v2392
        %2508 = vmatprep.subr.bf16.mxu0 %v2389
        %2509 = vmatpush2.bf16.msra.mxu0 %v2388
        %2510 = vmatprep.subr.bf16.mxu0 %v2385
        %2511 = vmatpush2.bf16.msra.mxu0 %v2384
        %2512 = vmatprep.mubr.bf16.mxu0 %v2043
        %2513 = vmatmul.mubr.bf16.gmra.mxu0 %v2042
        %v2514 = vpop.f32.mrf.mxu0
        %v2515 = vadd.f32 %v2143, %v2514
        %v2516 = vpop.f32.mrf.mxu0
        %v2517 = vadd.f32 %v2147, %v2516
        %v2518 = vpop.f32.mrf.mxu0
        %v2519 = vadd.f32 %v2143, %v2518
        %v2520 = vpop.f32.mrf.mxu0
        %v2521 = vadd.f32 %v2147, %v2520
        %2522 = vmatprep.mubr.bf16.mxu0 %v2045
        %2523 = vmatmul.mubr.bf16.gmra.mxu0 %v2044
        %v2524 = vpop.f32.mrf.mxu0
        %v2525 = vadd.f32 %v2143, %v2524
        %v2526 = vpop.f32.mrf.mxu0
        %v2527 = vadd.f32 %v2147, %v2526
        %v2528 = vpop.f32.mrf.mxu0
        %v2529 = vadd.f32 %v2143, %v2528
        %v2530 = vpop.f32.mrf.mxu0
        %v2531 = vadd.f32 %v2147, %v2530
        %2532 = vmatprep.mubr.bf16.mxu0 %v2047
        %2533 = vmatmul.mubr.bf16.gmra.mxu0 %v2046
        %v2534 = vpop.f32.mrf.mxu0
        %v2535 = vadd.f32 %v2143, %v2534
        %v2536 = vpop.f32.mrf.mxu0
        %v2537 = vadd.f32 %v2147, %v2536
        %v2538 = vpop.f32.mrf.mxu0
        %v2539 = vadd.f32 %v2143, %v2538
        %v2540 = vpop.f32.mrf.mxu0
        %v2541 = vadd.f32 %v2147, %v2540
        %2542 = vmatprep.mubr.bf16.mxu0 %v2049
        %2543 = vmatmul.mubr.bf16.gmra.mxu0 %v2048
        %v2544 = vpop.f32.mrf.mxu0
        %v2545 = vadd.f32 %v2143, %v2544
        %v2546 = vpop.f32.mrf.mxu0
        %v2547 = vadd.f32 %v2147, %v2546
        %v2548 = vpop.f32.mrf.mxu0
        %v2549 = vadd.f32 %v2143, %v2548
        %v2550 = vpop.f32.mrf.mxu0
        %v2551 = vadd.f32 %v2147, %v2550
        %2552 = vmatprep.mubr.bf16.mxu0 %v2051
        %2553 = vmatmul.mubr.bf16.gmra.mxu0 %v2050
        %v2554 = vpop.f32.mrf.mxu0
        %v2555 = vadd.f32 %v2143, %v2554
        %v2556 = vpop.f32.mrf.mxu0
        %v2557 = vadd.f32 %v2147, %v2556
        %v2558 = vpop.f32.mrf.mxu0
        %v2559 = vadd.f32 %v2143, %v2558
        %v2560 = vpop.f32.mrf.mxu0
        %v2561 = vadd.f32 %v2147, %v2560
        %2562 = vmatprep.mubr.bf16.mxu0 %v2053
        %2563 = vmatmul.mubr.bf16.gmra.mxu0 %v2052
        %v2564 = vpop.f32.mrf.mxu0
        %v2565 = vadd.f32 %v2143, %v2564
        %v2566 = vpop.f32.mrf.mxu0
        %v2567 = vadd.f32 %v2147, %v2566
        %v2568 = vpop.f32.mrf.mxu0
        %v2569 = vadd.f32 %v2143, %v2568
        %v2570 = vpop.f32.mrf.mxu0
        %v2571 = vadd.f32 %v2147, %v2570
        %2572 = vmatprep.mubr.bf16.mxu0 %v2055
        %2573 = vmatmul.mubr.bf16.gmra.mxu0 %v2054
        %v2574 = vpop.f32.mrf.mxu0
        %v2575 = vadd.f32 %v2143, %v2574
        %v2576 = vpop.f32.mrf.mxu0
        %v2577 = vadd.f32 %v2147, %v2576
        %v2578 = vpop.f32.mrf.mxu0
        %v2579 = vadd.f32 %v2143, %v2578
        %v2580 = vpop.f32.mrf.mxu0
        %v2581 = vadd.f32 %v2147, %v2580
        %2582 = vmatprep.mubr.bf16.mxu0 %v2057
        %2583 = vmatmul.mubr.bf16.gmra.mxu0 %v2056
        %v2584 = vpop.f32.mrf.mxu0
        %v2585 = vadd.f32 %v2143, %v2584
        %v2586 = vpop.f32.mrf.mxu0
        %v2587 = vadd.f32 %v2147, %v2586
        %v2588 = vpop.f32.mrf.mxu0
        %v2589 = vadd.f32 %v2143, %v2588
        %v2590 = vpop.f32.mrf.mxu0
        %v2591 = vadd.f32 %v2147, %v2590
        %2592 = vmatprep.mubr.bf16.mxu0 %v2059
        %2593 = vmatmul.mubr.bf16.gmra.mxu0 %v2058
        %v2594 = vpop.f32.mrf.mxu0
        %v2595 = vadd.f32 %v2143, %v2594
        %v2596 = vpop.f32.mrf.mxu0
        %v2597 = vadd.f32 %v2147, %v2596
        %v2598 = vpop.f32.mrf.mxu0
        %v2599 = vadd.f32 %v2143, %v2598
        %v2600 = vpop.f32.mrf.mxu0
        %v2601 = vadd.f32 %v2147, %v2600
        %2602 = vmatprep.mubr.bf16.mxu0 %v2061
        %2603 = vmatmul.mubr.bf16.gmra.mxu0 %v2060
        %v2604 = vpop.f32.mrf.mxu0
        %v2605 = vadd.f32 %v2143, %v2604
        %v2606 = vpop.f32.mrf.mxu0
        %v2607 = vadd.f32 %v2147, %v2606
        %v2608 = vpop.f32.mrf.mxu0
        %v2609 = vadd.f32 %v2143, %v2608
        %v2610 = vpop.f32.mrf.mxu0
        %v2611 = vadd.f32 %v2147, %v2610
        %2612 = vmatprep.mubr.bf16.mxu0 %v2063
        %2613 = vmatmul.mubr.bf16.gmra.mxu0 %v2062
        %v2614 = vpop.f32.mrf.mxu0
        %v2615 = vadd.f32 %v2143, %v2614
        %v2616 = vpop.f32.mrf.mxu0
        %v2617 = vadd.f32 %v2147, %v2616
        %v2618 = vpop.f32.mrf.mxu0
        %v2619 = vadd.f32 %v2143, %v2618
        %v2620 = vpop.f32.mrf.mxu0
        %v2621 = vadd.f32 %v2147, %v2620
        %2622 = vmatprep.mubr.bf16.mxu0 %v2065
        %2623 = vmatmul.mubr.bf16.gmra.mxu0 %v2064
        %v2624 = vpop.f32.mrf.mxu0
        %v2625 = vadd.f32 %v2143, %v2624
        %v2626 = vpop.f32.mrf.mxu0
        %v2627 = vadd.f32 %v2147, %v2626
        %v2628 = vpop.f32.mrf.mxu0
        %v2629 = vadd.f32 %v2143, %v2628
        %v2630 = vpop.f32.mrf.mxu0
        %v2631 = vadd.f32 %v2147, %v2630
        %2632 = vmatprep.mubr.bf16.mxu0 %v2067
        %2633 = vmatmul.mubr.bf16.gmra.mxu0 %v2066
        %v2634 = vpop.f32.mrf.mxu0
        %v2635 = vadd.f32 %v2143, %v2634
        %v2636 = vpop.f32.mrf.mxu0
        %v2637 = vadd.f32 %v2147, %v2636
        %v2638 = vpop.f32.mrf.mxu0
        %v2639 = vadd.f32 %v2143, %v2638
        %v2640 = vpop.f32.mrf.mxu0
        %v2641 = vadd.f32 %v2147, %v2640
        %2642 = vmatprep.mubr.bf16.mxu0 %v2069
        %2643 = vmatmul.mubr.bf16.gmra.mxu0 %v2068
        %v2644 = vpop.f32.mrf.mxu0
        %v2645 = vadd.f32 %v2143, %v2644
        %v2646 = vpop.f32.mrf.mxu0
        %v2647 = vadd.f32 %v2147, %v2646
        %v2648 = vpop.f32.mrf.mxu0
        %v2649 = vadd.f32 %v2143, %v2648
        %v2650 = vpop.f32.mrf.mxu0
        %v2651 = vadd.f32 %v2147, %v2650
        %2652 = vmatprep.mubr.bf16.mxu0 %v2071
        %2653 = vmatmul.mubr.bf16.gmra.mxu0 %v2070
        %v2654 = vpop.f32.mrf.mxu0
        %v2655 = vadd.f32 %v2143, %v2654
        %v2656 = vpop.f32.mrf.mxu0
        %v2657 = vadd.f32 %v2147, %v2656
        %v2658 = vpop.f32.mrf.mxu0
        %v2659 = vadd.f32 %v2143, %v2658
        %v2660 = vpop.f32.mrf.mxu0
        %v2661 = vadd.f32 %v2147, %v2660
        %2662 = vmatprep.mubr.bf16.mxu0 %v2073
        %2663 = vmatmul.mubr.bf16.gmra.mxu0 %v2072
        %v2664 = vpop.f32.mrf.mxu0
        %v2665 = vadd.f32 %v2143, %v2664
        %v2666 = vpop.f32.mrf.mxu0
        %v2667 = vadd.f32 %v2147, %v2666
        %v2668 = vpop.f32.mrf.mxu0
        %v2669 = vadd.f32 %v2143, %v2668
        %v2670 = vpop.f32.mrf.mxu0
        %v2671 = vadd.f32 %v2147, %v2670
        %2672 = vdwg.mxu0
        %2673 = vmatprep.subr.bf16.mxu0 %v2383
        %2674 = vmatpush1.bf16.msra.mxu0 %v2382
        %2675 = vmatprep.subr.bf16.mxu0 %v2379
        %2676 = vmatpush1.bf16.msra.mxu0 %v2378
        %2677 = vmatprep.subr.bf16.mxu0 %v2375
        %2678 = vmatpush1.bf16.msra.mxu0 %v2374
        %2679 = vmatprep.subr.bf16.mxu0 %v2371
        %2680 = vmatpush1.bf16.msra.mxu0 %v2370
        %2681 = vmatprep.subr.bf16.mxu0 %v2367
        %2682 = vmatpush1.bf16.msra.mxu0 %v2366
        %2683 = vmatprep.subr.bf16.mxu0 %v2363
        %2684 = vmatpush1.bf16.msra.mxu0 %v2362
        %2685 = vmatprep.subr.bf16.mxu0 %v2359
        %2686 = vmatpush1.bf16.msra.mxu0 %v2358
        %2687 = vmatprep.subr.bf16.mxu0 %v2355
        %2688 = vmatpush1.bf16.msra.mxu0 %v2354
        %2689 = vmatprep.subr.bf16.mxu0 %v2415
        %2690 = vmatpush2.bf16.msra.mxu0 %v2414
        %2691 = vmatprep.subr.bf16.mxu0 %v2411
        %2692 = vmatpush2.bf16.msra.mxu0 %v2410
        %2693 = vmatprep.subr.bf16.mxu0 %v2407
        %2694 = vmatpush2.bf16.msra.mxu0 %v2406
        %2695 = vmatprep.subr.bf16.mxu0 %v2403
        %2696 = vmatpush2.bf16.msra.mxu0 %v2402
        %2697 = vmatprep.subr.bf16.mxu0 %v2399
        %2698 = vmatpush2.bf16.msra.mxu0 %v2398
        %2699 = vmatprep.subr.bf16.mxu0 %v2395
        %2700 = vmatpush2.bf16.msra.mxu0 %v2394
        %2701 = vmatprep.subr.bf16.mxu0 %v2391
        %2702 = vmatpush2.bf16.msra.mxu0 %v2390
        %2703 = vmatprep.subr.bf16.mxu0 %v2387
        %2704 = vmatpush2.bf16.msra.mxu0 %v2386
        %2705 = vmatprep.mubr.bf16.mxu0 %v2043
        %2706 = vmatmul.mubr.bf16.gmra.mxu0 %v2042
        %v2707 = vpop.f32.mrf.mxu0
        %v2708 = vadd.f32 %v2151, %v2707
        %v2709 = vpop.f32.mrf.mxu0
        %v2710 = vadd.f32 %v2155, %v2709
        %v2711 = vpop.f32.mrf.mxu0
        %v2712 = vadd.f32 %v2151, %v2711
        %v2713 = vpop.f32.mrf.mxu0
        %v2714 = vadd.f32 %v2155, %v2713
        %2715 = vmatprep.mubr.bf16.mxu0 %v2045
        %2716 = vmatmul.mubr.bf16.gmra.mxu0 %v2044
        %v2717 = vpop.f32.mrf.mxu0
        %v2718 = vadd.f32 %v2151, %v2717
        %v2719 = vpop.f32.mrf.mxu0
        %v2720 = vadd.f32 %v2155, %v2719
        %v2721 = vpop.f32.mrf.mxu0
        %v2722 = vadd.f32 %v2151, %v2721
        %v2723 = vpop.f32.mrf.mxu0
        %v2724 = vadd.f32 %v2155, %v2723
        %2725 = vmatprep.mubr.bf16.mxu0 %v2047
        %2726 = vmatmul.mubr.bf16.gmra.mxu0 %v2046
        %v2727 = vpop.f32.mrf.mxu0
        %v2728 = vadd.f32 %v2151, %v2727
        %v2729 = vpop.f32.mrf.mxu0
        %v2730 = vadd.f32 %v2155, %v2729
        %v2731 = vpop.f32.mrf.mxu0
        %v2732 = vadd.f32 %v2151, %v2731
        %v2733 = vpop.f32.mrf.mxu0
        %v2734 = vadd.f32 %v2155, %v2733
        %2735 = vmatprep.mubr.bf16.mxu0 %v2049
        %2736 = vmatmul.mubr.bf16.gmra.mxu0 %v2048
        %v2737 = vpop.f32.mrf.mxu0
        %v2738 = vadd.f32 %v2151, %v2737
        %v2739 = vpop.f32.mrf.mxu0
        %v2740 = vadd.f32 %v2155, %v2739
        %v2741 = vpop.f32.mrf.mxu0
        %v2742 = vadd.f32 %v2151, %v2741
        %v2743 = vpop.f32.mrf.mxu0
        %v2744 = vadd.f32 %v2155, %v2743
        %2745 = vmatprep.mubr.bf16.mxu0 %v2051
        %2746 = vmatmul.mubr.bf16.gmra.mxu0 %v2050
        %v2747 = vpop.f32.mrf.mxu0
        %v2748 = vadd.f32 %v2151, %v2747
        %v2749 = vpop.f32.mrf.mxu0
        %v2750 = vadd.f32 %v2155, %v2749
        %v2751 = vpop.f32.mrf.mxu0
        %v2752 = vadd.f32 %v2151, %v2751
        %v2753 = vpop.f32.mrf.mxu0
        %v2754 = vadd.f32 %v2155, %v2753
        %2755 = vmatprep.mubr.bf16.mxu0 %v2053
        %2756 = vmatmul.mubr.bf16.gmra.mxu0 %v2052
        %v2757 = vpop.f32.mrf.mxu0
        %v2758 = vadd.f32 %v2151, %v2757
        %v2759 = vpop.f32.mrf.mxu0
        %v2760 = vadd.f32 %v2155, %v2759
        %v2761 = vpop.f32.mrf.mxu0
        %v2762 = vadd.f32 %v2151, %v2761
        %v2763 = vpop.f32.mrf.mxu0
        %v2764 = vadd.f32 %v2155, %v2763
        %2765 = vmatprep.mubr.bf16.mxu0 %v2055
        %2766 = vmatmul.mubr.bf16.gmra.mxu0 %v2054
        %v2767 = vpop.f32.mrf.mxu0
        %v2768 = vadd.f32 %v2151, %v2767
        %v2769 = vpop.f32.mrf.mxu0
        %v2770 = vadd.f32 %v2155, %v2769
        %v2771 = vpop.f32.mrf.mxu0
        %v2772 = vadd.f32 %v2151, %v2771
        %v2773 = vpop.f32.mrf.mxu0
        %v2774 = vadd.f32 %v2155, %v2773
        %2775 = vmatprep.mubr.bf16.mxu0 %v2057
        %2776 = vmatmul.mubr.bf16.gmra.mxu0 %v2056
        %v2777 = vpop.f32.mrf.mxu0
        %v2778 = vadd.f32 %v2151, %v2777
        %v2779 = vpop.f32.mrf.mxu0
        %v2780 = vadd.f32 %v2155, %v2779
        %v2781 = vpop.f32.mrf.mxu0
        %v2782 = vadd.f32 %v2151, %v2781
        %v2783 = vpop.f32.mrf.mxu0
        %v2784 = vadd.f32 %v2155, %v2783
        %2785 = vmatprep.mubr.bf16.mxu0 %v2059
        %2786 = vmatmul.mubr.bf16.gmra.mxu0 %v2058
        %v2787 = vpop.f32.mrf.mxu0
        %v2788 = vadd.f32 %v2151, %v2787
        %v2789 = vpop.f32.mrf.mxu0
        %v2790 = vadd.f32 %v2155, %v2789
        %v2791 = vpop.f32.mrf.mxu0
        %v2792 = vadd.f32 %v2151, %v2791
        %v2793 = vpop.f32.mrf.mxu0
        %v2794 = vadd.f32 %v2155, %v2793
        %2795 = vmatprep.mubr.bf16.mxu0 %v2061
        %2796 = vmatmul.mubr.bf16.gmra.mxu0 %v2060
        %v2797 = vpop.f32.mrf.mxu0
        %v2798 = vadd.f32 %v2151, %v2797
        %v2799 = vpop.f32.mrf.mxu0
        %v2800 = vadd.f32 %v2155, %v2799
        %v2801 = vpop.f32.mrf.mxu0
        %v2802 = vadd.f32 %v2151, %v2801
        %v2803 = vpop.f32.mrf.mxu0
        %v2804 = vadd.f32 %v2155, %v2803
        %2805 = vmatprep.mubr.bf16.mxu0 %v2063
        %2806 = vmatmul.mubr.bf16.gmra.mxu0 %v2062
        %v2807 = vpop.f32.mrf.mxu0
        %v2808 = vadd.f32 %v2151, %v2807
        %v2809 = vpop.f32.mrf.mxu0
        %v2810 = vadd.f32 %v2155, %v2809
        %v2811 = vpop.f32.mrf.mxu0
        %v2812 = vadd.f32 %v2151, %v2811
        %v2813 = vpop.f32.mrf.mxu0
        %v2814 = vadd.f32 %v2155, %v2813
        %2815 = vmatprep.mubr.bf16.mxu0 %v2065
        %2816 = vmatmul.mubr.bf16.gmra.mxu0 %v2064
        %v2817 = vpop.f32.mrf.mxu0
        %v2818 = vadd.f32 %v2151, %v2817
        %v2819 = vpop.f32.mrf.mxu0
        %v2820 = vadd.f32 %v2155, %v2819
        %v2821 = vpop.f32.mrf.mxu0
        %v2822 = vadd.f32 %v2151, %v2821
        %v2823 = vpop.f32.mrf.mxu0
        %v2824 = vadd.f32 %v2155, %v2823
        %2825 = vmatprep.mubr.bf16.mxu0 %v2067
        %2826 = vmatmul.mubr.bf16.gmra.mxu0 %v2066
        %v2827 = vpop.f32.mrf.mxu0
        %v2828 = vadd.f32 %v2151, %v2827
        %v2829 = vpop.f32.mrf.mxu0
        %v2830 = vadd.f32 %v2155, %v2829
        %v2831 = vpop.f32.mrf.mxu0
        %v2832 = vadd.f32 %v2151, %v2831
        %v2833 = vpop.f32.mrf.mxu0
        %v2834 = vadd.f32 %v2155, %v2833
        %2835 = vmatprep.mubr.bf16.mxu0 %v2069
        %2836 = vmatmul.mubr.bf16.gmra.mxu0 %v2068
        %v2837 = vpop.f32.mrf.mxu0
        %v2838 = vadd.f32 %v2151, %v2837
        %v2839 = vpop.f32.mrf.mxu0
        %v2840 = vadd.f32 %v2155, %v2839
        %v2841 = vpop.f32.mrf.mxu0
        %v2842 = vadd.f32 %v2151, %v2841
        %v2843 = vpop.f32.mrf.mxu0
        %v2844 = vadd.f32 %v2155, %v2843
        %2845 = vmatprep.mubr.bf16.mxu0 %v2071
        %2846 = vmatmul.mubr.bf16.gmra.mxu0 %v2070
        %v2847 = vpop.f32.mrf.mxu0
        %v2848 = vadd.f32 %v2151, %v2847
        %v2849 = vpop.f32.mrf.mxu0
        %v2850 = vadd.f32 %v2155, %v2849
        %v2851 = vpop.f32.mrf.mxu0
        %v2852 = vadd.f32 %v2151, %v2851
        %v2853 = vpop.f32.mrf.mxu0
        %v2854 = vadd.f32 %v2155, %v2853
        %2855 = vmatprep.mubr.bf16.mxu0 %v2073
        %2856 = vmatmul.mubr.bf16.gmra.mxu0 %v2072
        %v2857 = vpop.f32.mrf.mxu0
        %v2858 = vadd.f32 %v2151, %v2857
        %v2859 = vpop.f32.mrf.mxu0
        %v2860 = vadd.f32 %v2155, %v2859
        %v2861 = vpop.f32.mrf.mxu0
        %v2862 = vadd.f32 %v2151, %v2861
        %v2863 = vpop.f32.mrf.mxu0
        %v2864 = vadd.f32 %v2155, %v2863
        %2865 = vdwg.mxu0
        %v2866 = vmax.f32 %v2515, 0.0
        %v2867 = vmax.f32 %v2517, 0.0
        %v2868 = vmax.f32 %v2708, 0.0
        %v2869 = vmax.f32 %v2710, 0.0
        %v2870 = vmax.f32 %v2519, 0.0
        %v2871 = vmax.f32 %v2521, 0.0
        %v2872 = vmax.f32 %v2712, 0.0
        %v2873 = vmax.f32 %v2714, 0.0
        %v2874 = vmax.f32 %v2525, 0.0
        %v2875 = vmax.f32 %v2527, 0.0
        %v2876 = vmax.f32 %v2718, 0.0
        %v2877 = vmax.f32 %v2720, 0.0
        %v2878 = vmax.f32 %v2529, 0.0
        %v2879 = vmax.f32 %v2531, 0.0
        %v2880 = vmax.f32 %v2722, 0.0
        %v2881 = vmax.f32 %v2724, 0.0
        %v2882 = vmax.f32 %v2535, 0.0
        %v2883 = vmax.f32 %v2537, 0.0
        %v2884 = vmax.f32 %v2728, 0.0
        %v2885 = vmax.f32 %v2730, 0.0
        %v2886 = vmax.f32 %v2539, 0.0
        %v2887 = vmax.f32 %v2541, 0.0
        %v2888 = vmax.f32 %v2732, 0.0
        %v2889 = vmax.f32 %v2734, 0.0
        %v2890 = vmax.f32 %v2545, 0.0
        %v2891 = vmax.f32 %v2547, 0.0
        %v2892 = vmax.f32 %v2738, 0.0
        %v2893 = vmax.f32 %v2740, 0.0
        %v2894 = vmax.f32 %v2549, 0.0
        %v2895 = vmax.f32 %v2551, 0.0
        %v2896 = vmax.f32 %v2742, 0.0
        %v2897 = vmax.f32 %v2744, 0.0
        %v2898 = vmax.f32 %v2555, 0.0
        %v2899 = vmax.f32 %v2557, 0.0
        %v2900 = vmax.f32 %v2748, 0.0
        %v2901 = vmax.f32 %v2750, 0.0
        %v2902 = vmax.f32 %v2559, 0.0
        %v2903 = vmax.f32 %v2561, 0.0
        %v2904 = vmax.f32 %v2752, 0.0
        %v2905 = vmax.f32 %v2754, 0.0
        %v2906 = vmax.f32 %v2565, 0.0
        %v2907 = vmax.f32 %v2567, 0.0
        %v2908 = vmax.f32 %v2758, 0.0
        %v2909 = vmax.f32 %v2760, 0.0
        %v2910 = vmax.f32 %v2569, 0.0
        %v2911 = vmax.f32 %v2571, 0.0
        %v2912 = vmax.f32 %v2762, 0.0
        %v2913 = vmax.f32 %v2764, 0.0
        %v2914 = vmax.f32 %v2575, 0.0
        %v2915 = vmax.f32 %v2577, 0.0
        %v2916 = vmax.f32 %v2768, 0.0
        %v2917 = vmax.f32 %v2770, 0.0
        %v2918 = vmax.f32 %v2579, 0.0
        %v2919 = vmax.f32 %v2581, 0.0
        %v2920 = vmax.f32 %v2772, 0.0
        %v2921 = vmax.f32 %v2774, 0.0
        %v2922 = vmax.f32 %v2585, 0.0
        %v2923 = vmax.f32 %v2587, 0.0
        %v2924 = vmax.f32 %v2778, 0.0
        %v2925 = vmax.f32 %v2780, 0.0
        %v2926 = vmax.f32 %v2589, 0.0
        %v2927 = vmax.f32 %v2591, 0.0
        %v2928 = vmax.f32 %v2782, 0.0
        %v2929 = vmax.f32 %v2784, 0.0
        %v2930 = vmax.f32 %v2595, 0.0
        %v2931 = vmax.f32 %v2597, 0.0
        %v2932 = vmax.f32 %v2788, 0.0
        %v2933 = vmax.f32 %v2790, 0.0
        %v2934 = vmax.f32 %v2599, 0.0
        %v2935 = vmax.f32 %v2601, 0.0
        %v2936 = vmax.f32 %v2792, 0.0
        %v2937 = vmax.f32 %v2794, 0.0
        %v2938 = vmax.f32 %v2605, 0.0
        %v2939 = vmax.f32 %v2607, 0.0
        %v2940 = vmax.f32 %v2798, 0.0
        %v2941 = vmax.f32 %v2800, 0.0
        %v2942 = vmax.f32 %v2609, 0.0
        %v2943 = vmax.f32 %v2611, 0.0
        %v2944 = vmax.f32 %v2802, 0.0
        %v2945 = vmax.f32 %v2804, 0.0
        %v2946 = vmax.f32 %v2615, 0.0
        %v2947 = vmax.f32 %v2617, 0.0
        %v2948 = vmax.f32 %v2808, 0.0
        %v2949 = vmax.f32 %v2810, 0.0
        %v2950 = vmax.f32 %v2619, 0.0
        %v2951 = vmax.f32 %v2621, 0.0
        %v2952 = vmax.f32 %v2812, 0.0
        %v2953 = vmax.f32 %v2814, 0.0
        %v2954 = vmax.f32 %v2625, 0.0
        %v2955 = vmax.f32 %v2627, 0.0
        %v2956 = vmax.f32 %v2818, 0.0
        %v2957 = vmax.f32 %v2820, 0.0
        %v2958 = vmax.f32 %v2629, 0.0
        %v2959 = vmax.f32 %v2631, 0.0
        %v2960 = vmax.f32 %v2822, 0.0
        %v2961 = vmax.f32 %v2824, 0.0
        %v2962 = vmax.f32 %v2635, 0.0
        %v2963 = vmax.f32 %v2637, 0.0
        %v2964 = vmax.f32 %v2828, 0.0
        %v2965 = vmax.f32 %v2830, 0.0
        %v2966 = vmax.f32 %v2639, 0.0
        %v2967 = vmax.f32 %v2641, 0.0
        %v2968 = vmax.f32 %v2832, 0.0
        %v2969 = vmax.f32 %v2834, 0.0
        %v2970 = vmax.f32 %v2645, 0.0
        %v2971 = vmax.f32 %v2647, 0.0
        %v2972 = vmax.f32 %v2838, 0.0
        %v2973 = vmax.f32 %v2840, 0.0
        %v2974 = vmax.f32 %v2649, 0.0
        %v2975 = vmax.f32 %v2651, 0.0
        %v2976 = vmax.f32 %v2842, 0.0
        %v2977 = vmax.f32 %v2844, 0.0
        %v2978 = vmax.f32 %v2655, 0.0
        %v2979 = vmax.f32 %v2657, 0.0
        %v2980 = vmax.f32 %v2848, 0.0
        %v2981 = vmax.f32 %v2850, 0.0
        %v2982 = vmax.f32 %v2659, 0.0
        %v2983 = vmax.f32 %v2661, 0.0
        %v2984 = vmax.f32 %v2852, 0.0
        %v2985 = vmax.f32 %v2854, 0.0
        %v2986 = vmax.f32 %v2665, 0.0
        %v2987 = vmax.f32 %v2667, 0.0
        %v2988 = vmax.f32 %v2858, 0.0
        %v2989 = vmax.f32 %v2860, 0.0
        %v2990 = vmax.f32 %v2669, 0.0
        %v2991 = vmax.f32 %v2671, 0.0
        %v2992 = vmax.f32 %v2862, 0.0
        %v2993 = vmax.f32 %v2864, 0.0
        %v2994 = vpack.c.bf16 %v2870, %v2866
        %v2995 = vpack.c.bf16 %v2871, %v2867
        %v2996 = vpack.c.bf16 %v2872, %v2868
        %v2997 = vpack.c.bf16 %v2873, %v2869
        %v2998 = vpack.c.bf16 %v2878, %v2874
        %v2999 = vpack.c.bf16 %v2879, %v2875
        %v3000 = vpack.c.bf16 %v2880, %v2876
        %v3001 = vpack.c.bf16 %v2881, %v2877
        %v3002 = vpack.c.bf16 %v2886, %v2882
        %v3003 = vpack.c.bf16 %v2887, %v2883
        %v3004 = vpack.c.bf16 %v2888, %v2884
        %v3005 = vpack.c.bf16 %v2889, %v2885
        %v3006 = vpack.c.bf16 %v2894, %v2890
        %v3007 = vpack.c.bf16 %v2895, %v2891
        %v3008 = vpack.c.bf16 %v2896, %v2892
        %v3009 = vpack.c.bf16 %v2897, %v2893
        %v3010 = vpack.c.bf16 %v2902, %v2898
        %v3011 = vpack.c.bf16 %v2903, %v2899
        %v3012 = vpack.c.bf16 %v2904, %v2900
        %v3013 = vpack.c.bf16 %v2905, %v2901
        %v3014 = vpack.c.bf16 %v2910, %v2906
        %v3015 = vpack.c.bf16 %v2911, %v2907
        %v3016 = vpack.c.bf16 %v2912, %v2908
        %v3017 = vpack.c.bf16 %v2913, %v2909
        %v3018 = vpack.c.bf16 %v2918, %v2914
        %v3019 = vpack.c.bf16 %v2919, %v2915
        %v3020 = vpack.c.bf16 %v2920, %v2916
        %v3021 = vpack.c.bf16 %v2921, %v2917
        %v3022 = vpack.c.bf16 %v2926, %v2922
        %v3023 = vpack.c.bf16 %v2927, %v2923
        %v3024 = vpack.c.bf16 %v2928, %v2924
        %v3025 = vpack.c.bf16 %v2929, %v2925
        %v3026 = vpack.c.bf16 %v2934, %v2930
        %v3027 = vpack.c.bf16 %v2935, %v2931
        %v3028 = vpack.c.bf16 %v2936, %v2932
        %v3029 = vpack.c.bf16 %v2937, %v2933
        %v3030 = vpack.c.bf16 %v2942, %v2938
        %v3031 = vpack.c.bf16 %v2943, %v2939
        %v3032 = vpack.c.bf16 %v2944, %v2940
        %v3033 = vpack.c.bf16 %v2945, %v2941
        %v3034 = vpack.c.bf16 %v2950, %v2946
        %v3035 = vpack.c.bf16 %v2951, %v2947
        %v3036 = vpack.c.bf16 %v2952, %v2948
        %v3037 = vpack.c.bf16 %v2953, %v2949
        %v3038 = vpack.c.bf16 %v2958, %v2954
        %v3039 = vpack.c.bf16 %v2959, %v2955
        %v3040 = vpack.c.bf16 %v2960, %v2956
        %v3041 = vpack.c.bf16 %v2961, %v2957
        %v3042 = vpack.c.bf16 %v2966, %v2962
        %v3043 = vpack.c.bf16 %v2967, %v2963
        %v3044 = vpack.c.bf16 %v2968, %v2964
        %v3045 = vpack.c.bf16 %v2969, %v2965
        %v3046 = vpack.c.bf16 %v2974, %v2970
        %v3047 = vpack.c.bf16 %v2975, %v2971
        %v3048 = vpack.c.bf16 %v2976, %v2972
        %v3049 = vpack.c.bf16 %v2977, %v2973
        %v3050 = vpack.c.bf16 %v2982, %v2978
        %v3051 = vpack.c.bf16 %v2983, %v2979
        %v3052 = vpack.c.bf16 %v2984, %v2980
        %v3053 = vpack.c.bf16 %v2985, %v2981
        %v3054 = vpack.c.bf16 %v2990, %v2986
        %v3055 = vpack.c.bf16 %v2991, %v2987
        %v3056 = vpack.c.bf16 %v2992, %v2988
        %v3057 = vpack.c.bf16 %v2993, %v2989
        %v3058 = vld [vmem:[#allocation10] sm:$0xff]
        %v3059 = vld [vmem:[#allocation10 + $0x8] sm:$0xff]
        %v3060 = vld [vmem:[#allocation10 + $0x10] sm:$0xff]
        %v3061 = vld [vmem:[#allocation10 + $0x18] sm:$0xff]
        %v3062 = vld [vmem:[#allocation10 + $0x20] sm:$0xff]
        %v3063 = vld [vmem:[#allocation10 + $0x28] sm:$0xff]
        %v3064 = vld [vmem:[#allocation10 + $0x30] sm:$0xff]
        %v3065 = vld [vmem:[#allocation10 + $0x38] sm:$0xff]
        %v3066 = vld [vmem:[#allocation10 + $0x40] sm:$0xff]
        %v3067 = vld [vmem:[#allocation10 + $0x48] sm:$0xff]
        %v3068 = vld [vmem:[#allocation10 + $0x50] sm:$0xff]
        %v3069 = vld [vmem:[#allocation10 + $0x58] sm:$0xff]
        %v3070 = vld [vmem:[#allocation10 + $0x60] sm:$0xff]
        %v3071 = vld [vmem:[#allocation10 + $0x68] sm:$0xff]
        %v3072 = vld [vmem:[#allocation10 + $0x70] sm:$0xff]
        %v3073 = vld [vmem:[#allocation10 + $0x78] sm:$0xff]
        %v3074 = vld [vmem:[#allocation10 + $0x80] sm:$0xff]
        %v3075 = vld [vmem:[#allocation10 + $0x88] sm:$0xff]
        %v3076 = vld [vmem:[#allocation10 + $0x90] sm:$0xff]
        %v3077 = vld [vmem:[#allocation10 + $0x98] sm:$0xff]
        %v3078 = vld [vmem:[#allocation10 + $0xa0] sm:$0xff]
        %v3079 = vld [vmem:[#allocation10 + $0xa8] sm:$0xff]
        %v3080 = vld [vmem:[#allocation10 + $0xb0] sm:$0xff]
        %v3081 = vld [vmem:[#allocation10 + $0xb8] sm:$0xff]
        %v3082 = vld [vmem:[#allocation10 + $0xc0] sm:$0xff]
        %v3083 = vld [vmem:[#allocation10 + $0xc8] sm:$0xff]
        %v3084 = vld [vmem:[#allocation10 + $0xd0] sm:$0xff]
        %v3085 = vld [vmem:[#allocation10 + $0xd8] sm:$0xff]
        %v3086 = vld [vmem:[#allocation10 + $0xe0] sm:$0xff]
        %v3087 = vld [vmem:[#allocation10 + $0xe8] sm:$0xff]
        %v3088 = vld [vmem:[#allocation10 + $0xf0] sm:$0xff]
        %v3089 = vld [vmem:[#allocation10 + $0xf8] sm:$0xff]
        %v3090 = vld [vmem:[#allocation10 + $0x100] sm:$0xff]
        %v3091 = vld [vmem:[#allocation10 + $0x108] sm:$0xff]
        %v3092 = vld [vmem:[#allocation10 + $0x110] sm:$0xff]
        %v3093 = vld [vmem:[#allocation10 + $0x118] sm:$0xff]
        %v3094 = vld [vmem:[#allocation10 + $0x120] sm:$0xff]
        %v3095 = vld [vmem:[#allocation10 + $0x128] sm:$0xff]
        %v3096 = vld [vmem:[#allocation10 + $0x130] sm:$0xff]
        %v3097 = vld [vmem:[#allocation10 + $0x138] sm:$0xff]
        %v3098 = vld [vmem:[#allocation10 + $0x140] sm:$0xff]
        %v3099 = vld [vmem:[#allocation10 + $0x148] sm:$0xff]
        %v3100 = vld [vmem:[#allocation10 + $0x150] sm:$0xff]
        %v3101 = vld [vmem:[#allocation10 + $0x158] sm:$0xff]
        %v3102 = vld [vmem:[#allocation10 + $0x160] sm:$0xff]
        %v3103 = vld [vmem:[#allocation10 + $0x168] sm:$0xff]
        %v3104 = vld [vmem:[#allocation10 + $0x170] sm:$0xff]
        %v3105 = vld [vmem:[#allocation10 + $0x178] sm:$0xff]
        %v3106 = vld [vmem:[#allocation10 + $0x180] sm:$0xff]
        %v3107 = vld [vmem:[#allocation10 + $0x188] sm:$0xff]
        %v3108 = vld [vmem:[#allocation10 + $0x190] sm:$0xff]
        %v3109 = vld [vmem:[#allocation10 + $0x198] sm:$0xff]
        %v3110 = vld [vmem:[#allocation10 + $0x1a0] sm:$0xff]
        %v3111 = vld [vmem:[#allocation10 + $0x1a8] sm:$0xff]
        %v3112 = vld [vmem:[#allocation10 + $0x1b0] sm:$0xff]
        %v3113 = vld [vmem:[#allocation10 + $0x1b8] sm:$0xff]
        %v3114 = vld [vmem:[#allocation10 + $0x1c0] sm:$0xff]
        %v3115 = vld [vmem:[#allocation10 + $0x1c8] sm:$0xff]
        %v3116 = vld [vmem:[#allocation10 + $0x1d0] sm:$0xff]
        %v3117 = vld [vmem:[#allocation10 + $0x1d8] sm:$0xff]
        %v3118 = vld [vmem:[#allocation10 + $0x1e0] sm:$0xff]
        %v3119 = vld [vmem:[#allocation10 + $0x1e8] sm:$0xff]
        %v3120 = vld [vmem:[#allocation10 + $0x1f0] sm:$0xff]
        %v3121 = vld [vmem:[#allocation10 + $0x1f8] sm:$0xff]
        %v3122 = vld [vmem:[#allocation10 + $0x200] sm:$0xff]
        %v3123 = vld [vmem:[#allocation10 + $0x208] sm:$0xff]
        %v3124 = vld [vmem:[#allocation10 + $0x210] sm:$0xff]
        %v3125 = vld [vmem:[#allocation10 + $0x218] sm:$0xff]
        %v3126 = vld [vmem:[#allocation10 + $0x220] sm:$0xff]
        %v3127 = vld [vmem:[#allocation10 + $0x228] sm:$0xff]
        %v3128 = vld [vmem:[#allocation10 + $0x230] sm:$0xff]
        %v3129 = vld [vmem:[#allocation10 + $0x238] sm:$0xff]
        %v3130 = vld [vmem:[#allocation10 + $0x240] sm:$0xff]
        %v3131 = vld [vmem:[#allocation10 + $0x248] sm:$0xff]
        %v3132 = vld [vmem:[#allocation10 + $0x250] sm:$0xff]
        %v3133 = vld [vmem:[#allocation10 + $0x258] sm:$0xff]
        %v3134 = vld [vmem:[#allocation10 + $0x260] sm:$0xff]
        %v3135 = vld [vmem:[#allocation10 + $0x268] sm:$0xff]
        %v3136 = vld [vmem:[#allocation10 + $0x270] sm:$0xff]
        %v3137 = vld [vmem:[#allocation10 + $0x278] sm:$0xff]
        %v3138 = vld [vmem:[#allocation10 + $0x280] sm:$0xff]
        %v3139 = vld [vmem:[#allocation10 + $0x288] sm:$0xff]
        %v3140 = vld [vmem:[#allocation10 + $0x290] sm:$0xff]
        %v3141 = vld [vmem:[#allocation10 + $0x298] sm:$0xff]
        %v3142 = vld [vmem:[#allocation10 + $0x2a0] sm:$0xff]
        %v3143 = vld [vmem:[#allocation10 + $0x2a8] sm:$0xff]
        %v3144 = vld [vmem:[#allocation10 + $0x2b0] sm:$0xff]
        %v3145 = vld [vmem:[#allocation10 + $0x2b8] sm:$0xff]
        %v3146 = vld [vmem:[#allocation10 + $0x2c0] sm:$0xff]
        %v3147 = vld [vmem:[#allocation10 + $0x2c8] sm:$0xff]
        %v3148 = vld [vmem:[#allocation10 + $0x2d0] sm:$0xff]
        %v3149 = vld [vmem:[#allocation10 + $0x2d8] sm:$0xff]
        %v3150 = vld [vmem:[#allocation10 + $0x2e0] sm:$0xff]
        %v3151 = vld [vmem:[#allocation10 + $0x2e8] sm:$0xff]
        %v3152 = vld [vmem:[#allocation10 + $0x2f0] sm:$0xff]
        %v3153 = vld [vmem:[#allocation10 + $0x2f8] sm:$0xff]
        %v3154 = vld [vmem:[#allocation10 + $0x300] sm:$0xff]
        %v3155 = vld [vmem:[#allocation10 + $0x308] sm:$0xff]
        %v3156 = vld [vmem:[#allocation10 + $0x310] sm:$0xff]
        %v3157 = vld [vmem:[#allocation10 + $0x318] sm:$0xff]
        %v3158 = vld [vmem:[#allocation10 + $0x320] sm:$0xff]
        %v3159 = vld [vmem:[#allocation10 + $0x328] sm:$0xff]
        %v3160 = vld [vmem:[#allocation10 + $0x330] sm:$0xff]
        %v3161 = vld [vmem:[#allocation10 + $0x338] sm:$0xff]
        %v3162 = vld [vmem:[#allocation10 + $0x340] sm:$0xff]
        %v3163 = vld [vmem:[#allocation10 + $0x348] sm:$0xff]
        %v3164 = vld [vmem:[#allocation10 + $0x350] sm:$0xff]
        %v3165 = vld [vmem:[#allocation10 + $0x358] sm:$0xff]
        %v3166 = vld [vmem:[#allocation10 + $0x360] sm:$0xff]
        %v3167 = vld [vmem:[#allocation10 + $0x368] sm:$0xff]
        %v3168 = vld [vmem:[#allocation10 + $0x370] sm:$0xff]
        %v3169 = vld [vmem:[#allocation10 + $0x378] sm:$0xff]
        %v3170 = vld [vmem:[#allocation10 + $0x380] sm:$0xff]
        %v3171 = vld [vmem:[#allocation10 + $0x388] sm:$0xff]
        %v3172 = vld [vmem:[#allocation10 + $0x390] sm:$0xff]
        %v3173 = vld [vmem:[#allocation10 + $0x398] sm:$0xff]
        %v3174 = vld [vmem:[#allocation10 + $0x3a0] sm:$0xff]
        %v3175 = vld [vmem:[#allocation10 + $0x3a8] sm:$0xff]
        %v3176 = vld [vmem:[#allocation10 + $0x3b0] sm:$0xff]
        %v3177 = vld [vmem:[#allocation10 + $0x3b8] sm:$0xff]
        %v3178 = vld [vmem:[#allocation10 + $0x3c0] sm:$0xff]
        %v3179 = vld [vmem:[#allocation10 + $0x3c8] sm:$0xff]
        %v3180 = vld [vmem:[#allocation10 + $0x3d0] sm:$0xff]
        %v3181 = vld [vmem:[#allocation10 + $0x3d8] sm:$0xff]
        %v3182 = vld [vmem:[#allocation10 + $0x3e0] sm:$0xff]
        %v3183 = vld [vmem:[#allocation10 + $0x3e8] sm:$0xff]
        %v3184 = vld [vmem:[#allocation10 + $0x3f0] sm:$0xff]
        %v3185 = vld [vmem:[#allocation10 + $0x3f8] sm:$0xff]
        %v3186 = vld [vmem:[#allocation10 + $0x400] sm:$0xff]
        %v3187 = vld [vmem:[#allocation10 + $0x408] sm:$0xff]
        %v3188 = vld [vmem:[#allocation10 + $0x410] sm:$0xff]
        %v3189 = vld [vmem:[#allocation10 + $0x418] sm:$0xff]
        %v3190 = vld [vmem:[#allocation10 + $0x420] sm:$0xff]
        %v3191 = vld [vmem:[#allocation10 + $0x428] sm:$0xff]
        %v3192 = vld [vmem:[#allocation10 + $0x430] sm:$0xff]
        %v3193 = vld [vmem:[#allocation10 + $0x438] sm:$0xff]
        %v3194 = vld [vmem:[#allocation10 + $0x440] sm:$0xff]
        %v3195 = vld [vmem:[#allocation10 + $0x448] sm:$0xff]
        %v3196 = vld [vmem:[#allocation10 + $0x450] sm:$0xff]
        %v3197 = vld [vmem:[#allocation10 + $0x458] sm:$0xff]
        %v3198 = vld [vmem:[#allocation10 + $0x460] sm:$0xff]
        %v3199 = vld [vmem:[#allocation10 + $0x468] sm:$0xff]
        %v3200 = vld [vmem:[#allocation10 + $0x470] sm:$0xff]
        %v3201 = vld [vmem:[#allocation10 + $0x478] sm:$0xff]
        %v3202 = vld [vmem:[#allocation10 + $0x480] sm:$0xff]
        %v3203 = vld [vmem:[#allocation10 + $0x488] sm:$0xff]
        %v3204 = vld [vmem:[#allocation10 + $0x490] sm:$0xff]
        %v3205 = vld [vmem:[#allocation10 + $0x498] sm:$0xff]
        %v3206 = vld [vmem:[#allocation10 + $0x4a0] sm:$0xff]
        %v3207 = vld [vmem:[#allocation10 + $0x4a8] sm:$0xff]
        %v3208 = vld [vmem:[#allocation10 + $0x4b0] sm:$0xff]
        %v3209 = vld [vmem:[#allocation10 + $0x4b8] sm:$0xff]
        %v3210 = vld [vmem:[#allocation10 + $0x4c0] sm:$0xff]
        %v3211 = vld [vmem:[#allocation10 + $0x4c8] sm:$0xff]
        %v3212 = vld [vmem:[#allocation10 + $0x4d0] sm:$0xff]
        %v3213 = vld [vmem:[#allocation10 + $0x4d8] sm:$0xff]
        %v3214 = vld [vmem:[#allocation10 + $0x4e0] sm:$0xff]
        %v3215 = vld [vmem:[#allocation10 + $0x4e8] sm:$0xff]
        %v3216 = vld [vmem:[#allocation10 + $0x4f0] sm:$0xff]
        %v3217 = vld [vmem:[#allocation10 + $0x4f8] sm:$0xff]
        %v3218 = vld [vmem:[#allocation10 + $0x500] sm:$0xff]
        %v3219 = vld [vmem:[#allocation10 + $0x508] sm:$0xff]
        %v3220 = vld [vmem:[#allocation10 + $0x510] sm:$0xff]
        %v3221 = vld [vmem:[#allocation10 + $0x518] sm:$0xff]
        %v3222 = vld [vmem:[#allocation10 + $0x520] sm:$0xff]
        %v3223 = vld [vmem:[#allocation10 + $0x528] sm:$0xff]
        %v3224 = vld [vmem:[#allocation10 + $0x530] sm:$0xff]
        %v3225 = vld [vmem:[#allocation10 + $0x538] sm:$0xff]
        %v3226 = vld [vmem:[#allocation10 + $0x540] sm:$0xff]
        %v3227 = vld [vmem:[#allocation10 + $0x548] sm:$0xff]
        %v3228 = vld [vmem:[#allocation10 + $0x550] sm:$0xff]
        %v3229 = vld [vmem:[#allocation10 + $0x558] sm:$0xff]
        %v3230 = vld [vmem:[#allocation10 + $0x560] sm:$0xff]
        %v3231 = vld [vmem:[#allocation10 + $0x568] sm:$0xff]
        %v3232 = vld [vmem:[#allocation10 + $0x570] sm:$0xff]
        %v3233 = vld [vmem:[#allocation10 + $0x578] sm:$0xff]
        %v3234 = vld [vmem:[#allocation10 + $0x580] sm:$0xff]
        %v3235 = vld [vmem:[#allocation10 + $0x588] sm:$0xff]
        %v3236 = vld [vmem:[#allocation10 + $0x590] sm:$0xff]
        %v3237 = vld [vmem:[#allocation10 + $0x598] sm:$0xff]
        %v3238 = vld [vmem:[#allocation10 + $0x5a0] sm:$0xff]
        %v3239 = vld [vmem:[#allocation10 + $0x5a8] sm:$0xff]
        %v3240 = vld [vmem:[#allocation10 + $0x5b0] sm:$0xff]
        %v3241 = vld [vmem:[#allocation10 + $0x5b8] sm:$0xff]
        %v3242 = vld [vmem:[#allocation10 + $0x5c0] sm:$0xff]
        %v3243 = vld [vmem:[#allocation10 + $0x5c8] sm:$0xff]
        %v3244 = vld [vmem:[#allocation10 + $0x5d0] sm:$0xff]
        %v3245 = vld [vmem:[#allocation10 + $0x5d8] sm:$0xff]
        %v3246 = vld [vmem:[#allocation10 + $0x5e0] sm:$0xff]
        %v3247 = vld [vmem:[#allocation10 + $0x5e8] sm:$0xff]
        %v3248 = vld [vmem:[#allocation10 + $0x5f0] sm:$0xff]
        %v3249 = vld [vmem:[#allocation10 + $0x5f8] sm:$0xff]
        %v3250 = vld [vmem:[#allocation10 + $0x600] sm:$0xff]
        %v3251 = vld [vmem:[#allocation10 + $0x608] sm:$0xff]
        %v3252 = vld [vmem:[#allocation10 + $0x610] sm:$0xff]
        %v3253 = vld [vmem:[#allocation10 + $0x618] sm:$0xff]
        %v3254 = vld [vmem:[#allocation10 + $0x620] sm:$0xff]
        %v3255 = vld [vmem:[#allocation10 + $0x628] sm:$0xff]
        %v3256 = vld [vmem:[#allocation10 + $0x630] sm:$0xff]
        %v3257 = vld [vmem:[#allocation10 + $0x638] sm:$0xff]
        %v3258 = vld [vmem:[#allocation10 + $0x640] sm:$0xff]
        %v3259 = vld [vmem:[#allocation10 + $0x648] sm:$0xff]
        %v3260 = vld [vmem:[#allocation10 + $0x650] sm:$0xff]
        %v3261 = vld [vmem:[#allocation10 + $0x658] sm:$0xff]
        %v3262 = vld [vmem:[#allocation10 + $0x660] sm:$0xff]
        %v3263 = vld [vmem:[#allocation10 + $0x668] sm:$0xff]
        %v3264 = vld [vmem:[#allocation10 + $0x670] sm:$0xff]
        %v3265 = vld [vmem:[#allocation10 + $0x678] sm:$0xff]
        %v3266 = vld [vmem:[#allocation10 + $0x680] sm:$0xff]
        %v3267 = vld [vmem:[#allocation10 + $0x688] sm:$0xff]
        %v3268 = vld [vmem:[#allocation10 + $0x690] sm:$0xff]
        %v3269 = vld [vmem:[#allocation10 + $0x698] sm:$0xff]
        %v3270 = vld [vmem:[#allocation10 + $0x6a0] sm:$0xff]
        %v3271 = vld [vmem:[#allocation10 + $0x6a8] sm:$0xff]
        %v3272 = vld [vmem:[#allocation10 + $0x6b0] sm:$0xff]
        %v3273 = vld [vmem:[#allocation10 + $0x6b8] sm:$0xff]
        %v3274 = vld [vmem:[#allocation10 + $0x6c0] sm:$0xff]
        %v3275 = vld [vmem:[#allocation10 + $0x6c8] sm:$0xff]
        %v3276 = vld [vmem:[#allocation10 + $0x6d0] sm:$0xff]
        %v3277 = vld [vmem:[#allocation10 + $0x6d8] sm:$0xff]
        %v3278 = vld [vmem:[#allocation10 + $0x6e0] sm:$0xff]
        %v3279 = vld [vmem:[#allocation10 + $0x6e8] sm:$0xff]
        %v3280 = vld [vmem:[#allocation10 + $0x6f0] sm:$0xff]
        %v3281 = vld [vmem:[#allocation10 + $0x6f8] sm:$0xff]
        %v3282 = vld [vmem:[#allocation10 + $0x700] sm:$0xff]
        %v3283 = vld [vmem:[#allocation10 + $0x708] sm:$0xff]
        %v3284 = vld [vmem:[#allocation10 + $0x710] sm:$0xff]
        %v3285 = vld [vmem:[#allocation10 + $0x718] sm:$0xff]
        %v3286 = vld [vmem:[#allocation10 + $0x720] sm:$0xff]
        %v3287 = vld [vmem:[#allocation10 + $0x728] sm:$0xff]
        %v3288 = vld [vmem:[#allocation10 + $0x730] sm:$0xff]
        %v3289 = vld [vmem:[#allocation10 + $0x738] sm:$0xff]
        %v3290 = vld [vmem:[#allocation10 + $0x740] sm:$0xff]
        %v3291 = vld [vmem:[#allocation10 + $0x748] sm:$0xff]
        %v3292 = vld [vmem:[#allocation10 + $0x750] sm:$0xff]
        %v3293 = vld [vmem:[#allocation10 + $0x758] sm:$0xff]
        %v3294 = vld [vmem:[#allocation10 + $0x760] sm:$0xff]
        %v3295 = vld [vmem:[#allocation10 + $0x768] sm:$0xff]
        %v3296 = vld [vmem:[#allocation10 + $0x770] sm:$0xff]
        %v3297 = vld [vmem:[#allocation10 + $0x778] sm:$0xff]
        %v3298 = vld [vmem:[#allocation10 + $0x780] sm:$0xff]
        %v3299 = vld [vmem:[#allocation10 + $0x788] sm:$0xff]
        %v3300 = vld [vmem:[#allocation10 + $0x790] sm:$0xff]
        %v3301 = vld [vmem:[#allocation10 + $0x798] sm:$0xff]
        %v3302 = vld [vmem:[#allocation10 + $0x7a0] sm:$0xff]
        %v3303 = vld [vmem:[#allocation10 + $0x7a8] sm:$0xff]
        %v3304 = vld [vmem:[#allocation10 + $0x7b0] sm:$0xff]
        %v3305 = vld [vmem:[#allocation10 + $0x7b8] sm:$0xff]
        %v3306 = vld [vmem:[#allocation10 + $0x7c0] sm:$0xff]
        %v3307 = vld [vmem:[#allocation10 + $0x7c8] sm:$0xff]
        %v3308 = vld [vmem:[#allocation10 + $0x7d0] sm:$0xff]
        %v3309 = vld [vmem:[#allocation10 + $0x7d8] sm:$0xff]
        %v3310 = vld [vmem:[#allocation10 + $0x7e0] sm:$0xff]
        %v3311 = vld [vmem:[#allocation10 + $0x7e8] sm:$0xff]
        %v3312 = vld [vmem:[#allocation10 + $0x7f0] sm:$0xff]
        %v3313 = vld [vmem:[#allocation10 + $0x7f8] sm:$0xff]
        %v3314 = vld [vmem:[%s10] sm:$0xff]
        %v3316 = vlaneseq
        %v3317 = vshrl.u32 %v3316, 7
        %v3318 = vsub.s32 0, %v3317
        %v3319 = vrot.slane %v3314, %v3318
        %v3320 = vlaneseq
        %v3321 = vshrl.u32 %v3320, 7
        %v3322 = vsub.s32 1, %v3321
        %v3323 = vrot.slane %v3314, %v3322
        %v3324 = vlaneseq
        %v3325 = vshrl.u32 %v3324, 7
        %v3326 = vsub.s32 2, %v3325
        %v3327 = vrot.slane %v3314, %v3326
        %v3328 = vlaneseq
        %v3329 = vshrl.u32 %v3328, 7
        %v3330 = vsub.s32 3, %v3329
        %v3331 = vrot.slane %v3314, %v3330
        %v3332 = vlaneseq
        %v3333 = vshrl.u32 %v3332, 7
        %v3334 = vsub.s32 4, %v3333
        %v3335 = vrot.slane %v3314, %v3334
        %v3336 = vlaneseq
        %v3337 = vshrl.u32 %v3336, 7
        %v3338 = vsub.s32 5, %v3337
        %v3339 = vrot.slane %v3314, %v3338
        %v3340 = vlaneseq
        %v3341 = vshrl.u32 %v3340, 7
        %v3342 = vsub.s32 6, %v3341
        %v3343 = vrot.slane %v3314, %v3342
        %v3344 = vlaneseq
        %v3345 = vshrl.u32 %v3344, 7
        %v3346 = vsub.s32 7, %v3345
        %v3347 = vrot.slane %v3314, %v3346
        %v3612 = vunpack.c.l.b16 %v3058
        %v3613 = vunpack.c.h.b16 %v3058
        %v3614 = vunpack.c.l.b16 %v3059
        %v3615 = vunpack.c.h.b16 %v3059
        %v3616 = vunpack.c.l.b16 %v3060
        %v3617 = vunpack.c.h.b16 %v3060
        %v3618 = vunpack.c.l.b16 %v3061
        %v3619 = vunpack.c.h.b16 %v3061
        %v3620 = vunpack.c.l.b16 %v3062
        %v3621 = vunpack.c.h.b16 %v3062
        %v3622 = vunpack.c.l.b16 %v3063
        %v3623 = vunpack.c.h.b16 %v3063
        %v3624 = vunpack.c.l.b16 %v3064
        %v3625 = vunpack.c.h.b16 %v3064
        %v3626 = vunpack.c.l.b16 %v3065
        %v3627 = vunpack.c.h.b16 %v3065
        %v3628 = vunpack.c.l.b16 %v3066
        %v3629 = vunpack.c.h.b16 %v3066
        %v3630 = vunpack.c.l.b16 %v3067
        %v3631 = vunpack.c.h.b16 %v3067
        %v3632 = vunpack.c.l.b16 %v3068
        %v3633 = vunpack.c.h.b16 %v3068
        %v3634 = vunpack.c.l.b16 %v3069
        %v3635 = vunpack.c.h.b16 %v3069
        %v3636 = vunpack.c.l.b16 %v3070
        %v3637 = vunpack.c.h.b16 %v3070
        %v3638 = vunpack.c.l.b16 %v3071
        %v3639 = vunpack.c.h.b16 %v3071
        %v3640 = vunpack.c.l.b16 %v3072
        %v3641 = vunpack.c.h.b16 %v3072
        %v3642 = vunpack.c.l.b16 %v3073
        %v3643 = vunpack.c.h.b16 %v3073
        %v3644 = vunpack.c.l.b16 %v3074
        %v3645 = vunpack.c.h.b16 %v3074
        %v3646 = vunpack.c.l.b16 %v3075
        %v3647 = vunpack.c.h.b16 %v3075
        %v3648 = vunpack.c.l.b16 %v3076
        %v3649 = vunpack.c.h.b16 %v3076
        %v3650 = vunpack.c.l.b16 %v3077
        %v3651 = vunpack.c.h.b16 %v3077
        %v3652 = vunpack.c.l.b16 %v3078
        %v3653 = vunpack.c.h.b16 %v3078
        %v3654 = vunpack.c.l.b16 %v3079
        %v3655 = vunpack.c.h.b16 %v3079
        %v3656 = vunpack.c.l.b16 %v3080
        %v3657 = vunpack.c.h.b16 %v3080
        %v3658 = vunpack.c.l.b16 %v3081
        %v3659 = vunpack.c.h.b16 %v3081
        %v3660 = vunpack.c.l.b16 %v3082
        %v3661 = vunpack.c.h.b16 %v3082
        %v3662 = vunpack.c.l.b16 %v3083
        %v3663 = vunpack.c.h.b16 %v3083
        %v3664 = vunpack.c.l.b16 %v3084
        %v3665 = vunpack.c.h.b16 %v3084
        %v3666 = vunpack.c.l.b16 %v3085
        %v3667 = vunpack.c.h.b16 %v3085
        %v3668 = vunpack.c.l.b16 %v3086
        %v3669 = vunpack.c.h.b16 %v3086
        %v3670 = vunpack.c.l.b16 %v3087
        %v3671 = vunpack.c.h.b16 %v3087
        %v3672 = vunpack.c.l.b16 %v3088
        %v3673 = vunpack.c.h.b16 %v3088
        %v3674 = vunpack.c.l.b16 %v3089
        %v3675 = vunpack.c.h.b16 %v3089
        %v3676 = vunpack.c.l.b16 %v3090
        %v3677 = vunpack.c.h.b16 %v3090
        %v3678 = vunpack.c.l.b16 %v3091
        %v3679 = vunpack.c.h.b16 %v3091
        %v3680 = vunpack.c.l.b16 %v3092
        %v3681 = vunpack.c.h.b16 %v3092
        %v3682 = vunpack.c.l.b16 %v3093
        %v3683 = vunpack.c.h.b16 %v3093
        %v3684 = vunpack.c.l.b16 %v3094
        %v3685 = vunpack.c.h.b16 %v3094
        %v3686 = vunpack.c.l.b16 %v3095
        %v3687 = vunpack.c.h.b16 %v3095
        %v3688 = vunpack.c.l.b16 %v3096
        %v3689 = vunpack.c.h.b16 %v3096
        %v3690 = vunpack.c.l.b16 %v3097
        %v3691 = vunpack.c.h.b16 %v3097
        %v3692 = vunpack.c.l.b16 %v3098
        %v3693 = vunpack.c.h.b16 %v3098
        %v3694 = vunpack.c.l.b16 %v3099
        %v3695 = vunpack.c.h.b16 %v3099
        %v3696 = vunpack.c.l.b16 %v3100
        %v3697 = vunpack.c.h.b16 %v3100
        %v3698 = vunpack.c.l.b16 %v3101
        %v3699 = vunpack.c.h.b16 %v3101
        %v3700 = vunpack.c.l.b16 %v3102
        %v3701 = vunpack.c.h.b16 %v3102
        %v3702 = vunpack.c.l.b16 %v3103
        %v3703 = vunpack.c.h.b16 %v3103
        %v3704 = vunpack.c.l.b16 %v3104
        %v3705 = vunpack.c.h.b16 %v3104
        %v3706 = vunpack.c.l.b16 %v3105
        %v3707 = vunpack.c.h.b16 %v3105
        %v3708 = vunpack.c.l.b16 %v3106
        %v3709 = vunpack.c.h.b16 %v3106
        %v3710 = vunpack.c.l.b16 %v3107
        %v3711 = vunpack.c.h.b16 %v3107
        %v3712 = vunpack.c.l.b16 %v3108
        %v3713 = vunpack.c.h.b16 %v3108
        %v3714 = vunpack.c.l.b16 %v3109
        %v3715 = vunpack.c.h.b16 %v3109
        %v3716 = vunpack.c.l.b16 %v3110
        %v3717 = vunpack.c.h.b16 %v3110
        %v3718 = vunpack.c.l.b16 %v3111
        %v3719 = vunpack.c.h.b16 %v3111
        %v3720 = vunpack.c.l.b16 %v3112
        %v3721 = vunpack.c.h.b16 %v3112
        %v3722 = vunpack.c.l.b16 %v3113
        %v3723 = vunpack.c.h.b16 %v3113
        %v3724 = vunpack.c.l.b16 %v3114
        %v3725 = vunpack.c.h.b16 %v3114
        %v3726 = vunpack.c.l.b16 %v3115
        %v3727 = vunpack.c.h.b16 %v3115
        %v3728 = vunpack.c.l.b16 %v3116
        %v3729 = vunpack.c.h.b16 %v3116
        %v3730 = vunpack.c.l.b16 %v3117
        %v3731 = vunpack.c.h.b16 %v3117
        %v3732 = vunpack.c.l.b16 %v3118
        %v3733 = vunpack.c.h.b16 %v3118
        %v3734 = vunpack.c.l.b16 %v3119
        %v3735 = vunpack.c.h.b16 %v3119
        %v3736 = vunpack.c.l.b16 %v3120
        %v3737 = vunpack.c.h.b16 %v3120
        %v3738 = vunpack.c.l.b16 %v3121
        %v3739 = vunpack.c.h.b16 %v3121
        %v3740 = vunpack.c.l.b16 %v3122
        %v3741 = vunpack.c.h.b16 %v3122
        %v3742 = vunpack.c.l.b16 %v3123
        %v3743 = vunpack.c.h.b16 %v3123
        %v3744 = vunpack.c.l.b16 %v3124
        %v3745 = vunpack.c.h.b16 %v3124
        %v3746 = vunpack.c.l.b16 %v3125
        %v3747 = vunpack.c.h.b16 %v3125
        %v3748 = vunpack.c.l.b16 %v3126
        %v3749 = vunpack.c.h.b16 %v3126
        %v3750 = vunpack.c.l.b16 %v3127
        %v3751 = vunpack.c.h.b16 %v3127
        %v3752 = vunpack.c.l.b16 %v3128
        %v3753 = vunpack.c.h.b16 %v3128
        %v3754 = vunpack.c.l.b16 %v3129
        %v3755 = vunpack.c.h.b16 %v3129
        %v3756 = vunpack.c.l.b16 %v3130
        %v3757 = vunpack.c.h.b16 %v3130
        %v3758 = vunpack.c.l.b16 %v3131
        %v3759 = vunpack.c.h.b16 %v3131
        %v3760 = vunpack.c.l.b16 %v3132
        %v3761 = vunpack.c.h.b16 %v3132
        %v3762 = vunpack.c.l.b16 %v3133
        %v3763 = vunpack.c.h.b16 %v3133
        %v3764 = vunpack.c.l.b16 %v3134
        %v3765 = vunpack.c.h.b16 %v3134
        %v3766 = vunpack.c.l.b16 %v3135
        %v3767 = vunpack.c.h.b16 %v3135
        %v3768 = vunpack.c.l.b16 %v3136
        %v3769 = vunpack.c.h.b16 %v3136
        %v3770 = vunpack.c.l.b16 %v3137
        %v3771 = vunpack.c.h.b16 %v3137
        %v3772 = vunpack.c.l.b16 %v3138
        %v3773 = vunpack.c.h.b16 %v3138
        %v3774 = vunpack.c.l.b16 %v3139
        %v3775 = vunpack.c.h.b16 %v3139
        %v3776 = vunpack.c.l.b16 %v3140
        %v3777 = vunpack.c.h.b16 %v3140
        %v3778 = vunpack.c.l.b16 %v3141
        %v3779 = vunpack.c.h.b16 %v3141
        %v3780 = vunpack.c.l.b16 %v3142
        %v3781 = vunpack.c.h.b16 %v3142
        %v3782 = vunpack.c.l.b16 %v3143
        %v3783 = vunpack.c.h.b16 %v3143
        %v3784 = vunpack.c.l.b16 %v3144
        %v3785 = vunpack.c.h.b16 %v3144
        %v3786 = vunpack.c.l.b16 %v3145
        %v3787 = vunpack.c.h.b16 %v3145
        %v3788 = vunpack.c.l.b16 %v3146
        %v3789 = vunpack.c.h.b16 %v3146
        %v3790 = vunpack.c.l.b16 %v3147
        %v3791 = vunpack.c.h.b16 %v3147
        %v3792 = vunpack.c.l.b16 %v3148
        %v3793 = vunpack.c.h.b16 %v3148
        %v3794 = vunpack.c.l.b16 %v3149
        %v3795 = vunpack.c.h.b16 %v3149
        %v3796 = vunpack.c.l.b16 %v3150
        %v3797 = vunpack.c.h.b16 %v3150
        %v3798 = vunpack.c.l.b16 %v3151
        %v3799 = vunpack.c.h.b16 %v3151
        %v3800 = vunpack.c.l.b16 %v3152
        %v3801 = vunpack.c.h.b16 %v3152
        %v3802 = vunpack.c.l.b16 %v3153
        %v3803 = vunpack.c.h.b16 %v3153
        %v3804 = vunpack.c.l.b16 %v3154
        %v3805 = vunpack.c.h.b16 %v3154
        %v3806 = vunpack.c.l.b16 %v3155
        %v3807 = vunpack.c.h.b16 %v3155
        %v3808 = vunpack.c.l.b16 %v3156
        %v3809 = vunpack.c.h.b16 %v3156
        %v3810 = vunpack.c.l.b16 %v3157
        %v3811 = vunpack.c.h.b16 %v3157
        %v3812 = vunpack.c.l.b16 %v3158
        %v3813 = vunpack.c.h.b16 %v3158
        %v3814 = vunpack.c.l.b16 %v3159
        %v3815 = vunpack.c.h.b16 %v3159
        %v3816 = vunpack.c.l.b16 %v3160
        %v3817 = vunpack.c.h.b16 %v3160
        %v3818 = vunpack.c.l.b16 %v3161
        %v3819 = vunpack.c.h.b16 %v3161
        %v3820 = vunpack.c.l.b16 %v3162
        %v3821 = vunpack.c.h.b16 %v3162
        %v3822 = vunpack.c.l.b16 %v3163
        %v3823 = vunpack.c.h.b16 %v3163
        %v3824 = vunpack.c.l.b16 %v3164
        %v3825 = vunpack.c.h.b16 %v3164
        %v3826 = vunpack.c.l.b16 %v3165
        %v3827 = vunpack.c.h.b16 %v3165
        %v3828 = vunpack.c.l.b16 %v3166
        %v3829 = vunpack.c.h.b16 %v3166
        %v3830 = vunpack.c.l.b16 %v3167
        %v3831 = vunpack.c.h.b16 %v3167
        %v3832 = vunpack.c.l.b16 %v3168
        %v3833 = vunpack.c.h.b16 %v3168
        %v3834 = vunpack.c.l.b16 %v3169
        %v3835 = vunpack.c.h.b16 %v3169
        %v3836 = vunpack.c.l.b16 %v3170
        %v3837 = vunpack.c.h.b16 %v3170
        %v3838 = vunpack.c.l.b16 %v3171
        %v3839 = vunpack.c.h.b16 %v3171
        %v3840 = vunpack.c.l.b16 %v3172
        %v3841 = vunpack.c.h.b16 %v3172
        %v3842 = vunpack.c.l.b16 %v3173
        %v3843 = vunpack.c.h.b16 %v3173
        %v3844 = vunpack.c.l.b16 %v3174
        %v3845 = vunpack.c.h.b16 %v3174
        %v3846 = vunpack.c.l.b16 %v3175
        %v3847 = vunpack.c.h.b16 %v3175
        %v3848 = vunpack.c.l.b16 %v3176
        %v3849 = vunpack.c.h.b16 %v3176
        %v3850 = vunpack.c.l.b16 %v3177
        %v3851 = vunpack.c.h.b16 %v3177
        %v3852 = vunpack.c.l.b16 %v3178
        %v3853 = vunpack.c.h.b16 %v3178
        %v3854 = vunpack.c.l.b16 %v3179
        %v3855 = vunpack.c.h.b16 %v3179
        %v3856 = vunpack.c.l.b16 %v3180
        %v3857 = vunpack.c.h.b16 %v3180
        %v3858 = vunpack.c.l.b16 %v3181
        %v3859 = vunpack.c.h.b16 %v3181
        %v3860 = vunpack.c.l.b16 %v3182
        %v3861 = vunpack.c.h.b16 %v3182
        %v3862 = vunpack.c.l.b16 %v3183
        %v3863 = vunpack.c.h.b16 %v3183
        %v3864 = vunpack.c.l.b16 %v3184
        %v3865 = vunpack.c.h.b16 %v3184
        %v3866 = vunpack.c.l.b16 %v3185
        %v3867 = vunpack.c.h.b16 %v3185
        %v3868 = vunpack.c.l.b16 %v3186
        %v3869 = vunpack.c.h.b16 %v3186
        %v3870 = vunpack.c.l.b16 %v3187
        %v3871 = vunpack.c.h.b16 %v3187
        %v3872 = vunpack.c.l.b16 %v3188
        %v3873 = vunpack.c.h.b16 %v3188
        %v3874 = vunpack.c.l.b16 %v3189
        %v3875 = vunpack.c.h.b16 %v3189
        %v3876 = vunpack.c.l.b16 %v3190
        %v3877 = vunpack.c.h.b16 %v3190
        %v3878 = vunpack.c.l.b16 %v3191
        %v3879 = vunpack.c.h.b16 %v3191
        %v3880 = vunpack.c.l.b16 %v3192
        %v3881 = vunpack.c.h.b16 %v3192
        %v3882 = vunpack.c.l.b16 %v3193
        %v3883 = vunpack.c.h.b16 %v3193
        %v3884 = vunpack.c.l.b16 %v3194
        %v3885 = vunpack.c.h.b16 %v3194
        %v3886 = vunpack.c.l.b16 %v3195
        %v3887 = vunpack.c.h.b16 %v3195
        %v3888 = vunpack.c.l.b16 %v3196
        %v3889 = vunpack.c.h.b16 %v3196
        %v3890 = vunpack.c.l.b16 %v3197
        %v3891 = vunpack.c.h.b16 %v3197
        %v3892 = vunpack.c.l.b16 %v3198
        %v3893 = vunpack.c.h.b16 %v3198
        %v3894 = vunpack.c.l.b16 %v3199
        %v3895 = vunpack.c.h.b16 %v3199
        %v3896 = vunpack.c.l.b16 %v3200
        %v3897 = vunpack.c.h.b16 %v3200
        %v3898 = vunpack.c.l.b16 %v3201
        %v3899 = vunpack.c.h.b16 %v3201
        %v3900 = vunpack.c.l.b16 %v3202
        %v3901 = vunpack.c.h.b16 %v3202
        %v3902 = vunpack.c.l.b16 %v3203
        %v3903 = vunpack.c.h.b16 %v3203
        %v3904 = vunpack.c.l.b16 %v3204
        %v3905 = vunpack.c.h.b16 %v3204
        %v3906 = vunpack.c.l.b16 %v3205
        %v3907 = vunpack.c.h.b16 %v3205
        %v3908 = vunpack.c.l.b16 %v3206
        %v3909 = vunpack.c.h.b16 %v3206
        %v3910 = vunpack.c.l.b16 %v3207
        %v3911 = vunpack.c.h.b16 %v3207
        %v3912 = vunpack.c.l.b16 %v3208
        %v3913 = vunpack.c.h.b16 %v3208
        %v3914 = vunpack.c.l.b16 %v3209
        %v3915 = vunpack.c.h.b16 %v3209
        %v3916 = vunpack.c.l.b16 %v3210
        %v3917 = vunpack.c.h.b16 %v3210
        %v3918 = vunpack.c.l.b16 %v3211
        %v3919 = vunpack.c.h.b16 %v3211
        %v3920 = vunpack.c.l.b16 %v3212
        %v3921 = vunpack.c.h.b16 %v3212
        %v3922 = vunpack.c.l.b16 %v3213
        %v3923 = vunpack.c.h.b16 %v3213
        %v3924 = vunpack.c.l.b16 %v3214
        %v3925 = vunpack.c.h.b16 %v3214
        %v3926 = vunpack.c.l.b16 %v3215
        %v3927 = vunpack.c.h.b16 %v3215
        %v3928 = vunpack.c.l.b16 %v3216
        %v3929 = vunpack.c.h.b16 %v3216
        %v3930 = vunpack.c.l.b16 %v3217
        %v3931 = vunpack.c.h.b16 %v3217
        %v3932 = vunpack.c.l.b16 %v3218
        %v3933 = vunpack.c.h.b16 %v3218
        %v3934 = vunpack.c.l.b16 %v3219
        %v3935 = vunpack.c.h.b16 %v3219
        %v3936 = vunpack.c.l.b16 %v3220
        %v3937 = vunpack.c.h.b16 %v3220
        %v3938 = vunpack.c.l.b16 %v3221
        %v3939 = vunpack.c.h.b16 %v3221
        %v3940 = vunpack.c.l.b16 %v3222
        %v3941 = vunpack.c.h.b16 %v3222
        %v3942 = vunpack.c.l.b16 %v3223
        %v3943 = vunpack.c.h.b16 %v3223
        %v3944 = vunpack.c.l.b16 %v3224
        %v3945 = vunpack.c.h.b16 %v3224
        %v3946 = vunpack.c.l.b16 %v3225
        %v3947 = vunpack.c.h.b16 %v3225
        %v3948 = vunpack.c.l.b16 %v3226
        %v3949 = vunpack.c.h.b16 %v3226
        %v3950 = vunpack.c.l.b16 %v3227
        %v3951 = vunpack.c.h.b16 %v3227
        %v3952 = vunpack.c.l.b16 %v3228
        %v3953 = vunpack.c.h.b16 %v3228
        %v3954 = vunpack.c.l.b16 %v3229
        %v3955 = vunpack.c.h.b16 %v3229
        %v3956 = vunpack.c.l.b16 %v3230
        %v3957 = vunpack.c.h.b16 %v3230
        %v3958 = vunpack.c.l.b16 %v3231
        %v3959 = vunpack.c.h.b16 %v3231
        %v3960 = vunpack.c.l.b16 %v3232
        %v3961 = vunpack.c.h.b16 %v3232
        %v3962 = vunpack.c.l.b16 %v3233
        %v3963 = vunpack.c.h.b16 %v3233
        %v3964 = vunpack.c.l.b16 %v3234
        %v3965 = vunpack.c.h.b16 %v3234
        %v3966 = vunpack.c.l.b16 %v3235
        %v3967 = vunpack.c.h.b16 %v3235
        %v3968 = vunpack.c.l.b16 %v3236
        %v3969 = vunpack.c.h.b16 %v3236
        %v3970 = vunpack.c.l.b16 %v3237
        %v3971 = vunpack.c.h.b16 %v3237
        %v3972 = vunpack.c.l.b16 %v3238
        %v3973 = vunpack.c.h.b16 %v3238
        %v3974 = vunpack.c.l.b16 %v3239
        %v3975 = vunpack.c.h.b16 %v3239
        %v3976 = vunpack.c.l.b16 %v3240
        %v3977 = vunpack.c.h.b16 %v3240
        %v3978 = vunpack.c.l.b16 %v3241
        %v3979 = vunpack.c.h.b16 %v3241
        %v3980 = vunpack.c.l.b16 %v3242
        %v3981 = vunpack.c.h.b16 %v3242
        %v3982 = vunpack.c.l.b16 %v3243
        %v3983 = vunpack.c.h.b16 %v3243
        %v3984 = vunpack.c.l.b16 %v3244
        %v3985 = vunpack.c.h.b16 %v3244
        %v3986 = vunpack.c.l.b16 %v3245
        %v3987 = vunpack.c.h.b16 %v3245
        %v3988 = vunpack.c.l.b16 %v3246
        %v3989 = vunpack.c.h.b16 %v3246
        %v3990 = vunpack.c.l.b16 %v3247
        %v3991 = vunpack.c.h.b16 %v3247
        %v3992 = vunpack.c.l.b16 %v3248
        %v3993 = vunpack.c.h.b16 %v3248
        %v3994 = vunpack.c.l.b16 %v3249
        %v3995 = vunpack.c.h.b16 %v3249
        %v3996 = vunpack.c.l.b16 %v3250
        %v3997 = vunpack.c.h.b16 %v3250
        %v3998 = vunpack.c.l.b16 %v3251
        %v3999 = vunpack.c.h.b16 %v3251
        %v4000 = vunpack.c.l.b16 %v3252
        %v4001 = vunpack.c.h.b16 %v3252
        %v4002 = vunpack.c.l.b16 %v3253
        %v4003 = vunpack.c.h.b16 %v3253
        %v4004 = vunpack.c.l.b16 %v3254
        %v4005 = vunpack.c.h.b16 %v3254
        %v4006 = vunpack.c.l.b16 %v3255
        %v4007 = vunpack.c.h.b16 %v3255
        %v4008 = vunpack.c.l.b16 %v3256
        %v4009 = vunpack.c.h.b16 %v3256
        %v4010 = vunpack.c.l.b16 %v3257
        %v4011 = vunpack.c.h.b16 %v3257
        %v4012 = vunpack.c.l.b16 %v3258
        %v4013 = vunpack.c.h.b16 %v3258
        %v4014 = vunpack.c.l.b16 %v3259
        %v4015 = vunpack.c.h.b16 %v3259
        %v4016 = vunpack.c.l.b16 %v3260
        %v4017 = vunpack.c.h.b16 %v3260
        %v4018 = vunpack.c.l.b16 %v3261
        %v4019 = vunpack.c.h.b16 %v3261
        %v4020 = vunpack.c.l.b16 %v3262
        %v4021 = vunpack.c.h.b16 %v3262
        %v4022 = vunpack.c.l.b16 %v3263
        %v4023 = vunpack.c.h.b16 %v3263
        %v4024 = vunpack.c.l.b16 %v3264
        %v4025 = vunpack.c.h.b16 %v3264
        %v4026 = vunpack.c.l.b16 %v3265
        %v4027 = vunpack.c.h.b16 %v3265
        %v4028 = vunpack.c.l.b16 %v3266
        %v4029 = vunpack.c.h.b16 %v3266
        %v4030 = vunpack.c.l.b16 %v3267
        %v4031 = vunpack.c.h.b16 %v3267
        %v4032 = vunpack.c.l.b16 %v3268
        %v4033 = vunpack.c.h.b16 %v3268
        %v4034 = vunpack.c.l.b16 %v3269
        %v4035 = vunpack.c.h.b16 %v3269
        %v4036 = vunpack.c.l.b16 %v3270
        %v4037 = vunpack.c.h.b16 %v3270
        %v4038 = vunpack.c.l.b16 %v3271
        %v4039 = vunpack.c.h.b16 %v3271
        %v4040 = vunpack.c.l.b16 %v3272
        %v4041 = vunpack.c.h.b16 %v3272
        %v4042 = vunpack.c.l.b16 %v3273
        %v4043 = vunpack.c.h.b16 %v3273
        %v4044 = vunpack.c.l.b16 %v3274
        %v4045 = vunpack.c.h.b16 %v3274
        %v4046 = vunpack.c.l.b16 %v3275
        %v4047 = vunpack.c.h.b16 %v3275
        %v4048 = vunpack.c.l.b16 %v3276
        %v4049 = vunpack.c.h.b16 %v3276
        %v4050 = vunpack.c.l.b16 %v3277
        %v4051 = vunpack.c.h.b16 %v3277
        %v4052 = vunpack.c.l.b16 %v3278
        %v4053 = vunpack.c.h.b16 %v3278
        %v4054 = vunpack.c.l.b16 %v3279
        %v4055 = vunpack.c.h.b16 %v3279
        %v4056 = vunpack.c.l.b16 %v3280
        %v4057 = vunpack.c.h.b16 %v3280
        %v4058 = vunpack.c.l.b16 %v3281
        %v4059 = vunpack.c.h.b16 %v3281
        %v4060 = vunpack.c.l.b16 %v3282
        %v4061 = vunpack.c.h.b16 %v3282
        %v4062 = vunpack.c.l.b16 %v3283
        %v4063 = vunpack.c.h.b16 %v3283
        %v4064 = vunpack.c.l.b16 %v3284
        %v4065 = vunpack.c.h.b16 %v3284
        %v4066 = vunpack.c.l.b16 %v3285
        %v4067 = vunpack.c.h.b16 %v3285
        %v4068 = vunpack.c.l.b16 %v3286
        %v4069 = vunpack.c.h.b16 %v3286
        %v4070 = vunpack.c.l.b16 %v3287
        %v4071 = vunpack.c.h.b16 %v3287
        %v4072 = vunpack.c.l.b16 %v3288
        %v4073 = vunpack.c.h.b16 %v3288
        %v4074 = vunpack.c.l.b16 %v3289
        %v4075 = vunpack.c.h.b16 %v3289
        %v4076 = vunpack.c.l.b16 %v3290
        %v4077 = vunpack.c.h.b16 %v3290
        %v4078 = vunpack.c.l.b16 %v3291
        %v4079 = vunpack.c.h.b16 %v3291
        %v4080 = vunpack.c.l.b16 %v3292
        %v4081 = vunpack.c.h.b16 %v3292
        %v4082 = vunpack.c.l.b16 %v3293
        %v4083 = vunpack.c.h.b16 %v3293
        %v4084 = vunpack.c.l.b16 %v3294
        %v4085 = vunpack.c.h.b16 %v3294
        %v4086 = vunpack.c.l.b16 %v3295
        %v4087 = vunpack.c.h.b16 %v3295
        %v4088 = vunpack.c.l.b16 %v3296
        %v4089 = vunpack.c.h.b16 %v3296
        %v4090 = vunpack.c.l.b16 %v3297
        %v4091 = vunpack.c.h.b16 %v3297
        %v4092 = vunpack.c.l.b16 %v3298
        %v4093 = vunpack.c.h.b16 %v3298
        %v4094 = vunpack.c.l.b16 %v3299
        %v4095 = vunpack.c.h.b16 %v3299
        %v4096 = vunpack.c.l.b16 %v3300
        %v4097 = vunpack.c.h.b16 %v3300
        %v4098 = vunpack.c.l.b16 %v3301
        %v4099 = vunpack.c.h.b16 %v3301
        %v4100 = vunpack.c.l.b16 %v3302
        %v4101 = vunpack.c.h.b16 %v3302
        %v4102 = vunpack.c.l.b16 %v3303
        %v4103 = vunpack.c.h.b16 %v3303
        %v4104 = vunpack.c.l.b16 %v3304
        %v4105 = vunpack.c.h.b16 %v3304
        %v4106 = vunpack.c.l.b16 %v3305
        %v4107 = vunpack.c.h.b16 %v3305
        %v4108 = vunpack.c.l.b16 %v3306
        %v4109 = vunpack.c.h.b16 %v3306
        %v4110 = vunpack.c.l.b16 %v3307
        %v4111 = vunpack.c.h.b16 %v3307
        %v4112 = vunpack.c.l.b16 %v3308
        %v4113 = vunpack.c.h.b16 %v3308
        %v4114 = vunpack.c.l.b16 %v3309
        %v4115 = vunpack.c.h.b16 %v3309
        %v4116 = vunpack.c.l.b16 %v3310
        %v4117 = vunpack.c.h.b16 %v3310
        %v4118 = vunpack.c.l.b16 %v3311
        %v4119 = vunpack.c.h.b16 %v3311
        %v4120 = vunpack.c.l.b16 %v3312
        %v4121 = vunpack.c.h.b16 %v3312
        %v4122 = vunpack.c.l.b16 %v3313
        %v4123 = vunpack.c.h.b16 %v3313
        %v4124 = vpack.c.b16 %v3620, %v3612
        %v4125 = vpack.c.b16 %v3621, %v3613
        %v4126 = vpack.c.b16 %v3622, %v3614
        %v4127 = vpack.c.b16 %v3623, %v3615
        %v4128 = vpack.c.b16 %v3624, %v3616
        %v4129 = vpack.c.b16 %v3625, %v3617
        %v4130 = vpack.c.b16 %v3626, %v3618
        %v4131 = vpack.c.b16 %v3627, %v3619
        %v4132 = vpack.c.b16 %v3636, %v3628
        %v4133 = vpack.c.b16 %v3637, %v3629
        %v4134 = vpack.c.b16 %v3638, %v3630
        %v4135 = vpack.c.b16 %v3639, %v3631
        %v4136 = vpack.c.b16 %v3640, %v3632
        %v4137 = vpack.c.b16 %v3641, %v3633
        %v4138 = vpack.c.b16 %v3642, %v3634
        %v4139 = vpack.c.b16 %v3643, %v3635
        %v4140 = vpack.c.b16 %v3652, %v3644
        %v4141 = vpack.c.b16 %v3653, %v3645
        %v4142 = vpack.c.b16 %v3654, %v3646
        %v4143 = vpack.c.b16 %v3655, %v3647
        %v4144 = vpack.c.b16 %v3656, %v3648
        %v4145 = vpack.c.b16 %v3657, %v3649
        %v4146 = vpack.c.b16 %v3658, %v3650
        %v4147 = vpack.c.b16 %v3659, %v3651
        %v4148 = vpack.c.b16 %v3668, %v3660
        %v4149 = vpack.c.b16 %v3669, %v3661
        %v4150 = vpack.c.b16 %v3670, %v3662
        %v4151 = vpack.c.b16 %v3671, %v3663
        %v4152 = vpack.c.b16 %v3672, %v3664
        %v4153 = vpack.c.b16 %v3673, %v3665
        %v4154 = vpack.c.b16 %v3674, %v3666
        %v4155 = vpack.c.b16 %v3675, %v3667
        %v4156 = vpack.c.b16 %v3684, %v3676
        %v4157 = vpack.c.b16 %v3685, %v3677
        %v4158 = vpack.c.b16 %v3686, %v3678
        %v4159 = vpack.c.b16 %v3687, %v3679
        %v4160 = vpack.c.b16 %v3688, %v3680
        %v4161 = vpack.c.b16 %v3689, %v3681
        %v4162 = vpack.c.b16 %v3690, %v3682
        %v4163 = vpack.c.b16 %v3691, %v3683
        %v4164 = vpack.c.b16 %v3700, %v3692
        %v4165 = vpack.c.b16 %v3701, %v3693
        %v4166 = vpack.c.b16 %v3702, %v3694
        %v4167 = vpack.c.b16 %v3703, %v3695
        %v4168 = vpack.c.b16 %v3704, %v3696
        %v4169 = vpack.c.b16 %v3705, %v3697
        %v4170 = vpack.c.b16 %v3706, %v3698
        %v4171 = vpack.c.b16 %v3707, %v3699
        %v4172 = vpack.c.b16 %v3716, %v3708
        %v4173 = vpack.c.b16 %v3717, %v3709
        %v4174 = vpack.c.b16 %v3718, %v3710
        %v4175 = vpack.c.b16 %v3719, %v3711
        %v4176 = vpack.c.b16 %v3720, %v3712
        %v4177 = vpack.c.b16 %v3721, %v3713
        %v4178 = vpack.c.b16 %v3722, %v3714
        %v4179 = vpack.c.b16 %v3723, %v3715
        %v4180 = vpack.c.b16 %v3732, %v3724
        %v4181 = vpack.c.b16 %v3733, %v3725
        %v4182 = vpack.c.b16 %v3734, %v3726
        %v4183 = vpack.c.b16 %v3735, %v3727
        %v4184 = vpack.c.b16 %v3736, %v3728
        %v4185 = vpack.c.b16 %v3737, %v3729
        %v4186 = vpack.c.b16 %v3738, %v3730
        %v4187 = vpack.c.b16 %v3739, %v3731
        %v4188 = vpack.c.b16 %v3748, %v3740
        %v4189 = vpack.c.b16 %v3749, %v3741
        %v4190 = vpack.c.b16 %v3750, %v3742
        %v4191 = vpack.c.b16 %v3751, %v3743
        %v4192 = vpack.c.b16 %v3752, %v3744
        %v4193 = vpack.c.b16 %v3753, %v3745
        %v4194 = vpack.c.b16 %v3754, %v3746
        %v4195 = vpack.c.b16 %v3755, %v3747
        %v4196 = vpack.c.b16 %v3764, %v3756
        %v4197 = vpack.c.b16 %v3765, %v3757
        %v4198 = vpack.c.b16 %v3766, %v3758
        %v4199 = vpack.c.b16 %v3767, %v3759
        %v4200 = vpack.c.b16 %v3768, %v3760
        %v4201 = vpack.c.b16 %v3769, %v3761
        %v4202 = vpack.c.b16 %v3770, %v3762
        %v4203 = vpack.c.b16 %v3771, %v3763
        %v4204 = vpack.c.b16 %v3780, %v3772
        %v4205 = vpack.c.b16 %v3781, %v3773
        %v4206 = vpack.c.b16 %v3782, %v3774
        %v4207 = vpack.c.b16 %v3783, %v3775
        %v4208 = vpack.c.b16 %v3784, %v3776
        %v4209 = vpack.c.b16 %v3785, %v3777
        %v4210 = vpack.c.b16 %v3786, %v3778
        %v4211 = vpack.c.b16 %v3787, %v3779
        %v4212 = vpack.c.b16 %v3796, %v3788
        %v4213 = vpack.c.b16 %v3797, %v3789
        %v4214 = vpack.c.b16 %v3798, %v3790
        %v4215 = vpack.c.b16 %v3799, %v3791
        %v4216 = vpack.c.b16 %v3800, %v3792
        %v4217 = vpack.c.b16 %v3801, %v3793
        %v4218 = vpack.c.b16 %v3802, %v3794
        %v4219 = vpack.c.b16 %v3803, %v3795
        %v4220 = vpack.c.b16 %v3812, %v3804
        %v4221 = vpack.c.b16 %v3813, %v3805
        %v4222 = vpack.c.b16 %v3814, %v3806
        %v4223 = vpack.c.b16 %v3815, %v3807
        %v4224 = vpack.c.b16 %v3816, %v3808
        %v4225 = vpack.c.b16 %v3817, %v3809
        %v4226 = vpack.c.b16 %v3818, %v3810
        %v4227 = vpack.c.b16 %v3819, %v3811
        %v4228 = vpack.c.b16 %v3828, %v3820
        %v4229 = vpack.c.b16 %v3829, %v3821
        %v4230 = vpack.c.b16 %v3830, %v3822
        %v4231 = vpack.c.b16 %v3831, %v3823
        %v4232 = vpack.c.b16 %v3832, %v3824
        %v4233 = vpack.c.b16 %v3833, %v3825
        %v4234 = vpack.c.b16 %v3834, %v3826
        %v4235 = vpack.c.b16 %v3835, %v3827
        %v4236 = vpack.c.b16 %v3844, %v3836
        %v4237 = vpack.c.b16 %v3845, %v3837
        %v4238 = vpack.c.b16 %v3846, %v3838
        %v4239 = vpack.c.b16 %v3847, %v3839
        %v4240 = vpack.c.b16 %v3848, %v3840
        %v4241 = vpack.c.b16 %v3849, %v3841
        %v4242 = vpack.c.b16 %v3850, %v3842
        %v4243 = vpack.c.b16 %v3851, %v3843
        %v4244 = vpack.c.b16 %v3860, %v3852
        %v4245 = vpack.c.b16 %v3861, %v3853
        %v4246 = vpack.c.b16 %v3862, %v3854
        %v4247 = vpack.c.b16 %v3863, %v3855
        %v4248 = vpack.c.b16 %v3864, %v3856
        %v4249 = vpack.c.b16 %v3865, %v3857
        %v4250 = vpack.c.b16 %v3866, %v3858
        %v4251 = vpack.c.b16 %v3867, %v3859
        %v4252 = vpack.c.b16 %v3876, %v3868
        %v4253 = vpack.c.b16 %v3877, %v3869
        %v4254 = vpack.c.b16 %v3878, %v3870
        %v4255 = vpack.c.b16 %v3879, %v3871
        %v4256 = vpack.c.b16 %v3880, %v3872
        %v4257 = vpack.c.b16 %v3881, %v3873
        %v4258 = vpack.c.b16 %v3882, %v3874
        %v4259 = vpack.c.b16 %v3883, %v3875
        %v4260 = vpack.c.b16 %v3892, %v3884
        %v4261 = vpack.c.b16 %v3893, %v3885
        %v4262 = vpack.c.b16 %v3894, %v3886
        %v4263 = vpack.c.b16 %v3895, %v3887
        %v4264 = vpack.c.b16 %v3896, %v3888
        %v4265 = vpack.c.b16 %v3897, %v3889
        %v4266 = vpack.c.b16 %v3898, %v3890
        %v4267 = vpack.c.b16 %v3899, %v3891
        %v4268 = vpack.c.b16 %v3908, %v3900
        %v4269 = vpack.c.b16 %v3909, %v3901
        %v4270 = vpack.c.b16 %v3910, %v3902
        %v4271 = vpack.c.b16 %v3911, %v3903
        %v4272 = vpack.c.b16 %v3912, %v3904
        %v4273 = vpack.c.b16 %v3913, %v3905
        %v4274 = vpack.c.b16 %v3914, %v3906
        %v4275 = vpack.c.b16 %v3915, %v3907
        %v4276 = vpack.c.b16 %v3924, %v3916
        %v4277 = vpack.c.b16 %v3925, %v3917
        %v4278 = vpack.c.b16 %v3926, %v3918
        %v4279 = vpack.c.b16 %v3927, %v3919
        %v4280 = vpack.c.b16 %v3928, %v3920
        %v4281 = vpack.c.b16 %v3929, %v3921
        %v4282 = vpack.c.b16 %v3930, %v3922
        %v4283 = vpack.c.b16 %v3931, %v3923
        %v4284 = vpack.c.b16 %v3940, %v3932
        %v4285 = vpack.c.b16 %v3941, %v3933
        %v4286 = vpack.c.b16 %v3942, %v3934
        %v4287 = vpack.c.b16 %v3943, %v3935
        %v4288 = vpack.c.b16 %v3944, %v3936
        %v4289 = vpack.c.b16 %v3945, %v3937
        %v4290 = vpack.c.b16 %v3946, %v3938
        %v4291 = vpack.c.b16 %v3947, %v3939
        %v4292 = vpack.c.b16 %v3956, %v3948
        %v4293 = vpack.c.b16 %v3957, %v3949
        %v4294 = vpack.c.b16 %v3958, %v3950
        %v4295 = vpack.c.b16 %v3959, %v3951
        %v4296 = vpack.c.b16 %v3960, %v3952
        %v4297 = vpack.c.b16 %v3961, %v3953
        %v4298 = vpack.c.b16 %v3962, %v3954
        %v4299 = vpack.c.b16 %v3963, %v3955
        %v4300 = vpack.c.b16 %v3972, %v3964
        %v4301 = vpack.c.b16 %v3973, %v3965
        %v4302 = vpack.c.b16 %v3974, %v3966
        %v4303 = vpack.c.b16 %v3975, %v3967
        %v4304 = vpack.c.b16 %v3976, %v3968
        %v4305 = vpack.c.b16 %v3977, %v3969
        %v4306 = vpack.c.b16 %v3978, %v3970
        %v4307 = vpack.c.b16 %v3979, %v3971
        %v4308 = vpack.c.b16 %v3988, %v3980
        %v4309 = vpack.c.b16 %v3989, %v3981
        %v4310 = vpack.c.b16 %v3990, %v3982
        %v4311 = vpack.c.b16 %v3991, %v3983
        %v4312 = vpack.c.b16 %v3992, %v3984
        %v4313 = vpack.c.b16 %v3993, %v3985
        %v4314 = vpack.c.b16 %v3994, %v3986
        %v4315 = vpack.c.b16 %v3995, %v3987
        %v4316 = vpack.c.b16 %v4004, %v3996
        %v4317 = vpack.c.b16 %v4005, %v3997
        %v4318 = vpack.c.b16 %v4006, %v3998
        %v4319 = vpack.c.b16 %v4007, %v3999
        %v4320 = vpack.c.b16 %v4008, %v4000
        %v4321 = vpack.c.b16 %v4009, %v4001
        %v4322 = vpack.c.b16 %v4010, %v4002
        %v4323 = vpack.c.b16 %v4011, %v4003
        %v4324 = vpack.c.b16 %v4020, %v4012
        %v4325 = vpack.c.b16 %v4021, %v4013
        %v4326 = vpack.c.b16 %v4022, %v4014
        %v4327 = vpack.c.b16 %v4023, %v4015
        %v4328 = vpack.c.b16 %v4024, %v4016
        %v4329 = vpack.c.b16 %v4025, %v4017
        %v4330 = vpack.c.b16 %v4026, %v4018
        %v4331 = vpack.c.b16 %v4027, %v4019
        %v4332 = vpack.c.b16 %v4036, %v4028
        %v4333 = vpack.c.b16 %v4037, %v4029
        %v4334 = vpack.c.b16 %v4038, %v4030
        %v4335 = vpack.c.b16 %v4039, %v4031
        %v4336 = vpack.c.b16 %v4040, %v4032
        %v4337 = vpack.c.b16 %v4041, %v4033
        %v4338 = vpack.c.b16 %v4042, %v4034
        %v4339 = vpack.c.b16 %v4043, %v4035
        %v4340 = vpack.c.b16 %v4052, %v4044
        %v4341 = vpack.c.b16 %v4053, %v4045
        %v4342 = vpack.c.b16 %v4054, %v4046
        %v4343 = vpack.c.b16 %v4055, %v4047
        %v4344 = vpack.c.b16 %v4056, %v4048
        %v4345 = vpack.c.b16 %v4057, %v4049
        %v4346 = vpack.c.b16 %v4058, %v4050
        %v4347 = vpack.c.b16 %v4059, %v4051
        %v4348 = vpack.c.b16 %v4068, %v4060
        %v4349 = vpack.c.b16 %v4069, %v4061
        %v4350 = vpack.c.b16 %v4070, %v4062
        %v4351 = vpack.c.b16 %v4071, %v4063
        %v4352 = vpack.c.b16 %v4072, %v4064
        %v4353 = vpack.c.b16 %v4073, %v4065
        %v4354 = vpack.c.b16 %v4074, %v4066
        %v4355 = vpack.c.b16 %v4075, %v4067
        %v4356 = vpack.c.b16 %v4084, %v4076
        %v4357 = vpack.c.b16 %v4085, %v4077
        %v4358 = vpack.c.b16 %v4086, %v4078
        %v4359 = vpack.c.b16 %v4087, %v4079
        %v4360 = vpack.c.b16 %v4088, %v4080
        %v4361 = vpack.c.b16 %v4089, %v4081
        %v4362 = vpack.c.b16 %v4090, %v4082
        %v4363 = vpack.c.b16 %v4091, %v4083
        %v4364 = vpack.c.b16 %v4100, %v4092
        %v4365 = vpack.c.b16 %v4101, %v4093
        %v4366 = vpack.c.b16 %v4102, %v4094
        %v4367 = vpack.c.b16 %v4103, %v4095
        %v4368 = vpack.c.b16 %v4104, %v4096
        %v4369 = vpack.c.b16 %v4105, %v4097
        %v4370 = vpack.c.b16 %v4106, %v4098
        %v4371 = vpack.c.b16 %v4107, %v4099
        %v4372 = vpack.c.b16 %v4116, %v4108
        %v4373 = vpack.c.b16 %v4117, %v4109
        %v4374 = vpack.c.b16 %v4118, %v4110
        %v4375 = vpack.c.b16 %v4119, %v4111
        %v4376 = vpack.c.b16 %v4120, %v4112
        %v4377 = vpack.c.b16 %v4121, %v4113
        %v4378 = vpack.c.b16 %v4122, %v4114
        %v4379 = vpack.c.b16 %v4123, %v4115
        %4636 = vmatprep.subr.bf16.mxu0 %v4181
        %4637 = vmatpush1.bf16.msra.mxu0 %v4180
        %4638 = vmatprep.subr.bf16.mxu0 %v4173
        %4639 = vmatpush1.bf16.msra.mxu0 %v4172
        %4640 = vmatprep.subr.bf16.mxu0 %v4165
        %4641 = vmatpush1.bf16.msra.mxu0 %v4164
        %4642 = vmatprep.subr.bf16.mxu0 %v4157
        %4643 = vmatpush1.bf16.msra.mxu0 %v4156
        %4644 = vmatprep.subr.bf16.mxu0 %v4149
        %4645 = vmatpush1.bf16.msra.mxu0 %v4148
        %4646 = vmatprep.subr.bf16.mxu0 %v4141
        %4647 = vmatpush1.bf16.msra.mxu0 %v4140
        %4648 = vmatprep.subr.bf16.mxu0 %v4133
        %4649 = vmatpush1.bf16.msra.mxu0 %v4132
        %4650 = vmatprep.subr.bf16.mxu0 %v4125
        %4651 = vmatpush1.bf16.msra.mxu0 %v4124
        %4652 = vmatprep.subr.bf16.mxu0 %v4245
        %4653 = vmatpush2.bf16.msra.mxu0 %v4244
        %4654 = vmatprep.subr.bf16.mxu0 %v4237
        %4655 = vmatpush2.bf16.msra.mxu0 %v4236
        %4656 = vmatprep.subr.bf16.mxu0 %v4229
        %4657 = vmatpush2.bf16.msra.mxu0 %v4228
        %4658 = vmatprep.subr.bf16.mxu0 %v4221
        %4659 = vmatpush2.bf16.msra.mxu0 %v4220
        %4660 = vmatprep.subr.bf16.mxu0 %v4213
        %4661 = vmatpush2.bf16.msra.mxu0 %v4212
        %4662 = vmatprep.subr.bf16.mxu0 %v4205
        %4663 = vmatpush2.bf16.msra.mxu0 %v4204
        %4664 = vmatprep.subr.bf16.mxu0 %v4197
        %4665 = vmatpush2.bf16.msra.mxu0 %v4196
        %4666 = vmatprep.subr.bf16.mxu0 %v4189
        %4667 = vmatpush2.bf16.msra.mxu0 %v4188
        %4668 = vmatprep.mubr.bf16.mxu0 %v2995
        %4669 = vmatmul.mubr.bf16.gmra.mxu0 %v2994
        %v4670 = vpop.f32.mrf.mxu0
        %v4671 = vadd.f32 %v3319, %v4670
        %v4672 = vpop.f32.mrf.mxu0
        %v4673 = vadd.f32 %v3323, %v4672
        %v4674 = vpop.f32.mrf.mxu0
        %v4675 = vadd.f32 %v3319, %v4674
        %v4676 = vpop.f32.mrf.mxu0
        %v4677 = vadd.f32 %v3323, %v4676
        %4678 = vmatprep.mubr.bf16.mxu0 %v2999
        %4679 = vmatmul.mubr.bf16.gmra.mxu0 %v2998
        %v4680 = vpop.f32.mrf.mxu0
        %v4681 = vadd.f32 %v3319, %v4680
        %v4682 = vpop.f32.mrf.mxu0
        %v4683 = vadd.f32 %v3323, %v4682
        %v4684 = vpop.f32.mrf.mxu0
        %v4685 = vadd.f32 %v3319, %v4684
        %v4686 = vpop.f32.mrf.mxu0
        %v4687 = vadd.f32 %v3323, %v4686
        %4688 = vmatprep.mubr.bf16.mxu0 %v3003
        %4689 = vmatmul.mubr.bf16.gmra.mxu0 %v3002
        %v4690 = vpop.f32.mrf.mxu0
        %v4691 = vadd.f32 %v3319, %v4690
        %v4692 = vpop.f32.mrf.mxu0
        %v4693 = vadd.f32 %v3323, %v4692
        %v4694 = vpop.f32.mrf.mxu0
        %v4695 = vadd.f32 %v3319, %v4694
        %v4696 = vpop.f32.mrf.mxu0
        %v4697 = vadd.f32 %v3323, %v4696
        %4698 = vmatprep.mubr.bf16.mxu0 %v3007
        %4699 = vmatmul.mubr.bf16.gmra.mxu0 %v3006
        %v4700 = vpop.f32.mrf.mxu0
        %v4701 = vadd.f32 %v3319, %v4700
        %v4702 = vpop.f32.mrf.mxu0
        %v4703 = vadd.f32 %v3323, %v4702
        %v4704 = vpop.f32.mrf.mxu0
        %v4705 = vadd.f32 %v3319, %v4704
        %v4706 = vpop.f32.mrf.mxu0
        %v4707 = vadd.f32 %v3323, %v4706
        %4708 = vmatprep.mubr.bf16.mxu0 %v3011
        %4709 = vmatmul.mubr.bf16.gmra.mxu0 %v3010
        %v4710 = vpop.f32.mrf.mxu0
        %v4711 = vadd.f32 %v3319, %v4710
        %v4712 = vpop.f32.mrf.mxu0
        %v4713 = vadd.f32 %v3323, %v4712
        %v4714 = vpop.f32.mrf.mxu0
        %v4715 = vadd.f32 %v3319, %v4714
        %v4716 = vpop.f32.mrf.mxu0
        %v4717 = vadd.f32 %v3323, %v4716
        %4718 = vmatprep.mubr.bf16.mxu0 %v3015
        %4719 = vmatmul.mubr.bf16.gmra.mxu0 %v3014
        %v4720 = vpop.f32.mrf.mxu0
        %v4721 = vadd.f32 %v3319, %v4720
        %v4722 = vpop.f32.mrf.mxu0
        %v4723 = vadd.f32 %v3323, %v4722
        %v4724 = vpop.f32.mrf.mxu0
        %v4725 = vadd.f32 %v3319, %v4724
        %v4726 = vpop.f32.mrf.mxu0
        %v4727 = vadd.f32 %v3323, %v4726
        %4728 = vmatprep.mubr.bf16.mxu0 %v3019
        %4729 = vmatmul.mubr.bf16.gmra.mxu0 %v3018
        %v4730 = vpop.f32.mrf.mxu0
        %v4731 = vadd.f32 %v3319, %v4730
        %v4732 = vpop.f32.mrf.mxu0
        %v4733 = vadd.f32 %v3323, %v4732
        %v4734 = vpop.f32.mrf.mxu0
        %v4735 = vadd.f32 %v3319, %v4734
        %v4736 = vpop.f32.mrf.mxu0
        %v4737 = vadd.f32 %v3323, %v4736
        %4738 = vmatprep.mubr.bf16.mxu0 %v3023
        %4739 = vmatmul.mubr.bf16.gmra.mxu0 %v3022
        %v4740 = vpop.f32.mrf.mxu0
        %v4741 = vadd.f32 %v3319, %v4740
        %v4742 = vpop.f32.mrf.mxu0
        %v4743 = vadd.f32 %v3323, %v4742
        %v4744 = vpop.f32.mrf.mxu0
        %v4745 = vadd.f32 %v3319, %v4744
        %v4746 = vpop.f32.mrf.mxu0
        %v4747 = vadd.f32 %v3323, %v4746
        %4748 = vmatprep.mubr.bf16.mxu0 %v3027
        %4749 = vmatmul.mubr.bf16.gmra.mxu0 %v3026
        %v4750 = vpop.f32.mrf.mxu0
        %v4751 = vadd.f32 %v3319, %v4750
        %v4752 = vpop.f32.mrf.mxu0
        %v4753 = vadd.f32 %v3323, %v4752
        %v4754 = vpop.f32.mrf.mxu0
        %v4755 = vadd.f32 %v3319, %v4754
        %v4756 = vpop.f32.mrf.mxu0
        %v4757 = vadd.f32 %v3323, %v4756
        %4758 = vmatprep.mubr.bf16.mxu0 %v3031
        %4759 = vmatmul.mubr.bf16.gmra.mxu0 %v3030
        %v4760 = vpop.f32.mrf.mxu0
        %v4761 = vadd.f32 %v3319, %v4760
        %v4762 = vpop.f32.mrf.mxu0
        %v4763 = vadd.f32 %v3323, %v4762
        %v4764 = vpop.f32.mrf.mxu0
        %v4765 = vadd.f32 %v3319, %v4764
        %v4766 = vpop.f32.mrf.mxu0
        %v4767 = vadd.f32 %v3323, %v4766
        %4768 = vmatprep.mubr.bf16.mxu0 %v3035
        %4769 = vmatmul.mubr.bf16.gmra.mxu0 %v3034
        %v4770 = vpop.f32.mrf.mxu0
        %v4771 = vadd.f32 %v3319, %v4770
        %v4772 = vpop.f32.mrf.mxu0
        %v4773 = vadd.f32 %v3323, %v4772
        %v4774 = vpop.f32.mrf.mxu0
        %v4775 = vadd.f32 %v3319, %v4774
        %v4776 = vpop.f32.mrf.mxu0
        %v4777 = vadd.f32 %v3323, %v4776
        %4778 = vmatprep.mubr.bf16.mxu0 %v3039
        %4779 = vmatmul.mubr.bf16.gmra.mxu0 %v3038
        %v4780 = vpop.f32.mrf.mxu0
        %v4781 = vadd.f32 %v3319, %v4780
        %v4782 = vpop.f32.mrf.mxu0
        %v4783 = vadd.f32 %v3323, %v4782
        %v4784 = vpop.f32.mrf.mxu0
        %v4785 = vadd.f32 %v3319, %v4784
        %v4786 = vpop.f32.mrf.mxu0
        %v4787 = vadd.f32 %v3323, %v4786
        %4788 = vmatprep.mubr.bf16.mxu0 %v3043
        %4789 = vmatmul.mubr.bf16.gmra.mxu0 %v3042
        %v4790 = vpop.f32.mrf.mxu0
        %v4791 = vadd.f32 %v3319, %v4790
        %v4792 = vpop.f32.mrf.mxu0
        %v4793 = vadd.f32 %v3323, %v4792
        %v4794 = vpop.f32.mrf.mxu0
        %v4795 = vadd.f32 %v3319, %v4794
        %v4796 = vpop.f32.mrf.mxu0
        %v4797 = vadd.f32 %v3323, %v4796
        %4798 = vmatprep.mubr.bf16.mxu0 %v3047
        %4799 = vmatmul.mubr.bf16.gmra.mxu0 %v3046
        %v4800 = vpop.f32.mrf.mxu0
        %v4801 = vadd.f32 %v3319, %v4800
        %v4802 = vpop.f32.mrf.mxu0
        %v4803 = vadd.f32 %v3323, %v4802
        %v4804 = vpop.f32.mrf.mxu0
        %v4805 = vadd.f32 %v3319, %v4804
        %v4806 = vpop.f32.mrf.mxu0
        %v4807 = vadd.f32 %v3323, %v4806
        %4808 = vmatprep.mubr.bf16.mxu0 %v3051
        %4809 = vmatmul.mubr.bf16.gmra.mxu0 %v3050
        %v4810 = vpop.f32.mrf.mxu0
        %v4811 = vadd.f32 %v3319, %v4810
        %v4812 = vpop.f32.mrf.mxu0
        %v4813 = vadd.f32 %v3323, %v4812
        %v4814 = vpop.f32.mrf.mxu0
        %v4815 = vadd.f32 %v3319, %v4814
        %v4816 = vpop.f32.mrf.mxu0
        %v4817 = vadd.f32 %v3323, %v4816
        %4818 = vmatprep.mubr.bf16.mxu0 %v3055
        %4819 = vmatmul.mubr.bf16.gmra.mxu0 %v3054
        %v4820 = vpop.f32.mrf.mxu0
        %v4821 = vadd.f32 %v3319, %v4820
        %v4822 = vpop.f32.mrf.mxu0
        %v4823 = vadd.f32 %v3323, %v4822
        %v4824 = vpop.f32.mrf.mxu0
        %v4825 = vadd.f32 %v3319, %v4824
        %v4826 = vpop.f32.mrf.mxu0
        %v4827 = vadd.f32 %v3323, %v4826
        %4828 = vdwg.mxu0
        %4829 = vmatprep.subr.bf16.mxu0 %v4309
        %4830 = vmatpush1.bf16.msra.mxu0 %v4308
        %4831 = vmatprep.subr.bf16.mxu0 %v4301
        %4832 = vmatpush1.bf16.msra.mxu0 %v4300
        %4833 = vmatprep.subr.bf16.mxu0 %v4293
        %4834 = vmatpush1.bf16.msra.mxu0 %v4292
        %4835 = vmatprep.subr.bf16.mxu0 %v4285
        %4836 = vmatpush1.bf16.msra.mxu0 %v4284
        %4837 = vmatprep.subr.bf16.mxu0 %v4277
        %4838 = vmatpush1.bf16.msra.mxu0 %v4276
        %4839 = vmatprep.subr.bf16.mxu0 %v4269
        %4840 = vmatpush1.bf16.msra.mxu0 %v4268
        %4841 = vmatprep.subr.bf16.mxu0 %v4261
        %4842 = vmatpush1.bf16.msra.mxu0 %v4260
        %4843 = vmatprep.subr.bf16.mxu0 %v4253
        %4844 = vmatpush1.bf16.msra.mxu0 %v4252
        %4845 = vmatprep.subr.bf16.mxu0 %v4373
        %4846 = vmatpush2.bf16.msra.mxu0 %v4372
        %4847 = vmatprep.subr.bf16.mxu0 %v4365
        %4848 = vmatpush2.bf16.msra.mxu0 %v4364
        %4849 = vmatprep.subr.bf16.mxu0 %v4357
        %4850 = vmatpush2.bf16.msra.mxu0 %v4356
        %4851 = vmatprep.subr.bf16.mxu0 %v4349
        %4852 = vmatpush2.bf16.msra.mxu0 %v4348
        %4853 = vmatprep.subr.bf16.mxu0 %v4341
        %4854 = vmatpush2.bf16.msra.mxu0 %v4340
        %4855 = vmatprep.subr.bf16.mxu0 %v4333
        %4856 = vmatpush2.bf16.msra.mxu0 %v4332
        %4857 = vmatprep.subr.bf16.mxu0 %v4325
        %4858 = vmatpush2.bf16.msra.mxu0 %v4324
        %4859 = vmatprep.subr.bf16.mxu0 %v4317
        %4860 = vmatpush2.bf16.msra.mxu0 %v4316
        %4861 = vmatprep.mubr.bf16.mxu0 %v2997
        %4862 = vmatmul.mubr.bf16.gmra.mxu0 %v2996
        %v4863 = vpop.f32.mrf.mxu0
        %v4864 = vadd.f32 %v4671, %v4863
        %v4865 = vpop.f32.mrf.mxu0
        %v4866 = vadd.f32 %v4673, %v4865
        %v4867 = vpop.f32.mrf.mxu0
        %v4868 = vadd.f32 %v4675, %v4867
        %v4869 = vpop.f32.mrf.mxu0
        %v4870 = vadd.f32 %v4677, %v4869
        %4871 = vmatprep.mubr.bf16.mxu0 %v3001
        %4872 = vmatmul.mubr.bf16.gmra.mxu0 %v3000
        %v4873 = vpop.f32.mrf.mxu0
        %v4874 = vadd.f32 %v4681, %v4873
        %v4875 = vpop.f32.mrf.mxu0
        %v4876 = vadd.f32 %v4683, %v4875
        %v4877 = vpop.f32.mrf.mxu0
        %v4878 = vadd.f32 %v4685, %v4877
        %v4879 = vpop.f32.mrf.mxu0
        %v4880 = vadd.f32 %v4687, %v4879
        %4881 = vmatprep.mubr.bf16.mxu0 %v3005
        %4882 = vmatmul.mubr.bf16.gmra.mxu0 %v3004
        %v4883 = vpop.f32.mrf.mxu0
        %v4884 = vadd.f32 %v4691, %v4883
        %v4885 = vpop.f32.mrf.mxu0
        %v4886 = vadd.f32 %v4693, %v4885
        %v4887 = vpop.f32.mrf.mxu0
        %v4888 = vadd.f32 %v4695, %v4887
        %v4889 = vpop.f32.mrf.mxu0
        %v4890 = vadd.f32 %v4697, %v4889
        %4891 = vmatprep.mubr.bf16.mxu0 %v3009
        %4892 = vmatmul.mubr.bf16.gmra.mxu0 %v3008
        %v4893 = vpop.f32.mrf.mxu0
        %v4894 = vadd.f32 %v4701, %v4893
        %v4895 = vpop.f32.mrf.mxu0
        %v4896 = vadd.f32 %v4703, %v4895
        %v4897 = vpop.f32.mrf.mxu0
        %v4898 = vadd.f32 %v4705, %v4897
        %v4899 = vpop.f32.mrf.mxu0
        %v4900 = vadd.f32 %v4707, %v4899
        %4901 = vmatprep.mubr.bf16.mxu0 %v3013
        %4902 = vmatmul.mubr.bf16.gmra.mxu0 %v3012
        %v4903 = vpop.f32.mrf.mxu0
        %v4904 = vadd.f32 %v4711, %v4903
        %v4905 = vpop.f32.mrf.mxu0
        %v4906 = vadd.f32 %v4713, %v4905
        %v4907 = vpop.f32.mrf.mxu0
        %v4908 = vadd.f32 %v4715, %v4907
        %v4909 = vpop.f32.mrf.mxu0
        %v4910 = vadd.f32 %v4717, %v4909
        %4911 = vmatprep.mubr.bf16.mxu0 %v3017
        %4912 = vmatmul.mubr.bf16.gmra.mxu0 %v3016
        %v4913 = vpop.f32.mrf.mxu0
        %v4914 = vadd.f32 %v4721, %v4913
        %v4915 = vpop.f32.mrf.mxu0
        %v4916 = vadd.f32 %v4723, %v4915
        %v4917 = vpop.f32.mrf.mxu0
        %v4918 = vadd.f32 %v4725, %v4917
        %v4919 = vpop.f32.mrf.mxu0
        %v4920 = vadd.f32 %v4727, %v4919
        %4921 = vmatprep.mubr.bf16.mxu0 %v3021
        %4922 = vmatmul.mubr.bf16.gmra.mxu0 %v3020
        %v4923 = vpop.f32.mrf.mxu0
        %v4924 = vadd.f32 %v4731, %v4923
        %v4925 = vpop.f32.mrf.mxu0
        %v4926 = vadd.f32 %v4733, %v4925
        %v4927 = vpop.f32.mrf.mxu0
        %v4928 = vadd.f32 %v4735, %v4927
        %v4929 = vpop.f32.mrf.mxu0
        %v4930 = vadd.f32 %v4737, %v4929
        %4931 = vmatprep.mubr.bf16.mxu0 %v3025
        %4932 = vmatmul.mubr.bf16.gmra.mxu0 %v3024
        %v4933 = vpop.f32.mrf.mxu0
        %v4934 = vadd.f32 %v4741, %v4933
        %v4935 = vpop.f32.mrf.mxu0
        %v4936 = vadd.f32 %v4743, %v4935
        %v4937 = vpop.f32.mrf.mxu0
        %v4938 = vadd.f32 %v4745, %v4937
        %v4939 = vpop.f32.mrf.mxu0
        %v4940 = vadd.f32 %v4747, %v4939
        %4941 = vmatprep.mubr.bf16.mxu0 %v3029
        %4942 = vmatmul.mubr.bf16.gmra.mxu0 %v3028
        %v4943 = vpop.f32.mrf.mxu0
        %v4944 = vadd.f32 %v4751, %v4943
        %v4945 = vpop.f32.mrf.mxu0
        %v4946 = vadd.f32 %v4753, %v4945
        %v4947 = vpop.f32.mrf.mxu0
        %v4948 = vadd.f32 %v4755, %v4947
        %v4949 = vpop.f32.mrf.mxu0
        %v4950 = vadd.f32 %v4757, %v4949
        %4951 = vmatprep.mubr.bf16.mxu0 %v3033
        %4952 = vmatmul.mubr.bf16.gmra.mxu0 %v3032
        %v4953 = vpop.f32.mrf.mxu0
        %v4954 = vadd.f32 %v4761, %v4953
        %v4955 = vpop.f32.mrf.mxu0
        %v4956 = vadd.f32 %v4763, %v4955
        %v4957 = vpop.f32.mrf.mxu0
        %v4958 = vadd.f32 %v4765, %v4957
        %v4959 = vpop.f32.mrf.mxu0
        %v4960 = vadd.f32 %v4767, %v4959
        %4961 = vmatprep.mubr.bf16.mxu0 %v3037
        %4962 = vmatmul.mubr.bf16.gmra.mxu0 %v3036
        %v4963 = vpop.f32.mrf.mxu0
        %v4964 = vadd.f32 %v4771, %v4963
        %v4965 = vpop.f32.mrf.mxu0
        %v4966 = vadd.f32 %v4773, %v4965
        %v4967 = vpop.f32.mrf.mxu0
        %v4968 = vadd.f32 %v4775, %v4967
        %v4969 = vpop.f32.mrf.mxu0
        %v4970 = vadd.f32 %v4777, %v4969
        %4971 = vmatprep.mubr.bf16.mxu0 %v3041
        %4972 = vmatmul.mubr.bf16.gmra.mxu0 %v3040
        %v4973 = vpop.f32.mrf.mxu0
        %v4974 = vadd.f32 %v4781, %v4973
        %v4975 = vpop.f32.mrf.mxu0
        %v4976 = vadd.f32 %v4783, %v4975
        %v4977 = vpop.f32.mrf.mxu0
        %v4978 = vadd.f32 %v4785, %v4977
        %v4979 = vpop.f32.mrf.mxu0
        %v4980 = vadd.f32 %v4787, %v4979
        %4981 = vmatprep.mubr.bf16.mxu0 %v3045
        %4982 = vmatmul.mubr.bf16.gmra.mxu0 %v3044
        %v4983 = vpop.f32.mrf.mxu0
        %v4984 = vadd.f32 %v4791, %v4983
        %v4985 = vpop.f32.mrf.mxu0
        %v4986 = vadd.f32 %v4793, %v4985
        %v4987 = vpop.f32.mrf.mxu0
        %v4988 = vadd.f32 %v4795, %v4987
        %v4989 = vpop.f32.mrf.mxu0
        %v4990 = vadd.f32 %v4797, %v4989
        %4991 = vmatprep.mubr.bf16.mxu0 %v3049
        %4992 = vmatmul.mubr.bf16.gmra.mxu0 %v3048
        %v4993 = vpop.f32.mrf.mxu0
        %v4994 = vadd.f32 %v4801, %v4993
        %v4995 = vpop.f32.mrf.mxu0
        %v4996 = vadd.f32 %v4803, %v4995
        %v4997 = vpop.f32.mrf.mxu0
        %v4998 = vadd.f32 %v4805, %v4997
        %v4999 = vpop.f32.mrf.mxu0
        %v5000 = vadd.f32 %v4807, %v4999
        %5001 = vmatprep.mubr.bf16.mxu0 %v3053
        %5002 = vmatmul.mubr.bf16.gmra.mxu0 %v3052
        %v5003 = vpop.f32.mrf.mxu0
        %v5004 = vadd.f32 %v4811, %v5003
        %v5005 = vpop.f32.mrf.mxu0
        %v5006 = vadd.f32 %v4813, %v5005
        %v5007 = vpop.f32.mrf.mxu0
        %v5008 = vadd.f32 %v4815, %v5007
        %v5009 = vpop.f32.mrf.mxu0
        %v5010 = vadd.f32 %v4817, %v5009
        %5011 = vmatprep.mubr.bf16.mxu0 %v3057
        %5012 = vmatmul.mubr.bf16.gmra.mxu0 %v3056
        %v5013 = vpop.f32.mrf.mxu0
        %v5014 = vadd.f32 %v4821, %v5013
        %v5015 = vpop.f32.mrf.mxu0
        %v5016 = vadd.f32 %v4823, %v5015
        %v5017 = vpop.f32.mrf.mxu0
        %v5018 = vadd.f32 %v4825, %v5017
        %v5019 = vpop.f32.mrf.mxu0
        %v5020 = vadd.f32 %v4827, %v5019
        %5021 = vdwg.mxu0
        %5022 = vmatprep.subr.bf16.mxu0 %v4183
        %5023 = vmatpush1.bf16.msra.mxu0 %v4182
        %5024 = vmatprep.subr.bf16.mxu0 %v4175
        %5025 = vmatpush1.bf16.msra.mxu0 %v4174
        %5026 = vmatprep.subr.bf16.mxu0 %v4167
        %5027 = vmatpush1.bf16.msra.mxu0 %v4166
        %5028 = vmatprep.subr.bf16.mxu0 %v4159
        %5029 = vmatpush1.bf16.msra.mxu0 %v4158
        %5030 = vmatprep.subr.bf16.mxu0 %v4151
        %5031 = vmatpush1.bf16.msra.mxu0 %v4150
        %5032 = vmatprep.subr.bf16.mxu0 %v4143
        %5033 = vmatpush1.bf16.msra.mxu0 %v4142
        %5034 = vmatprep.subr.bf16.mxu0 %v4135
        %5035 = vmatpush1.bf16.msra.mxu0 %v4134
        %5036 = vmatprep.subr.bf16.mxu0 %v4127
        %5037 = vmatpush1.bf16.msra.mxu0 %v4126
        %5038 = vmatprep.subr.bf16.mxu0 %v4247
        %5039 = vmatpush2.bf16.msra.mxu0 %v4246
        %5040 = vmatprep.subr.bf16.mxu0 %v4239
        %5041 = vmatpush2.bf16.msra.mxu0 %v4238
        %5042 = vmatprep.subr.bf16.mxu0 %v4231
        %5043 = vmatpush2.bf16.msra.mxu0 %v4230
        %5044 = vmatprep.subr.bf16.mxu0 %v4223
        %5045 = vmatpush2.bf16.msra.mxu0 %v4222
        %5046 = vmatprep.subr.bf16.mxu0 %v4215
        %5047 = vmatpush2.bf16.msra.mxu0 %v4214
        %5048 = vmatprep.subr.bf16.mxu0 %v4207
        %5049 = vmatpush2.bf16.msra.mxu0 %v4206
        %5050 = vmatprep.subr.bf16.mxu0 %v4199
        %5051 = vmatpush2.bf16.msra.mxu0 %v4198
        %5052 = vmatprep.subr.bf16.mxu0 %v4191
        %5053 = vmatpush2.bf16.msra.mxu0 %v4190
        %5054 = vmatprep.mubr.bf16.mxu0 %v2995
        %5055 = vmatmul.mubr.bf16.gmra.mxu0 %v2994
        %v5056 = vpop.f32.mrf.mxu0
        %v5057 = vadd.f32 %v3327, %v5056
        %v5058 = vpop.f32.mrf.mxu0
        %v5059 = vadd.f32 %v3331, %v5058
        %v5060 = vpop.f32.mrf.mxu0
        %v5061 = vadd.f32 %v3327, %v5060
        %v5062 = vpop.f32.mrf.mxu0
        %v5063 = vadd.f32 %v3331, %v5062
        %5064 = vmatprep.mubr.bf16.mxu0 %v2999
        %5065 = vmatmul.mubr.bf16.gmra.mxu0 %v2998
        %v5066 = vpop.f32.mrf.mxu0
        %v5067 = vadd.f32 %v3327, %v5066
        %v5068 = vpop.f32.mrf.mxu0
        %v5069 = vadd.f32 %v3331, %v5068
        %v5070 = vpop.f32.mrf.mxu0
        %v5071 = vadd.f32 %v3327, %v5070
        %v5072 = vpop.f32.mrf.mxu0
        %v5073 = vadd.f32 %v3331, %v5072
        %5074 = vmatprep.mubr.bf16.mxu0 %v3003
        %5075 = vmatmul.mubr.bf16.gmra.mxu0 %v3002
        %v5076 = vpop.f32.mrf.mxu0
        %v5077 = vadd.f32 %v3327, %v5076
        %v5078 = vpop.f32.mrf.mxu0
        %v5079 = vadd.f32 %v3331, %v5078
        %v5080 = vpop.f32.mrf.mxu0
        %v5081 = vadd.f32 %v3327, %v5080
        %v5082 = vpop.f32.mrf.mxu0
        %v5083 = vadd.f32 %v3331, %v5082
        %5084 = vmatprep.mubr.bf16.mxu0 %v3007
        %5085 = vmatmul.mubr.bf16.gmra.mxu0 %v3006
        %v5086 = vpop.f32.mrf.mxu0
        %v5087 = vadd.f32 %v3327, %v5086
        %v5088 = vpop.f32.mrf.mxu0
        %v5089 = vadd.f32 %v3331, %v5088
        %v5090 = vpop.f32.mrf.mxu0
        %v5091 = vadd.f32 %v3327, %v5090
        %v5092 = vpop.f32.mrf.mxu0
        %v5093 = vadd.f32 %v3331, %v5092
        %5094 = vmatprep.mubr.bf16.mxu0 %v3011
        %5095 = vmatmul.mubr.bf16.gmra.mxu0 %v3010
        %v5096 = vpop.f32.mrf.mxu0
        %v5097 = vadd.f32 %v3327, %v5096
        %v5098 = vpop.f32.mrf.mxu0
        %v5099 = vadd.f32 %v3331, %v5098
        %v5100 = vpop.f32.mrf.mxu0
        %v5101 = vadd.f32 %v3327, %v5100
        %v5102 = vpop.f32.mrf.mxu0
        %v5103 = vadd.f32 %v3331, %v5102
        %5104 = vmatprep.mubr.bf16.mxu0 %v3015
        %5105 = vmatmul.mubr.bf16.gmra.mxu0 %v3014
        %v5106 = vpop.f32.mrf.mxu0
        %v5107 = vadd.f32 %v3327, %v5106
        %v5108 = vpop.f32.mrf.mxu0
        %v5109 = vadd.f32 %v3331, %v5108
        %v5110 = vpop.f32.mrf.mxu0
        %v5111 = vadd.f32 %v3327, %v5110
        %v5112 = vpop.f32.mrf.mxu0
        %v5113 = vadd.f32 %v3331, %v5112
        %5114 = vmatprep.mubr.bf16.mxu0 %v3019
        %5115 = vmatmul.mubr.bf16.gmra.mxu0 %v3018
        %v5116 = vpop.f32.mrf.mxu0
        %v5117 = vadd.f32 %v3327, %v5116
        %v5118 = vpop.f32.mrf.mxu0
        %v5119 = vadd.f32 %v3331, %v5118
        %v5120 = vpop.f32.mrf.mxu0
        %v5121 = vadd.f32 %v3327, %v5120
        %v5122 = vpop.f32.mrf.mxu0
        %v5123 = vadd.f32 %v3331, %v5122
        %5124 = vmatprep.mubr.bf16.mxu0 %v3023
        %5125 = vmatmul.mubr.bf16.gmra.mxu0 %v3022
        %v5126 = vpop.f32.mrf.mxu0
        %v5127 = vadd.f32 %v3327, %v5126
        %v5128 = vpop.f32.mrf.mxu0
        %v5129 = vadd.f32 %v3331, %v5128
        %v5130 = vpop.f32.mrf.mxu0
        %v5131 = vadd.f32 %v3327, %v5130
        %v5132 = vpop.f32.mrf.mxu0
        %v5133 = vadd.f32 %v3331, %v5132
        %5134 = vmatprep.mubr.bf16.mxu0 %v3027
        %5135 = vmatmul.mubr.bf16.gmra.mxu0 %v3026
        %v5136 = vpop.f32.mrf.mxu0
        %v5137 = vadd.f32 %v3327, %v5136
        %v5138 = vpop.f32.mrf.mxu0
        %v5139 = vadd.f32 %v3331, %v5138
        %v5140 = vpop.f32.mrf.mxu0
        %v5141 = vadd.f32 %v3327, %v5140
        %v5142 = vpop.f32.mrf.mxu0
        %v5143 = vadd.f32 %v3331, %v5142
        %5144 = vmatprep.mubr.bf16.mxu0 %v3031
        %5145 = vmatmul.mubr.bf16.gmra.mxu0 %v3030
        %v5146 = vpop.f32.mrf.mxu0
        %v5147 = vadd.f32 %v3327, %v5146
        %v5148 = vpop.f32.mrf.mxu0
        %v5149 = vadd.f32 %v3331, %v5148
        %v5150 = vpop.f32.mrf.mxu0
        %v5151 = vadd.f32 %v3327, %v5150
        %v5152 = vpop.f32.mrf.mxu0
        %v5153 = vadd.f32 %v3331, %v5152
        %5154 = vmatprep.mubr.bf16.mxu0 %v3035
        %5155 = vmatmul.mubr.bf16.gmra.mxu0 %v3034
        %v5156 = vpop.f32.mrf.mxu0
        %v5157 = vadd.f32 %v3327, %v5156
        %v5158 = vpop.f32.mrf.mxu0
        %v5159 = vadd.f32 %v3331, %v5158
        %v5160 = vpop.f32.mrf.mxu0
        %v5161 = vadd.f32 %v3327, %v5160
        %v5162 = vpop.f32.mrf.mxu0
        %v5163 = vadd.f32 %v3331, %v5162
        %5164 = vmatprep.mubr.bf16.mxu0 %v3039
        %5165 = vmatmul.mubr.bf16.gmra.mxu0 %v3038
        %v5166 = vpop.f32.mrf.mxu0
        %v5167 = vadd.f32 %v3327, %v5166
        %v5168 = vpop.f32.mrf.mxu0
        %v5169 = vadd.f32 %v3331, %v5168
        %v5170 = vpop.f32.mrf.mxu0
        %v5171 = vadd.f32 %v3327, %v5170
        %v5172 = vpop.f32.mrf.mxu0
        %v5173 = vadd.f32 %v3331, %v5172
        %5174 = vmatprep.mubr.bf16.mxu0 %v3043
        %5175 = vmatmul.mubr.bf16.gmra.mxu0 %v3042
        %v5176 = vpop.f32.mrf.mxu0
        %v5177 = vadd.f32 %v3327, %v5176
        %v5178 = vpop.f32.mrf.mxu0
        %v5179 = vadd.f32 %v3331, %v5178
        %v5180 = vpop.f32.mrf.mxu0
        %v5181 = vadd.f32 %v3327, %v5180
        %v5182 = vpop.f32.mrf.mxu0
        %v5183 = vadd.f32 %v3331, %v5182
        %5184 = vmatprep.mubr.bf16.mxu0 %v3047
        %5185 = vmatmul.mubr.bf16.gmra.mxu0 %v3046
        %v5186 = vpop.f32.mrf.mxu0
        %v5187 = vadd.f32 %v3327, %v5186
        %v5188 = vpop.f32.mrf.mxu0
        %v5189 = vadd.f32 %v3331, %v5188
        %v5190 = vpop.f32.mrf.mxu0
        %v5191 = vadd.f32 %v3327, %v5190
        %v5192 = vpop.f32.mrf.mxu0
        %v5193 = vadd.f32 %v3331, %v5192
        %5194 = vmatprep.mubr.bf16.mxu0 %v3051
        %5195 = vmatmul.mubr.bf16.gmra.mxu0 %v3050
        %v5196 = vpop.f32.mrf.mxu0
        %v5197 = vadd.f32 %v3327, %v5196
        %v5198 = vpop.f32.mrf.mxu0
        %v5199 = vadd.f32 %v3331, %v5198
        %v5200 = vpop.f32.mrf.mxu0
        %v5201 = vadd.f32 %v3327, %v5200
        %v5202 = vpop.f32.mrf.mxu0
        %v5203 = vadd.f32 %v3331, %v5202
        %5204 = vmatprep.mubr.bf16.mxu0 %v3055
        %5205 = vmatmul.mubr.bf16.gmra.mxu0 %v3054
        %v5206 = vpop.f32.mrf.mxu0
        %v5207 = vadd.f32 %v3327, %v5206
        %v5208 = vpop.f32.mrf.mxu0
        %v5209 = vadd.f32 %v3331, %v5208
        %v5210 = vpop.f32.mrf.mxu0
        %v5211 = vadd.f32 %v3327, %v5210
        %v5212 = vpop.f32.mrf.mxu0
        %v5213 = vadd.f32 %v3331, %v5212
        %5214 = vdwg.mxu0
        %5215 = vmatprep.subr.bf16.mxu0 %v4311
        %5216 = vmatpush1.bf16.msra.mxu0 %v4310
        %5217 = vmatprep.subr.bf16.mxu0 %v4303
        %5218 = vmatpush1.bf16.msra.mxu0 %v4302
        %5219 = vmatprep.subr.bf16.mxu0 %v4295
        %5220 = vmatpush1.bf16.msra.mxu0 %v4294
        %5221 = vmatprep.subr.bf16.mxu0 %v4287
        %5222 = vmatpush1.bf16.msra.mxu0 %v4286
        %5223 = vmatprep.subr.bf16.mxu0 %v4279
        %5224 = vmatpush1.bf16.msra.mxu0 %v4278
        %5225 = vmatprep.subr.bf16.mxu0 %v4271
        %5226 = vmatpush1.bf16.msra.mxu0 %v4270
        %5227 = vmatprep.subr.bf16.mxu0 %v4263
        %5228 = vmatpush1.bf16.msra.mxu0 %v4262
        %5229 = vmatprep.subr.bf16.mxu0 %v4255
        %5230 = vmatpush1.bf16.msra.mxu0 %v4254
        %5231 = vmatprep.subr.bf16.mxu0 %v4375
        %5232 = vmatpush2.bf16.msra.mxu0 %v4374
        %5233 = vmatprep.subr.bf16.mxu0 %v4367
        %5234 = vmatpush2.bf16.msra.mxu0 %v4366
        %5235 = vmatprep.subr.bf16.mxu0 %v4359
        %5236 = vmatpush2.bf16.msra.mxu0 %v4358
        %5237 = vmatprep.subr.bf16.mxu0 %v4351
        %5238 = vmatpush2.bf16.msra.mxu0 %v4350
        %5239 = vmatprep.subr.bf16.mxu0 %v4343
        %5240 = vmatpush2.bf16.msra.mxu0 %v4342
        %5241 = vmatprep.subr.bf16.mxu0 %v4335
        %5242 = vmatpush2.bf16.msra.mxu0 %v4334
        %5243 = vmatprep.subr.bf16.mxu0 %v4327
        %5244 = vmatpush2.bf16.msra.mxu0 %v4326
        %5245 = vmatprep.subr.bf16.mxu0 %v4319
        %5246 = vmatpush2.bf16.msra.mxu0 %v4318
        %5247 = vmatprep.mubr.bf16.mxu0 %v2997
        %5248 = vmatmul.mubr.bf16.gmra.mxu0 %v2996
        %v5249 = vpop.f32.mrf.mxu0
        %v5250 = vadd.f32 %v5057, %v5249
        %v5251 = vpop.f32.mrf.mxu0
        %v5252 = vadd.f32 %v5059, %v5251
        %v5253 = vpop.f32.mrf.mxu0
        %v5254 = vadd.f32 %v5061, %v5253
        %v5255 = vpop.f32.mrf.mxu0
        %v5256 = vadd.f32 %v5063, %v5255
        %5257 = vmatprep.mubr.bf16.mxu0 %v3001
        %5258 = vmatmul.mubr.bf16.gmra.mxu0 %v3000
        %v5259 = vpop.f32.mrf.mxu0
        %v5260 = vadd.f32 %v5067, %v5259
        %v5261 = vpop.f32.mrf.mxu0
        %v5262 = vadd.f32 %v5069, %v5261
        %v5263 = vpop.f32.mrf.mxu0
        %v5264 = vadd.f32 %v5071, %v5263
        %v5265 = vpop.f32.mrf.mxu0
        %v5266 = vadd.f32 %v5073, %v5265
        %5267 = vmatprep.mubr.bf16.mxu0 %v3005
        %5268 = vmatmul.mubr.bf16.gmra.mxu0 %v3004
        %v5269 = vpop.f32.mrf.mxu0
        %v5270 = vadd.f32 %v5077, %v5269
        %v5271 = vpop.f32.mrf.mxu0
        %v5272 = vadd.f32 %v5079, %v5271
        %v5273 = vpop.f32.mrf.mxu0
        %v5274 = vadd.f32 %v5081, %v5273
        %v5275 = vpop.f32.mrf.mxu0
        %v5276 = vadd.f32 %v5083, %v5275
        %5277 = vmatprep.mubr.bf16.mxu0 %v3009
        %5278 = vmatmul.mubr.bf16.gmra.mxu0 %v3008
        %v5279 = vpop.f32.mrf.mxu0
        %v5280 = vadd.f32 %v5087, %v5279
        %v5281 = vpop.f32.mrf.mxu0
        %v5282 = vadd.f32 %v5089, %v5281
        %v5283 = vpop.f32.mrf.mxu0
        %v5284 = vadd.f32 %v5091, %v5283
        %v5285 = vpop.f32.mrf.mxu0
        %v5286 = vadd.f32 %v5093, %v5285
        %5287 = vmatprep.mubr.bf16.mxu0 %v3013
        %5288 = vmatmul.mubr.bf16.gmra.mxu0 %v3012
        %v5289 = vpop.f32.mrf.mxu0
        %v5290 = vadd.f32 %v5097, %v5289
        %v5291 = vpop.f32.mrf.mxu0
        %v5292 = vadd.f32 %v5099, %v5291
        %v5293 = vpop.f32.mrf.mxu0
        %v5294 = vadd.f32 %v5101, %v5293
        %v5295 = vpop.f32.mrf.mxu0
        %v5296 = vadd.f32 %v5103, %v5295
        %5297 = vmatprep.mubr.bf16.mxu0 %v3017
        %5298 = vmatmul.mubr.bf16.gmra.mxu0 %v3016
        %v5299 = vpop.f32.mrf.mxu0
        %v5300 = vadd.f32 %v5107, %v5299
        %v5301 = vpop.f32.mrf.mxu0
        %v5302 = vadd.f32 %v5109, %v5301
        %v5303 = vpop.f32.mrf.mxu0
        %v5304 = vadd.f32 %v5111, %v5303
        %v5305 = vpop.f32.mrf.mxu0
        %v5306 = vadd.f32 %v5113, %v5305
        %5307 = vmatprep.mubr.bf16.mxu0 %v3021
        %5308 = vmatmul.mubr.bf16.gmra.mxu0 %v3020
        %v5309 = vpop.f32.mrf.mxu0
        %v5310 = vadd.f32 %v5117, %v5309
        %v5311 = vpop.f32.mrf.mxu0
        %v5312 = vadd.f32 %v5119, %v5311
        %v5313 = vpop.f32.mrf.mxu0
        %v5314 = vadd.f32 %v5121, %v5313
        %v5315 = vpop.f32.mrf.mxu0
        %v5316 = vadd.f32 %v5123, %v5315
        %5317 = vmatprep.mubr.bf16.mxu0 %v3025
        %5318 = vmatmul.mubr.bf16.gmra.mxu0 %v3024
        %v5319 = vpop.f32.mrf.mxu0
        %v5320 = vadd.f32 %v5127, %v5319
        %v5321 = vpop.f32.mrf.mxu0
        %v5322 = vadd.f32 %v5129, %v5321
        %v5323 = vpop.f32.mrf.mxu0
        %v5324 = vadd.f32 %v5131, %v5323
        %v5325 = vpop.f32.mrf.mxu0
        %v5326 = vadd.f32 %v5133, %v5325
        %5327 = vmatprep.mubr.bf16.mxu0 %v3029
        %5328 = vmatmul.mubr.bf16.gmra.mxu0 %v3028
        %v5329 = vpop.f32.mrf.mxu0
        %v5330 = vadd.f32 %v5137, %v5329
        %v5331 = vpop.f32.mrf.mxu0
        %v5332 = vadd.f32 %v5139, %v5331
        %v5333 = vpop.f32.mrf.mxu0
        %v5334 = vadd.f32 %v5141, %v5333
        %v5335 = vpop.f32.mrf.mxu0
        %v5336 = vadd.f32 %v5143, %v5335
        %5337 = vmatprep.mubr.bf16.mxu0 %v3033
        %5338 = vmatmul.mubr.bf16.gmra.mxu0 %v3032
        %v5339 = vpop.f32.mrf.mxu0
        %v5340 = vadd.f32 %v5147, %v5339
        %v5341 = vpop.f32.mrf.mxu0
        %v5342 = vadd.f32 %v5149, %v5341
        %v5343 = vpop.f32.mrf.mxu0
        %v5344 = vadd.f32 %v5151, %v5343
        %v5345 = vpop.f32.mrf.mxu0
        %v5346 = vadd.f32 %v5153, %v5345
        %5347 = vmatprep.mubr.bf16.mxu0 %v3037
        %5348 = vmatmul.mubr.bf16.gmra.mxu0 %v3036
        %v5349 = vpop.f32.mrf.mxu0
        %v5350 = vadd.f32 %v5157, %v5349
        %v5351 = vpop.f32.mrf.mxu0
        %v5352 = vadd.f32 %v5159, %v5351
        %v5353 = vpop.f32.mrf.mxu0
        %v5354 = vadd.f32 %v5161, %v5353
        %v5355 = vpop.f32.mrf.mxu0
        %v5356 = vadd.f32 %v5163, %v5355
        %5357 = vmatprep.mubr.bf16.mxu0 %v3041
        %5358 = vmatmul.mubr.bf16.gmra.mxu0 %v3040
        %v5359 = vpop.f32.mrf.mxu0
        %v5360 = vadd.f32 %v5167, %v5359
        %v5361 = vpop.f32.mrf.mxu0
        %v5362 = vadd.f32 %v5169, %v5361
        %v5363 = vpop.f32.mrf.mxu0
        %v5364 = vadd.f32 %v5171, %v5363
        %v5365 = vpop.f32.mrf.mxu0
        %v5366 = vadd.f32 %v5173, %v5365
        %5367 = vmatprep.mubr.bf16.mxu0 %v3045
        %5368 = vmatmul.mubr.bf16.gmra.mxu0 %v3044
        %v5369 = vpop.f32.mrf.mxu0
        %v5370 = vadd.f32 %v5177, %v5369
        %v5371 = vpop.f32.mrf.mxu0
        %v5372 = vadd.f32 %v5179, %v5371
        %v5373 = vpop.f32.mrf.mxu0
        %v5374 = vadd.f32 %v5181, %v5373
        %v5375 = vpop.f32.mrf.mxu0
        %v5376 = vadd.f32 %v5183, %v5375
        %5377 = vmatprep.mubr.bf16.mxu0 %v3049
        %5378 = vmatmul.mubr.bf16.gmra.mxu0 %v3048
        %v5379 = vpop.f32.mrf.mxu0
        %v5380 = vadd.f32 %v5187, %v5379
        %v5381 = vpop.f32.mrf.mxu0
        %v5382 = vadd.f32 %v5189, %v5381
        %v5383 = vpop.f32.mrf.mxu0
        %v5384 = vadd.f32 %v5191, %v5383
        %v5385 = vpop.f32.mrf.mxu0
        %v5386 = vadd.f32 %v5193, %v5385
        %5387 = vmatprep.mubr.bf16.mxu0 %v3053
        %5388 = vmatmul.mubr.bf16.gmra.mxu0 %v3052
        %v5389 = vpop.f32.mrf.mxu0
        %v5390 = vadd.f32 %v5197, %v5389
        %v5391 = vpop.f32.mrf.mxu0
        %v5392 = vadd.f32 %v5199, %v5391
        %v5393 = vpop.f32.mrf.mxu0
        %v5394 = vadd.f32 %v5201, %v5393
        %v5395 = vpop.f32.mrf.mxu0
        %v5396 = vadd.f32 %v5203, %v5395
        %5397 = vmatprep.mubr.bf16.mxu0 %v3057
        %5398 = vmatmul.mubr.bf16.gmra.mxu0 %v3056
        %v5399 = vpop.f32.mrf.mxu0
        %v5400 = vadd.f32 %v5207, %v5399
        %v5401 = vpop.f32.mrf.mxu0
        %v5402 = vadd.f32 %v5209, %v5401
        %v5403 = vpop.f32.mrf.mxu0
        %v5404 = vadd.f32 %v5211, %v5403
        %v5405 = vpop.f32.mrf.mxu0
        %v5406 = vadd.f32 %v5213, %v5405
        %5407 = vdwg.mxu0
        %5408 = vmatprep.subr.bf16.mxu0 %v4185
        %5409 = vmatpush1.bf16.msra.mxu0 %v4184
        %5410 = vmatprep.subr.bf16.mxu0 %v4177
        %5411 = vmatpush1.bf16.msra.mxu0 %v4176
        %5412 = vmatprep.subr.bf16.mxu0 %v4169
        %5413 = vmatpush1.bf16.msra.mxu0 %v4168
        %5414 = vmatprep.subr.bf16.mxu0 %v4161
        %5415 = vmatpush1.bf16.msra.mxu0 %v4160
        %5416 = vmatprep.subr.bf16.mxu0 %v4153
        %5417 = vmatpush1.bf16.msra.mxu0 %v4152
        %5418 = vmatprep.subr.bf16.mxu0 %v4145
        %5419 = vmatpush1.bf16.msra.mxu0 %v4144
        %5420 = vmatprep.subr.bf16.mxu0 %v4137
        %5421 = vmatpush1.bf16.msra.mxu0 %v4136
        %5422 = vmatprep.subr.bf16.mxu0 %v4129
        %5423 = vmatpush1.bf16.msra.mxu0 %v4128
        %5424 = vmatprep.subr.bf16.mxu0 %v4249
        %5425 = vmatpush2.bf16.msra.mxu0 %v4248
        %5426 = vmatprep.subr.bf16.mxu0 %v4241
        %5427 = vmatpush2.bf16.msra.mxu0 %v4240
        %5428 = vmatprep.subr.bf16.mxu0 %v4233
        %5429 = vmatpush2.bf16.msra.mxu0 %v4232
        %5430 = vmatprep.subr.bf16.mxu0 %v4225
        %5431 = vmatpush2.bf16.msra.mxu0 %v4224
        %5432 = vmatprep.subr.bf16.mxu0 %v4217
        %5433 = vmatpush2.bf16.msra.mxu0 %v4216
        %5434 = vmatprep.subr.bf16.mxu0 %v4209
        %5435 = vmatpush2.bf16.msra.mxu0 %v4208
        %5436 = vmatprep.subr.bf16.mxu0 %v4201
        %5437 = vmatpush2.bf16.msra.mxu0 %v4200
        %5438 = vmatprep.subr.bf16.mxu0 %v4193
        %5439 = vmatpush2.bf16.msra.mxu0 %v4192
        %5440 = vmatprep.mubr.bf16.mxu0 %v2995
        %5441 = vmatmul.mubr.bf16.gmra.mxu0 %v2994
        %v5442 = vpop.f32.mrf.mxu0
        %v5443 = vadd.f32 %v3335, %v5442
        %v5444 = vpop.f32.mrf.mxu0
        %v5445 = vadd.f32 %v3339, %v5444
        %v5446 = vpop.f32.mrf.mxu0
        %v5447 = vadd.f32 %v3335, %v5446
        %v5448 = vpop.f32.mrf.mxu0
        %v5449 = vadd.f32 %v3339, %v5448
        %5450 = vmatprep.mubr.bf16.mxu0 %v2999
        %5451 = vmatmul.mubr.bf16.gmra.mxu0 %v2998
        %v5452 = vpop.f32.mrf.mxu0
        %v5453 = vadd.f32 %v3335, %v5452
        %v5454 = vpop.f32.mrf.mxu0
        %v5455 = vadd.f32 %v3339, %v5454
        %v5456 = vpop.f32.mrf.mxu0
        %v5457 = vadd.f32 %v3335, %v5456
        %v5458 = vpop.f32.mrf.mxu0
        %v5459 = vadd.f32 %v3339, %v5458
        %5460 = vmatprep.mubr.bf16.mxu0 %v3003
        %5461 = vmatmul.mubr.bf16.gmra.mxu0 %v3002
        %v5462 = vpop.f32.mrf.mxu0
        %v5463 = vadd.f32 %v3335, %v5462
        %v5464 = vpop.f32.mrf.mxu0
        %v5465 = vadd.f32 %v3339, %v5464
        %v5466 = vpop.f32.mrf.mxu0
        %v5467 = vadd.f32 %v3335, %v5466
        %v5468 = vpop.f32.mrf.mxu0
        %v5469 = vadd.f32 %v3339, %v5468
        %5470 = vmatprep.mubr.bf16.mxu0 %v3007
        %5471 = vmatmul.mubr.bf16.gmra.mxu0 %v3006
        %v5472 = vpop.f32.mrf.mxu0
        %v5473 = vadd.f32 %v3335, %v5472
        %v5474 = vpop.f32.mrf.mxu0
        %v5475 = vadd.f32 %v3339, %v5474
        %v5476 = vpop.f32.mrf.mxu0
        %v5477 = vadd.f32 %v3335, %v5476
        %v5478 = vpop.f32.mrf.mxu0
        %v5479 = vadd.f32 %v3339, %v5478
        %5480 = vmatprep.mubr.bf16.mxu0 %v3011
        %5481 = vmatmul.mubr.bf16.gmra.mxu0 %v3010
        %v5482 = vpop.f32.mrf.mxu0
        %v5483 = vadd.f32 %v3335, %v5482
        %v5484 = vpop.f32.mrf.mxu0
        %v5485 = vadd.f32 %v3339, %v5484
        %v5486 = vpop.f32.mrf.mxu0
        %v5487 = vadd.f32 %v3335, %v5486
        %v5488 = vpop.f32.mrf.mxu0
        %v5489 = vadd.f32 %v3339, %v5488
        %5490 = vmatprep.mubr.bf16.mxu0 %v3015
        %5491 = vmatmul.mubr.bf16.gmra.mxu0 %v3014
        %v5492 = vpop.f32.mrf.mxu0
        %v5493 = vadd.f32 %v3335, %v5492
        %v5494 = vpop.f32.mrf.mxu0
        %v5495 = vadd.f32 %v3339, %v5494
        %v5496 = vpop.f32.mrf.mxu0
        %v5497 = vadd.f32 %v3335, %v5496
        %v5498 = vpop.f32.mrf.mxu0
        %v5499 = vadd.f32 %v3339, %v5498
        %5500 = vmatprep.mubr.bf16.mxu0 %v3019
        %5501 = vmatmul.mubr.bf16.gmra.mxu0 %v3018
        %v5502 = vpop.f32.mrf.mxu0
        %v5503 = vadd.f32 %v3335, %v5502
        %v5504 = vpop.f32.mrf.mxu0
        %v5505 = vadd.f32 %v3339, %v5504
        %v5506 = vpop.f32.mrf.mxu0
        %v5507 = vadd.f32 %v3335, %v5506
        %v5508 = vpop.f32.mrf.mxu0
        %v5509 = vadd.f32 %v3339, %v5508
        %5510 = vmatprep.mubr.bf16.mxu0 %v3023
        %5511 = vmatmul.mubr.bf16.gmra.mxu0 %v3022
        %v5512 = vpop.f32.mrf.mxu0
        %v5513 = vadd.f32 %v3335, %v5512
        %v5514 = vpop.f32.mrf.mxu0
        %v5515 = vadd.f32 %v3339, %v5514
        %v5516 = vpop.f32.mrf.mxu0
        %v5517 = vadd.f32 %v3335, %v5516
        %v5518 = vpop.f32.mrf.mxu0
        %v5519 = vadd.f32 %v3339, %v5518
        %5520 = vmatprep.mubr.bf16.mxu0 %v3027
        %5521 = vmatmul.mubr.bf16.gmra.mxu0 %v3026
        %v5522 = vpop.f32.mrf.mxu0
        %v5523 = vadd.f32 %v3335, %v5522
        %v5524 = vpop.f32.mrf.mxu0
        %v5525 = vadd.f32 %v3339, %v5524
        %v5526 = vpop.f32.mrf.mxu0
        %v5527 = vadd.f32 %v3335, %v5526
        %v5528 = vpop.f32.mrf.mxu0
        %v5529 = vadd.f32 %v3339, %v5528
        %5530 = vmatprep.mubr.bf16.mxu0 %v3031
        %5531 = vmatmul.mubr.bf16.gmra.mxu0 %v3030
        %v5532 = vpop.f32.mrf.mxu0
        %v5533 = vadd.f32 %v3335, %v5532
        %v5534 = vpop.f32.mrf.mxu0
        %v5535 = vadd.f32 %v3339, %v5534
        %v5536 = vpop.f32.mrf.mxu0
        %v5537 = vadd.f32 %v3335, %v5536
        %v5538 = vpop.f32.mrf.mxu0
        %v5539 = vadd.f32 %v3339, %v5538
        %5540 = vmatprep.mubr.bf16.mxu0 %v3035
        %5541 = vmatmul.mubr.bf16.gmra.mxu0 %v3034
        %v5542 = vpop.f32.mrf.mxu0
        %v5543 = vadd.f32 %v3335, %v5542
        %v5544 = vpop.f32.mrf.mxu0
        %v5545 = vadd.f32 %v3339, %v5544
        %v5546 = vpop.f32.mrf.mxu0
        %v5547 = vadd.f32 %v3335, %v5546
        %v5548 = vpop.f32.mrf.mxu0
        %v5549 = vadd.f32 %v3339, %v5548
        %5550 = vmatprep.mubr.bf16.mxu0 %v3039
        %5551 = vmatmul.mubr.bf16.gmra.mxu0 %v3038
        %v5552 = vpop.f32.mrf.mxu0
        %v5553 = vadd.f32 %v3335, %v5552
        %v5554 = vpop.f32.mrf.mxu0
        %v5555 = vadd.f32 %v3339, %v5554
        %v5556 = vpop.f32.mrf.mxu0
        %v5557 = vadd.f32 %v3335, %v5556
        %v5558 = vpop.f32.mrf.mxu0
        %v5559 = vadd.f32 %v3339, %v5558
        %5560 = vmatprep.mubr.bf16.mxu0 %v3043
        %5561 = vmatmul.mubr.bf16.gmra.mxu0 %v3042
        %v5562 = vpop.f32.mrf.mxu0
        %v5563 = vadd.f32 %v3335, %v5562
        %v5564 = vpop.f32.mrf.mxu0
        %v5565 = vadd.f32 %v3339, %v5564
        %v5566 = vpop.f32.mrf.mxu0
        %v5567 = vadd.f32 %v3335, %v5566
        %v5568 = vpop.f32.mrf.mxu0
        %v5569 = vadd.f32 %v3339, %v5568
        %5570 = vmatprep.mubr.bf16.mxu0 %v3047
        %5571 = vmatmul.mubr.bf16.gmra.mxu0 %v3046
        %v5572 = vpop.f32.mrf.mxu0
        %v5573 = vadd.f32 %v3335, %v5572
        %v5574 = vpop.f32.mrf.mxu0
        %v5575 = vadd.f32 %v3339, %v5574
        %v5576 = vpop.f32.mrf.mxu0
        %v5577 = vadd.f32 %v3335, %v5576
        %v5578 = vpop.f32.mrf.mxu0
        %v5579 = vadd.f32 %v3339, %v5578
        %5580 = vmatprep.mubr.bf16.mxu0 %v3051
        %5581 = vmatmul.mubr.bf16.gmra.mxu0 %v3050
        %v5582 = vpop.f32.mrf.mxu0
        %v5583 = vadd.f32 %v3335, %v5582
        %v5584 = vpop.f32.mrf.mxu0
        %v5585 = vadd.f32 %v3339, %v5584
        %v5586 = vpop.f32.mrf.mxu0
        %v5587 = vadd.f32 %v3335, %v5586
        %v5588 = vpop.f32.mrf.mxu0
        %v5589 = vadd.f32 %v3339, %v5588
        %5590 = vmatprep.mubr.bf16.mxu0 %v3055
        %5591 = vmatmul.mubr.bf16.gmra.mxu0 %v3054
        %v5592 = vpop.f32.mrf.mxu0
        %v5593 = vadd.f32 %v3335, %v5592
        %v5594 = vpop.f32.mrf.mxu0
        %v5595 = vadd.f32 %v3339, %v5594
        %v5596 = vpop.f32.mrf.mxu0
        %v5597 = vadd.f32 %v3335, %v5596
        %v5598 = vpop.f32.mrf.mxu0
        %v5599 = vadd.f32 %v3339, %v5598
        %5600 = vdwg.mxu0
        %5601 = vmatprep.subr.bf16.mxu0 %v4313
        %5602 = vmatpush1.bf16.msra.mxu0 %v4312
        %5603 = vmatprep.subr.bf16.mxu0 %v4305
        %5604 = vmatpush1.bf16.msra.mxu0 %v4304
        %5605 = vmatprep.subr.bf16.mxu0 %v4297
        %5606 = vmatpush1.bf16.msra.mxu0 %v4296
        %5607 = vmatprep.subr.bf16.mxu0 %v4289
        %5608 = vmatpush1.bf16.msra.mxu0 %v4288
        %5609 = vmatprep.subr.bf16.mxu0 %v4281
        %5610 = vmatpush1.bf16.msra.mxu0 %v4280
        %5611 = vmatprep.subr.bf16.mxu0 %v4273
        %5612 = vmatpush1.bf16.msra.mxu0 %v4272
        %5613 = vmatprep.subr.bf16.mxu0 %v4265
        %5614 = vmatpush1.bf16.msra.mxu0 %v4264
        %5615 = vmatprep.subr.bf16.mxu0 %v4257
        %5616 = vmatpush1.bf16.msra.mxu0 %v4256
        %5617 = vmatprep.subr.bf16.mxu0 %v4377
        %5618 = vmatpush2.bf16.msra.mxu0 %v4376
        %5619 = vmatprep.subr.bf16.mxu0 %v4369
        %5620 = vmatpush2.bf16.msra.mxu0 %v4368
        %5621 = vmatprep.subr.bf16.mxu0 %v4361
        %5622 = vmatpush2.bf16.msra.mxu0 %v4360
        %5623 = vmatprep.subr.bf16.mxu0 %v4353
        %5624 = vmatpush2.bf16.msra.mxu0 %v4352
        %5625 = vmatprep.subr.bf16.mxu0 %v4345
        %5626 = vmatpush2.bf16.msra.mxu0 %v4344
        %5627 = vmatprep.subr.bf16.mxu0 %v4337
        %5628 = vmatpush2.bf16.msra.mxu0 %v4336
        %5629 = vmatprep.subr.bf16.mxu0 %v4329
        %5630 = vmatpush2.bf16.msra.mxu0 %v4328
        %5631 = vmatprep.subr.bf16.mxu0 %v4321
        %5632 = vmatpush2.bf16.msra.mxu0 %v4320
        %5633 = vmatprep.mubr.bf16.mxu0 %v2997
        %5634 = vmatmul.mubr.bf16.gmra.mxu0 %v2996
        %v5635 = vpop.f32.mrf.mxu0
        %v5636 = vadd.f32 %v5443, %v5635
        %v5637 = vpop.f32.mrf.mxu0
        %v5638 = vadd.f32 %v5445, %v5637
        %v5639 = vpop.f32.mrf.mxu0
        %v5640 = vadd.f32 %v5447, %v5639
        %v5641 = vpop.f32.mrf.mxu0
        %v5642 = vadd.f32 %v5449, %v5641
        %5643 = vmatprep.mubr.bf16.mxu0 %v3001
        %5644 = vmatmul.mubr.bf16.gmra.mxu0 %v3000
        %v5645 = vpop.f32.mrf.mxu0
        %v5646 = vadd.f32 %v5453, %v5645
        %v5647 = vpop.f32.mrf.mxu0
        %v5648 = vadd.f32 %v5455, %v5647
        %v5649 = vpop.f32.mrf.mxu0
        %v5650 = vadd.f32 %v5457, %v5649
        %v5651 = vpop.f32.mrf.mxu0
        %v5652 = vadd.f32 %v5459, %v5651
        %5653 = vmatprep.mubr.bf16.mxu0 %v3005
        %5654 = vmatmul.mubr.bf16.gmra.mxu0 %v3004
        %v5655 = vpop.f32.mrf.mxu0
        %v5656 = vadd.f32 %v5463, %v5655
        %v5657 = vpop.f32.mrf.mxu0
        %v5658 = vadd.f32 %v5465, %v5657
        %v5659 = vpop.f32.mrf.mxu0
        %v5660 = vadd.f32 %v5467, %v5659
        %v5661 = vpop.f32.mrf.mxu0
        %v5662 = vadd.f32 %v5469, %v5661
        %5663 = vmatprep.mubr.bf16.mxu0 %v3009
        %5664 = vmatmul.mubr.bf16.gmra.mxu0 %v3008
        %v5665 = vpop.f32.mrf.mxu0
        %v5666 = vadd.f32 %v5473, %v5665
        %v5667 = vpop.f32.mrf.mxu0
        %v5668 = vadd.f32 %v5475, %v5667
        %v5669 = vpop.f32.mrf.mxu0
        %v5670 = vadd.f32 %v5477, %v5669
        %v5671 = vpop.f32.mrf.mxu0
        %v5672 = vadd.f32 %v5479, %v5671
        %5673 = vmatprep.mubr.bf16.mxu0 %v3013
        %5674 = vmatmul.mubr.bf16.gmra.mxu0 %v3012
        %v5675 = vpop.f32.mrf.mxu0
        %v5676 = vadd.f32 %v5483, %v5675
        %v5677 = vpop.f32.mrf.mxu0
        %v5678 = vadd.f32 %v5485, %v5677
        %v5679 = vpop.f32.mrf.mxu0
        %v5680 = vadd.f32 %v5487, %v5679
        %v5681 = vpop.f32.mrf.mxu0
        %v5682 = vadd.f32 %v5489, %v5681
        %5683 = vmatprep.mubr.bf16.mxu0 %v3017
        %5684 = vmatmul.mubr.bf16.gmra.mxu0 %v3016
        %v5685 = vpop.f32.mrf.mxu0
        %v5686 = vadd.f32 %v5493, %v5685
        %v5687 = vpop.f32.mrf.mxu0
        %v5688 = vadd.f32 %v5495, %v5687
        %v5689 = vpop.f32.mrf.mxu0
        %v5690 = vadd.f32 %v5497, %v5689
        %v5691 = vpop.f32.mrf.mxu0
        %v5692 = vadd.f32 %v5499, %v5691
        %5693 = vmatprep.mubr.bf16.mxu0 %v3021
        %5694 = vmatmul.mubr.bf16.gmra.mxu0 %v3020
        %v5695 = vpop.f32.mrf.mxu0
        %v5696 = vadd.f32 %v5503, %v5695
        %v5697 = vpop.f32.mrf.mxu0
        %v5698 = vadd.f32 %v5505, %v5697
        %v5699 = vpop.f32.mrf.mxu0
        %v5700 = vadd.f32 %v5507, %v5699
        %v5701 = vpop.f32.mrf.mxu0
        %v5702 = vadd.f32 %v5509, %v5701
        %5703 = vmatprep.mubr.bf16.mxu0 %v3025
        %5704 = vmatmul.mubr.bf16.gmra.mxu0 %v3024
        %v5705 = vpop.f32.mrf.mxu0
        %v5706 = vadd.f32 %v5513, %v5705
        %v5707 = vpop.f32.mrf.mxu0
        %v5708 = vadd.f32 %v5515, %v5707
        %v5709 = vpop.f32.mrf.mxu0
        %v5710 = vadd.f32 %v5517, %v5709
        %v5711 = vpop.f32.mrf.mxu0
        %v5712 = vadd.f32 %v5519, %v5711
        %5713 = vmatprep.mubr.bf16.mxu0 %v3029
        %5714 = vmatmul.mubr.bf16.gmra.mxu0 %v3028
        %v5715 = vpop.f32.mrf.mxu0
        %v5716 = vadd.f32 %v5523, %v5715
        %v5717 = vpop.f32.mrf.mxu0
        %v5718 = vadd.f32 %v5525, %v5717
        %v5719 = vpop.f32.mrf.mxu0
        %v5720 = vadd.f32 %v5527, %v5719
        %v5721 = vpop.f32.mrf.mxu0
        %v5722 = vadd.f32 %v5529, %v5721
        %5723 = vmatprep.mubr.bf16.mxu0 %v3033
        %5724 = vmatmul.mubr.bf16.gmra.mxu0 %v3032
        %v5725 = vpop.f32.mrf.mxu0
        %v5726 = vadd.f32 %v5533, %v5725
        %v5727 = vpop.f32.mrf.mxu0
        %v5728 = vadd.f32 %v5535, %v5727
        %v5729 = vpop.f32.mrf.mxu0
        %v5730 = vadd.f32 %v5537, %v5729
        %v5731 = vpop.f32.mrf.mxu0
        %v5732 = vadd.f32 %v5539, %v5731
        %5733 = vmatprep.mubr.bf16.mxu0 %v3037
        %5734 = vmatmul.mubr.bf16.gmra.mxu0 %v3036
        %v5735 = vpop.f32.mrf.mxu0
        %v5736 = vadd.f32 %v5543, %v5735
        %v5737 = vpop.f32.mrf.mxu0
        %v5738 = vadd.f32 %v5545, %v5737
        %v5739 = vpop.f32.mrf.mxu0
        %v5740 = vadd.f32 %v5547, %v5739
        %v5741 = vpop.f32.mrf.mxu0
        %v5742 = vadd.f32 %v5549, %v5741
        %5743 = vmatprep.mubr.bf16.mxu0 %v3041
        %5744 = vmatmul.mubr.bf16.gmra.mxu0 %v3040
        %v5745 = vpop.f32.mrf.mxu0
        %v5746 = vadd.f32 %v5553, %v5745
        %v5747 = vpop.f32.mrf.mxu0
        %v5748 = vadd.f32 %v5555, %v5747
        %v5749 = vpop.f32.mrf.mxu0
        %v5750 = vadd.f32 %v5557, %v5749
        %v5751 = vpop.f32.mrf.mxu0
        %v5752 = vadd.f32 %v5559, %v5751
        %5753 = vmatprep.mubr.bf16.mxu0 %v3045
        %5754 = vmatmul.mubr.bf16.gmra.mxu0 %v3044
        %v5755 = vpop.f32.mrf.mxu0
        %v5756 = vadd.f32 %v5563, %v5755
        %v5757 = vpop.f32.mrf.mxu0
        %v5758 = vadd.f32 %v5565, %v5757
        %v5759 = vpop.f32.mrf.mxu0
        %v5760 = vadd.f32 %v5567, %v5759
        %v5761 = vpop.f32.mrf.mxu0
        %v5762 = vadd.f32 %v5569, %v5761
        %5763 = vmatprep.mubr.bf16.mxu0 %v3049
        %5764 = vmatmul.mubr.bf16.gmra.mxu0 %v3048
        %v5765 = vpop.f32.mrf.mxu0
        %v5766 = vadd.f32 %v5573, %v5765
        %v5767 = vpop.f32.mrf.mxu0
        %v5768 = vadd.f32 %v5575, %v5767
        %v5769 = vpop.f32.mrf.mxu0
        %v5770 = vadd.f32 %v5577, %v5769
        %v5771 = vpop.f32.mrf.mxu0
        %v5772 = vadd.f32 %v5579, %v5771
        %5773 = vmatprep.mubr.bf16.mxu0 %v3053
        %5774 = vmatmul.mubr.bf16.gmra.mxu0 %v3052
        %v5775 = vpop.f32.mrf.mxu0
        %v5776 = vadd.f32 %v5583, %v5775
        %v5777 = vpop.f32.mrf.mxu0
        %v5778 = vadd.f32 %v5585, %v5777
        %v5779 = vpop.f32.mrf.mxu0
        %v5780 = vadd.f32 %v5587, %v5779
        %v5781 = vpop.f32.mrf.mxu0
        %v5782 = vadd.f32 %v5589, %v5781
        %5783 = vmatprep.mubr.bf16.mxu0 %v3057
        %5784 = vmatmul.mubr.bf16.gmra.mxu0 %v3056
        %v5785 = vpop.f32.mrf.mxu0
        %v5786 = vadd.f32 %v5593, %v5785
        %v5787 = vpop.f32.mrf.mxu0
        %v5788 = vadd.f32 %v5595, %v5787
        %v5789 = vpop.f32.mrf.mxu0
        %v5790 = vadd.f32 %v5597, %v5789
        %v5791 = vpop.f32.mrf.mxu0
        %v5792 = vadd.f32 %v5599, %v5791
        %5793 = vdwg.mxu0
        %5794 = vmatprep.subr.bf16.mxu0 %v4187
        %5795 = vmatpush1.bf16.msra.mxu0 %v4186
        %5796 = vmatprep.subr.bf16.mxu0 %v4179
        %5797 = vmatpush1.bf16.msra.mxu0 %v4178
        %5798 = vmatprep.subr.bf16.mxu0 %v4171
        %5799 = vmatpush1.bf16.msra.mxu0 %v4170
        %5800 = vmatprep.subr.bf16.mxu0 %v4163
        %5801 = vmatpush1.bf16.msra.mxu0 %v4162
        %5802 = vmatprep.subr.bf16.mxu0 %v4155
        %5803 = vmatpush1.bf16.msra.mxu0 %v4154
        %5804 = vmatprep.subr.bf16.mxu0 %v4147
        %5805 = vmatpush1.bf16.msra.mxu0 %v4146
        %5806 = vmatprep.subr.bf16.mxu0 %v4139
        %5807 = vmatpush1.bf16.msra.mxu0 %v4138
        %5808 = vmatprep.subr.bf16.mxu0 %v4131
        %5809 = vmatpush1.bf16.msra.mxu0 %v4130
        %5810 = vmatprep.subr.bf16.mxu0 %v4251
        %5811 = vmatpush2.bf16.msra.mxu0 %v4250
        %5812 = vmatprep.subr.bf16.mxu0 %v4243
        %5813 = vmatpush2.bf16.msra.mxu0 %v4242
        %5814 = vmatprep.subr.bf16.mxu0 %v4235
        %5815 = vmatpush2.bf16.msra.mxu0 %v4234
        %5816 = vmatprep.subr.bf16.mxu0 %v4227
        %5817 = vmatpush2.bf16.msra.mxu0 %v4226
        %5818 = vmatprep.subr.bf16.mxu0 %v4219
        %5819 = vmatpush2.bf16.msra.mxu0 %v4218
        %5820 = vmatprep.subr.bf16.mxu0 %v4211
        %5821 = vmatpush2.bf16.msra.mxu0 %v4210
        %5822 = vmatprep.subr.bf16.mxu0 %v4203
        %5823 = vmatpush2.bf16.msra.mxu0 %v4202
        %5824 = vmatprep.subr.bf16.mxu0 %v4195
        %5825 = vmatpush2.bf16.msra.mxu0 %v4194
        %5826 = vmatprep.mubr.bf16.mxu0 %v2995
        %5827 = vmatmul.mubr.bf16.gmra.mxu0 %v2994
        %v5828 = vpop.f32.mrf.mxu0
        %v5829 = vadd.f32 %v3343, %v5828
        %v5830 = vpop.f32.mrf.mxu0
        %v5831 = vadd.f32 %v3347, %v5830
        %v5832 = vpop.f32.mrf.mxu0
        %v5833 = vadd.f32 %v3343, %v5832
        %v5834 = vpop.f32.mrf.mxu0
        %v5835 = vadd.f32 %v3347, %v5834
        %5836 = vmatprep.mubr.bf16.mxu0 %v2999
        %5837 = vmatmul.mubr.bf16.gmra.mxu0 %v2998
        %v5838 = vpop.f32.mrf.mxu0
        %v5839 = vadd.f32 %v3343, %v5838
        %v5840 = vpop.f32.mrf.mxu0
        %v5841 = vadd.f32 %v3347, %v5840
        %v5842 = vpop.f32.mrf.mxu0
        %v5843 = vadd.f32 %v3343, %v5842
        %v5844 = vpop.f32.mrf.mxu0
        %v5845 = vadd.f32 %v3347, %v5844
        %5846 = vmatprep.mubr.bf16.mxu0 %v3003
        %5847 = vmatmul.mubr.bf16.gmra.mxu0 %v3002
        %v5848 = vpop.f32.mrf.mxu0
        %v5849 = vadd.f32 %v3343, %v5848
        %v5850 = vpop.f32.mrf.mxu0
        %v5851 = vadd.f32 %v3347, %v5850
        %v5852 = vpop.f32.mrf.mxu0
        %v5853 = vadd.f32 %v3343, %v5852
        %v5854 = vpop.f32.mrf.mxu0
        %v5855 = vadd.f32 %v3347, %v5854
        %5856 = vmatprep.mubr.bf16.mxu0 %v3007
        %5857 = vmatmul.mubr.bf16.gmra.mxu0 %v3006
        %v5858 = vpop.f32.mrf.mxu0
        %v5859 = vadd.f32 %v3343, %v5858
        %v5860 = vpop.f32.mrf.mxu0
        %v5861 = vadd.f32 %v3347, %v5860
        %v5862 = vpop.f32.mrf.mxu0
        %v5863 = vadd.f32 %v3343, %v5862
        %v5864 = vpop.f32.mrf.mxu0
        %v5865 = vadd.f32 %v3347, %v5864
        %5866 = vmatprep.mubr.bf16.mxu0 %v3011
        %5867 = vmatmul.mubr.bf16.gmra.mxu0 %v3010
        %v5868 = vpop.f32.mrf.mxu0
        %v5869 = vadd.f32 %v3343, %v5868
        %v5870 = vpop.f32.mrf.mxu0
        %v5871 = vadd.f32 %v3347, %v5870
        %v5872 = vpop.f32.mrf.mxu0
        %v5873 = vadd.f32 %v3343, %v5872
        %v5874 = vpop.f32.mrf.mxu0
        %v5875 = vadd.f32 %v3347, %v5874
        %5876 = vmatprep.mubr.bf16.mxu0 %v3015
        %5877 = vmatmul.mubr.bf16.gmra.mxu0 %v3014
        %v5878 = vpop.f32.mrf.mxu0
        %v5879 = vadd.f32 %v3343, %v5878
        %v5880 = vpop.f32.mrf.mxu0
        %v5881 = vadd.f32 %v3347, %v5880
        %v5882 = vpop.f32.mrf.mxu0
        %v5883 = vadd.f32 %v3343, %v5882
        %v5884 = vpop.f32.mrf.mxu0
        %v5885 = vadd.f32 %v3347, %v5884
        %5886 = vmatprep.mubr.bf16.mxu0 %v3019
        %5887 = vmatmul.mubr.bf16.gmra.mxu0 %v3018
        %v5888 = vpop.f32.mrf.mxu0
        %v5889 = vadd.f32 %v3343, %v5888
        %v5890 = vpop.f32.mrf.mxu0
        %v5891 = vadd.f32 %v3347, %v5890
        %v5892 = vpop.f32.mrf.mxu0
        %v5893 = vadd.f32 %v3343, %v5892
        %v5894 = vpop.f32.mrf.mxu0
        %v5895 = vadd.f32 %v3347, %v5894
        %5896 = vmatprep.mubr.bf16.mxu0 %v3023
        %5897 = vmatmul.mubr.bf16.gmra.mxu0 %v3022
        %v5898 = vpop.f32.mrf.mxu0
        %v5899 = vadd.f32 %v3343, %v5898
        %v5900 = vpop.f32.mrf.mxu0
        %v5901 = vadd.f32 %v3347, %v5900
        %v5902 = vpop.f32.mrf.mxu0
        %v5903 = vadd.f32 %v3343, %v5902
        %v5904 = vpop.f32.mrf.mxu0
        %v5905 = vadd.f32 %v3347, %v5904
        %5906 = vmatprep.mubr.bf16.mxu0 %v3027
        %5907 = vmatmul.mubr.bf16.gmra.mxu0 %v3026
        %v5908 = vpop.f32.mrf.mxu0
        %v5909 = vadd.f32 %v3343, %v5908
        %v5910 = vpop.f32.mrf.mxu0
        %v5911 = vadd.f32 %v3347, %v5910
        %v5912 = vpop.f32.mrf.mxu0
        %v5913 = vadd.f32 %v3343, %v5912
        %v5914 = vpop.f32.mrf.mxu0
        %v5915 = vadd.f32 %v3347, %v5914
        %5916 = vmatprep.mubr.bf16.mxu0 %v3031
        %5917 = vmatmul.mubr.bf16.gmra.mxu0 %v3030
        %v5918 = vpop.f32.mrf.mxu0
        %v5919 = vadd.f32 %v3343, %v5918
        %v5920 = vpop.f32.mrf.mxu0
        %v5921 = vadd.f32 %v3347, %v5920
        %v5922 = vpop.f32.mrf.mxu0
        %v5923 = vadd.f32 %v3343, %v5922
        %v5924 = vpop.f32.mrf.mxu0
        %v5925 = vadd.f32 %v3347, %v5924
        %5926 = vmatprep.mubr.bf16.mxu0 %v3035
        %5927 = vmatmul.mubr.bf16.gmra.mxu0 %v3034
        %v5928 = vpop.f32.mrf.mxu0
        %v5929 = vadd.f32 %v3343, %v5928
        %v5930 = vpop.f32.mrf.mxu0
        %v5931 = vadd.f32 %v3347, %v5930
        %v5932 = vpop.f32.mrf.mxu0
        %v5933 = vadd.f32 %v3343, %v5932
        %v5934 = vpop.f32.mrf.mxu0
        %v5935 = vadd.f32 %v3347, %v5934
        %5936 = vmatprep.mubr.bf16.mxu0 %v3039
        %5937 = vmatmul.mubr.bf16.gmra.mxu0 %v3038
        %v5938 = vpop.f32.mrf.mxu0
        %v5939 = vadd.f32 %v3343, %v5938
        %v5940 = vpop.f32.mrf.mxu0
        %v5941 = vadd.f32 %v3347, %v5940
        %v5942 = vpop.f32.mrf.mxu0
        %v5943 = vadd.f32 %v3343, %v5942
        %v5944 = vpop.f32.mrf.mxu0
        %v5945 = vadd.f32 %v3347, %v5944
        %5946 = vmatprep.mubr.bf16.mxu0 %v3043
        %5947 = vmatmul.mubr.bf16.gmra.mxu0 %v3042
        %v5948 = vpop.f32.mrf.mxu0
        %v5949 = vadd.f32 %v3343, %v5948
        %v5950 = vpop.f32.mrf.mxu0
        %v5951 = vadd.f32 %v3347, %v5950
        %v5952 = vpop.f32.mrf.mxu0
        %v5953 = vadd.f32 %v3343, %v5952
        %v5954 = vpop.f32.mrf.mxu0
        %v5955 = vadd.f32 %v3347, %v5954
        %5956 = vmatprep.mubr.bf16.mxu0 %v3047
        %5957 = vmatmul.mubr.bf16.gmra.mxu0 %v3046
        %v5958 = vpop.f32.mrf.mxu0
        %v5959 = vadd.f32 %v3343, %v5958
        %v5960 = vpop.f32.mrf.mxu0
        %v5961 = vadd.f32 %v3347, %v5960
        %v5962 = vpop.f32.mrf.mxu0
        %v5963 = vadd.f32 %v3343, %v5962
        %v5964 = vpop.f32.mrf.mxu0
        %v5965 = vadd.f32 %v3347, %v5964
        %5966 = vmatprep.mubr.bf16.mxu0 %v3051
        %5967 = vmatmul.mubr.bf16.gmra.mxu0 %v3050
        %v5968 = vpop.f32.mrf.mxu0
        %v5969 = vadd.f32 %v3343, %v5968
        %v5970 = vpop.f32.mrf.mxu0
        %v5971 = vadd.f32 %v3347, %v5970
        %v5972 = vpop.f32.mrf.mxu0
        %v5973 = vadd.f32 %v3343, %v5972
        %v5974 = vpop.f32.mrf.mxu0
        %v5975 = vadd.f32 %v3347, %v5974
        %5976 = vmatprep.mubr.bf16.mxu0 %v3055
        %5977 = vmatmul.mubr.bf16.gmra.mxu0 %v3054
        %v5978 = vpop.f32.mrf.mxu0
        %v5979 = vadd.f32 %v3343, %v5978
        %v5980 = vpop.f32.mrf.mxu0
        %v5981 = vadd.f32 %v3347, %v5980
        %v5982 = vpop.f32.mrf.mxu0
        %v5983 = vadd.f32 %v3343, %v5982
        %v5984 = vpop.f32.mrf.mxu0
        %v5985 = vadd.f32 %v3347, %v5984
        %5986 = vdwg.mxu0
        %5987 = vmatprep.subr.bf16.mxu0 %v4315
        %5988 = vmatpush1.bf16.msra.mxu0 %v4314
        %5989 = vmatprep.subr.bf16.mxu0 %v4307
        %5990 = vmatpush1.bf16.msra.mxu0 %v4306
        %5991 = vmatprep.subr.bf16.mxu0 %v4299
        %5992 = vmatpush1.bf16.msra.mxu0 %v4298
        %5993 = vmatprep.subr.bf16.mxu0 %v4291
        %5994 = vmatpush1.bf16.msra.mxu0 %v4290
        %5995 = vmatprep.subr.bf16.mxu0 %v4283
        %5996 = vmatpush1.bf16.msra.mxu0 %v4282
        %5997 = vmatprep.subr.bf16.mxu0 %v4275
        %5998 = vmatpush1.bf16.msra.mxu0 %v4274
        %5999 = vmatprep.subr.bf16.mxu0 %v4267
        %6000 = vmatpush1.bf16.msra.mxu0 %v4266
        %6001 = vmatprep.subr.bf16.mxu0 %v4259
        %6002 = vmatpush1.bf16.msra.mxu0 %v4258
        %6003 = vmatprep.subr.bf16.mxu0 %v4379
        %6004 = vmatpush2.bf16.msra.mxu0 %v4378
        %6005 = vmatprep.subr.bf16.mxu0 %v4371
        %6006 = vmatpush2.bf16.msra.mxu0 %v4370
        %6007 = vmatprep.subr.bf16.mxu0 %v4363
        %6008 = vmatpush2.bf16.msra.mxu0 %v4362
        %6009 = vmatprep.subr.bf16.mxu0 %v4355
        %6010 = vmatpush2.bf16.msra.mxu0 %v4354
        %6011 = vmatprep.subr.bf16.mxu0 %v4347
        %6012 = vmatpush2.bf16.msra.mxu0 %v4346
        %6013 = vmatprep.subr.bf16.mxu0 %v4339
        %6014 = vmatpush2.bf16.msra.mxu0 %v4338
        %6015 = vmatprep.subr.bf16.mxu0 %v4331
        %6016 = vmatpush2.bf16.msra.mxu0 %v4330
        %6017 = vmatprep.subr.bf16.mxu0 %v4323
        %6018 = vmatpush2.bf16.msra.mxu0 %v4322
        %6019 = vmatprep.mubr.bf16.mxu0 %v2997
        %6020 = vmatmul.mubr.bf16.gmra.mxu0 %v2996
        %v6021 = vpop.f32.mrf.mxu0
        %v6022 = vadd.f32 %v5829, %v6021
        %v6023 = vpop.f32.mrf.mxu0
        %v6024 = vadd.f32 %v5831, %v6023
        %v6025 = vpop.f32.mrf.mxu0
        %v6026 = vadd.f32 %v5833, %v6025
        %v6027 = vpop.f32.mrf.mxu0
        %v6028 = vadd.f32 %v5835, %v6027
        %6029 = vmatprep.mubr.bf16.mxu0 %v3001
        %6030 = vmatmul.mubr.bf16.gmra.mxu0 %v3000
        %v6031 = vpop.f32.mrf.mxu0
        %v6032 = vadd.f32 %v5839, %v6031
        %v6033 = vpop.f32.mrf.mxu0
        %v6034 = vadd.f32 %v5841, %v6033
        %v6035 = vpop.f32.mrf.mxu0
        %v6036 = vadd.f32 %v5843, %v6035
        %v6037 = vpop.f32.mrf.mxu0
        %v6038 = vadd.f32 %v5845, %v6037
        %6039 = vmatprep.mubr.bf16.mxu0 %v3005
        %6040 = vmatmul.mubr.bf16.gmra.mxu0 %v3004
        %v6041 = vpop.f32.mrf.mxu0
        %v6042 = vadd.f32 %v5849, %v6041
        %v6043 = vpop.f32.mrf.mxu0
        %v6044 = vadd.f32 %v5851, %v6043
        %v6045 = vpop.f32.mrf.mxu0
        %v6046 = vadd.f32 %v5853, %v6045
        %v6047 = vpop.f32.mrf.mxu0
        %v6048 = vadd.f32 %v5855, %v6047
        %6049 = vmatprep.mubr.bf16.mxu0 %v3009
        %6050 = vmatmul.mubr.bf16.gmra.mxu0 %v3008
        %v6051 = vpop.f32.mrf.mxu0
        %v6052 = vadd.f32 %v5859, %v6051
        %v6053 = vpop.f32.mrf.mxu0
        %v6054 = vadd.f32 %v5861, %v6053
        %v6055 = vpop.f32.mrf.mxu0
        %v6056 = vadd.f32 %v5863, %v6055
        %v6057 = vpop.f32.mrf.mxu0
        %v6058 = vadd.f32 %v5865, %v6057
        %6059 = vmatprep.mubr.bf16.mxu0 %v3013
        %6060 = vmatmul.mubr.bf16.gmra.mxu0 %v3012
        %v6061 = vpop.f32.mrf.mxu0
        %v6062 = vadd.f32 %v5869, %v6061
        %v6063 = vpop.f32.mrf.mxu0
        %v6064 = vadd.f32 %v5871, %v6063
        %v6065 = vpop.f32.mrf.mxu0
        %v6066 = vadd.f32 %v5873, %v6065
        %v6067 = vpop.f32.mrf.mxu0
        %v6068 = vadd.f32 %v5875, %v6067
        %6069 = vmatprep.mubr.bf16.mxu0 %v3017
        %6070 = vmatmul.mubr.bf16.gmra.mxu0 %v3016
        %v6071 = vpop.f32.mrf.mxu0
        %v6072 = vadd.f32 %v5879, %v6071
        %v6073 = vpop.f32.mrf.mxu0
        %v6074 = vadd.f32 %v5881, %v6073
        %v6075 = vpop.f32.mrf.mxu0
        %v6076 = vadd.f32 %v5883, %v6075
        %v6077 = vpop.f32.mrf.mxu0
        %v6078 = vadd.f32 %v5885, %v6077
        %6079 = vmatprep.mubr.bf16.mxu0 %v3021
        %6080 = vmatmul.mubr.bf16.gmra.mxu0 %v3020
        %v6081 = vpop.f32.mrf.mxu0
        %v6082 = vadd.f32 %v5889, %v6081
        %v6083 = vpop.f32.mrf.mxu0
        %v6084 = vadd.f32 %v5891, %v6083
        %v6085 = vpop.f32.mrf.mxu0
        %v6086 = vadd.f32 %v5893, %v6085
        %v6087 = vpop.f32.mrf.mxu0
        %v6088 = vadd.f32 %v5895, %v6087
        %6089 = vmatprep.mubr.bf16.mxu0 %v3025
        %6090 = vmatmul.mubr.bf16.gmra.mxu0 %v3024
        %v6091 = vpop.f32.mrf.mxu0
        %v6092 = vadd.f32 %v5899, %v6091
        %v6093 = vpop.f32.mrf.mxu0
        %v6094 = vadd.f32 %v5901, %v6093
        %v6095 = vpop.f32.mrf.mxu0
        %v6096 = vadd.f32 %v5903, %v6095
        %v6097 = vpop.f32.mrf.mxu0
        %v6098 = vadd.f32 %v5905, %v6097
        %6099 = vmatprep.mubr.bf16.mxu0 %v3029
        %6100 = vmatmul.mubr.bf16.gmra.mxu0 %v3028
        %v6101 = vpop.f32.mrf.mxu0
        %v6102 = vadd.f32 %v5909, %v6101
        %v6103 = vpop.f32.mrf.mxu0
        %v6104 = vadd.f32 %v5911, %v6103
        %v6105 = vpop.f32.mrf.mxu0
        %v6106 = vadd.f32 %v5913, %v6105
        %v6107 = vpop.f32.mrf.mxu0
        %v6108 = vadd.f32 %v5915, %v6107
        %6109 = vmatprep.mubr.bf16.mxu0 %v3033
        %6110 = vmatmul.mubr.bf16.gmra.mxu0 %v3032
        %v6111 = vpop.f32.mrf.mxu0
        %v6112 = vadd.f32 %v5919, %v6111
        %v6113 = vpop.f32.mrf.mxu0
        %v6114 = vadd.f32 %v5921, %v6113
        %v6115 = vpop.f32.mrf.mxu0
        %v6116 = vadd.f32 %v5923, %v6115
        %v6117 = vpop.f32.mrf.mxu0
        %v6118 = vadd.f32 %v5925, %v6117
        %6119 = vmatprep.mubr.bf16.mxu0 %v3037
        %6120 = vmatmul.mubr.bf16.gmra.mxu0 %v3036
        %v6121 = vpop.f32.mrf.mxu0
        %v6122 = vadd.f32 %v5929, %v6121
        %v6123 = vpop.f32.mrf.mxu0
        %v6124 = vadd.f32 %v5931, %v6123
        %v6125 = vpop.f32.mrf.mxu0
        %v6126 = vadd.f32 %v5933, %v6125
        %v6127 = vpop.f32.mrf.mxu0
        %v6128 = vadd.f32 %v5935, %v6127
        %6129 = vmatprep.mubr.bf16.mxu0 %v3041
        %6130 = vmatmul.mubr.bf16.gmra.mxu0 %v3040
        %v6131 = vpop.f32.mrf.mxu0
        %v6132 = vadd.f32 %v5939, %v6131
        %v6133 = vpop.f32.mrf.mxu0
        %v6134 = vadd.f32 %v5941, %v6133
        %v6135 = vpop.f32.mrf.mxu0
        %v6136 = vadd.f32 %v5943, %v6135
        %v6137 = vpop.f32.mrf.mxu0
        %v6138 = vadd.f32 %v5945, %v6137
        %6139 = vmatprep.mubr.bf16.mxu0 %v3045
        %6140 = vmatmul.mubr.bf16.gmra.mxu0 %v3044
        %v6141 = vpop.f32.mrf.mxu0
        %v6142 = vadd.f32 %v5949, %v6141
        %v6143 = vpop.f32.mrf.mxu0
        %v6144 = vadd.f32 %v5951, %v6143
        %v6145 = vpop.f32.mrf.mxu0
        %v6146 = vadd.f32 %v5953, %v6145
        %v6147 = vpop.f32.mrf.mxu0
        %v6148 = vadd.f32 %v5955, %v6147
        %6149 = vmatprep.mubr.bf16.mxu0 %v3049
        %6150 = vmatmul.mubr.bf16.gmra.mxu0 %v3048
        %v6151 = vpop.f32.mrf.mxu0
        %v6152 = vadd.f32 %v5959, %v6151
        %v6153 = vpop.f32.mrf.mxu0
        %v6154 = vadd.f32 %v5961, %v6153
        %v6155 = vpop.f32.mrf.mxu0
        %v6156 = vadd.f32 %v5963, %v6155
        %v6157 = vpop.f32.mrf.mxu0
        %v6158 = vadd.f32 %v5965, %v6157
        %6159 = vmatprep.mubr.bf16.mxu0 %v3053
        %6160 = vmatmul.mubr.bf16.gmra.mxu0 %v3052
        %v6161 = vpop.f32.mrf.mxu0
        %v6162 = vadd.f32 %v5969, %v6161
        %v6163 = vpop.f32.mrf.mxu0
        %v6164 = vadd.f32 %v5971, %v6163
        %v6165 = vpop.f32.mrf.mxu0
        %v6166 = vadd.f32 %v5973, %v6165
        %v6167 = vpop.f32.mrf.mxu0
        %v6168 = vadd.f32 %v5975, %v6167
        %6169 = vmatprep.mubr.bf16.mxu0 %v3057
        %6170 = vmatmul.mubr.bf16.gmra.mxu0 %v3056
        %v6171 = vpop.f32.mrf.mxu0
        %v6172 = vadd.f32 %v5979, %v6171
        %v6173 = vpop.f32.mrf.mxu0
        %v6174 = vadd.f32 %v5981, %v6173
        %v6175 = vpop.f32.mrf.mxu0
        %v6176 = vadd.f32 %v5983, %v6175
        %v6177 = vpop.f32.mrf.mxu0
        %v6178 = vadd.f32 %v5985, %v6177
        %6179 = vdwg.mxu0
        %v6180 = vmax.f32 %v4864, 0.0
        %v6181 = vmax.f32 %v4866, 0.0
        %v6182 = vmax.f32 %v5250, 0.0
        %v6183 = vmax.f32 %v5252, 0.0
        %v6184 = vmax.f32 %v5636, 0.0
        %v6185 = vmax.f32 %v5638, 0.0
        %v6186 = vmax.f32 %v6022, 0.0
        %v6187 = vmax.f32 %v6024, 0.0
        %v6188 = vmax.f32 %v4868, 0.0
        %v6189 = vmax.f32 %v4870, 0.0
        %v6190 = vmax.f32 %v5254, 0.0
        %v6191 = vmax.f32 %v5256, 0.0
        %v6192 = vmax.f32 %v5640, 0.0
        %v6193 = vmax.f32 %v5642, 0.0
        %v6194 = vmax.f32 %v6026, 0.0
        %v6195 = vmax.f32 %v6028, 0.0
        %v6196 = vmax.f32 %v4874, 0.0
        %v6197 = vmax.f32 %v4876, 0.0
        %v6198 = vmax.f32 %v5260, 0.0
        %v6199 = vmax.f32 %v5262, 0.0
        %v6200 = vmax.f32 %v5646, 0.0
        %v6201 = vmax.f32 %v5648, 0.0
        %v6202 = vmax.f32 %v6032, 0.0
        %v6203 = vmax.f32 %v6034, 0.0
        %v6204 = vmax.f32 %v4878, 0.0
        %v6205 = vmax.f32 %v4880, 0.0
        %v6206 = vmax.f32 %v5264, 0.0
        %v6207 = vmax.f32 %v5266, 0.0
        %v6208 = vmax.f32 %v5650, 0.0
        %v6209 = vmax.f32 %v5652, 0.0
        %v6210 = vmax.f32 %v6036, 0.0
        %v6211 = vmax.f32 %v6038, 0.0
        %v6212 = vmax.f32 %v4884, 0.0
        %v6213 = vmax.f32 %v4886, 0.0
        %v6214 = vmax.f32 %v5270, 0.0
        %v6215 = vmax.f32 %v5272, 0.0
        %v6216 = vmax.f32 %v5656, 0.0
        %v6217 = vmax.f32 %v5658, 0.0
        %v6218 = vmax.f32 %v6042, 0.0
        %v6219 = vmax.f32 %v6044, 0.0
        %v6220 = vmax.f32 %v4888, 0.0
        %v6221 = vmax.f32 %v4890, 0.0
        %v6222 = vmax.f32 %v5274, 0.0
        %v6223 = vmax.f32 %v5276, 0.0
        %v6224 = vmax.f32 %v5660, 0.0
        %v6225 = vmax.f32 %v5662, 0.0
        %v6226 = vmax.f32 %v6046, 0.0
        %v6227 = vmax.f32 %v6048, 0.0
        %v6228 = vmax.f32 %v4894, 0.0
        %v6229 = vmax.f32 %v4896, 0.0
        %v6230 = vmax.f32 %v5280, 0.0
        %v6231 = vmax.f32 %v5282, 0.0
        %v6232 = vmax.f32 %v5666, 0.0
        %v6233 = vmax.f32 %v5668, 0.0
        %v6234 = vmax.f32 %v6052, 0.0
        %v6235 = vmax.f32 %v6054, 0.0
        %v6236 = vmax.f32 %v4898, 0.0
        %v6237 = vmax.f32 %v4900, 0.0
        %v6238 = vmax.f32 %v5284, 0.0
        %v6239 = vmax.f32 %v5286, 0.0
        %v6240 = vmax.f32 %v5670, 0.0
        %v6241 = vmax.f32 %v5672, 0.0
        %v6242 = vmax.f32 %v6056, 0.0
        %v6243 = vmax.f32 %v6058, 0.0
        %v6244 = vmax.f32 %v4904, 0.0
        %v6245 = vmax.f32 %v4906, 0.0
        %v6246 = vmax.f32 %v5290, 0.0
        %v6247 = vmax.f32 %v5292, 0.0
        %v6248 = vmax.f32 %v5676, 0.0
        %v6249 = vmax.f32 %v5678, 0.0
        %v6250 = vmax.f32 %v6062, 0.0
        %v6251 = vmax.f32 %v6064, 0.0
        %v6252 = vmax.f32 %v4908, 0.0
        %v6253 = vmax.f32 %v4910, 0.0
        %v6254 = vmax.f32 %v5294, 0.0
        %v6255 = vmax.f32 %v5296, 0.0
        %v6256 = vmax.f32 %v5680, 0.0
        %v6257 = vmax.f32 %v5682, 0.0
        %v6258 = vmax.f32 %v6066, 0.0
        %v6259 = vmax.f32 %v6068, 0.0
        %v6260 = vmax.f32 %v4914, 0.0
        %v6261 = vmax.f32 %v4916, 0.0
        %v6262 = vmax.f32 %v5300, 0.0
        %v6263 = vmax.f32 %v5302, 0.0
        %v6264 = vmax.f32 %v5686, 0.0
        %v6265 = vmax.f32 %v5688, 0.0
        %v6266 = vmax.f32 %v6072, 0.0
        %v6267 = vmax.f32 %v6074, 0.0
        %v6268 = vmax.f32 %v4918, 0.0
        %v6269 = vmax.f32 %v4920, 0.0
        %v6270 = vmax.f32 %v5304, 0.0
        %v6271 = vmax.f32 %v5306, 0.0
        %v6272 = vmax.f32 %v5690, 0.0
        %v6273 = vmax.f32 %v5692, 0.0
        %v6274 = vmax.f32 %v6076, 0.0
        %v6275 = vmax.f32 %v6078, 0.0
        %v6276 = vmax.f32 %v4924, 0.0
        %v6277 = vmax.f32 %v4926, 0.0
        %v6278 = vmax.f32 %v5310, 0.0
        %v6279 = vmax.f32 %v5312, 0.0
        %v6280 = vmax.f32 %v5696, 0.0
        %v6281 = vmax.f32 %v5698, 0.0
        %v6282 = vmax.f32 %v6082, 0.0
        %v6283 = vmax.f32 %v6084, 0.0
        %v6284 = vmax.f32 %v4928, 0.0
        %v6285 = vmax.f32 %v4930, 0.0
        %v6286 = vmax.f32 %v5314, 0.0
        %v6287 = vmax.f32 %v5316, 0.0
        %v6288 = vmax.f32 %v5700, 0.0
        %v6289 = vmax.f32 %v5702, 0.0
        %v6290 = vmax.f32 %v6086, 0.0
        %v6291 = vmax.f32 %v6088, 0.0
        %v6292 = vmax.f32 %v4934, 0.0
        %v6293 = vmax.f32 %v4936, 0.0
        %v6294 = vmax.f32 %v5320, 0.0
        %v6295 = vmax.f32 %v5322, 0.0
        %v6296 = vmax.f32 %v5706, 0.0
        %v6297 = vmax.f32 %v5708, 0.0
        %v6298 = vmax.f32 %v6092, 0.0
        %v6299 = vmax.f32 %v6094, 0.0
        %v6300 = vmax.f32 %v4938, 0.0
        %v6301 = vmax.f32 %v4940, 0.0
        %v6302 = vmax.f32 %v5324, 0.0
        %v6303 = vmax.f32 %v5326, 0.0
        %v6304 = vmax.f32 %v5710, 0.0
        %v6305 = vmax.f32 %v5712, 0.0
        %v6306 = vmax.f32 %v6096, 0.0
        %v6307 = vmax.f32 %v6098, 0.0
        %v6308 = vmax.f32 %v4944, 0.0
        %v6309 = vmax.f32 %v4946, 0.0
        %v6310 = vmax.f32 %v5330, 0.0
        %v6311 = vmax.f32 %v5332, 0.0
        %v6312 = vmax.f32 %v5716, 0.0
        %v6313 = vmax.f32 %v5718, 0.0
        %v6314 = vmax.f32 %v6102, 0.0
        %v6315 = vmax.f32 %v6104, 0.0
        %v6316 = vmax.f32 %v4948, 0.0
        %v6317 = vmax.f32 %v4950, 0.0
        %v6318 = vmax.f32 %v5334, 0.0
        %v6319 = vmax.f32 %v5336, 0.0
        %v6320 = vmax.f32 %v5720, 0.0
        %v6321 = vmax.f32 %v5722, 0.0
        %v6322 = vmax.f32 %v6106, 0.0
        %v6323 = vmax.f32 %v6108, 0.0
        %v6324 = vmax.f32 %v4954, 0.0
        %v6325 = vmax.f32 %v4956, 0.0
        %v6326 = vmax.f32 %v5340, 0.0
        %v6327 = vmax.f32 %v5342, 0.0
        %v6328 = vmax.f32 %v5726, 0.0
        %v6329 = vmax.f32 %v5728, 0.0
        %v6330 = vmax.f32 %v6112, 0.0
        %v6331 = vmax.f32 %v6114, 0.0
        %v6332 = vmax.f32 %v4958, 0.0
        %v6333 = vmax.f32 %v4960, 0.0
        %v6334 = vmax.f32 %v5344, 0.0
        %v6335 = vmax.f32 %v5346, 0.0
        %v6336 = vmax.f32 %v5730, 0.0
        %v6337 = vmax.f32 %v5732, 0.0
        %v6338 = vmax.f32 %v6116, 0.0
        %v6339 = vmax.f32 %v6118, 0.0
        %v6340 = vmax.f32 %v4964, 0.0
        %v6341 = vmax.f32 %v4966, 0.0
        %v6342 = vmax.f32 %v5350, 0.0
        %v6343 = vmax.f32 %v5352, 0.0
        %v6344 = vmax.f32 %v5736, 0.0
        %v6345 = vmax.f32 %v5738, 0.0
        %v6346 = vmax.f32 %v6122, 0.0
        %v6347 = vmax.f32 %v6124, 0.0
        %v6348 = vmax.f32 %v4968, 0.0
        %v6349 = vmax.f32 %v4970, 0.0
        %v6350 = vmax.f32 %v5354, 0.0
        %v6351 = vmax.f32 %v5356, 0.0
        %v6352 = vmax.f32 %v5740, 0.0
        %v6353 = vmax.f32 %v5742, 0.0
        %v6354 = vmax.f32 %v6126, 0.0
        %v6355 = vmax.f32 %v6128, 0.0
        %v6356 = vmax.f32 %v4974, 0.0
        %v6357 = vmax.f32 %v4976, 0.0
        %v6358 = vmax.f32 %v5360, 0.0
        %v6359 = vmax.f32 %v5362, 0.0
        %v6360 = vmax.f32 %v5746, 0.0
        %v6361 = vmax.f32 %v5748, 0.0
        %v6362 = vmax.f32 %v6132, 0.0
        %v6363 = vmax.f32 %v6134, 0.0
        %v6364 = vmax.f32 %v4978, 0.0
        %v6365 = vmax.f32 %v4980, 0.0
        %v6366 = vmax.f32 %v5364, 0.0
        %v6367 = vmax.f32 %v5366, 0.0
        %v6368 = vmax.f32 %v5750, 0.0
        %v6369 = vmax.f32 %v5752, 0.0
        %v6370 = vmax.f32 %v6136, 0.0
        %v6371 = vmax.f32 %v6138, 0.0
        %v6372 = vmax.f32 %v4984, 0.0
        %v6373 = vmax.f32 %v4986, 0.0
        %v6374 = vmax.f32 %v5370, 0.0
        %v6375 = vmax.f32 %v5372, 0.0
        %v6376 = vmax.f32 %v5756, 0.0
        %v6377 = vmax.f32 %v5758, 0.0
        %v6378 = vmax.f32 %v6142, 0.0
        %v6379 = vmax.f32 %v6144, 0.0
        %v6380 = vmax.f32 %v4988, 0.0
        %v6381 = vmax.f32 %v4990, 0.0
        %v6382 = vmax.f32 %v5374, 0.0
        %v6383 = vmax.f32 %v5376, 0.0
        %v6384 = vmax.f32 %v5760, 0.0
        %v6385 = vmax.f32 %v5762, 0.0
        %v6386 = vmax.f32 %v6146, 0.0
        %v6387 = vmax.f32 %v6148, 0.0
        %v6388 = vmax.f32 %v4994, 0.0
        %v6389 = vmax.f32 %v4996, 0.0
        %v6390 = vmax.f32 %v5380, 0.0
        %v6391 = vmax.f32 %v5382, 0.0
        %v6392 = vmax.f32 %v5766, 0.0
        %v6393 = vmax.f32 %v5768, 0.0
        %v6394 = vmax.f32 %v6152, 0.0
        %v6395 = vmax.f32 %v6154, 0.0
        %v6396 = vmax.f32 %v4998, 0.0
        %v6397 = vmax.f32 %v5000, 0.0
        %v6398 = vmax.f32 %v5384, 0.0
        %v6399 = vmax.f32 %v5386, 0.0
        %v6400 = vmax.f32 %v5770, 0.0
        %v6401 = vmax.f32 %v5772, 0.0
        %v6402 = vmax.f32 %v6156, 0.0
        %v6403 = vmax.f32 %v6158, 0.0
        %v6404 = vmax.f32 %v5004, 0.0
        %v6405 = vmax.f32 %v5006, 0.0
        %v6406 = vmax.f32 %v5390, 0.0
        %v6407 = vmax.f32 %v5392, 0.0
        %v6408 = vmax.f32 %v5776, 0.0
        %v6409 = vmax.f32 %v5778, 0.0
        %v6410 = vmax.f32 %v6162, 0.0
        %v6411 = vmax.f32 %v6164, 0.0
        %v6412 = vmax.f32 %v5008, 0.0
        %v6413 = vmax.f32 %v5010, 0.0
        %v6414 = vmax.f32 %v5394, 0.0
        %v6415 = vmax.f32 %v5396, 0.0
        %v6416 = vmax.f32 %v5780, 0.0
        %v6417 = vmax.f32 %v5782, 0.0
        %v6418 = vmax.f32 %v6166, 0.0
        %v6419 = vmax.f32 %v6168, 0.0
        %v6420 = vmax.f32 %v5014, 0.0
        %v6421 = vmax.f32 %v5016, 0.0
        %v6422 = vmax.f32 %v5400, 0.0
        %v6423 = vmax.f32 %v5402, 0.0
        %v6424 = vmax.f32 %v5786, 0.0
        %v6425 = vmax.f32 %v5788, 0.0
        %v6426 = vmax.f32 %v6172, 0.0
        %v6427 = vmax.f32 %v6174, 0.0
        %v6428 = vmax.f32 %v5018, 0.0
        %v6429 = vmax.f32 %v5020, 0.0
        %v6430 = vmax.f32 %v5404, 0.0
        %v6431 = vmax.f32 %v5406, 0.0
        %v6432 = vmax.f32 %v5790, 0.0
        %v6433 = vmax.f32 %v5792, 0.0
        %v6434 = vmax.f32 %v6176, 0.0
        %v6435 = vmax.f32 %v6178, 0.0
        %v6436 = vmax.f32 %v6180, %v6188
        %v6437 = vmax.f32 %v6436, %v6196
        %v6438 = vmax.f32 %v6437, %v6204
        %v6439 = vmax.f32 %v6438, %v6212
        %v6440 = vmax.f32 %v6439, %v6220
        %v6441 = vmax.f32 %v6440, %v6228
        %v6442 = vmax.f32 %v6441, %v6236
        %v6443 = vrot.slane %v6442, 4
        %v6444 = vmax.f32 %v6442, %v6443
        %v6445 = vrot.slane %v6444, 2
        %v6446 = vmax.f32 %v6444, %v6445
        %v6447 = vrot.slane %v6446, 1
        %v6448 = vmax.f32 %v6446, %v6447
        %v6449 = vmax.f32 %v6181, %v6189
        %v6450 = vmax.f32 %v6449, %v6197
        %v6451 = vmax.f32 %v6450, %v6205
        %v6452 = vmax.f32 %v6451, %v6213
        %v6453 = vmax.f32 %v6452, %v6221
        %v6454 = vmax.f32 %v6453, %v6229
        %v6455 = vmax.f32 %v6454, %v6237
        %v6456 = vrot.slane %v6455, 4
        %v6457 = vmax.f32 %v6455, %v6456
        %v6458 = vrot.slane %v6457, 2
        %v6459 = vmax.f32 %v6457, %v6458
        %v6460 = vrot.slane %v6459, 1
        %v6461 = vmax.f32 %v6459, %v6460
        %v6462 = vmax.f32 %v6182, %v6190
        %v6463 = vmax.f32 %v6462, %v6198
        %v6464 = vmax.f32 %v6463, %v6206
        %v6465 = vmax.f32 %v6464, %v6214
        %v6466 = vmax.f32 %v6465, %v6222
        %v6467 = vmax.f32 %v6466, %v6230
        %v6468 = vmax.f32 %v6467, %v6238
        %v6469 = vrot.slane %v6468, 4
        %v6470 = vmax.f32 %v6468, %v6469
        %v6471 = vrot.slane %v6470, 2
        %v6472 = vmax.f32 %v6470, %v6471
        %v6473 = vrot.slane %v6472, 1
        %v6474 = vmax.f32 %v6472, %v6473
        %v6475 = vmax.f32 %v6183, %v6191
        %v6476 = vmax.f32 %v6475, %v6199
        %v6477 = vmax.f32 %v6476, %v6207
        %v6478 = vmax.f32 %v6477, %v6215
        %v6479 = vmax.f32 %v6478, %v6223
        %v6480 = vmax.f32 %v6479, %v6231
        %v6481 = vmax.f32 %v6480, %v6239
        %v6482 = vrot.slane %v6481, 4
        %v6483 = vmax.f32 %v6481, %v6482
        %v6484 = vrot.slane %v6483, 2
        %v6485 = vmax.f32 %v6483, %v6484
        %v6486 = vrot.slane %v6485, 1
        %v6487 = vmax.f32 %v6485, %v6486
        %v6488 = vmax.f32 %v6184, %v6192
        %v6489 = vmax.f32 %v6488, %v6200
        %v6490 = vmax.f32 %v6489, %v6208
        %v6491 = vmax.f32 %v6490, %v6216
        %v6492 = vmax.f32 %v6491, %v6224
        %v6493 = vmax.f32 %v6492, %v6232
        %v6494 = vmax.f32 %v6493, %v6240
        %v6495 = vrot.slane %v6494, 4
        %v6496 = vmax.f32 %v6494, %v6495
        %v6497 = vrot.slane %v6496, 2
        %v6498 = vmax.f32 %v6496, %v6497
        %v6499 = vrot.slane %v6498, 1
        %v6500 = vmax.f32 %v6498, %v6499
        %v6501 = vmax.f32 %v6185, %v6193
        %v6502 = vmax.f32 %v6501, %v6201
        %v6503 = vmax.f32 %v6502, %v6209
        %v6504 = vmax.f32 %v6503, %v6217
        %v6505 = vmax.f32 %v6504, %v6225
        %v6506 = vmax.f32 %v6505, %v6233
        %v6507 = vmax.f32 %v6506, %v6241
        %v6508 = vrot.slane %v6507, 4
        %v6509 = vmax.f32 %v6507, %v6508
        %v6510 = vrot.slane %v6509, 2
        %v6511 = vmax.f32 %v6509, %v6510
        %v6512 = vrot.slane %v6511, 1
        %v6513 = vmax.f32 %v6511, %v6512
        %v6514 = vmax.f32 %v6186, %v6194
        %v6515 = vmax.f32 %v6514, %v6202
        %v6516 = vmax.f32 %v6515, %v6210
        %v6517 = vmax.f32 %v6516, %v6218
        %v6518 = vmax.f32 %v6517, %v6226
        %v6519 = vmax.f32 %v6518, %v6234
        %v6520 = vmax.f32 %v6519, %v6242
        %v6521 = vrot.slane %v6520, 4
        %v6522 = vmax.f32 %v6520, %v6521
        %v6523 = vrot.slane %v6522, 2
        %v6524 = vmax.f32 %v6522, %v6523
        %v6525 = vrot.slane %v6524, 1
        %v6526 = vmax.f32 %v6524, %v6525
        %v6527 = vmax.f32 %v6187, %v6195
        %v6528 = vmax.f32 %v6527, %v6203
        %v6529 = vmax.f32 %v6528, %v6211
        %v6530 = vmax.f32 %v6529, %v6219
        %v6531 = vmax.f32 %v6530, %v6227
        %v6532 = vmax.f32 %v6531, %v6235
        %v6533 = vmax.f32 %v6532, %v6243
        %v6534 = vrot.slane %v6533, 4
        %v6535 = vmax.f32 %v6533, %v6534
        %v6536 = vrot.slane %v6535, 2
        %v6537 = vmax.f32 %v6535, %v6536
        %v6538 = vrot.slane %v6537, 1
        %v6539 = vmax.f32 %v6537, %v6538
        %v6540 = vmax.f32 %v6244, %v6252
        %v6541 = vmax.f32 %v6540, %v6260
        %v6542 = vmax.f32 %v6541, %v6268
        %v6543 = vmax.f32 %v6542, %v6276
        %v6544 = vmax.f32 %v6543, %v6284
        %v6545 = vmax.f32 %v6544, %v6292
        %v6546 = vmax.f32 %v6545, %v6300
        %v6547 = vrot.slane %v6546, 4
        %v6548 = vmax.f32 %v6546, %v6547
        %v6549 = vrot.slane %v6548, 2
        %v6550 = vmax.f32 %v6548, %v6549
        %v6551 = vrot.slane %v6550, 1
        %v6552 = vmax.f32 %v6550, %v6551
        %v6553 = vmax.f32 %v6245, %v6253
        %v6554 = vmax.f32 %v6553, %v6261
        %v6555 = vmax.f32 %v6554, %v6269
        %v6556 = vmax.f32 %v6555, %v6277
        %v6557 = vmax.f32 %v6556, %v6285
        %v6558 = vmax.f32 %v6557, %v6293
        %v6559 = vmax.f32 %v6558, %v6301
        %v6560 = vrot.slane %v6559, 4
        %v6561 = vmax.f32 %v6559, %v6560
        %v6562 = vrot.slane %v6561, 2
        %v6563 = vmax.f32 %v6561, %v6562
        %v6564 = vrot.slane %v6563, 1
        %v6565 = vmax.f32 %v6563, %v6564
        %v6566 = vmax.f32 %v6246, %v6254
        %v6567 = vmax.f32 %v6566, %v6262
        %v6568 = vmax.f32 %v6567, %v6270
        %v6569 = vmax.f32 %v6568, %v6278
        %v6570 = vmax.f32 %v6569, %v6286
        %v6571 = vmax.f32 %v6570, %v6294
        %v6572 = vmax.f32 %v6571, %v6302
        %v6573 = vrot.slane %v6572, 4
        %v6574 = vmax.f32 %v6572, %v6573
        %v6575 = vrot.slane %v6574, 2
        %v6576 = vmax.f32 %v6574, %v6575
        %v6577 = vrot.slane %v6576, 1
        %v6578 = vmax.f32 %v6576, %v6577
        %v6579 = vmax.f32 %v6247, %v6255
        %v6580 = vmax.f32 %v6579, %v6263
        %v6581 = vmax.f32 %v6580, %v6271
        %v6582 = vmax.f32 %v6581, %v6279
        %v6583 = vmax.f32 %v6582, %v6287
        %v6584 = vmax.f32 %v6583, %v6295
        %v6585 = vmax.f32 %v6584, %v6303
        %v6586 = vrot.slane %v6585, 4
        %v6587 = vmax.f32 %v6585, %v6586
        %v6588 = vrot.slane %v6587, 2
        %v6589 = vmax.f32 %v6587, %v6588
        %v6590 = vrot.slane %v6589, 1
        %v6591 = vmax.f32 %v6589, %v6590
        %v6592 = vmax.f32 %v6248, %v6256
        %v6593 = vmax.f32 %v6592, %v6264
        %v6594 = vmax.f32 %v6593, %v6272
        %v6595 = vmax.f32 %v6594, %v6280
        %v6596 = vmax.f32 %v6595, %v6288
        %v6597 = vmax.f32 %v6596, %v6296
        %v6598 = vmax.f32 %v6597, %v6304
        %v6599 = vrot.slane %v6598, 4
        %v6600 = vmax.f32 %v6598, %v6599
        %v6601 = vrot.slane %v6600, 2
        %v6602 = vmax.f32 %v6600, %v6601
        %v6603 = vrot.slane %v6602, 1
        %v6604 = vmax.f32 %v6602, %v6603
        %v6605 = vmax.f32 %v6249, %v6257
        %v6606 = vmax.f32 %v6605, %v6265
        %v6607 = vmax.f32 %v6606, %v6273
        %v6608 = vmax.f32 %v6607, %v6281
        %v6609 = vmax.f32 %v6608, %v6289
        %v6610 = vmax.f32 %v6609, %v6297
        %v6611 = vmax.f32 %v6610, %v6305
        %v6612 = vrot.slane %v6611, 4
        %v6613 = vmax.f32 %v6611, %v6612
        %v6614 = vrot.slane %v6613, 2
        %v6615 = vmax.f32 %v6613, %v6614
        %v6616 = vrot.slane %v6615, 1
        %v6617 = vmax.f32 %v6615, %v6616
        %v6618 = vmax.f32 %v6250, %v6258
        %v6619 = vmax.f32 %v6618, %v6266
        %v6620 = vmax.f32 %v6619, %v6274
        %v6621 = vmax.f32 %v6620, %v6282
        %v6622 = vmax.f32 %v6621, %v6290
        %v6623 = vmax.f32 %v6622, %v6298
        %v6624 = vmax.f32 %v6623, %v6306
        %v6625 = vrot.slane %v6624, 4
        %v6626 = vmax.f32 %v6624, %v6625
        %v6627 = vrot.slane %v6626, 2
        %v6628 = vmax.f32 %v6626, %v6627
        %v6629 = vrot.slane %v6628, 1
        %v6630 = vmax.f32 %v6628, %v6629
        %v6631 = vmax.f32 %v6251, %v6259
        %v6632 = vmax.f32 %v6631, %v6267
        %v6633 = vmax.f32 %v6632, %v6275
        %v6634 = vmax.f32 %v6633, %v6283
        %v6635 = vmax.f32 %v6634, %v6291
        %v6636 = vmax.f32 %v6635, %v6299
        %v6637 = vmax.f32 %v6636, %v6307
        %v6638 = vrot.slane %v6637, 4
        %v6639 = vmax.f32 %v6637, %v6638
        %v6640 = vrot.slane %v6639, 2
        %v6641 = vmax.f32 %v6639, %v6640
        %v6642 = vrot.slane %v6641, 1
        %v6643 = vmax.f32 %v6641, %v6642
        %v6644 = vmax.f32 %v6308, %v6316
        %v6645 = vmax.f32 %v6644, %v6324
        %v6646 = vmax.f32 %v6645, %v6332
        %v6647 = vmax.f32 %v6646, %v6340
        %v6648 = vmax.f32 %v6647, %v6348
        %v6649 = vmax.f32 %v6648, %v6356
        %v6650 = vmax.f32 %v6649, %v6364
        %v6651 = vrot.slane %v6650, 4
        %v6652 = vmax.f32 %v6650, %v6651
        %v6653 = vrot.slane %v6652, 2
        %v6654 = vmax.f32 %v6652, %v6653
        %v6655 = vrot.slane %v6654, 1
        %v6656 = vmax.f32 %v6654, %v6655
        %v6657 = vmax.f32 %v6309, %v6317
        %v6658 = vmax.f32 %v6657, %v6325
        %v6659 = vmax.f32 %v6658, %v6333
        %v6660 = vmax.f32 %v6659, %v6341
        %v6661 = vmax.f32 %v6660, %v6349
        %v6662 = vmax.f32 %v6661, %v6357
        %v6663 = vmax.f32 %v6662, %v6365
        %v6664 = vrot.slane %v6663, 4
        %v6665 = vmax.f32 %v6663, %v6664
        %v6666 = vrot.slane %v6665, 2
        %v6667 = vmax.f32 %v6665, %v6666
        %v6668 = vrot.slane %v6667, 1
        %v6669 = vmax.f32 %v6667, %v6668
        %v6670 = vmax.f32 %v6310, %v6318
        %v6671 = vmax.f32 %v6670, %v6326
        %v6672 = vmax.f32 %v6671, %v6334
        %v6673 = vmax.f32 %v6672, %v6342
        %v6674 = vmax.f32 %v6673, %v6350
        %v6675 = vmax.f32 %v6674, %v6358
        %v6676 = vmax.f32 %v6675, %v6366
        %v6677 = vrot.slane %v6676, 4
        %v6678 = vmax.f32 %v6676, %v6677
        %v6679 = vrot.slane %v6678, 2
        %v6680 = vmax.f32 %v6678, %v6679
        %v6681 = vrot.slane %v6680, 1
        %v6682 = vmax.f32 %v6680, %v6681
        %v6683 = vmax.f32 %v6311, %v6319
        %v6684 = vmax.f32 %v6683, %v6327
        %v6685 = vmax.f32 %v6684, %v6335
        %v6686 = vmax.f32 %v6685, %v6343
        %v6687 = vmax.f32 %v6686, %v6351
        %v6688 = vmax.f32 %v6687, %v6359
        %v6689 = vmax.f32 %v6688, %v6367
        %v6690 = vrot.slane %v6689, 4
        %v6691 = vmax.f32 %v6689, %v6690
        %v6692 = vrot.slane %v6691, 2
        %v6693 = vmax.f32 %v6691, %v6692
        %v6694 = vrot.slane %v6693, 1
        %v6695 = vmax.f32 %v6693, %v6694
        %v6696 = vmax.f32 %v6312, %v6320
        %v6697 = vmax.f32 %v6696, %v6328
        %v6698 = vmax.f32 %v6697, %v6336
        %v6699 = vmax.f32 %v6698, %v6344
        %v6700 = vmax.f32 %v6699, %v6352
        %v6701 = vmax.f32 %v6700, %v6360
        %v6702 = vmax.f32 %v6701, %v6368
        %v6703 = vrot.slane %v6702, 4
        %v6704 = vmax.f32 %v6702, %v6703
        %v6705 = vrot.slane %v6704, 2
        %v6706 = vmax.f32 %v6704, %v6705
        %v6707 = vrot.slane %v6706, 1
        %v6708 = vmax.f32 %v6706, %v6707
        %v6709 = vmax.f32 %v6313, %v6321
        %v6710 = vmax.f32 %v6709, %v6329
        %v6711 = vmax.f32 %v6710, %v6337
        %v6712 = vmax.f32 %v6711, %v6345
        %v6713 = vmax.f32 %v6712, %v6353
        %v6714 = vmax.f32 %v6713, %v6361
        %v6715 = vmax.f32 %v6714, %v6369
        %v6716 = vrot.slane %v6715, 4
        %v6717 = vmax.f32 %v6715, %v6716
        %v6718 = vrot.slane %v6717, 2
        %v6719 = vmax.f32 %v6717, %v6718
        %v6720 = vrot.slane %v6719, 1
        %v6721 = vmax.f32 %v6719, %v6720
        %v6722 = vmax.f32 %v6314, %v6322
        %v6723 = vmax.f32 %v6722, %v6330
        %v6724 = vmax.f32 %v6723, %v6338
        %v6725 = vmax.f32 %v6724, %v6346
        %v6726 = vmax.f32 %v6725, %v6354
        %v6727 = vmax.f32 %v6726, %v6362
        %v6728 = vmax.f32 %v6727, %v6370
        %v6729 = vrot.slane %v6728, 4
        %v6730 = vmax.f32 %v6728, %v6729
        %v6731 = vrot.slane %v6730, 2
        %v6732 = vmax.f32 %v6730, %v6731
        %v6733 = vrot.slane %v6732, 1
        %v6734 = vmax.f32 %v6732, %v6733
        %v6735 = vmax.f32 %v6315, %v6323
        %v6736 = vmax.f32 %v6735, %v6331
        %v6737 = vmax.f32 %v6736, %v6339
        %v6738 = vmax.f32 %v6737, %v6347
        %v6739 = vmax.f32 %v6738, %v6355
        %v6740 = vmax.f32 %v6739, %v6363
        %v6741 = vmax.f32 %v6740, %v6371
        %v6742 = vrot.slane %v6741, 4
        %v6743 = vmax.f32 %v6741, %v6742
        %v6744 = vrot.slane %v6743, 2
        %v6745 = vmax.f32 %v6743, %v6744
        %v6746 = vrot.slane %v6745, 1
        %v6747 = vmax.f32 %v6745, %v6746
        %v6748 = vmax.f32 %v6372, %v6380
        %v6749 = vmax.f32 %v6748, %v6388
        %v6750 = vmax.f32 %v6749, %v6396
        %v6751 = vmax.f32 %v6750, %v6404
        %v6752 = vmax.f32 %v6751, %v6412
        %v6753 = vmax.f32 %v6752, %v6420
        %v6754 = vmax.f32 %v6753, %v6428
        %v6755 = vrot.slane %v6754, 4
        %v6756 = vmax.f32 %v6754, %v6755
        %v6757 = vrot.slane %v6756, 2
        %v6758 = vmax.f32 %v6756, %v6757
        %v6759 = vrot.slane %v6758, 1
        %v6760 = vmax.f32 %v6758, %v6759
        %v6761 = vmax.f32 %v6373, %v6381
        %v6762 = vmax.f32 %v6761, %v6389
        %v6763 = vmax.f32 %v6762, %v6397
        %v6764 = vmax.f32 %v6763, %v6405
        %v6765 = vmax.f32 %v6764, %v6413
        %v6766 = vmax.f32 %v6765, %v6421
        %v6767 = vmax.f32 %v6766, %v6429
        %v6768 = vrot.slane %v6767, 4
        %v6769 = vmax.f32 %v6767, %v6768
        %v6770 = vrot.slane %v6769, 2
        %v6771 = vmax.f32 %v6769, %v6770
        %v6772 = vrot.slane %v6771, 1
        %v6773 = vmax.f32 %v6771, %v6772
        %v6774 = vmax.f32 %v6374, %v6382
        %v6775 = vmax.f32 %v6774, %v6390
        %v6776 = vmax.f32 %v6775, %v6398
        %v6777 = vmax.f32 %v6776, %v6406
        %v6778 = vmax.f32 %v6777, %v6414
        %v6779 = vmax.f32 %v6778, %v6422
        %v6780 = vmax.f32 %v6779, %v6430
        %v6781 = vrot.slane %v6780, 4
        %v6782 = vmax.f32 %v6780, %v6781
        %v6783 = vrot.slane %v6782, 2
        %v6784 = vmax.f32 %v6782, %v6783
        %v6785 = vrot.slane %v6784, 1
        %v6786 = vmax.f32 %v6784, %v6785
        %v6787 = vmax.f32 %v6375, %v6383
        %v6788 = vmax.f32 %v6787, %v6391
        %v6789 = vmax.f32 %v6788, %v6399
        %v6790 = vmax.f32 %v6789, %v6407
        %v6791 = vmax.f32 %v6790, %v6415
        %v6792 = vmax.f32 %v6791, %v6423
        %v6793 = vmax.f32 %v6792, %v6431
        %v6794 = vrot.slane %v6793, 4
        %v6795 = vmax.f32 %v6793, %v6794
        %v6796 = vrot.slane %v6795, 2
        %v6797 = vmax.f32 %v6795, %v6796
        %v6798 = vrot.slane %v6797, 1
        %v6799 = vmax.f32 %v6797, %v6798
        %v6800 = vmax.f32 %v6376, %v6384
        %v6801 = vmax.f32 %v6800, %v6392
        %v6802 = vmax.f32 %v6801, %v6400
        %v6803 = vmax.f32 %v6802, %v6408
        %v6804 = vmax.f32 %v6803, %v6416
        %v6805 = vmax.f32 %v6804, %v6424
        %v6806 = vmax.f32 %v6805, %v6432
        %v6807 = vrot.slane %v6806, 4
        %v6808 = vmax.f32 %v6806, %v6807
        %v6809 = vrot.slane %v6808, 2
        %v6810 = vmax.f32 %v6808, %v6809
        %v6811 = vrot.slane %v6810, 1
        %v6812 = vmax.f32 %v6810, %v6811
        %v6813 = vmax.f32 %v6377, %v6385
        %v6814 = vmax.f32 %v6813, %v6393
        %v6815 = vmax.f32 %v6814, %v6401
        %v6816 = vmax.f32 %v6815, %v6409
        %v6817 = vmax.f32 %v6816, %v6417
        %v6818 = vmax.f32 %v6817, %v6425
        %v6819 = vmax.f32 %v6818, %v6433
        %v6820 = vrot.slane %v6819, 4
        %v6821 = vmax.f32 %v6819, %v6820
        %v6822 = vrot.slane %v6821, 2
        %v6823 = vmax.f32 %v6821, %v6822
        %v6824 = vrot.slane %v6823, 1
        %v6825 = vmax.f32 %v6823, %v6824
        %v6826 = vmax.f32 %v6378, %v6386
        %v6827 = vmax.f32 %v6826, %v6394
        %v6828 = vmax.f32 %v6827, %v6402
        %v6829 = vmax.f32 %v6828, %v6410
        %v6830 = vmax.f32 %v6829, %v6418
        %v6831 = vmax.f32 %v6830, %v6426
        %v6832 = vmax.f32 %v6831, %v6434
        %v6833 = vrot.slane %v6832, 4
        %v6834 = vmax.f32 %v6832, %v6833
        %v6835 = vrot.slane %v6834, 2
        %v6836 = vmax.f32 %v6834, %v6835
        %v6837 = vrot.slane %v6836, 1
        %v6838 = vmax.f32 %v6836, %v6837
        %v6839 = vmax.f32 %v6379, %v6387
        %v6840 = vmax.f32 %v6839, %v6395
        %v6841 = vmax.f32 %v6840, %v6403
        %v6842 = vmax.f32 %v6841, %v6411
        %v6843 = vmax.f32 %v6842, %v6419
        %v6844 = vmax.f32 %v6843, %v6427
        %v6845 = vmax.f32 %v6844, %v6435
        %v6846 = vrot.slane %v6845, 4
        %v6847 = vmax.f32 %v6845, %v6846
        %v6848 = vrot.slane %v6847, 2
        %v6849 = vmax.f32 %v6847, %v6848
        %v6850 = vrot.slane %v6849, 1
        %v6851 = vmax.f32 %v6849, %v6850
        %v6852 = vpack.c.bf16 %v6448, %v6448
        %v6853 = vpack.c.bf16 %v6461, %v6461
        %v6854 = vpack.c.bf16 %v6474, %v6474
        %v6855 = vpack.c.bf16 %v6487, %v6487
        %v6856 = vpack.c.bf16 %v6500, %v6500
        %v6857 = vpack.c.bf16 %v6513, %v6513
        %v6858 = vpack.c.bf16 %v6526, %v6526
        %v6859 = vpack.c.bf16 %v6539, %v6539
        %v6860 = vpack.c.bf16 %v6552, %v6552
        %v6861 = vpack.c.bf16 %v6565, %v6565
        %v6862 = vpack.c.bf16 %v6578, %v6578
        %v6863 = vpack.c.bf16 %v6591, %v6591
        %v6864 = vpack.c.bf16 %v6604, %v6604
        %v6865 = vpack.c.bf16 %v6617, %v6617
        %v6866 = vpack.c.bf16 %v6630, %v6630
        %v6867 = vpack.c.bf16 %v6643, %v6643
        %v6868 = vpack.c.bf16 %v6656, %v6656
        %v6869 = vpack.c.bf16 %v6669, %v6669
        %v6870 = vpack.c.bf16 %v6682, %v6682
        %v6871 = vpack.c.bf16 %v6695, %v6695
        %v6872 = vpack.c.bf16 %v6708, %v6708
        %v6873 = vpack.c.bf16 %v6721, %v6721
        %v6874 = vpack.c.bf16 %v6734, %v6734
        %v6875 = vpack.c.bf16 %v6747, %v6747
        %v6876 = vpack.c.bf16 %v6760, %v6760
        %v6877 = vpack.c.bf16 %v6773, %v6773
        %v6878 = vpack.c.bf16 %v6786, %v6786
        %v6879 = vpack.c.bf16 %v6799, %v6799
        %v6880 = vpack.c.bf16 %v6812, %v6812
        %v6881 = vpack.c.bf16 %v6825, %v6825
        %v6882 = vpack.c.bf16 %v6838, %v6838
        %v6883 = vpack.c.bf16 %v6851, %v6851
        %v6884 = vld [vmem:[#allocation12] sm:$0xff]
        %v6885 = vld [vmem:[#allocation12 + $0x8] sm:$0xff]
        %v6886 = vld [vmem:[#allocation12 + $0x10] sm:$0xff]
        %v6887 = vld [vmem:[#allocation12 + $0x18] sm:$0xff]
        %v6888 = vld [vmem:[#allocation12 + $0x20] sm:$0xff]
        %v6889 = vld [vmem:[#allocation12 + $0x28] sm:$0xff]
        %v6890 = vld [vmem:[#allocation12 + $0x30] sm:$0xff]
        %v6891 = vld [vmem:[#allocation12 + $0x38] sm:$0xff]
        %v6892 = vld [vmem:[#allocation12 + $0x40] sm:$0xff]
        %v6893 = vld [vmem:[#allocation12 + $0x48] sm:$0xff]
        %v6894 = vld [vmem:[#allocation12 + $0x50] sm:$0xff]
        %v6895 = vld [vmem:[#allocation12 + $0x58] sm:$0xff]
        %v6896 = vld [vmem:[#allocation12 + $0x60] sm:$0xff]
        %v6897 = vld [vmem:[#allocation12 + $0x68] sm:$0xff]
        %v6898 = vld [vmem:[#allocation12 + $0x70] sm:$0xff]
        %v6899 = vld [vmem:[#allocation12 + $0x78] sm:$0xff]
        %v6900 = vld [vmem:[#allocation12 + $0x80] sm:$0xff]
        %v6901 = vld [vmem:[#allocation12 + $0x88] sm:$0xff]
        %v6902 = vld [vmem:[#allocation12 + $0x90] sm:$0xff]
        %v6903 = vld [vmem:[#allocation12 + $0x98] sm:$0xff]
        %v6904 = vld [vmem:[#allocation12 + $0xa0] sm:$0xff]
        %v6905 = vld [vmem:[#allocation12 + $0xa8] sm:$0xff]
        %v6906 = vld [vmem:[#allocation12 + $0xb0] sm:$0xff]
        %v6907 = vld [vmem:[#allocation12 + $0xb8] sm:$0xff]
        %v6908 = vld [vmem:[#allocation12 + $0xc0] sm:$0xff]
        %v6909 = vld [vmem:[#allocation12 + $0xc8] sm:$0xff]
        %v6910 = vld [vmem:[#allocation12 + $0xd0] sm:$0xff]
        %v6911 = vld [vmem:[#allocation12 + $0xd8] sm:$0xff]
        %v6912 = vld [vmem:[#allocation12 + $0xe0] sm:$0xff]
        %v6913 = vld [vmem:[#allocation12 + $0xe8] sm:$0xff]
        %v6914 = vld [vmem:[#allocation12 + $0xf0] sm:$0xff]
        %v6915 = vld [vmem:[#allocation12 + $0xf8] sm:$0xff]
        %v6916 = vld [vmem:[#allocation12 + $0x100] sm:$0xff]
        %v6917 = vld [vmem:[#allocation12 + $0x108] sm:$0xff]
        %v6918 = vld [vmem:[#allocation12 + $0x110] sm:$0xff]
        %v6919 = vld [vmem:[#allocation12 + $0x118] sm:$0xff]
        %v6920 = vld [vmem:[#allocation12 + $0x120] sm:$0xff]
        %v6921 = vld [vmem:[#allocation12 + $0x128] sm:$0xff]
        %v6922 = vld [vmem:[#allocation12 + $0x130] sm:$0xff]
        %v6923 = vld [vmem:[#allocation12 + $0x138] sm:$0xff]
        %v6924 = vld [vmem:[#allocation12 + $0x140] sm:$0xff]
        %v6925 = vld [vmem:[#allocation12 + $0x148] sm:$0xff]
        %v6926 = vld [vmem:[#allocation12 + $0x150] sm:$0xff]
        %v6927 = vld [vmem:[#allocation12 + $0x158] sm:$0xff]
        %v6928 = vld [vmem:[#allocation12 + $0x160] sm:$0xff]
        %v6929 = vld [vmem:[#allocation12 + $0x168] sm:$0xff]
        %v6930 = vld [vmem:[#allocation12 + $0x170] sm:$0xff]
        %v6931 = vld [vmem:[#allocation12 + $0x178] sm:$0xff]
        %v6932 = vld [vmem:[#allocation12 + $0x180] sm:$0xff]
        %v6933 = vld [vmem:[#allocation12 + $0x188] sm:$0xff]
        %v6934 = vld [vmem:[#allocation12 + $0x190] sm:$0xff]
        %v6935 = vld [vmem:[#allocation12 + $0x198] sm:$0xff]
        %v6936 = vld [vmem:[#allocation12 + $0x1a0] sm:$0xff]
        %v6937 = vld [vmem:[#allocation12 + $0x1a8] sm:$0xff]
        %v6938 = vld [vmem:[#allocation12 + $0x1b0] sm:$0xff]
        %v6939 = vld [vmem:[#allocation12 + $0x1b8] sm:$0xff]
        %v6940 = vld [vmem:[#allocation12 + $0x1c0] sm:$0xff]
        %v6941 = vld [vmem:[#allocation12 + $0x1c8] sm:$0xff]
        %v6942 = vld [vmem:[#allocation12 + $0x1d0] sm:$0xff]
        %v6943 = vld [vmem:[#allocation12 + $0x1d8] sm:$0xff]
        %v6944 = vld [vmem:[#allocation12 + $0x1e0] sm:$0xff]
        %v6945 = vld [vmem:[#allocation12 + $0x1e8] sm:$0xff]
        %v6946 = vld [vmem:[#allocation12 + $0x1f0] sm:$0xff]
        %v6947 = vld [vmem:[#allocation12 + $0x1f8] sm:$0xff]
        %v6948 = vld [vmem:[#allocation12 + $0x200] sm:$0xff]
        %v6949 = vld [vmem:[#allocation12 + $0x208] sm:$0xff]
        %v6950 = vld [vmem:[#allocation12 + $0x210] sm:$0xff]
        %v6951 = vld [vmem:[#allocation12 + $0x218] sm:$0xff]
        %v6952 = vld [vmem:[#allocation12 + $0x220] sm:$0xff]
        %v6953 = vld [vmem:[#allocation12 + $0x228] sm:$0xff]
        %v6954 = vld [vmem:[#allocation12 + $0x230] sm:$0xff]
        %v6955 = vld [vmem:[#allocation12 + $0x238] sm:$0xff]
        %v6956 = vld [vmem:[#allocation12 + $0x240] sm:$0xff]
        %v6957 = vld [vmem:[#allocation12 + $0x248] sm:$0xff]
        %v6958 = vld [vmem:[#allocation12 + $0x250] sm:$0xff]
        %v6959 = vld [vmem:[#allocation12 + $0x258] sm:$0xff]
        %v6960 = vld [vmem:[#allocation12 + $0x260] sm:$0xff]
        %v6961 = vld [vmem:[#allocation12 + $0x268] sm:$0xff]
        %v6962 = vld [vmem:[#allocation12 + $0x270] sm:$0xff]
        %v6963 = vld [vmem:[#allocation12 + $0x278] sm:$0xff]
        %v6964 = vld [vmem:[#allocation12 + $0x280] sm:$0xff]
        %v6965 = vld [vmem:[#allocation12 + $0x288] sm:$0xff]
        %v6966 = vld [vmem:[#allocation12 + $0x290] sm:$0xff]
        %v6967 = vld [vmem:[#allocation12 + $0x298] sm:$0xff]
        %v6968 = vld [vmem:[#allocation12 + $0x2a0] sm:$0xff]
        %v6969 = vld [vmem:[#allocation12 + $0x2a8] sm:$0xff]
        %v6970 = vld [vmem:[#allocation12 + $0x2b0] sm:$0xff]
        %v6971 = vld [vmem:[#allocation12 + $0x2b8] sm:$0xff]
        %v6972 = vld [vmem:[#allocation12 + $0x2c0] sm:$0xff]
        %v6973 = vld [vmem:[#allocation12 + $0x2c8] sm:$0xff]
        %v6974 = vld [vmem:[#allocation12 + $0x2d0] sm:$0xff]
        %v6975 = vld [vmem:[#allocation12 + $0x2d8] sm:$0xff]
        %v6976 = vld [vmem:[#allocation12 + $0x2e0] sm:$0xff]
        %v6977 = vld [vmem:[#allocation12 + $0x2e8] sm:$0xff]
        %v6978 = vld [vmem:[#allocation12 + $0x2f0] sm:$0xff]
        %v6979 = vld [vmem:[#allocation12 + $0x2f8] sm:$0xff]
        %v6980 = vld [vmem:[#allocation12 + $0x300] sm:$0xff]
        %v6981 = vld [vmem:[#allocation12 + $0x308] sm:$0xff]
        %v6982 = vld [vmem:[#allocation12 + $0x310] sm:$0xff]
        %v6983 = vld [vmem:[#allocation12 + $0x318] sm:$0xff]
        %v6984 = vld [vmem:[#allocation12 + $0x320] sm:$0xff]
        %v6985 = vld [vmem:[#allocation12 + $0x328] sm:$0xff]
        %v6986 = vld [vmem:[#allocation12 + $0x330] sm:$0xff]
        %v6987 = vld [vmem:[#allocation12 + $0x338] sm:$0xff]
        %v6988 = vld [vmem:[#allocation12 + $0x340] sm:$0xff]
        %v6989 = vld [vmem:[#allocation12 + $0x348] sm:$0xff]
        %v6990 = vld [vmem:[#allocation12 + $0x350] sm:$0xff]
        %v6991 = vld [vmem:[#allocation12 + $0x358] sm:$0xff]
        %v6992 = vld [vmem:[#allocation12 + $0x360] sm:$0xff]
        %v6993 = vld [vmem:[#allocation12 + $0x368] sm:$0xff]
        %v6994 = vld [vmem:[#allocation12 + $0x370] sm:$0xff]
        %v6995 = vld [vmem:[#allocation12 + $0x378] sm:$0xff]
        %v6996 = vld [vmem:[#allocation12 + $0x380] sm:$0xff]
        %v6997 = vld [vmem:[#allocation12 + $0x388] sm:$0xff]
        %v6998 = vld [vmem:[#allocation12 + $0x390] sm:$0xff]
        %v6999 = vld [vmem:[#allocation12 + $0x398] sm:$0xff]
        %v7000 = vld [vmem:[#allocation12 + $0x3a0] sm:$0xff]
        %v7001 = vld [vmem:[#allocation12 + $0x3a8] sm:$0xff]
        %v7002 = vld [vmem:[#allocation12 + $0x3b0] sm:$0xff]
        %v7003 = vld [vmem:[#allocation12 + $0x3b8] sm:$0xff]
        %v7004 = vld [vmem:[#allocation12 + $0x3c0] sm:$0xff]
        %v7005 = vld [vmem:[#allocation12 + $0x3c8] sm:$0xff]
        %v7006 = vld [vmem:[#allocation12 + $0x3d0] sm:$0xff]
        %v7007 = vld [vmem:[#allocation12 + $0x3d8] sm:$0xff]
        %v7008 = vld [vmem:[#allocation12 + $0x3e0] sm:$0xff]
        %v7009 = vld [vmem:[#allocation12 + $0x3e8] sm:$0xff]
        %v7010 = vld [vmem:[#allocation12 + $0x3f0] sm:$0xff]
        %v7011 = vld [vmem:[#allocation12 + $0x3f8] sm:$0xff]
        %v7012 = vld [vmem:[#allocation12 + $0x400] sm:$0xff]
        %v7013 = vld [vmem:[#allocation12 + $0x408] sm:$0xff]
        %v7014 = vld [vmem:[#allocation12 + $0x410] sm:$0xff]
        %v7015 = vld [vmem:[#allocation12 + $0x418] sm:$0xff]
        %v7016 = vld [vmem:[#allocation12 + $0x420] sm:$0xff]
        %v7017 = vld [vmem:[#allocation12 + $0x428] sm:$0xff]
        %v7018 = vld [vmem:[#allocation12 + $0x430] sm:$0xff]
        %v7019 = vld [vmem:[#allocation12 + $0x438] sm:$0xff]
        %v7020 = vld [vmem:[#allocation12 + $0x440] sm:$0xff]
        %v7021 = vld [vmem:[#allocation12 + $0x448] sm:$0xff]
        %v7022 = vld [vmem:[#allocation12 + $0x450] sm:$0xff]
        %v7023 = vld [vmem:[#allocation12 + $0x458] sm:$0xff]
        %v7024 = vld [vmem:[#allocation12 + $0x460] sm:$0xff]
        %v7025 = vld [vmem:[#allocation12 + $0x468] sm:$0xff]
        %v7026 = vld [vmem:[#allocation12 + $0x470] sm:$0xff]
        %v7027 = vld [vmem:[#allocation12 + $0x478] sm:$0xff]
        %v7028 = vld [vmem:[#allocation12 + $0x480] sm:$0xff]
        %v7029 = vld [vmem:[#allocation12 + $0x488] sm:$0xff]
        %v7030 = vld [vmem:[#allocation12 + $0x490] sm:$0xff]
        %v7031 = vld [vmem:[#allocation12 + $0x498] sm:$0xff]
        %v7032 = vld [vmem:[#allocation12 + $0x4a0] sm:$0xff]
        %v7033 = vld [vmem:[#allocation12 + $0x4a8] sm:$0xff]
        %v7034 = vld [vmem:[#allocation12 + $0x4b0] sm:$0xff]
        %v7035 = vld [vmem:[#allocation12 + $0x4b8] sm:$0xff]
        %v7036 = vld [vmem:[#allocation12 + $0x4c0] sm:$0xff]
        %v7037 = vld [vmem:[#allocation12 + $0x4c8] sm:$0xff]
        %v7038 = vld [vmem:[#allocation12 + $0x4d0] sm:$0xff]
        %v7039 = vld [vmem:[#allocation12 + $0x4d8] sm:$0xff]
        %v7040 = vld [vmem:[#allocation12 + $0x4e0] sm:$0xff]
        %v7041 = vld [vmem:[#allocation12 + $0x4e8] sm:$0xff]
        %v7042 = vld [vmem:[#allocation12 + $0x4f0] sm:$0xff]
        %v7043 = vld [vmem:[#allocation12 + $0x4f8] sm:$0xff]
        %v7044 = vld [vmem:[#allocation12 + $0x500] sm:$0xff]
        %v7045 = vld [vmem:[#allocation12 + $0x508] sm:$0xff]
        %v7046 = vld [vmem:[#allocation12 + $0x510] sm:$0xff]
        %v7047 = vld [vmem:[#allocation12 + $0x518] sm:$0xff]
        %v7048 = vld [vmem:[#allocation12 + $0x520] sm:$0xff]
        %v7049 = vld [vmem:[#allocation12 + $0x528] sm:$0xff]
        %v7050 = vld [vmem:[#allocation12 + $0x530] sm:$0xff]
        %v7051 = vld [vmem:[#allocation12 + $0x538] sm:$0xff]
        %v7052 = vld [vmem:[#allocation12 + $0x540] sm:$0xff]
        %v7053 = vld [vmem:[#allocation12 + $0x548] sm:$0xff]
        %v7054 = vld [vmem:[#allocation12 + $0x550] sm:$0xff]
        %v7055 = vld [vmem:[#allocation12 + $0x558] sm:$0xff]
        %v7056 = vld [vmem:[#allocation12 + $0x560] sm:$0xff]
        %v7057 = vld [vmem:[#allocation12 + $0x568] sm:$0xff]
        %v7058 = vld [vmem:[#allocation12 + $0x570] sm:$0xff]
        %v7059 = vld [vmem:[#allocation12 + $0x578] sm:$0xff]
        %v7060 = vld [vmem:[#allocation12 + $0x580] sm:$0xff]
        %v7061 = vld [vmem:[#allocation12 + $0x588] sm:$0xff]
        %v7062 = vld [vmem:[#allocation12 + $0x590] sm:$0xff]
        %v7063 = vld [vmem:[#allocation12 + $0x598] sm:$0xff]
        %v7064 = vld [vmem:[#allocation12 + $0x5a0] sm:$0xff]
        %v7065 = vld [vmem:[#allocation12 + $0x5a8] sm:$0xff]
        %v7066 = vld [vmem:[#allocation12 + $0x5b0] sm:$0xff]
        %v7067 = vld [vmem:[#allocation12 + $0x5b8] sm:$0xff]
        %v7068 = vld [vmem:[#allocation12 + $0x5c0] sm:$0xff]
        %v7069 = vld [vmem:[#allocation12 + $0x5c8] sm:$0xff]
        %v7070 = vld [vmem:[#allocation12 + $0x5d0] sm:$0xff]
        %v7071 = vld [vmem:[#allocation12 + $0x5d8] sm:$0xff]
        %v7072 = vld [vmem:[#allocation12 + $0x5e0] sm:$0xff]
        %v7073 = vld [vmem:[#allocation12 + $0x5e8] sm:$0xff]
        %v7074 = vld [vmem:[#allocation12 + $0x5f0] sm:$0xff]
        %v7075 = vld [vmem:[#allocation12 + $0x5f8] sm:$0xff]
        %v7076 = vld [vmem:[#allocation12 + $0x600] sm:$0xff]
        %v7077 = vld [vmem:[#allocation12 + $0x608] sm:$0xff]
        %v7078 = vld [vmem:[#allocation12 + $0x610] sm:$0xff]
        %v7079 = vld [vmem:[#allocation12 + $0x618] sm:$0xff]
        %v7080 = vld [vmem:[#allocation12 + $0x620] sm:$0xff]
        %v7081 = vld [vmem:[#allocation12 + $0x628] sm:$0xff]
        %v7082 = vld [vmem:[#allocation12 + $0x630] sm:$0xff]
        %v7083 = vld [vmem:[#allocation12 + $0x638] sm:$0xff]
        %v7084 = vld [vmem:[#allocation12 + $0x640] sm:$0xff]
        %v7085 = vld [vmem:[#allocation12 + $0x648] sm:$0xff]
        %v7086 = vld [vmem:[#allocation12 + $0x650] sm:$0xff]
        %v7087 = vld [vmem:[#allocation12 + $0x658] sm:$0xff]
        %v7088 = vld [vmem:[#allocation12 + $0x660] sm:$0xff]
        %v7089 = vld [vmem:[#allocation12 + $0x668] sm:$0xff]
        %v7090 = vld [vmem:[#allocation12 + $0x670] sm:$0xff]
        %v7091 = vld [vmem:[#allocation12 + $0x678] sm:$0xff]
        %v7092 = vld [vmem:[#allocation12 + $0x680] sm:$0xff]
        %v7093 = vld [vmem:[#allocation12 + $0x688] sm:$0xff]
        %v7094 = vld [vmem:[#allocation12 + $0x690] sm:$0xff]
        %v7095 = vld [vmem:[#allocation12 + $0x698] sm:$0xff]
        %v7096 = vld [vmem:[#allocation12 + $0x6a0] sm:$0xff]
        %v7097 = vld [vmem:[#allocation12 + $0x6a8] sm:$0xff]
        %v7098 = vld [vmem:[#allocation12 + $0x6b0] sm:$0xff]
        %v7099 = vld [vmem:[#allocation12 + $0x6b8] sm:$0xff]
        %v7100 = vld [vmem:[#allocation12 + $0x6c0] sm:$0xff]
        %v7101 = vld [vmem:[#allocation12 + $0x6c8] sm:$0xff]
        %v7102 = vld [vmem:[#allocation12 + $0x6d0] sm:$0xff]
        %v7103 = vld [vmem:[#allocation12 + $0x6d8] sm:$0xff]
        %v7104 = vld [vmem:[#allocation12 + $0x6e0] sm:$0xff]
        %v7105 = vld [vmem:[#allocation12 + $0x6e8] sm:$0xff]
        %v7106 = vld [vmem:[#allocation12 + $0x6f0] sm:$0xff]
        %v7107 = vld [vmem:[#allocation12 + $0x6f8] sm:$0xff]
        %v7108 = vld [vmem:[#allocation12 + $0x700] sm:$0xff]
        %v7109 = vld [vmem:[#allocation12 + $0x708] sm:$0xff]
        %v7110 = vld [vmem:[#allocation12 + $0x710] sm:$0xff]
        %v7111 = vld [vmem:[#allocation12 + $0x718] sm:$0xff]
        %v7112 = vld [vmem:[#allocation12 + $0x720] sm:$0xff]
        %v7113 = vld [vmem:[#allocation12 + $0x728] sm:$0xff]
        %v7114 = vld [vmem:[#allocation12 + $0x730] sm:$0xff]
        %v7115 = vld [vmem:[#allocation12 + $0x738] sm:$0xff]
        %v7116 = vld [vmem:[#allocation12 + $0x740] sm:$0xff]
        %v7117 = vld [vmem:[#allocation12 + $0x748] sm:$0xff]
        %v7118 = vld [vmem:[#allocation12 + $0x750] sm:$0xff]
        %v7119 = vld [vmem:[#allocation12 + $0x758] sm:$0xff]
        %v7120 = vld [vmem:[#allocation12 + $0x760] sm:$0xff]
        %v7121 = vld [vmem:[#allocation12 + $0x768] sm:$0xff]
        %v7122 = vld [vmem:[#allocation12 + $0x770] sm:$0xff]
        %v7123 = vld [vmem:[#allocation12 + $0x778] sm:$0xff]
        %v7124 = vld [vmem:[#allocation12 + $0x780] sm:$0xff]
        %v7125 = vld [vmem:[#allocation12 + $0x788] sm:$0xff]
        %v7126 = vld [vmem:[#allocation12 + $0x790] sm:$0xff]
        %v7127 = vld [vmem:[#allocation12 + $0x798] sm:$0xff]
        %v7128 = vld [vmem:[#allocation12 + $0x7a0] sm:$0xff]
        %v7129 = vld [vmem:[#allocation12 + $0x7a8] sm:$0xff]
        %v7130 = vld [vmem:[#allocation12 + $0x7b0] sm:$0xff]
        %v7131 = vld [vmem:[#allocation12 + $0x7b8] sm:$0xff]
        %v7132 = vld [vmem:[#allocation12 + $0x7c0] sm:$0xff]
        %v7133 = vld [vmem:[#allocation12 + $0x7c8] sm:$0xff]
        %v7134 = vld [vmem:[#allocation12 + $0x7d0] sm:$0xff]
        %v7135 = vld [vmem:[#allocation12 + $0x7d8] sm:$0xff]
        %v7136 = vld [vmem:[#allocation12 + $0x7e0] sm:$0xff]
        %v7137 = vld [vmem:[#allocation12 + $0x7e8] sm:$0xff]
        %v7138 = vld [vmem:[#allocation12 + $0x7f0] sm:$0xff]
        %v7139 = vld [vmem:[#allocation12 + $0x7f8] sm:$0xff]
        %v7140 = vld [vmem:[%s12] sm:$0xf]
        %v7142 = vlaneseq
        %v7143 = vshrl.u32 %v7142, 7
        %v7144 = vsub.s32 0, %v7143
        %v7145 = vrot.slane %v7140, %v7144
        %v7146 = vlaneseq
        %v7147 = vshrl.u32 %v7146, 7
        %v7148 = vsub.s32 1, %v7147
        %v7149 = vrot.slane %v7140, %v7148
        %v7150 = vlaneseq
        %v7151 = vshrl.u32 %v7150, 7
        %v7152 = vsub.s32 2, %v7151
        %v7153 = vrot.slane %v7140, %v7152
        %v7154 = vlaneseq
        %v7155 = vshrl.u32 %v7154, 7
        %v7156 = vsub.s32 3, %v7155
        %v7157 = vrot.slane %v7140, %v7156
        %v7194 = vunpack.c.l.b16 %v6852
        %v7195 = vunpack.c.l.b16 %v6853
        %v7196 = vunpack.c.l.b16 %v6854
        %v7197 = vunpack.c.l.b16 %v6855
        %v7198 = vunpack.c.l.b16 %v6856
        %v7199 = vunpack.c.l.b16 %v6857
        %v7200 = vunpack.c.l.b16 %v6858
        %v7201 = vunpack.c.l.b16 %v6859
        %v7202 = vunpack.c.l.b16 %v6860
        %v7203 = vunpack.c.l.b16 %v6861
        %v7204 = vunpack.c.l.b16 %v6862
        %v7205 = vunpack.c.l.b16 %v6863
        %v7206 = vunpack.c.l.b16 %v6864
        %v7207 = vunpack.c.l.b16 %v6865
        %v7208 = vunpack.c.l.b16 %v6866
        %v7209 = vunpack.c.l.b16 %v6867
        %v7210 = vunpack.c.l.b16 %v6868
        %v7211 = vunpack.c.l.b16 %v6869
        %v7212 = vunpack.c.l.b16 %v6870
        %v7213 = vunpack.c.l.b16 %v6871
        %v7214 = vunpack.c.l.b16 %v6872
        %v7215 = vunpack.c.l.b16 %v6873
        %v7216 = vunpack.c.l.b16 %v6874
        %v7217 = vunpack.c.l.b16 %v6875
        %v7218 = vunpack.c.l.b16 %v6876
        %v7219 = vunpack.c.l.b16 %v6877
        %v7220 = vunpack.c.l.b16 %v6878
        %v7221 = vunpack.c.l.b16 %v6879
        %v7222 = vunpack.c.l.b16 %v6880
        %v7223 = vunpack.c.l.b16 %v6881
        %v7224 = vunpack.c.l.b16 %v6882
        %v7225 = vunpack.c.l.b16 %v6883
        %vm7226 = vcmask 1041409
        %v7227 = vsel %vm7226, %v7202, %v7194
        %vm7228 = vcmask 1042434
        %v7229 = vsel %vm7228, %v7210, %v7227
        %vm7230 = vcmask 1043459
        %v7231 = vsel %vm7230, %v7218, %v7229
        %v7232 = vsel %vm7226, %v7203, %v7195
        %v7233 = vsel %vm7228, %v7211, %v7232
        %v7234 = vsel %vm7230, %v7219, %v7233
        %v7235 = vsel %vm7226, %v7204, %v7196
        %v7236 = vsel %vm7228, %v7212, %v7235
        %v7237 = vsel %vm7230, %v7220, %v7236
        %v7238 = vsel %vm7226, %v7205, %v7197
        %v7239 = vsel %vm7228, %v7213, %v7238
        %v7240 = vsel %vm7230, %v7221, %v7239
        %v7241 = vsel %vm7226, %v7206, %v7198
        %v7242 = vsel %vm7228, %v7214, %v7241
        %v7243 = vsel %vm7230, %v7222, %v7242
        %v7244 = vsel %vm7226, %v7207, %v7199
        %v7245 = vsel %vm7228, %v7215, %v7244
        %v7246 = vsel %vm7230, %v7223, %v7245
        %v7247 = vsel %vm7226, %v7208, %v7200
        %v7248 = vsel %vm7228, %v7216, %v7247
        %v7249 = vsel %vm7230, %v7224, %v7248
        %v7250 = vsel %vm7226, %v7209, %v7201
        %v7251 = vsel %vm7228, %v7217, %v7250
        %v7252 = vsel %vm7230, %v7225, %v7251
        %v7253 = vpack.c.b16 %v7231, %v7231
        %v7254 = vpack.c.b16 %v7234, %v7234
        %v7255 = vpack.c.b16 %v7237, %v7237
        %v7256 = vpack.c.b16 %v7240, %v7240
        %v7257 = vpack.c.b16 %v7243, %v7243
        %v7258 = vpack.c.b16 %v7246, %v7246
        %v7259 = vpack.c.b16 %v7249, %v7249
        %v7260 = vpack.c.b16 %v7252, %v7252
        %v7525 = vunpack.c.l.b16 %v6884
        %v7526 = vunpack.c.h.b16 %v6884
        %v7527 = vunpack.c.l.b16 %v6885
        %v7528 = vunpack.c.h.b16 %v6885
        %v7529 = vunpack.c.l.b16 %v6886
        %v7530 = vunpack.c.h.b16 %v6886
        %v7531 = vunpack.c.l.b16 %v6887
        %v7532 = vunpack.c.h.b16 %v6887
        %v7533 = vunpack.c.l.b16 %v6888
        %v7534 = vunpack.c.h.b16 %v6888
        %v7535 = vunpack.c.l.b16 %v6889
        %v7536 = vunpack.c.h.b16 %v6889
        %v7537 = vunpack.c.l.b16 %v6890
        %v7538 = vunpack.c.h.b16 %v6890
        %v7539 = vunpack.c.l.b16 %v6891
        %v7540 = vunpack.c.h.b16 %v6891
        %v7541 = vunpack.c.l.b16 %v6892
        %v7542 = vunpack.c.h.b16 %v6892
        %v7543 = vunpack.c.l.b16 %v6893
        %v7544 = vunpack.c.h.b16 %v6893
        %v7545 = vunpack.c.l.b16 %v6894
        %v7546 = vunpack.c.h.b16 %v6894
        %v7547 = vunpack.c.l.b16 %v6895
        %v7548 = vunpack.c.h.b16 %v6895
        %v7549 = vunpack.c.l.b16 %v6896
        %v7550 = vunpack.c.h.b16 %v6896
        %v7551 = vunpack.c.l.b16 %v6897
        %v7552 = vunpack.c.h.b16 %v6897
        %v7553 = vunpack.c.l.b16 %v6898
        %v7554 = vunpack.c.h.b16 %v6898
        %v7555 = vunpack.c.l.b16 %v6899
        %v7556 = vunpack.c.h.b16 %v6899
        %v7557 = vunpack.c.l.b16 %v6900
        %v7558 = vunpack.c.h.b16 %v6900
        %v7559 = vunpack.c.l.b16 %v6901
        %v7560 = vunpack.c.h.b16 %v6901
        %v7561 = vunpack.c.l.b16 %v6902
        %v7562 = vunpack.c.h.b16 %v6902
        %v7563 = vunpack.c.l.b16 %v6903
        %v7564 = vunpack.c.h.b16 %v6903
        %v7565 = vunpack.c.l.b16 %v6904
        %v7566 = vunpack.c.h.b16 %v6904
        %v7567 = vunpack.c.l.b16 %v6905
        %v7568 = vunpack.c.h.b16 %v6905
        %v7569 = vunpack.c.l.b16 %v6906
        %v7570 = vunpack.c.h.b16 %v6906
        %v7571 = vunpack.c.l.b16 %v6907
        %v7572 = vunpack.c.h.b16 %v6907
        %v7573 = vunpack.c.l.b16 %v6908
        %v7574 = vunpack.c.h.b16 %v6908
        %v7575 = vunpack.c.l.b16 %v6909
        %v7576 = vunpack.c.h.b16 %v6909
        %v7577 = vunpack.c.l.b16 %v6910
        %v7578 = vunpack.c.h.b16 %v6910
        %v7579 = vunpack.c.l.b16 %v6911
        %v7580 = vunpack.c.h.b16 %v6911
        %v7581 = vunpack.c.l.b16 %v6912
        %v7582 = vunpack.c.h.b16 %v6912
        %v7583 = vunpack.c.l.b16 %v6913
        %v7584 = vunpack.c.h.b16 %v6913
        %v7585 = vunpack.c.l.b16 %v6914
        %v7586 = vunpack.c.h.b16 %v6914
        %v7587 = vunpack.c.l.b16 %v6915
        %v7588 = vunpack.c.h.b16 %v6915
        %v7589 = vunpack.c.l.b16 %v6916
        %v7590 = vunpack.c.h.b16 %v6916
        %v7591 = vunpack.c.l.b16 %v6917
        %v7592 = vunpack.c.h.b16 %v6917
        %v7593 = vunpack.c.l.b16 %v6918
        %v7594 = vunpack.c.h.b16 %v6918
        %v7595 = vunpack.c.l.b16 %v6919
        %v7596 = vunpack.c.h.b16 %v6919
        %v7597 = vunpack.c.l.b16 %v6920
        %v7598 = vunpack.c.h.b16 %v6920
        %v7599 = vunpack.c.l.b16 %v6921
        %v7600 = vunpack.c.h.b16 %v6921
        %v7601 = vunpack.c.l.b16 %v6922
        %v7602 = vunpack.c.h.b16 %v6922
        %v7603 = vunpack.c.l.b16 %v6923
        %v7604 = vunpack.c.h.b16 %v6923
        %v7605 = vunpack.c.l.b16 %v6924
        %v7606 = vunpack.c.h.b16 %v6924
        %v7607 = vunpack.c.l.b16 %v6925
        %v7608 = vunpack.c.h.b16 %v6925
        %v7609 = vunpack.c.l.b16 %v6926
        %v7610 = vunpack.c.h.b16 %v6926
        %v7611 = vunpack.c.l.b16 %v6927
        %v7612 = vunpack.c.h.b16 %v6927
        %v7613 = vunpack.c.l.b16 %v6928
        %v7614 = vunpack.c.h.b16 %v6928
        %v7615 = vunpack.c.l.b16 %v6929
        %v7616 = vunpack.c.h.b16 %v6929
        %v7617 = vunpack.c.l.b16 %v6930
        %v7618 = vunpack.c.h.b16 %v6930
        %v7619 = vunpack.c.l.b16 %v6931
        %v7620 = vunpack.c.h.b16 %v6931
        %v7621 = vunpack.c.l.b16 %v6932
        %v7622 = vunpack.c.h.b16 %v6932
        %v7623 = vunpack.c.l.b16 %v6933
        %v7624 = vunpack.c.h.b16 %v6933
        %v7625 = vunpack.c.l.b16 %v6934
        %v7626 = vunpack.c.h.b16 %v6934
        %v7627 = vunpack.c.l.b16 %v6935
        %v7628 = vunpack.c.h.b16 %v6935
        %v7629 = vunpack.c.l.b16 %v6936
        %v7630 = vunpack.c.h.b16 %v6936
        %v7631 = vunpack.c.l.b16 %v6937
        %v7632 = vunpack.c.h.b16 %v6937
        %v7633 = vunpack.c.l.b16 %v6938
        %v7634 = vunpack.c.h.b16 %v6938
        %v7635 = vunpack.c.l.b16 %v6939
        %v7636 = vunpack.c.h.b16 %v6939
        %v7637 = vunpack.c.l.b16 %v6940
        %v7638 = vunpack.c.h.b16 %v6940
        %v7639 = vunpack.c.l.b16 %v6941
        %v7640 = vunpack.c.h.b16 %v6941
        %v7641 = vunpack.c.l.b16 %v6942
        %v7642 = vunpack.c.h.b16 %v6942
        %v7643 = vunpack.c.l.b16 %v6943
        %v7644 = vunpack.c.h.b16 %v6943
        %v7645 = vunpack.c.l.b16 %v6944
        %v7646 = vunpack.c.h.b16 %v6944
        %v7647 = vunpack.c.l.b16 %v6945
        %v7648 = vunpack.c.h.b16 %v6945
        %v7649 = vunpack.c.l.b16 %v6946
        %v7650 = vunpack.c.h.b16 %v6946
        %v7651 = vunpack.c.l.b16 %v6947
        %v7652 = vunpack.c.h.b16 %v6947
        %v7653 = vunpack.c.l.b16 %v6948
        %v7654 = vunpack.c.h.b16 %v6948
        %v7655 = vunpack.c.l.b16 %v6949
        %v7656 = vunpack.c.h.b16 %v6949
        %v7657 = vunpack.c.l.b16 %v6950
        %v7658 = vunpack.c.h.b16 %v6950
        %v7659 = vunpack.c.l.b16 %v6951
        %v7660 = vunpack.c.h.b16 %v6951
        %v7661 = vunpack.c.l.b16 %v6952
        %v7662 = vunpack.c.h.b16 %v6952
        %v7663 = vunpack.c.l.b16 %v6953
        %v7664 = vunpack.c.h.b16 %v6953
        %v7665 = vunpack.c.l.b16 %v6954
        %v7666 = vunpack.c.h.b16 %v6954
        %v7667 = vunpack.c.l.b16 %v6955
        %v7668 = vunpack.c.h.b16 %v6955
        %v7669 = vunpack.c.l.b16 %v6956
        %v7670 = vunpack.c.h.b16 %v6956
        %v7671 = vunpack.c.l.b16 %v6957
        %v7672 = vunpack.c.h.b16 %v6957
        %v7673 = vunpack.c.l.b16 %v6958
        %v7674 = vunpack.c.h.b16 %v6958
        %v7675 = vunpack.c.l.b16 %v6959
        %v7676 = vunpack.c.h.b16 %v6959
        %v7677 = vunpack.c.l.b16 %v6960
        %v7678 = vunpack.c.h.b16 %v6960
        %v7679 = vunpack.c.l.b16 %v6961
        %v7680 = vunpack.c.h.b16 %v6961
        %v7681 = vunpack.c.l.b16 %v6962
        %v7682 = vunpack.c.h.b16 %v6962
        %v7683 = vunpack.c.l.b16 %v6963
        %v7684 = vunpack.c.h.b16 %v6963
        %v7685 = vunpack.c.l.b16 %v6964
        %v7686 = vunpack.c.h.b16 %v6964
        %v7687 = vunpack.c.l.b16 %v6965
        %v7688 = vunpack.c.h.b16 %v6965
        %v7689 = vunpack.c.l.b16 %v6966
        %v7690 = vunpack.c.h.b16 %v6966
        %v7691 = vunpack.c.l.b16 %v6967
        %v7692 = vunpack.c.h.b16 %v6967
        %v7693 = vunpack.c.l.b16 %v6968
        %v7694 = vunpack.c.h.b16 %v6968
        %v7695 = vunpack.c.l.b16 %v6969
        %v7696 = vunpack.c.h.b16 %v6969
        %v7697 = vunpack.c.l.b16 %v6970
        %v7698 = vunpack.c.h.b16 %v6970
        %v7699 = vunpack.c.l.b16 %v6971
        %v7700 = vunpack.c.h.b16 %v6971
        %v7701 = vunpack.c.l.b16 %v6972
        %v7702 = vunpack.c.h.b16 %v6972
        %v7703 = vunpack.c.l.b16 %v6973
        %v7704 = vunpack.c.h.b16 %v6973
        %v7705 = vunpack.c.l.b16 %v6974
        %v7706 = vunpack.c.h.b16 %v6974
        %v7707 = vunpack.c.l.b16 %v6975
        %v7708 = vunpack.c.h.b16 %v6975
        %v7709 = vunpack.c.l.b16 %v6976
        %v7710 = vunpack.c.h.b16 %v6976
        %v7711 = vunpack.c.l.b16 %v6977
        %v7712 = vunpack.c.h.b16 %v6977
        %v7713 = vunpack.c.l.b16 %v6978
        %v7714 = vunpack.c.h.b16 %v6978
        %v7715 = vunpack.c.l.b16 %v6979
        %v7716 = vunpack.c.h.b16 %v6979
        %v7717 = vunpack.c.l.b16 %v6980
        %v7718 = vunpack.c.h.b16 %v6980
        %v7719 = vunpack.c.l.b16 %v6981
        %v7720 = vunpack.c.h.b16 %v6981
        %v7721 = vunpack.c.l.b16 %v6982
        %v7722 = vunpack.c.h.b16 %v6982
        %v7723 = vunpack.c.l.b16 %v6983
        %v7724 = vunpack.c.h.b16 %v6983
        %v7725 = vunpack.c.l.b16 %v6984
        %v7726 = vunpack.c.h.b16 %v6984
        %v7727 = vunpack.c.l.b16 %v6985
        %v7728 = vunpack.c.h.b16 %v6985
        %v7729 = vunpack.c.l.b16 %v6986
        %v7730 = vunpack.c.h.b16 %v6986
        %v7731 = vunpack.c.l.b16 %v6987
        %v7732 = vunpack.c.h.b16 %v6987
        %v7733 = vunpack.c.l.b16 %v6988
        %v7734 = vunpack.c.h.b16 %v6988
        %v7735 = vunpack.c.l.b16 %v6989
        %v7736 = vunpack.c.h.b16 %v6989
        %v7737 = vunpack.c.l.b16 %v6990
        %v7738 = vunpack.c.h.b16 %v6990
        %v7739 = vunpack.c.l.b16 %v6991
        %v7740 = vunpack.c.h.b16 %v6991
        %v7741 = vunpack.c.l.b16 %v6992
        %v7742 = vunpack.c.h.b16 %v6992
        %v7743 = vunpack.c.l.b16 %v6993
        %v7744 = vunpack.c.h.b16 %v6993
        %v7745 = vunpack.c.l.b16 %v6994
        %v7746 = vunpack.c.h.b16 %v6994
        %v7747 = vunpack.c.l.b16 %v6995
        %v7748 = vunpack.c.h.b16 %v6995
        %v7749 = vunpack.c.l.b16 %v6996
        %v7750 = vunpack.c.h.b16 %v6996
        %v7751 = vunpack.c.l.b16 %v6997
        %v7752 = vunpack.c.h.b16 %v6997
        %v7753 = vunpack.c.l.b16 %v6998
        %v7754 = vunpack.c.h.b16 %v6998
        %v7755 = vunpack.c.l.b16 %v6999
        %v7756 = vunpack.c.h.b16 %v6999
        %v7757 = vunpack.c.l.b16 %v7000
        %v7758 = vunpack.c.h.b16 %v7000
        %v7759 = vunpack.c.l.b16 %v7001
        %v7760 = vunpack.c.h.b16 %v7001
        %v7761 = vunpack.c.l.b16 %v7002
        %v7762 = vunpack.c.h.b16 %v7002
        %v7763 = vunpack.c.l.b16 %v7003
        %v7764 = vunpack.c.h.b16 %v7003
        %v7765 = vunpack.c.l.b16 %v7004
        %v7766 = vunpack.c.h.b16 %v7004
        %v7767 = vunpack.c.l.b16 %v7005
        %v7768 = vunpack.c.h.b16 %v7005
        %v7769 = vunpack.c.l.b16 %v7006
        %v7770 = vunpack.c.h.b16 %v7006
        %v7771 = vunpack.c.l.b16 %v7007
        %v7772 = vunpack.c.h.b16 %v7007
        %v7773 = vunpack.c.l.b16 %v7008
        %v7774 = vunpack.c.h.b16 %v7008
        %v7775 = vunpack.c.l.b16 %v7009
        %v7776 = vunpack.c.h.b16 %v7009
        %v7777 = vunpack.c.l.b16 %v7010
        %v7778 = vunpack.c.h.b16 %v7010
        %v7779 = vunpack.c.l.b16 %v7011
        %v7780 = vunpack.c.h.b16 %v7011
        %v7781 = vunpack.c.l.b16 %v7012
        %v7782 = vunpack.c.h.b16 %v7012
        %v7783 = vunpack.c.l.b16 %v7013
        %v7784 = vunpack.c.h.b16 %v7013
        %v7785 = vunpack.c.l.b16 %v7014
        %v7786 = vunpack.c.h.b16 %v7014
        %v7787 = vunpack.c.l.b16 %v7015
        %v7788 = vunpack.c.h.b16 %v7015
        %v7789 = vunpack.c.l.b16 %v7016
        %v7790 = vunpack.c.h.b16 %v7016
        %v7791 = vunpack.c.l.b16 %v7017
        %v7792 = vunpack.c.h.b16 %v7017
        %v7793 = vunpack.c.l.b16 %v7018
        %v7794 = vunpack.c.h.b16 %v7018
        %v7795 = vunpack.c.l.b16 %v7019
        %v7796 = vunpack.c.h.b16 %v7019
        %v7797 = vunpack.c.l.b16 %v7020
        %v7798 = vunpack.c.h.b16 %v7020
        %v7799 = vunpack.c.l.b16 %v7021
        %v7800 = vunpack.c.h.b16 %v7021
        %v7801 = vunpack.c.l.b16 %v7022
        %v7802 = vunpack.c.h.b16 %v7022
        %v7803 = vunpack.c.l.b16 %v7023
        %v7804 = vunpack.c.h.b16 %v7023
        %v7805 = vunpack.c.l.b16 %v7024
        %v7806 = vunpack.c.h.b16 %v7024
        %v7807 = vunpack.c.l.b16 %v7025
        %v7808 = vunpack.c.h.b16 %v7025
        %v7809 = vunpack.c.l.b16 %v7026
        %v7810 = vunpack.c.h.b16 %v7026
        %v7811 = vunpack.c.l.b16 %v7027
        %v7812 = vunpack.c.h.b16 %v7027
        %v7813 = vunpack.c.l.b16 %v7028
        %v7814 = vunpack.c.h.b16 %v7028
        %v7815 = vunpack.c.l.b16 %v7029
        %v7816 = vunpack.c.h.b16 %v7029
        %v7817 = vunpack.c.l.b16 %v7030
        %v7818 = vunpack.c.h.b16 %v7030
        %v7819 = vunpack.c.l.b16 %v7031
        %v7820 = vunpack.c.h.b16 %v7031
        %v7821 = vunpack.c.l.b16 %v7032
        %v7822 = vunpack.c.h.b16 %v7032
        %v7823 = vunpack.c.l.b16 %v7033
        %v7824 = vunpack.c.h.b16 %v7033
        %v7825 = vunpack.c.l.b16 %v7034
        %v7826 = vunpack.c.h.b16 %v7034
        %v7827 = vunpack.c.l.b16 %v7035
        %v7828 = vunpack.c.h.b16 %v7035
        %v7829 = vunpack.c.l.b16 %v7036
        %v7830 = vunpack.c.h.b16 %v7036
        %v7831 = vunpack.c.l.b16 %v7037
        %v7832 = vunpack.c.h.b16 %v7037
        %v7833 = vunpack.c.l.b16 %v7038
        %v7834 = vunpack.c.h.b16 %v7038
        %v7835 = vunpack.c.l.b16 %v7039
        %v7836 = vunpack.c.h.b16 %v7039
        %v7837 = vunpack.c.l.b16 %v7040
        %v7838 = vunpack.c.h.b16 %v7040
        %v7839 = vunpack.c.l.b16 %v7041
        %v7840 = vunpack.c.h.b16 %v7041
        %v7841 = vunpack.c.l.b16 %v7042
        %v7842 = vunpack.c.h.b16 %v7042
        %v7843 = vunpack.c.l.b16 %v7043
        %v7844 = vunpack.c.h.b16 %v7043
        %v7845 = vunpack.c.l.b16 %v7044
        %v7846 = vunpack.c.h.b16 %v7044
        %v7847 = vunpack.c.l.b16 %v7045
        %v7848 = vunpack.c.h.b16 %v7045
        %v7849 = vunpack.c.l.b16 %v7046
        %v7850 = vunpack.c.h.b16 %v7046
        %v7851 = vunpack.c.l.b16 %v7047
        %v7852 = vunpack.c.h.b16 %v7047
        %v7853 = vunpack.c.l.b16 %v7048
        %v7854 = vunpack.c.h.b16 %v7048
        %v7855 = vunpack.c.l.b16 %v7049
        %v7856 = vunpack.c.h.b16 %v7049
        %v7857 = vunpack.c.l.b16 %v7050
        %v7858 = vunpack.c.h.b16 %v7050
        %v7859 = vunpack.c.l.b16 %v7051
        %v7860 = vunpack.c.h.b16 %v7051
        %v7861 = vunpack.c.l.b16 %v7052
        %v7862 = vunpack.c.h.b16 %v7052
        %v7863 = vunpack.c.l.b16 %v7053
        %v7864 = vunpack.c.h.b16 %v7053
        %v7865 = vunpack.c.l.b16 %v7054
        %v7866 = vunpack.c.h.b16 %v7054
        %v7867 = vunpack.c.l.b16 %v7055
        %v7868 = vunpack.c.h.b16 %v7055
        %v7869 = vunpack.c.l.b16 %v7056
        %v7870 = vunpack.c.h.b16 %v7056
        %v7871 = vunpack.c.l.b16 %v7057
        %v7872 = vunpack.c.h.b16 %v7057
        %v7873 = vunpack.c.l.b16 %v7058
        %v7874 = vunpack.c.h.b16 %v7058
        %v7875 = vunpack.c.l.b16 %v7059
        %v7876 = vunpack.c.h.b16 %v7059
        %v7877 = vunpack.c.l.b16 %v7060
        %v7878 = vunpack.c.h.b16 %v7060
        %v7879 = vunpack.c.l.b16 %v7061
        %v7880 = vunpack.c.h.b16 %v7061
        %v7881 = vunpack.c.l.b16 %v7062
        %v7882 = vunpack.c.h.b16 %v7062
        %v7883 = vunpack.c.l.b16 %v7063
        %v7884 = vunpack.c.h.b16 %v7063
        %v7885 = vunpack.c.l.b16 %v7064
        %v7886 = vunpack.c.h.b16 %v7064
        %v7887 = vunpack.c.l.b16 %v7065
        %v7888 = vunpack.c.h.b16 %v7065
        %v7889 = vunpack.c.l.b16 %v7066
        %v7890 = vunpack.c.h.b16 %v7066
        %v7891 = vunpack.c.l.b16 %v7067
        %v7892 = vunpack.c.h.b16 %v7067
        %v7893 = vunpack.c.l.b16 %v7068
        %v7894 = vunpack.c.h.b16 %v7068
        %v7895 = vunpack.c.l.b16 %v7069
        %v7896 = vunpack.c.h.b16 %v7069
        %v7897 = vunpack.c.l.b16 %v7070
        %v7898 = vunpack.c.h.b16 %v7070
        %v7899 = vunpack.c.l.b16 %v7071
        %v7900 = vunpack.c.h.b16 %v7071
        %v7901 = vunpack.c.l.b16 %v7072
        %v7902 = vunpack.c.h.b16 %v7072
        %v7903 = vunpack.c.l.b16 %v7073
        %v7904 = vunpack.c.h.b16 %v7073
        %v7905 = vunpack.c.l.b16 %v7074
        %v7906 = vunpack.c.h.b16 %v7074
        %v7907 = vunpack.c.l.b16 %v7075
        %v7908 = vunpack.c.h.b16 %v7075
        %v7909 = vunpack.c.l.b16 %v7076
        %v7910 = vunpack.c.h.b16 %v7076
        %v7911 = vunpack.c.l.b16 %v7077
        %v7912 = vunpack.c.h.b16 %v7077
        %v7913 = vunpack.c.l.b16 %v7078
        %v7914 = vunpack.c.h.b16 %v7078
        %v7915 = vunpack.c.l.b16 %v7079
        %v7916 = vunpack.c.h.b16 %v7079
        %v7917 = vunpack.c.l.b16 %v7080
        %v7918 = vunpack.c.h.b16 %v7080
        %v7919 = vunpack.c.l.b16 %v7081
        %v7920 = vunpack.c.h.b16 %v7081
        %v7921 = vunpack.c.l.b16 %v7082
        %v7922 = vunpack.c.h.b16 %v7082
        %v7923 = vunpack.c.l.b16 %v7083
        %v7924 = vunpack.c.h.b16 %v7083
        %v7925 = vunpack.c.l.b16 %v7084
        %v7926 = vunpack.c.h.b16 %v7084
        %v7927 = vunpack.c.l.b16 %v7085
        %v7928 = vunpack.c.h.b16 %v7085
        %v7929 = vunpack.c.l.b16 %v7086
        %v7930 = vunpack.c.h.b16 %v7086
        %v7931 = vunpack.c.l.b16 %v7087
        %v7932 = vunpack.c.h.b16 %v7087
        %v7933 = vunpack.c.l.b16 %v7088
        %v7934 = vunpack.c.h.b16 %v7088
        %v7935 = vunpack.c.l.b16 %v7089
        %v7936 = vunpack.c.h.b16 %v7089
        %v7937 = vunpack.c.l.b16 %v7090
        %v7938 = vunpack.c.h.b16 %v7090
        %v7939 = vunpack.c.l.b16 %v7091
        %v7940 = vunpack.c.h.b16 %v7091
        %v7941 = vunpack.c.l.b16 %v7092
        %v7942 = vunpack.c.h.b16 %v7092
        %v7943 = vunpack.c.l.b16 %v7093
        %v7944 = vunpack.c.h.b16 %v7093
        %v7945 = vunpack.c.l.b16 %v7094
        %v7946 = vunpack.c.h.b16 %v7094
        %v7947 = vunpack.c.l.b16 %v7095
        %v7948 = vunpack.c.h.b16 %v7095
        %v7949 = vunpack.c.l.b16 %v7096
        %v7950 = vunpack.c.h.b16 %v7096
        %v7951 = vunpack.c.l.b16 %v7097
        %v7952 = vunpack.c.h.b16 %v7097
        %v7953 = vunpack.c.l.b16 %v7098
        %v7954 = vunpack.c.h.b16 %v7098
        %v7955 = vunpack.c.l.b16 %v7099
        %v7956 = vunpack.c.h.b16 %v7099
        %v7957 = vunpack.c.l.b16 %v7100
        %v7958 = vunpack.c.h.b16 %v7100
        %v7959 = vunpack.c.l.b16 %v7101
        %v7960 = vunpack.c.h.b16 %v7101
        %v7961 = vunpack.c.l.b16 %v7102
        %v7962 = vunpack.c.h.b16 %v7102
        %v7963 = vunpack.c.l.b16 %v7103
        %v7964 = vunpack.c.h.b16 %v7103
        %v7965 = vunpack.c.l.b16 %v7104
        %v7966 = vunpack.c.h.b16 %v7104
        %v7967 = vunpack.c.l.b16 %v7105
        %v7968 = vunpack.c.h.b16 %v7105
        %v7969 = vunpack.c.l.b16 %v7106
        %v7970 = vunpack.c.h.b16 %v7106
        %v7971 = vunpack.c.l.b16 %v7107
        %v7972 = vunpack.c.h.b16 %v7107
        %v7973 = vunpack.c.l.b16 %v7108
        %v7974 = vunpack.c.h.b16 %v7108
        %v7975 = vunpack.c.l.b16 %v7109
        %v7976 = vunpack.c.h.b16 %v7109
        %v7977 = vunpack.c.l.b16 %v7110
        %v7978 = vunpack.c.h.b16 %v7110
        %v7979 = vunpack.c.l.b16 %v7111
        %v7980 = vunpack.c.h.b16 %v7111
        %v7981 = vunpack.c.l.b16 %v7112
        %v7982 = vunpack.c.h.b16 %v7112
        %v7983 = vunpack.c.l.b16 %v7113
        %v7984 = vunpack.c.h.b16 %v7113
        %v7985 = vunpack.c.l.b16 %v7114
        %v7986 = vunpack.c.h.b16 %v7114
        %v7987 = vunpack.c.l.b16 %v7115
        %v7988 = vunpack.c.h.b16 %v7115
        %v7989 = vunpack.c.l.b16 %v7116
        %v7990 = vunpack.c.h.b16 %v7116
        %v7991 = vunpack.c.l.b16 %v7117
        %v7992 = vunpack.c.h.b16 %v7117
        %v7993 = vunpack.c.l.b16 %v7118
        %v7994 = vunpack.c.h.b16 %v7118
        %v7995 = vunpack.c.l.b16 %v7119
        %v7996 = vunpack.c.h.b16 %v7119
        %v7997 = vunpack.c.l.b16 %v7120
        %v7998 = vunpack.c.h.b16 %v7120
        %v7999 = vunpack.c.l.b16 %v7121
        %v8000 = vunpack.c.h.b16 %v7121
        %v8001 = vunpack.c.l.b16 %v7122
        %v8002 = vunpack.c.h.b16 %v7122
        %v8003 = vunpack.c.l.b16 %v7123
        %v8004 = vunpack.c.h.b16 %v7123
        %v8005 = vunpack.c.l.b16 %v7124
        %v8006 = vunpack.c.h.b16 %v7124
        %v8007 = vunpack.c.l.b16 %v7125
        %v8008 = vunpack.c.h.b16 %v7125
        %v8009 = vunpack.c.l.b16 %v7126
        %v8010 = vunpack.c.h.b16 %v7126
        %v8011 = vunpack.c.l.b16 %v7127
        %v8012 = vunpack.c.h.b16 %v7127
        %v8013 = vunpack.c.l.b16 %v7128
        %v8014 = vunpack.c.h.b16 %v7128
        %v8015 = vunpack.c.l.b16 %v7129
        %v8016 = vunpack.c.h.b16 %v7129
        %v8017 = vunpack.c.l.b16 %v7130
        %v8018 = vunpack.c.h.b16 %v7130
        %v8019 = vunpack.c.l.b16 %v7131
        %v8020 = vunpack.c.h.b16 %v7131
        %v8021 = vunpack.c.l.b16 %v7132
        %v8022 = vunpack.c.h.b16 %v7132
        %v8023 = vunpack.c.l.b16 %v7133
        %v8024 = vunpack.c.h.b16 %v7133
        %v8025 = vunpack.c.l.b16 %v7134
        %v8026 = vunpack.c.h.b16 %v7134
        %v8027 = vunpack.c.l.b16 %v7135
        %v8028 = vunpack.c.h.b16 %v7135
        %v8029 = vunpack.c.l.b16 %v7136
        %v8030 = vunpack.c.h.b16 %v7136
        %v8031 = vunpack.c.l.b16 %v7137
        %v8032 = vunpack.c.h.b16 %v7137
        %v8033 = vunpack.c.l.b16 %v7138
        %v8034 = vunpack.c.h.b16 %v7138
        %v8035 = vunpack.c.l.b16 %v7139
        %v8036 = vunpack.c.h.b16 %v7139
        %v8037 = vpack.c.b16 %v7529, %v7525
        %v8038 = vpack.c.b16 %v7530, %v7526
        %v8039 = vpack.c.b16 %v7531, %v7527
        %v8040 = vpack.c.b16 %v7532, %v7528
        %v8041 = vpack.c.b16 %v7537, %v7533
        %v8042 = vpack.c.b16 %v7538, %v7534
        %v8043 = vpack.c.b16 %v7539, %v7535
        %v8044 = vpack.c.b16 %v7540, %v7536
        %v8045 = vpack.c.b16 %v7545, %v7541
        %v8046 = vpack.c.b16 %v7546, %v7542
        %v8047 = vpack.c.b16 %v7547, %v7543
        %v8048 = vpack.c.b16 %v7548, %v7544
        %v8049 = vpack.c.b16 %v7553, %v7549
        %v8050 = vpack.c.b16 %v7554, %v7550
        %v8051 = vpack.c.b16 %v7555, %v7551
        %v8052 = vpack.c.b16 %v7556, %v7552
        %v8053 = vpack.c.b16 %v7561, %v7557
        %v8054 = vpack.c.b16 %v7562, %v7558
        %v8055 = vpack.c.b16 %v7563, %v7559
        %v8056 = vpack.c.b16 %v7564, %v7560
        %v8057 = vpack.c.b16 %v7569, %v7565
        %v8058 = vpack.c.b16 %v7570, %v7566
        %v8059 = vpack.c.b16 %v7571, %v7567
        %v8060 = vpack.c.b16 %v7572, %v7568
        %v8061 = vpack.c.b16 %v7577, %v7573
        %v8062 = vpack.c.b16 %v7578, %v7574
        %v8063 = vpack.c.b16 %v7579, %v7575
        %v8064 = vpack.c.b16 %v7580, %v7576
        %v8065 = vpack.c.b16 %v7585, %v7581
        %v8066 = vpack.c.b16 %v7586, %v7582
        %v8067 = vpack.c.b16 %v7587, %v7583
        %v8068 = vpack.c.b16 %v7588, %v7584
        %v8069 = vpack.c.b16 %v7593, %v7589
        %v8070 = vpack.c.b16 %v7594, %v7590
        %v8071 = vpack.c.b16 %v7595, %v7591
        %v8072 = vpack.c.b16 %v7596, %v7592
        %v8073 = vpack.c.b16 %v7601, %v7597
        %v8074 = vpack.c.b16 %v7602, %v7598
        %v8075 = vpack.c.b16 %v7603, %v7599
        %v8076 = vpack.c.b16 %v7604, %v7600
        %v8077 = vpack.c.b16 %v7609, %v7605
        %v8078 = vpack.c.b16 %v7610, %v7606
        %v8079 = vpack.c.b16 %v7611, %v7607
        %v8080 = vpack.c.b16 %v7612, %v7608
        %v8081 = vpack.c.b16 %v7617, %v7613
        %v8082 = vpack.c.b16 %v7618, %v7614
        %v8083 = vpack.c.b16 %v7619, %v7615
        %v8084 = vpack.c.b16 %v7620, %v7616
        %v8085 = vpack.c.b16 %v7625, %v7621
        %v8086 = vpack.c.b16 %v7626, %v7622
        %v8087 = vpack.c.b16 %v7627, %v7623
        %v8088 = vpack.c.b16 %v7628, %v7624
        %v8089 = vpack.c.b16 %v7633, %v7629
        %v8090 = vpack.c.b16 %v7634, %v7630
        %v8091 = vpack.c.b16 %v7635, %v7631
        %v8092 = vpack.c.b16 %v7636, %v7632
        %v8093 = vpack.c.b16 %v7641, %v7637
        %v8094 = vpack.c.b16 %v7642, %v7638
        %v8095 = vpack.c.b16 %v7643, %v7639
        %v8096 = vpack.c.b16 %v7644, %v7640
        %v8097 = vpack.c.b16 %v7649, %v7645
        %v8098 = vpack.c.b16 %v7650, %v7646
        %v8099 = vpack.c.b16 %v7651, %v7647
        %v8100 = vpack.c.b16 %v7652, %v7648
        %v8101 = vpack.c.b16 %v7657, %v7653
        %v8102 = vpack.c.b16 %v7658, %v7654
        %v8103 = vpack.c.b16 %v7659, %v7655
        %v8104 = vpack.c.b16 %v7660, %v7656
        %v8105 = vpack.c.b16 %v7665, %v7661
        %v8106 = vpack.c.b16 %v7666, %v7662
        %v8107 = vpack.c.b16 %v7667, %v7663
        %v8108 = vpack.c.b16 %v7668, %v7664
        %v8109 = vpack.c.b16 %v7673, %v7669
        %v8110 = vpack.c.b16 %v7674, %v7670
        %v8111 = vpack.c.b16 %v7675, %v7671
        %v8112 = vpack.c.b16 %v7676, %v7672
        %v8113 = vpack.c.b16 %v7681, %v7677
        %v8114 = vpack.c.b16 %v7682, %v7678
        %v8115 = vpack.c.b16 %v7683, %v7679
        %v8116 = vpack.c.b16 %v7684, %v7680
        %v8117 = vpack.c.b16 %v7689, %v7685
        %v8118 = vpack.c.b16 %v7690, %v7686
        %v8119 = vpack.c.b16 %v7691, %v7687
        %v8120 = vpack.c.b16 %v7692, %v7688
        %v8121 = vpack.c.b16 %v7697, %v7693
        %v8122 = vpack.c.b16 %v7698, %v7694
        %v8123 = vpack.c.b16 %v7699, %v7695
        %v8124 = vpack.c.b16 %v7700, %v7696
        %v8125 = vpack.c.b16 %v7705, %v7701
        %v8126 = vpack.c.b16 %v7706, %v7702
        %v8127 = vpack.c.b16 %v7707, %v7703
        %v8128 = vpack.c.b16 %v7708, %v7704
        %v8129 = vpack.c.b16 %v7713, %v7709
        %v8130 = vpack.c.b16 %v7714, %v7710
        %v8131 = vpack.c.b16 %v7715, %v7711
        %v8132 = vpack.c.b16 %v7716, %v7712
        %v8133 = vpack.c.b16 %v7721, %v7717
        %v8134 = vpack.c.b16 %v7722, %v7718
        %v8135 = vpack.c.b16 %v7723, %v7719
        %v8136 = vpack.c.b16 %v7724, %v7720
        %v8137 = vpack.c.b16 %v7729, %v7725
        %v8138 = vpack.c.b16 %v7730, %v7726
        %v8139 = vpack.c.b16 %v7731, %v7727
        %v8140 = vpack.c.b16 %v7732, %v7728
        %v8141 = vpack.c.b16 %v7737, %v7733
        %v8142 = vpack.c.b16 %v7738, %v7734
        %v8143 = vpack.c.b16 %v7739, %v7735
        %v8144 = vpack.c.b16 %v7740, %v7736
        %v8145 = vpack.c.b16 %v7745, %v7741
        %v8146 = vpack.c.b16 %v7746, %v7742
        %v8147 = vpack.c.b16 %v7747, %v7743
        %v8148 = vpack.c.b16 %v7748, %v7744
        %v8149 = vpack.c.b16 %v7753, %v7749
        %v8150 = vpack.c.b16 %v7754, %v7750
        %v8151 = vpack.c.b16 %v7755, %v7751
        %v8152 = vpack.c.b16 %v7756, %v7752
        %v8153 = vpack.c.b16 %v7761, %v7757
        %v8154 = vpack.c.b16 %v7762, %v7758
        %v8155 = vpack.c.b16 %v7763, %v7759
        %v8156 = vpack.c.b16 %v7764, %v7760
        %v8157 = vpack.c.b16 %v7769, %v7765
        %v8158 = vpack.c.b16 %v7770, %v7766
        %v8159 = vpack.c.b16 %v7771, %v7767
        %v8160 = vpack.c.b16 %v7772, %v7768
        %v8161 = vpack.c.b16 %v7777, %v7773
        %v8162 = vpack.c.b16 %v7778, %v7774
        %v8163 = vpack.c.b16 %v7779, %v7775
        %v8164 = vpack.c.b16 %v7780, %v7776
        %v8165 = vpack.c.b16 %v7785, %v7781
        %v8166 = vpack.c.b16 %v7786, %v7782
        %v8167 = vpack.c.b16 %v7787, %v7783
        %v8168 = vpack.c.b16 %v7788, %v7784
        %v8169 = vpack.c.b16 %v7793, %v7789
        %v8170 = vpack.c.b16 %v7794, %v7790
        %v8171 = vpack.c.b16 %v7795, %v7791
        %v8172 = vpack.c.b16 %v7796, %v7792
        %v8173 = vpack.c.b16 %v7801, %v7797
        %v8174 = vpack.c.b16 %v7802, %v7798
        %v8175 = vpack.c.b16 %v7803, %v7799
        %v8176 = vpack.c.b16 %v7804, %v7800
        %v8177 = vpack.c.b16 %v7809, %v7805
        %v8178 = vpack.c.b16 %v7810, %v7806
        %v8179 = vpack.c.b16 %v7811, %v7807
        %v8180 = vpack.c.b16 %v7812, %v7808
        %v8181 = vpack.c.b16 %v7817, %v7813
        %v8182 = vpack.c.b16 %v7818, %v7814
        %v8183 = vpack.c.b16 %v7819, %v7815
        %v8184 = vpack.c.b16 %v7820, %v7816
        %v8185 = vpack.c.b16 %v7825, %v7821
        %v8186 = vpack.c.b16 %v7826, %v7822
        %v8187 = vpack.c.b16 %v7827, %v7823
        %v8188 = vpack.c.b16 %v7828, %v7824
        %v8189 = vpack.c.b16 %v7833, %v7829
        %v8190 = vpack.c.b16 %v7834, %v7830
        %v8191 = vpack.c.b16 %v7835, %v7831
        %v8192 = vpack.c.b16 %v7836, %v7832
        %v8193 = vpack.c.b16 %v7841, %v7837
        %v8194 = vpack.c.b16 %v7842, %v7838
        %v8195 = vpack.c.b16 %v7843, %v7839
        %v8196 = vpack.c.b16 %v7844, %v7840
        %v8197 = vpack.c.b16 %v7849, %v7845
        %v8198 = vpack.c.b16 %v7850, %v7846
        %v8199 = vpack.c.b16 %v7851, %v7847
        %v8200 = vpack.c.b16 %v7852, %v7848
        %v8201 = vpack.c.b16 %v7857, %v7853
        %v8202 = vpack.c.b16 %v7858, %v7854
        %v8203 = vpack.c.b16 %v7859, %v7855
        %v8204 = vpack.c.b16 %v7860, %v7856
        %v8205 = vpack.c.b16 %v7865, %v7861
        %v8206 = vpack.c.b16 %v7866, %v7862
        %v8207 = vpack.c.b16 %v7867, %v7863
        %v8208 = vpack.c.b16 %v7868, %v7864
        %v8209 = vpack.c.b16 %v7873, %v7869
        %v8210 = vpack.c.b16 %v7874, %v7870
        %v8211 = vpack.c.b16 %v7875, %v7871
        %v8212 = vpack.c.b16 %v7876, %v7872
        %v8213 = vpack.c.b16 %v7881, %v7877
        %v8214 = vpack.c.b16 %v7882, %v7878
        %v8215 = vpack.c.b16 %v7883, %v7879
        %v8216 = vpack.c.b16 %v7884, %v7880
        %v8217 = vpack.c.b16 %v7889, %v7885
        %v8218 = vpack.c.b16 %v7890, %v7886
        %v8219 = vpack.c.b16 %v7891, %v7887
        %v8220 = vpack.c.b16 %v7892, %v7888
        %v8221 = vpack.c.b16 %v7897, %v7893
        %v8222 = vpack.c.b16 %v7898, %v7894
        %v8223 = vpack.c.b16 %v7899, %v7895
        %v8224 = vpack.c.b16 %v7900, %v7896
        %v8225 = vpack.c.b16 %v7905, %v7901
        %v8226 = vpack.c.b16 %v7906, %v7902
        %v8227 = vpack.c.b16 %v7907, %v7903
        %v8228 = vpack.c.b16 %v7908, %v7904
        %v8229 = vpack.c.b16 %v7913, %v7909
        %v8230 = vpack.c.b16 %v7914, %v7910
        %v8231 = vpack.c.b16 %v7915, %v7911
        %v8232 = vpack.c.b16 %v7916, %v7912
        %v8233 = vpack.c.b16 %v7921, %v7917
        %v8234 = vpack.c.b16 %v7922, %v7918
        %v8235 = vpack.c.b16 %v7923, %v7919
        %v8236 = vpack.c.b16 %v7924, %v7920
        %v8237 = vpack.c.b16 %v7929, %v7925
        %v8238 = vpack.c.b16 %v7930, %v7926
        %v8239 = vpack.c.b16 %v7931, %v7927
        %v8240 = vpack.c.b16 %v7932, %v7928
        %v8241 = vpack.c.b16 %v7937, %v7933
        %v8242 = vpack.c.b16 %v7938, %v7934
        %v8243 = vpack.c.b16 %v7939, %v7935
        %v8244 = vpack.c.b16 %v7940, %v7936
        %v8245 = vpack.c.b16 %v7945, %v7941
        %v8246 = vpack.c.b16 %v7946, %v7942
        %v8247 = vpack.c.b16 %v7947, %v7943
        %v8248 = vpack.c.b16 %v7948, %v7944
        %v8249 = vpack.c.b16 %v7953, %v7949
        %v8250 = vpack.c.b16 %v7954, %v7950
        %v8251 = vpack.c.b16 %v7955, %v7951
        %v8252 = vpack.c.b16 %v7956, %v7952
        %v8253 = vpack.c.b16 %v7961, %v7957
        %v8254 = vpack.c.b16 %v7962, %v7958
        %v8255 = vpack.c.b16 %v7963, %v7959
        %v8256 = vpack.c.b16 %v7964, %v7960
        %v8257 = vpack.c.b16 %v7969, %v7965
        %v8258 = vpack.c.b16 %v7970, %v7966
        %v8259 = vpack.c.b16 %v7971, %v7967
        %v8260 = vpack.c.b16 %v7972, %v7968
        %v8261 = vpack.c.b16 %v7977, %v7973
        %v8262 = vpack.c.b16 %v7978, %v7974
        %v8263 = vpack.c.b16 %v7979, %v7975
        %v8264 = vpack.c.b16 %v7980, %v7976
        %v8265 = vpack.c.b16 %v7985, %v7981
        %v8266 = vpack.c.b16 %v7986, %v7982
        %v8267 = vpack.c.b16 %v7987, %v7983
        %v8268 = vpack.c.b16 %v7988, %v7984
        %v8269 = vpack.c.b16 %v7993, %v7989
        %v8270 = vpack.c.b16 %v7994, %v7990
        %v8271 = vpack.c.b16 %v7995, %v7991
        %v8272 = vpack.c.b16 %v7996, %v7992
        %v8273 = vpack.c.b16 %v8001, %v7997
        %v8274 = vpack.c.b16 %v8002, %v7998
        %v8275 = vpack.c.b16 %v8003, %v7999
        %v8276 = vpack.c.b16 %v8004, %v8000
        %v8277 = vpack.c.b16 %v8009, %v8005
        %v8278 = vpack.c.b16 %v8010, %v8006
        %v8279 = vpack.c.b16 %v8011, %v8007
        %v8280 = vpack.c.b16 %v8012, %v8008
        %v8281 = vpack.c.b16 %v8017, %v8013
        %v8282 = vpack.c.b16 %v8018, %v8014
        %v8283 = vpack.c.b16 %v8019, %v8015
        %v8284 = vpack.c.b16 %v8020, %v8016
        %v8285 = vpack.c.b16 %v8025, %v8021
        %v8286 = vpack.c.b16 %v8026, %v8022
        %v8287 = vpack.c.b16 %v8027, %v8023
        %v8288 = vpack.c.b16 %v8028, %v8024
        %v8289 = vpack.c.b16 %v8033, %v8029
        %v8290 = vpack.c.b16 %v8034, %v8030
        %v8291 = vpack.c.b16 %v8035, %v8031
        %v8292 = vpack.c.b16 %v8036, %v8032
        %8549 = vmatprep.subr.bf16.mxu0 %v8066
        %8550 = vmatpush1.bf16.msra.mxu0 %v8065
        %8551 = vmatprep.subr.bf16.mxu0 %v8062
        %8552 = vmatpush1.bf16.msra.mxu0 %v8061
        %8553 = vmatprep.subr.bf16.mxu0 %v8058
        %8554 = vmatpush1.bf16.msra.mxu0 %v8057
        %8555 = vmatprep.subr.bf16.mxu0 %v8054
        %8556 = vmatpush1.bf16.msra.mxu0 %v8053
        %8557 = vmatprep.subr.bf16.mxu0 %v8050
        %8558 = vmatpush1.bf16.msra.mxu0 %v8049
        %8559 = vmatprep.subr.bf16.mxu0 %v8046
        %8560 = vmatpush1.bf16.msra.mxu0 %v8045
        %8561 = vmatprep.subr.bf16.mxu0 %v8042
        %8562 = vmatpush1.bf16.msra.mxu0 %v8041
        %8563 = vmatprep.subr.bf16.mxu0 %v8038
        %8564 = vmatpush1.bf16.msra.mxu0 %v8037
        %8565 = vmatprep.subr.bf16.mxu0 %v8098
        %8566 = vmatpush2.bf16.msra.mxu0 %v8097
        %8567 = vmatprep.subr.bf16.mxu0 %v8094
        %8568 = vmatpush2.bf16.msra.mxu0 %v8093
        %8569 = vmatprep.subr.bf16.mxu0 %v8090
        %8570 = vmatpush2.bf16.msra.mxu0 %v8089
        %8571 = vmatprep.subr.bf16.mxu0 %v8086
        %8572 = vmatpush2.bf16.msra.mxu0 %v8085
        %8573 = vmatprep.subr.bf16.mxu0 %v8082
        %8574 = vmatpush2.bf16.msra.mxu0 %v8081
        %8575 = vmatprep.subr.bf16.mxu0 %v8078
        %8576 = vmatpush2.bf16.msra.mxu0 %v8077
        %8577 = vmatprep.subr.bf16.mxu0 %v8074
        %8578 = vmatpush2.bf16.msra.mxu0 %v8073
        %8579 = vmatprep.subr.bf16.mxu0 %v8070
        %8580 = vmatpush2.bf16.msra.mxu0 %v8069
        %8581 = vmatprep.mubr.bf16.mxu0 %v7254
        %8582 = vmatmul.mubr.bf16.gmra.mxu0 %v7253
        %v8583 = vpop.f32.mrf.mxu0
        %v8584 = vadd.f32 %v7145, %v8583
        %v8585 = vpop.f32.mrf.mxu0
        %v8586 = vadd.f32 %v7149, %v8585
        %v8587 = vpop.f32.mrf.mxu0
        %v8588 = vpop.f32.mrf.mxu0
        %8589 = vdwg.mxu0
        %8590 = vmatprep.subr.bf16.mxu0 %v8130
        %8591 = vmatpush1.bf16.msra.mxu0 %v8129
        %8592 = vmatprep.subr.bf16.mxu0 %v8126
        %8593 = vmatpush1.bf16.msra.mxu0 %v8125
        %8594 = vmatprep.subr.bf16.mxu0 %v8122
        %8595 = vmatpush1.bf16.msra.mxu0 %v8121
        %8596 = vmatprep.subr.bf16.mxu0 %v8118
        %8597 = vmatpush1.bf16.msra.mxu0 %v8117
        %8598 = vmatprep.subr.bf16.mxu0 %v8114
        %8599 = vmatpush1.bf16.msra.mxu0 %v8113
        %8600 = vmatprep.subr.bf16.mxu0 %v8110
        %8601 = vmatpush1.bf16.msra.mxu0 %v8109
        %8602 = vmatprep.subr.bf16.mxu0 %v8106
        %8603 = vmatpush1.bf16.msra.mxu0 %v8105
        %8604 = vmatprep.subr.bf16.mxu0 %v8102
        %8605 = vmatpush1.bf16.msra.mxu0 %v8101
        %8606 = vmatprep.subr.bf16.mxu0 %v8162
        %8607 = vmatpush2.bf16.msra.mxu0 %v8161
        %8608 = vmatprep.subr.bf16.mxu0 %v8158
        %8609 = vmatpush2.bf16.msra.mxu0 %v8157
        %8610 = vmatprep.subr.bf16.mxu0 %v8154
        %8611 = vmatpush2.bf16.msra.mxu0 %v8153
        %8612 = vmatprep.subr.bf16.mxu0 %v8150
        %8613 = vmatpush2.bf16.msra.mxu0 %v8149
        %8614 = vmatprep.subr.bf16.mxu0 %v8146
        %8615 = vmatpush2.bf16.msra.mxu0 %v8145
        %8616 = vmatprep.subr.bf16.mxu0 %v8142
        %8617 = vmatpush2.bf16.msra.mxu0 %v8141
        %8618 = vmatprep.subr.bf16.mxu0 %v8138
        %8619 = vmatpush2.bf16.msra.mxu0 %v8137
        %8620 = vmatprep.subr.bf16.mxu0 %v8134
        %8621 = vmatpush2.bf16.msra.mxu0 %v8133
        %8622 = vmatprep.mubr.bf16.mxu0 %v7256
        %8623 = vmatmul.mubr.bf16.gmra.mxu0 %v7255
        %v8624 = vpop.f32.mrf.mxu0
        %v8625 = vadd.f32 %v8584, %v8624
        %v8626 = vpop.f32.mrf.mxu0
        %v8627 = vadd.f32 %v8586, %v8626
        %v8628 = vpop.f32.mrf.mxu0
        %v8629 = vpop.f32.mrf.mxu0
        %8630 = vdwg.mxu0
        %8631 = vmatprep.subr.bf16.mxu0 %v8194
        %8632 = vmatpush1.bf16.msra.mxu0 %v8193
        %8633 = vmatprep.subr.bf16.mxu0 %v8190
        %8634 = vmatpush1.bf16.msra.mxu0 %v8189
        %8635 = vmatprep.subr.bf16.mxu0 %v8186
        %8636 = vmatpush1.bf16.msra.mxu0 %v8185
        %8637 = vmatprep.subr.bf16.mxu0 %v8182
        %8638 = vmatpush1.bf16.msra.mxu0 %v8181
        %8639 = vmatprep.subr.bf16.mxu0 %v8178
        %8640 = vmatpush1.bf16.msra.mxu0 %v8177
        %8641 = vmatprep.subr.bf16.mxu0 %v8174
        %8642 = vmatpush1.bf16.msra.mxu0 %v8173
        %8643 = vmatprep.subr.bf16.mxu0 %v8170
        %8644 = vmatpush1.bf16.msra.mxu0 %v8169
        %8645 = vmatprep.subr.bf16.mxu0 %v8166
        %8646 = vmatpush1.bf16.msra.mxu0 %v8165
        %8647 = vmatprep.subr.bf16.mxu0 %v8226
        %8648 = vmatpush2.bf16.msra.mxu0 %v8225
        %8649 = vmatprep.subr.bf16.mxu0 %v8222
        %8650 = vmatpush2.bf16.msra.mxu0 %v8221
        %8651 = vmatprep.subr.bf16.mxu0 %v8218
        %8652 = vmatpush2.bf16.msra.mxu0 %v8217
        %8653 = vmatprep.subr.bf16.mxu0 %v8214
        %8654 = vmatpush2.bf16.msra.mxu0 %v8213
        %8655 = vmatprep.subr.bf16.mxu0 %v8210
        %8656 = vmatpush2.bf16.msra.mxu0 %v8209
        %8657 = vmatprep.subr.bf16.mxu0 %v8206
        %8658 = vmatpush2.bf16.msra.mxu0 %v8205
        %8659 = vmatprep.subr.bf16.mxu0 %v8202
        %8660 = vmatpush2.bf16.msra.mxu0 %v8201
        %8661 = vmatprep.subr.bf16.mxu0 %v8198
        %8662 = vmatpush2.bf16.msra.mxu0 %v8197
        %8663 = vmatprep.mubr.bf16.mxu0 %v7258
        %8664 = vmatmul.mubr.bf16.gmra.mxu0 %v7257
        %v8665 = vpop.f32.mrf.mxu0
        %v8666 = vadd.f32 %v8625, %v8665
        %v8667 = vpop.f32.mrf.mxu0
        %v8668 = vadd.f32 %v8627, %v8667
        %v8669 = vpop.f32.mrf.mxu0
        %v8670 = vpop.f32.mrf.mxu0
        %8671 = vdwg.mxu0
        %8672 = vmatprep.subr.bf16.mxu0 %v8258
        %8673 = vmatpush1.bf16.msra.mxu0 %v8257
        %8674 = vmatprep.subr.bf16.mxu0 %v8254
        %8675 = vmatpush1.bf16.msra.mxu0 %v8253
        %8676 = vmatprep.subr.bf16.mxu0 %v8250
        %8677 = vmatpush1.bf16.msra.mxu0 %v8249
        %8678 = vmatprep.subr.bf16.mxu0 %v8246
        %8679 = vmatpush1.bf16.msra.mxu0 %v8245
        %8680 = vmatprep.subr.bf16.mxu0 %v8242
        %8681 = vmatpush1.bf16.msra.mxu0 %v8241
        %8682 = vmatprep.subr.bf16.mxu0 %v8238
        %8683 = vmatpush1.bf16.msra.mxu0 %v8237
        %8684 = vmatprep.subr.bf16.mxu0 %v8234
        %8685 = vmatpush1.bf16.msra.mxu0 %v8233
        %8686 = vmatprep.subr.bf16.mxu0 %v8230
        %8687 = vmatpush1.bf16.msra.mxu0 %v8229
        %8688 = vmatprep.subr.bf16.mxu0 %v8290
        %8689 = vmatpush2.bf16.msra.mxu0 %v8289
        %8690 = vmatprep.subr.bf16.mxu0 %v8286
        %8691 = vmatpush2.bf16.msra.mxu0 %v8285
        %8692 = vmatprep.subr.bf16.mxu0 %v8282
        %8693 = vmatpush2.bf16.msra.mxu0 %v8281
        %8694 = vmatprep.subr.bf16.mxu0 %v8278
        %8695 = vmatpush2.bf16.msra.mxu0 %v8277
        %8696 = vmatprep.subr.bf16.mxu0 %v8274
        %8697 = vmatpush2.bf16.msra.mxu0 %v8273
        %8698 = vmatprep.subr.bf16.mxu0 %v8270
        %8699 = vmatpush2.bf16.msra.mxu0 %v8269
        %8700 = vmatprep.subr.bf16.mxu0 %v8266
        %8701 = vmatpush2.bf16.msra.mxu0 %v8265
        %8702 = vmatprep.subr.bf16.mxu0 %v8262
        %8703 = vmatpush2.bf16.msra.mxu0 %v8261
        %8704 = vmatprep.mubr.bf16.mxu0 %v7260
        %8705 = vmatmul.mubr.bf16.gmra.mxu0 %v7259
        %v8706 = vpop.f32.mrf.mxu0
        %v8707 = vadd.f32 %v8666, %v8706
        %v8708 = vpop.f32.mrf.mxu0
        %v8709 = vadd.f32 %v8668, %v8708
        %v8710 = vpop.f32.mrf.mxu0
        %v8711 = vpop.f32.mrf.mxu0
        %8712 = vdwg.mxu0
        %8713 = vmatprep.subr.bf16.mxu0 %v8068
        %8714 = vmatpush1.bf16.msra.mxu0 %v8067
        %8715 = vmatprep.subr.bf16.mxu0 %v8064
        %8716 = vmatpush1.bf16.msra.mxu0 %v8063
        %8717 = vmatprep.subr.bf16.mxu0 %v8060
        %8718 = vmatpush1.bf16.msra.mxu0 %v8059
        %8719 = vmatprep.subr.bf16.mxu0 %v8056
        %8720 = vmatpush1.bf16.msra.mxu0 %v8055
        %8721 = vmatprep.subr.bf16.mxu0 %v8052
        %8722 = vmatpush1.bf16.msra.mxu0 %v8051
        %8723 = vmatprep.subr.bf16.mxu0 %v8048
        %8724 = vmatpush1.bf16.msra.mxu0 %v8047
        %8725 = vmatprep.subr.bf16.mxu0 %v8044
        %8726 = vmatpush1.bf16.msra.mxu0 %v8043
        %8727 = vmatprep.subr.bf16.mxu0 %v8040
        %8728 = vmatpush1.bf16.msra.mxu0 %v8039
        %8729 = vmatprep.subr.bf16.mxu0 %v8100
        %8730 = vmatpush2.bf16.msra.mxu0 %v8099
        %8731 = vmatprep.subr.bf16.mxu0 %v8096
        %8732 = vmatpush2.bf16.msra.mxu0 %v8095
        %8733 = vmatprep.subr.bf16.mxu0 %v8092
        %8734 = vmatpush2.bf16.msra.mxu0 %v8091
        %8735 = vmatprep.subr.bf16.mxu0 %v8088
        %8736 = vmatpush2.bf16.msra.mxu0 %v8087
        %8737 = vmatprep.subr.bf16.mxu0 %v8084
        %8738 = vmatpush2.bf16.msra.mxu0 %v8083
        %8739 = vmatprep.subr.bf16.mxu0 %v8080
        %8740 = vmatpush2.bf16.msra.mxu0 %v8079
        %8741 = vmatprep.subr.bf16.mxu0 %v8076
        %8742 = vmatpush2.bf16.msra.mxu0 %v8075
        %8743 = vmatprep.subr.bf16.mxu0 %v8072
        %8744 = vmatpush2.bf16.msra.mxu0 %v8071
        %8745 = vmatprep.mubr.bf16.mxu0 %v7254
        %8746 = vmatmul.mubr.bf16.gmra.mxu0 %v7253
        %v8747 = vpop.f32.mrf.mxu0
        %v8748 = vadd.f32 %v7153, %v8747
        %v8749 = vpop.f32.mrf.mxu0
        %v8750 = vadd.f32 %v7157, %v8749
        %v8751 = vpop.f32.mrf.mxu0
        %v8752 = vpop.f32.mrf.mxu0
        %8753 = vdwg.mxu0
        %8754 = vmatprep.subr.bf16.mxu0 %v8132
        %8755 = vmatpush1.bf16.msra.mxu0 %v8131
        %8756 = vmatprep.subr.bf16.mxu0 %v8128
        %8757 = vmatpush1.bf16.msra.mxu0 %v8127
        %8758 = vmatprep.subr.bf16.mxu0 %v8124
        %8759 = vmatpush1.bf16.msra.mxu0 %v8123
        %8760 = vmatprep.subr.bf16.mxu0 %v8120
        %8761 = vmatpush1.bf16.msra.mxu0 %v8119
        %8762 = vmatprep.subr.bf16.mxu0 %v8116
        %8763 = vmatpush1.bf16.msra.mxu0 %v8115
        %8764 = vmatprep.subr.bf16.mxu0 %v8112
        %8765 = vmatpush1.bf16.msra.mxu0 %v8111
        %8766 = vmatprep.subr.bf16.mxu0 %v8108
        %8767 = vmatpush1.bf16.msra.mxu0 %v8107
        %8768 = vmatprep.subr.bf16.mxu0 %v8104
        %8769 = vmatpush1.bf16.msra.mxu0 %v8103
        %8770 = vmatprep.subr.bf16.mxu0 %v8164
        %8771 = vmatpush2.bf16.msra.mxu0 %v8163
        %8772 = vmatprep.subr.bf16.mxu0 %v8160
        %8773 = vmatpush2.bf16.msra.mxu0 %v8159
        %8774 = vmatprep.subr.bf16.mxu0 %v8156
        %8775 = vmatpush2.bf16.msra.mxu0 %v8155
        %8776 = vmatprep.subr.bf16.mxu0 %v8152
        %8777 = vmatpush2.bf16.msra.mxu0 %v8151
        %8778 = vmatprep.subr.bf16.mxu0 %v8148
        %8779 = vmatpush2.bf16.msra.mxu0 %v8147
        %8780 = vmatprep.subr.bf16.mxu0 %v8144
        %8781 = vmatpush2.bf16.msra.mxu0 %v8143
        %8782 = vmatprep.subr.bf16.mxu0 %v8140
        %8783 = vmatpush2.bf16.msra.mxu0 %v8139
        %8784 = vmatprep.subr.bf16.mxu0 %v8136
        %8785 = vmatpush2.bf16.msra.mxu0 %v8135
        %8786 = vmatprep.mubr.bf16.mxu0 %v7256
        %8787 = vmatmul.mubr.bf16.gmra.mxu0 %v7255
        %v8788 = vpop.f32.mrf.mxu0
        %v8789 = vadd.f32 %v8748, %v8788
        %v8790 = vpop.f32.mrf.mxu0
        %v8791 = vadd.f32 %v8750, %v8790
        %v8792 = vpop.f32.mrf.mxu0
        %v8793 = vpop.f32.mrf.mxu0
        %8794 = vdwg.mxu0
        %8795 = vmatprep.subr.bf16.mxu0 %v8196
        %8796 = vmatpush1.bf16.msra.mxu0 %v8195
        %8797 = vmatprep.subr.bf16.mxu0 %v8192
        %8798 = vmatpush1.bf16.msra.mxu0 %v8191
        %8799 = vmatprep.subr.bf16.mxu0 %v8188
        %8800 = vmatpush1.bf16.msra.mxu0 %v8187
        %8801 = vmatprep.subr.bf16.mxu0 %v8184
        %8802 = vmatpush1.bf16.msra.mxu0 %v8183
        %8803 = vmatprep.subr.bf16.mxu0 %v8180
        %8804 = vmatpush1.bf16.msra.mxu0 %v8179
        %8805 = vmatprep.subr.bf16.mxu0 %v8176
        %8806 = vmatpush1.bf16.msra.mxu0 %v8175
        %8807 = vmatprep.subr.bf16.mxu0 %v8172
        %8808 = vmatpush1.bf16.msra.mxu0 %v8171
        %8809 = vmatprep.subr.bf16.mxu0 %v8168
        %8810 = vmatpush1.bf16.msra.mxu0 %v8167
        %8811 = vmatprep.subr.bf16.mxu0 %v8228
        %8812 = vmatpush2.bf16.msra.mxu0 %v8227
        %8813 = vmatprep.subr.bf16.mxu0 %v8224
        %8814 = vmatpush2.bf16.msra.mxu0 %v8223
        %8815 = vmatprep.subr.bf16.mxu0 %v8220
        %8816 = vmatpush2.bf16.msra.mxu0 %v8219
        %8817 = vmatprep.subr.bf16.mxu0 %v8216
        %8818 = vmatpush2.bf16.msra.mxu0 %v8215
        %8819 = vmatprep.subr.bf16.mxu0 %v8212
        %8820 = vmatpush2.bf16.msra.mxu0 %v8211
        %8821 = vmatprep.subr.bf16.mxu0 %v8208
        %8822 = vmatpush2.bf16.msra.mxu0 %v8207
        %8823 = vmatprep.subr.bf16.mxu0 %v8204
        %8824 = vmatpush2.bf16.msra.mxu0 %v8203
        %8825 = vmatprep.subr.bf16.mxu0 %v8200
        %8826 = vmatpush2.bf16.msra.mxu0 %v8199
        %8827 = vmatprep.mubr.bf16.mxu0 %v7258
        %8828 = vmatmul.mubr.bf16.gmra.mxu0 %v7257
        %v8829 = vpop.f32.mrf.mxu0
        %v8830 = vadd.f32 %v8789, %v8829
        %v8831 = vpop.f32.mrf.mxu0
        %v8832 = vadd.f32 %v8791, %v8831
        %v8833 = vpop.f32.mrf.mxu0
        %v8834 = vpop.f32.mrf.mxu0
        %8835 = vdwg.mxu0
        %8836 = vmatprep.subr.bf16.mxu0 %v8260
        %8837 = vmatpush1.bf16.msra.mxu0 %v8259
        %8838 = vmatprep.subr.bf16.mxu0 %v8256
        %8839 = vmatpush1.bf16.msra.mxu0 %v8255
        %8840 = vmatprep.subr.bf16.mxu0 %v8252
        %8841 = vmatpush1.bf16.msra.mxu0 %v8251
        %8842 = vmatprep.subr.bf16.mxu0 %v8248
        %8843 = vmatpush1.bf16.msra.mxu0 %v8247
        %8844 = vmatprep.subr.bf16.mxu0 %v8244
        %8845 = vmatpush1.bf16.msra.mxu0 %v8243
        %8846 = vmatprep.subr.bf16.mxu0 %v8240
        %8847 = vmatpush1.bf16.msra.mxu0 %v8239
        %8848 = vmatprep.subr.bf16.mxu0 %v8236
        %8849 = vmatpush1.bf16.msra.mxu0 %v8235
        %8850 = vmatprep.subr.bf16.mxu0 %v8232
        %8851 = vmatpush1.bf16.msra.mxu0 %v8231
        %8852 = vmatprep.subr.bf16.mxu0 %v8292
        %8853 = vmatpush2.bf16.msra.mxu0 %v8291
        %8854 = vmatprep.subr.bf16.mxu0 %v8288
        %8855 = vmatpush2.bf16.msra.mxu0 %v8287
        %8856 = vmatprep.subr.bf16.mxu0 %v8284
        %8857 = vmatpush2.bf16.msra.mxu0 %v8283
        %8858 = vmatprep.subr.bf16.mxu0 %v8280
        %8859 = vmatpush2.bf16.msra.mxu0 %v8279
        %8860 = vmatprep.subr.bf16.mxu0 %v8276
        %8861 = vmatpush2.bf16.msra.mxu0 %v8275
        %8862 = vmatprep.subr.bf16.mxu0 %v8272
        %8863 = vmatpush2.bf16.msra.mxu0 %v8271
        %8864 = vmatprep.subr.bf16.mxu0 %v8268
        %8865 = vmatpush2.bf16.msra.mxu0 %v8267
        %8866 = vmatprep.subr.bf16.mxu0 %v8264
        %8867 = vmatpush2.bf16.msra.mxu0 %v8263
        %8868 = vmatprep.mubr.bf16.mxu0 %v7260
        %8869 = vmatmul.mubr.bf16.gmra.mxu0 %v7259
        %v8870 = vpop.f32.mrf.mxu0
        %v8871 = vadd.f32 %v8830, %v8870
        %v8872 = vpop.f32.mrf.mxu0
        %v8873 = vadd.f32 %v8832, %v8872
        %v8874 = vpop.f32.mrf.mxu0
        %v8875 = vpop.f32.mrf.mxu0
        %8876 = vdwg.mxu0
        %v8877 = vmax.f32 %v8707, 0.0
        %v8878 = vmax.f32 %v8709, 0.0
        %v8879 = vmax.f32 %v8871, 0.0
        %v8880 = vmax.f32 %v8873, 0.0
        %v8881 = vpack.c.bf16 %v8877, %v8877
        %v8882 = vpack.c.bf16 %v8878, %v8878
        %v8883 = vpack.c.bf16 %v8879, %v8879
        %v8884 = vpack.c.bf16 %v8880, %v8880
        %v8885 = vld [vmem:[#allocation13] sm:$0xff]
        %v8886 = vld [vmem:[#allocation13 + $0x8] sm:$0xff]
        %v8887 = vld [vmem:[#allocation13 + $0x10] sm:$0xff]
        %v8888 = vld [vmem:[#allocation13 + $0x18] sm:$0xff]
        %v8889 = vld [vmem:[#allocation13 + $0x20] sm:$0xff]
        %v8890 = vld [vmem:[#allocation13 + $0x28] sm:$0xff]
        %v8891 = vld [vmem:[#allocation13 + $0x30] sm:$0xff]
        %v8892 = vld [vmem:[#allocation13 + $0x38] sm:$0xff]
        %v8893 = vld [vmem:[#allocation13 + $0x40] sm:$0xff]
        %v8894 = vld [vmem:[#allocation13 + $0x48] sm:$0xff]
        %v8895 = vld [vmem:[#allocation13 + $0x50] sm:$0xff]
        %v8896 = vld [vmem:[#allocation13 + $0x58] sm:$0xff]
        %v8897 = vld [vmem:[#allocation13 + $0x60] sm:$0xff]
        %v8898 = vld [vmem:[#allocation13 + $0x68] sm:$0xff]
        %v8899 = vld [vmem:[#allocation13 + $0x70] sm:$0xff]
        %v8900 = vld [vmem:[#allocation13 + $0x78] sm:$0xff]
        %v8901 = vld [vmem:[#allocation13 + $0x80] sm:$0xff]
        %v8902 = vld [vmem:[#allocation13 + $0x88] sm:$0xff]
        %v8903 = vld [vmem:[#allocation13 + $0x90] sm:$0xff]
        %v8904 = vld [vmem:[#allocation13 + $0x98] sm:$0xff]
        %v8905 = vld [vmem:[#allocation13 + $0xa0] sm:$0xff]
        %v8906 = vld [vmem:[#allocation13 + $0xa8] sm:$0xff]
        %v8907 = vld [vmem:[#allocation13 + $0xb0] sm:$0xff]
        %v8908 = vld [vmem:[#allocation13 + $0xb8] sm:$0xff]
        %v8909 = vld [vmem:[#allocation13 + $0xc0] sm:$0xff]
        %v8910 = vld [vmem:[#allocation13 + $0xc8] sm:$0xff]
        %v8911 = vld [vmem:[#allocation13 + $0xd0] sm:$0xff]
        %v8912 = vld [vmem:[#allocation13 + $0xd8] sm:$0xff]
        %v8913 = vld [vmem:[#allocation13 + $0xe0] sm:$0xff]
        %v8914 = vld [vmem:[#allocation13 + $0xe8] sm:$0xff]
        %v8915 = vld [vmem:[#allocation13 + $0xf0] sm:$0xff]
        %v8916 = vld [vmem:[#allocation13 + $0xf8] sm:$0xff]
        %v8917 = vld [vmem:[#allocation13 + $0x100] sm:$0xff]
        %v8918 = vld [vmem:[#allocation13 + $0x108] sm:$0xff]
        %v8919 = vld [vmem:[#allocation13 + $0x110] sm:$0xff]
        %v8920 = vld [vmem:[#allocation13 + $0x118] sm:$0xff]
        %v8921 = vld [vmem:[#allocation13 + $0x120] sm:$0xff]
        %v8922 = vld [vmem:[#allocation13 + $0x128] sm:$0xff]
        %v8923 = vld [vmem:[#allocation13 + $0x130] sm:$0xff]
        %v8924 = vld [vmem:[#allocation13 + $0x138] sm:$0xff]
        %v8925 = vld [vmem:[#allocation13 + $0x140] sm:$0xff]
        %v8926 = vld [vmem:[#allocation13 + $0x148] sm:$0xff]
        %v8927 = vld [vmem:[#allocation13 + $0x150] sm:$0xff]
        %v8928 = vld [vmem:[#allocation13 + $0x158] sm:$0xff]
        %v8929 = vld [vmem:[#allocation13 + $0x160] sm:$0xff]
        %v8930 = vld [vmem:[#allocation13 + $0x168] sm:$0xff]
        %v8931 = vld [vmem:[#allocation13 + $0x170] sm:$0xff]
        %v8932 = vld [vmem:[#allocation13 + $0x178] sm:$0xff]
        %v8933 = vld [vmem:[#allocation13 + $0x180] sm:$0xff]
        %v8934 = vld [vmem:[#allocation13 + $0x188] sm:$0xff]
        %v8935 = vld [vmem:[#allocation13 + $0x190] sm:$0xff]
        %v8936 = vld [vmem:[#allocation13 + $0x198] sm:$0xff]
        %v8937 = vld [vmem:[#allocation13 + $0x1a0] sm:$0xff]
        %v8938 = vld [vmem:[#allocation13 + $0x1a8] sm:$0xff]
        %v8939 = vld [vmem:[#allocation13 + $0x1b0] sm:$0xff]
        %v8940 = vld [vmem:[#allocation13 + $0x1b8] sm:$0xff]
        %v8941 = vld [vmem:[#allocation13 + $0x1c0] sm:$0xff]
        %v8942 = vld [vmem:[#allocation13 + $0x1c8] sm:$0xff]
        %v8943 = vld [vmem:[#allocation13 + $0x1d0] sm:$0xff]
        %v8944 = vld [vmem:[#allocation13 + $0x1d8] sm:$0xff]
        %v8945 = vld [vmem:[#allocation13 + $0x1e0] sm:$0xff]
        %v8946 = vld [vmem:[#allocation13 + $0x1e8] sm:$0xff]
        %v8947 = vld [vmem:[#allocation13 + $0x1f0] sm:$0xff]
        %v8948 = vld [vmem:[#allocation13 + $0x1f8] sm:$0xff]
        %v8949 = vld [vmem:[#allocation15] sm:$0x3]
        %v8951 = vlaneseq
        %v8952 = vshrl.u32 %v8951, 7
        %v8953 = vsub.s32 0, %v8952
        %v8954 = vrot.slane %v8949, %v8953
        %v8955 = vlaneseq
        %v8956 = vshrl.u32 %v8955, 7
        %v8957 = vsub.s32 1, %v8956
        %v8958 = vrot.slane %v8949, %v8957
        %v9025 = vunpack.c.l.b16 %v8885
        %v9026 = vunpack.c.h.b16 %v8885
        %v9027 = vunpack.c.l.b16 %v8886
        %v9028 = vunpack.c.h.b16 %v8886
        %v9029 = vunpack.c.l.b16 %v8887
        %v9030 = vunpack.c.h.b16 %v8887
        %v9031 = vunpack.c.l.b16 %v8888
        %v9032 = vunpack.c.h.b16 %v8888
        %v9033 = vunpack.c.l.b16 %v8889
        %v9034 = vunpack.c.h.b16 %v8889
        %v9035 = vunpack.c.l.b16 %v8890
        %v9036 = vunpack.c.h.b16 %v8890
        %v9037 = vunpack.c.l.b16 %v8891
        %v9038 = vunpack.c.h.b16 %v8891
        %v9039 = vunpack.c.l.b16 %v8892
        %v9040 = vunpack.c.h.b16 %v8892
        %v9041 = vunpack.c.l.b16 %v8893
        %v9042 = vunpack.c.h.b16 %v8893
        %v9043 = vunpack.c.l.b16 %v8894
        %v9044 = vunpack.c.h.b16 %v8894
        %v9045 = vunpack.c.l.b16 %v8895
        %v9046 = vunpack.c.h.b16 %v8895
        %v9047 = vunpack.c.l.b16 %v8896
        %v9048 = vunpack.c.h.b16 %v8896
        %v9049 = vunpack.c.l.b16 %v8897
        %v9050 = vunpack.c.h.b16 %v8897
        %v9051 = vunpack.c.l.b16 %v8898
        %v9052 = vunpack.c.h.b16 %v8898
        %v9053 = vunpack.c.l.b16 %v8899
        %v9054 = vunpack.c.h.b16 %v8899
        %v9055 = vunpack.c.l.b16 %v8900
        %v9056 = vunpack.c.h.b16 %v8900
        %v9057 = vunpack.c.l.b16 %v8901
        %v9058 = vunpack.c.h.b16 %v8901
        %v9059 = vunpack.c.l.b16 %v8902
        %v9060 = vunpack.c.h.b16 %v8902
        %v9061 = vunpack.c.l.b16 %v8903
        %v9062 = vunpack.c.h.b16 %v8903
        %v9063 = vunpack.c.l.b16 %v8904
        %v9064 = vunpack.c.h.b16 %v8904
        %v9065 = vunpack.c.l.b16 %v8905
        %v9066 = vunpack.c.h.b16 %v8905
        %v9067 = vunpack.c.l.b16 %v8906
        %v9068 = vunpack.c.h.b16 %v8906
        %v9069 = vunpack.c.l.b16 %v8907
        %v9070 = vunpack.c.h.b16 %v8907
        %v9071 = vunpack.c.l.b16 %v8908
        %v9072 = vunpack.c.h.b16 %v8908
        %v9073 = vunpack.c.l.b16 %v8909
        %v9074 = vunpack.c.h.b16 %v8909
        %v9075 = vunpack.c.l.b16 %v8910
        %v9076 = vunpack.c.h.b16 %v8910
        %v9077 = vunpack.c.l.b16 %v8911
        %v9078 = vunpack.c.h.b16 %v8911
        %v9079 = vunpack.c.l.b16 %v8912
        %v9080 = vunpack.c.h.b16 %v8912
        %v9081 = vunpack.c.l.b16 %v8913
        %v9082 = vunpack.c.h.b16 %v8913
        %v9083 = vunpack.c.l.b16 %v8914
        %v9084 = vunpack.c.h.b16 %v8914
        %v9085 = vunpack.c.l.b16 %v8915
        %v9086 = vunpack.c.h.b16 %v8915
        %v9087 = vunpack.c.l.b16 %v8916
        %v9088 = vunpack.c.h.b16 %v8916
        %v9089 = vunpack.c.l.b16 %v8917
        %v9090 = vunpack.c.h.b16 %v8917
        %v9091 = vunpack.c.l.b16 %v8918
        %v9092 = vunpack.c.h.b16 %v8918
        %v9093 = vunpack.c.l.b16 %v8919
        %v9094 = vunpack.c.h.b16 %v8919
        %v9095 = vunpack.c.l.b16 %v8920
        %v9096 = vunpack.c.h.b16 %v8920
        %v9097 = vunpack.c.l.b16 %v8921
        %v9098 = vunpack.c.h.b16 %v8921
        %v9099 = vunpack.c.l.b16 %v8922
        %v9100 = vunpack.c.h.b16 %v8922
        %v9101 = vunpack.c.l.b16 %v8923
        %v9102 = vunpack.c.h.b16 %v8923
        %v9103 = vunpack.c.l.b16 %v8924
        %v9104 = vunpack.c.h.b16 %v8924
        %v9105 = vunpack.c.l.b16 %v8925
        %v9106 = vunpack.c.h.b16 %v8925
        %v9107 = vunpack.c.l.b16 %v8926
        %v9108 = vunpack.c.h.b16 %v8926
        %v9109 = vunpack.c.l.b16 %v8927
        %v9110 = vunpack.c.h.b16 %v8927
        %v9111 = vunpack.c.l.b16 %v8928
        %v9112 = vunpack.c.h.b16 %v8928
        %v9113 = vunpack.c.l.b16 %v8929
        %v9114 = vunpack.c.h.b16 %v8929
        %v9115 = vunpack.c.l.b16 %v8930
        %v9116 = vunpack.c.h.b16 %v8930
        %v9117 = vunpack.c.l.b16 %v8931
        %v9118 = vunpack.c.h.b16 %v8931
        %v9119 = vunpack.c.l.b16 %v8932
        %v9120 = vunpack.c.h.b16 %v8932
        %v9121 = vunpack.c.l.b16 %v8933
        %v9122 = vunpack.c.h.b16 %v8933
        %v9123 = vunpack.c.l.b16 %v8934
        %v9124 = vunpack.c.h.b16 %v8934
        %v9125 = vunpack.c.l.b16 %v8935
        %v9126 = vunpack.c.h.b16 %v8935
        %v9127 = vunpack.c.l.b16 %v8936
        %v9128 = vunpack.c.h.b16 %v8936
        %v9129 = vunpack.c.l.b16 %v8937
        %v9130 = vunpack.c.h.b16 %v8937
        %v9131 = vunpack.c.l.b16 %v8938
        %v9132 = vunpack.c.h.b16 %v8938
        %v9133 = vunpack.c.l.b16 %v8939
        %v9134 = vunpack.c.h.b16 %v8939
        %v9135 = vunpack.c.l.b16 %v8940
        %v9136 = vunpack.c.h.b16 %v8940
        %v9137 = vunpack.c.l.b16 %v8941
        %v9138 = vunpack.c.h.b16 %v8941
        %v9139 = vunpack.c.l.b16 %v8942
        %v9140 = vunpack.c.h.b16 %v8942
        %v9141 = vunpack.c.l.b16 %v8943
        %v9142 = vunpack.c.h.b16 %v8943
        %v9143 = vunpack.c.l.b16 %v8944
        %v9144 = vunpack.c.h.b16 %v8944
        %v9145 = vunpack.c.l.b16 %v8945
        %v9146 = vunpack.c.h.b16 %v8945
        %v9147 = vunpack.c.l.b16 %v8946
        %v9148 = vunpack.c.h.b16 %v8946
        %v9149 = vunpack.c.l.b16 %v8947
        %v9150 = vunpack.c.h.b16 %v8947
        %v9151 = vunpack.c.l.b16 %v8948
        %v9152 = vunpack.c.h.b16 %v8948
        %v9153 = vpack.c.b16 %v9027, %v9025
        %v9154 = vpack.c.b16 %v9028, %v9026
        %v9155 = vpack.c.b16 %v9031, %v9029
        %v9156 = vpack.c.b16 %v9032, %v9030
        %v9157 = vpack.c.b16 %v9035, %v9033
        %v9158 = vpack.c.b16 %v9036, %v9034
        %v9159 = vpack.c.b16 %v9039, %v9037
        %v9160 = vpack.c.b16 %v9040, %v9038
        %v9161 = vpack.c.b16 %v9043, %v9041
        %v9162 = vpack.c.b16 %v9044, %v9042
        %v9163 = vpack.c.b16 %v9047, %v9045
        %v9164 = vpack.c.b16 %v9048, %v9046
        %v9165 = vpack.c.b16 %v9051, %v9049
        %v9166 = vpack.c.b16 %v9052, %v9050
        %v9167 = vpack.c.b16 %v9055, %v9053
        %v9168 = vpack.c.b16 %v9056, %v9054
        %v9169 = vpack.c.b16 %v9059, %v9057
        %v9170 = vpack.c.b16 %v9060, %v9058
        %v9171 = vpack.c.b16 %v9063, %v9061
        %v9172 = vpack.c.b16 %v9064, %v9062
        %v9173 = vpack.c.b16 %v9067, %v9065
        %v9174 = vpack.c.b16 %v9068, %v9066
        %v9175 = vpack.c.b16 %v9071, %v9069
        %v9176 = vpack.c.b16 %v9072, %v9070
        %v9177 = vpack.c.b16 %v9075, %v9073
        %v9178 = vpack.c.b16 %v9076, %v9074
        %v9179 = vpack.c.b16 %v9079, %v9077
        %v9180 = vpack.c.b16 %v9080, %v9078
        %v9181 = vpack.c.b16 %v9083, %v9081
        %v9182 = vpack.c.b16 %v9084, %v9082
        %v9183 = vpack.c.b16 %v9087, %v9085
        %v9184 = vpack.c.b16 %v9088, %v9086
        %v9185 = vpack.c.b16 %v9091, %v9089
        %v9186 = vpack.c.b16 %v9092, %v9090
        %v9187 = vpack.c.b16 %v9095, %v9093
        %v9188 = vpack.c.b16 %v9096, %v9094
        %v9189 = vpack.c.b16 %v9099, %v9097
        %v9190 = vpack.c.b16 %v9100, %v9098
        %v9191 = vpack.c.b16 %v9103, %v9101
        %v9192 = vpack.c.b16 %v9104, %v9102
        %v9193 = vpack.c.b16 %v9107, %v9105
        %v9194 = vpack.c.b16 %v9108, %v9106
        %v9195 = vpack.c.b16 %v9111, %v9109
        %v9196 = vpack.c.b16 %v9112, %v9110
        %v9197 = vpack.c.b16 %v9115, %v9113
        %v9198 = vpack.c.b16 %v9116, %v9114
        %v9199 = vpack.c.b16 %v9119, %v9117
        %v9200 = vpack.c.b16 %v9120, %v9118
        %v9201 = vpack.c.b16 %v9123, %v9121
        %v9202 = vpack.c.b16 %v9124, %v9122
        %v9203 = vpack.c.b16 %v9127, %v9125
        %v9204 = vpack.c.b16 %v9128, %v9126
        %v9205 = vpack.c.b16 %v9131, %v9129
        %v9206 = vpack.c.b16 %v9132, %v9130
        %v9207 = vpack.c.b16 %v9135, %v9133
        %v9208 = vpack.c.b16 %v9136, %v9134
        %v9209 = vpack.c.b16 %v9139, %v9137
        %v9210 = vpack.c.b16 %v9140, %v9138
        %v9211 = vpack.c.b16 %v9143, %v9141
        %v9212 = vpack.c.b16 %v9144, %v9142
        %v9213 = vpack.c.b16 %v9147, %v9145
        %v9214 = vpack.c.b16 %v9148, %v9146
        %v9215 = vpack.c.b16 %v9151, %v9149
        %v9216 = vpack.c.b16 %v9152, %v9150
        %9281 = vmatprep.subr.bf16.mxu0 %v9168
        %9282 = vmatpush1.bf16.msra.mxu0 %v9167
        %9283 = vmatprep.subr.bf16.mxu0 %v9166
        %9284 = vmatpush1.bf16.msra.mxu0 %v9165
        %9285 = vmatprep.subr.bf16.mxu0 %v9164
        %9286 = vmatpush1.bf16.msra.mxu0 %v9163
        %9287 = vmatprep.subr.bf16.mxu0 %v9162
        %9288 = vmatpush1.bf16.msra.mxu0 %v9161
        %9289 = vmatprep.subr.bf16.mxu0 %v9160
        %9290 = vmatpush1.bf16.msra.mxu0 %v9159
        %9291 = vmatprep.subr.bf16.mxu0 %v9158
        %9292 = vmatpush1.bf16.msra.mxu0 %v9157
        %9293 = vmatprep.subr.bf16.mxu0 %v9156
        %9294 = vmatpush1.bf16.msra.mxu0 %v9155
        %9295 = vmatprep.subr.bf16.mxu0 %v9154
        %9296 = vmatpush1.bf16.msra.mxu0 %v9153
        %9297 = vmatprep.subr.bf16.mxu0 %v9184
        %9298 = vmatpush2.bf16.msra.mxu0 %v9183
        %9299 = vmatprep.subr.bf16.mxu0 %v9182
        %9300 = vmatpush2.bf16.msra.mxu0 %v9181
        %9301 = vmatprep.subr.bf16.mxu0 %v9180
        %9302 = vmatpush2.bf16.msra.mxu0 %v9179
        %9303 = vmatprep.subr.bf16.mxu0 %v9178
        %9304 = vmatpush2.bf16.msra.mxu0 %v9177
        %9305 = vmatprep.subr.bf16.mxu0 %v9176
        %9306 = vmatpush2.bf16.msra.mxu0 %v9175
        %9307 = vmatprep.subr.bf16.mxu0 %v9174
        %9308 = vmatpush2.bf16.msra.mxu0 %v9173
        %9309 = vmatprep.subr.bf16.mxu0 %v9172
        %9310 = vmatpush2.bf16.msra.mxu0 %v9171
        %9311 = vmatprep.subr.bf16.mxu0 %v9170
        %9312 = vmatpush2.bf16.msra.mxu0 %v9169
        %9313 = vmatprep.mubr.bf16.mxu0 %v8882
        %9314 = vmatmul.mubr.bf16.gmra.mxu0 %v8881
        %v9315 = vpop.f32.mrf.mxu0
        %v9316 = vadd.f32 %v8954, %v9315
        %v9317 = vpop.f32.mrf.mxu0
        %v9318 = vadd.f32 %v8958, %v9317
        %v9319 = vpop.f32.mrf.mxu0
        %v9320 = vpop.f32.mrf.mxu0
        %9321 = vdwg.mxu0
        %9322 = vmatprep.subr.bf16.mxu0 %v9200
        %9323 = vmatpush1.bf16.msra.mxu0 %v9199
        %9324 = vmatprep.subr.bf16.mxu0 %v9198
        %9325 = vmatpush1.bf16.msra.mxu0 %v9197
        %9326 = vmatprep.subr.bf16.mxu0 %v9196
        %9327 = vmatpush1.bf16.msra.mxu0 %v9195
        %9328 = vmatprep.subr.bf16.mxu0 %v9194
        %9329 = vmatpush1.bf16.msra.mxu0 %v9193
        %9330 = vmatprep.subr.bf16.mxu0 %v9192
        %9331 = vmatpush1.bf16.msra.mxu0 %v9191
        %9332 = vmatprep.subr.bf16.mxu0 %v9190
        %9333 = vmatpush1.bf16.msra.mxu0 %v9189
        %9334 = vmatprep.subr.bf16.mxu0 %v9188
        %9335 = vmatpush1.bf16.msra.mxu0 %v9187
        %9336 = vmatprep.subr.bf16.mxu0 %v9186
        %9337 = vmatpush1.bf16.msra.mxu0 %v9185
        %9338 = vmatprep.subr.bf16.mxu0 %v9216
        %9339 = vmatpush2.bf16.msra.mxu0 %v9215
        %9340 = vmatprep.subr.bf16.mxu0 %v9214
        %9341 = vmatpush2.bf16.msra.mxu0 %v9213
        %9342 = vmatprep.subr.bf16.mxu0 %v9212
        %9343 = vmatpush2.bf16.msra.mxu0 %v9211
        %9344 = vmatprep.subr.bf16.mxu0 %v9210
        %9345 = vmatpush2.bf16.msra.mxu0 %v9209
        %9346 = vmatprep.subr.bf16.mxu0 %v9208
        %9347 = vmatpush2.bf16.msra.mxu0 %v9207
        %9348 = vmatprep.subr.bf16.mxu0 %v9206
        %9349 = vmatpush2.bf16.msra.mxu0 %v9205
        %9350 = vmatprep.subr.bf16.mxu0 %v9204
        %9351 = vmatpush2.bf16.msra.mxu0 %v9203
        %9352 = vmatprep.subr.bf16.mxu0 %v9202
        %9353 = vmatpush2.bf16.msra.mxu0 %v9201
        %9354 = vmatprep.mubr.bf16.mxu0 %v8884
        %9355 = vmatmul.mubr.bf16.gmra.mxu0 %v8883
        %v9356 = vpop.f32.mrf.mxu0
        %v9357 = vadd.f32 %v9316, %v9356
        %v9358 = vpop.f32.mrf.mxu0
        %v9359 = vadd.f32 %v9318, %v9358
        %v9360 = vpop.f32.mrf.mxu0
        %v9361 = vpop.f32.mrf.mxu0
        %9362 = vdwg.mxu0
        %v9363 = vmax.f32 %v9357, 0.0
        %v9364 = vmax.f32 %v9359, 0.0
        %v9365 = vpack.c.bf16 %v9363, %v9363
        %v9366 = vpack.c.bf16 %v9364, %v9364
        %v9367 = vld [vmem:[%s15] sm:$0xf]
        %v9368 = vld [vmem:[%s15 + $0x4] sm:$0xf]
        %v9369 = vld [vmem:[%s15 + $0x8] sm:$0xf]
        %v9370 = vld [vmem:[%s15 + $0xc] sm:$0xf]
        %v9371 = vld [vmem:[%s15 + $0x10] sm:$0xf]
        %v9372 = vld [vmem:[%s15 + $0x14] sm:$0xf]
        %v9373 = vld [vmem:[%s15 + $0x18] sm:$0xf]
        %v9374 = vld [vmem:[%s15 + $0x1c] sm:$0xf]
        %v9375 = vld [vmem:[%s15 + $0x20] sm:$0xf]
        %v9376 = vld [vmem:[%s15 + $0x24] sm:$0xf]
        %v9377 = vld [vmem:[%s15 + $0x28] sm:$0xf]
        %v9378 = vld [vmem:[%s15 + $0x2c] sm:$0xf]
        %v9379 = vld [vmem:[%s15 + $0x30] sm:$0xf]
        %v9380 = vld [vmem:[%s15 + $0x34] sm:$0xf]
        %v9381 = vld [vmem:[%s15 + $0x38] sm:$0xf]
        %v9382 = vld [vmem:[%s15 + $0x3c] sm:$0xf]
        %v9383 = vld [vmem:[%s15 + $0x40] sm:$0xf]
        %v9384 = vld [vmem:[%s15 + $0x44] sm:$0xf]
        %v9385 = vld [vmem:[%s15 + $0x48] sm:$0xf]
        %v9386 = vld [vmem:[%s15 + $0x4c] sm:$0xf]
        %v9387 = vld [vmem:[%s15 + $0x50] sm:$0xf]
        %v9388 = vld [vmem:[%s15 + $0x54] sm:$0xf]
        %v9389 = vld [vmem:[%s15 + $0x58] sm:$0xf]
        %v9390 = vld [vmem:[%s15 + $0x5c] sm:$0xf]
        %v9391 = vld [vmem:[%s15 + $0x60] sm:$0xf]
        %v9392 = vld [vmem:[%s15 + $0x64] sm:$0xf]
        %v9393 = vld [vmem:[%s15 + $0x68] sm:$0xf]
        %v9394 = vld [vmem:[%s15 + $0x6c] sm:$0xf]
        %v9395 = vld [vmem:[%s15 + $0x70] sm:$0xf]
        %v9396 = vld [vmem:[%s15 + $0x74] sm:$0xf]
        %v9397 = vld [vmem:[%s15 + $0x78] sm:$0xf]
        %v9398 = vld [vmem:[%s15 + $0x7c] sm:$0xf]
        %v9399 = vld [vmem:[%s16] sm:$0x1]
        %v9401 = vlaneseq
        %v9402 = vshrl.u32 %v9401, 7
        %v9403 = vsub.s32 0, %v9402
        %v9404 = vrot.slane %v9399, %v9403
        %v9438 = vunpack.c.l.b16 %v9367
        %v9439 = vunpack.c.l.b16 %v9368
        %v9440 = vunpack.c.l.b16 %v9369
        %v9441 = vunpack.c.l.b16 %v9370
        %v9442 = vunpack.c.l.b16 %v9371
        %v9443 = vunpack.c.l.b16 %v9372
        %v9444 = vunpack.c.l.b16 %v9373
        %v9445 = vunpack.c.l.b16 %v9374
        %v9446 = vunpack.c.l.b16 %v9375
        %v9447 = vunpack.c.l.b16 %v9376
        %v9448 = vunpack.c.l.b16 %v9377
        %v9449 = vunpack.c.l.b16 %v9378
        %v9450 = vunpack.c.l.b16 %v9379
        %v9451 = vunpack.c.l.b16 %v9380
        %v9452 = vunpack.c.l.b16 %v9381
        %v9453 = vunpack.c.l.b16 %v9382
        %v9454 = vunpack.c.l.b16 %v9383
        %v9455 = vunpack.c.l.b16 %v9384
        %v9456 = vunpack.c.l.b16 %v9385
        %v9457 = vunpack.c.l.b16 %v9386
        %v9458 = vunpack.c.l.b16 %v9387
        %v9459 = vunpack.c.l.b16 %v9388
        %v9460 = vunpack.c.l.b16 %v9389
        %v9461 = vunpack.c.l.b16 %v9390
        %v9462 = vunpack.c.l.b16 %v9391
        %v9463 = vunpack.c.l.b16 %v9392
        %v9464 = vunpack.c.l.b16 %v9393
        %v9465 = vunpack.c.l.b16 %v9394
        %v9466 = vunpack.c.l.b16 %v9395
        %v9467 = vunpack.c.l.b16 %v9396
        %v9468 = vunpack.c.l.b16 %v9397
        %v9469 = vunpack.c.l.b16 %v9398
        %v9470 = vpack.c.b16 %v9439, %v9438
        %v9471 = vpack.c.b16 %v9441, %v9440
        %v9472 = vpack.c.b16 %v9443, %v9442
        %v9473 = vpack.c.b16 %v9445, %v9444
        %v9474 = vpack.c.b16 %v9447, %v9446
        %v9475 = vpack.c.b16 %v9449, %v9448
        %v9476 = vpack.c.b16 %v9451, %v9450
        %v9477 = vpack.c.b16 %v9453, %v9452
        %v9478 = vpack.c.b16 %v9455, %v9454
        %v9479 = vpack.c.b16 %v9457, %v9456
        %v9480 = vpack.c.b16 %v9459, %v9458
        %v9481 = vpack.c.b16 %v9461, %v9460
        %v9482 = vpack.c.b16 %v9463, %v9462
        %v9483 = vpack.c.b16 %v9465, %v9464
        %v9484 = vpack.c.b16 %v9467, %v9466
        %v9485 = vpack.c.b16 %v9469, %v9468
        %9502 = vmatprep.subr.bf16.mxu0 0
        %9503 = vmatpush1.bf16.msra.mxu0 %v9477
        %9504 = vmatprep.subr.bf16.mxu0 0
        %9505 = vmatpush1.bf16.msra.mxu0 %v9476
        %9506 = vmatprep.subr.bf16.mxu0 0
        %9507 = vmatpush1.bf16.msra.mxu0 %v9475
        %9508 = vmatprep.subr.bf16.mxu0 0
        %9509 = vmatpush1.bf16.msra.mxu0 %v9474
        %9510 = vmatprep.subr.bf16.mxu0 0
        %9511 = vmatpush1.bf16.msra.mxu0 %v9473
        %9512 = vmatprep.subr.bf16.mxu0 0
        %9513 = vmatpush1.bf16.msra.mxu0 %v9472
        %9514 = vmatprep.subr.bf16.mxu0 0
        %9515 = vmatpush1.bf16.msra.mxu0 %v9471
        %9516 = vmatprep.subr.bf16.mxu0 0
        %9517 = vmatpush1.bf16.msra.mxu0 %v9470
        %9518 = vmatprep.subr.bf16.mxu0 0
        %9519 = vmatpush2.bf16.msra.mxu0 %v9485
        %9520 = vmatprep.subr.bf16.mxu0 0
        %9521 = vmatpush2.bf16.msra.mxu0 %v9484
        %9522 = vmatprep.subr.bf16.mxu0 0
        %9523 = vmatpush2.bf16.msra.mxu0 %v9483
        %9524 = vmatprep.subr.bf16.mxu0 0
        %9525 = vmatpush2.bf16.msra.mxu0 %v9482
        %9526 = vmatprep.subr.bf16.mxu0 0
        %9527 = vmatpush2.bf16.msra.mxu0 %v9481
        %9528 = vmatprep.subr.bf16.mxu0 0
        %9529 = vmatpush2.bf16.msra.mxu0 %v9480
        %9530 = vmatprep.subr.bf16.mxu0 0
        %9531 = vmatpush2.bf16.msra.mxu0 %v9479
        %9532 = vmatprep.subr.bf16.mxu0 0
        %9533 = vmatpush2.bf16.msra.mxu0 %v9478
        %9534 = vmatprep.mubr.bf16.mxu0 %v9366
        %9535 = vmatmul.mubr.bf16.gmra.mxu0 %v9365
        %v9536 = vpop.f32.mrf.mxu0
        %v9537 = vadd.f32 %v9404, %v9536
        %v9538 = vpop.f32.mrf.mxu0
        %v9539 = vpop.f32.mrf.mxu0
        %v9540 = vpop.f32.mrf.mxu0
        %9541 = vdwg.mxu0
        %v9542 = vtanh.pop %v9537
        %vm9543 = vcmask 19456
        %9544 = vst.msk [vmem:[%s670] sm:$0xf] %vm9543, %v9542
        %p9545 = scmp.lt.s32.totalorder %s33, 1
        %s9546 = scalar_select %p9545, %s33, 1
        %s9547 = smul.addr %s9546, 4
        %s9548 = scalar_lea.vmem %s17, %s9547
        // Predicated region
        $region125: #{pointfilter_forward.1} parent=87 // pred_check
          %p9549 = pneg %p413
        $region126: #{pointfilter_forward.1} parent=87 // pred_check_branch
          %9551 = sbr.rel (%p9549) target = $region128
        $region127: #{pointfilter_forward.1} parent=87 // pred_region
          _
        $region128: #{pointfilter_forward.1} parent=87 // pred_fallthru
          _
      $region88: #{pointfilter_forward.1} parent=5 // pred_fallthru
        _
      %p9552 = scmp.le.s32.totalorder 2, %s28
      // Predicated region
      $region129: #{pointfilter_forward.1} parent=5 // pred_check
        %p9553 = pneg %p9552
      $region130: #{pointfilter_forward.1} parent=5 // pred_check_branch
        %9555 = sbr.rel (%p9553) target = $region132
      $region131: #{pointfilter_forward.1} parent=5 // pred_region
        %s9556 = ssub.s32 %s28, 2
        // Predicated region
        $region133: #{pointfilter_forward.1} parent=131 // pred_check
          %p9557 = pneg %p419
        $region134: #{pointfilter_forward.1} parent=131 // pred_check_branch
          %9559 = sbr.rel (%p9557) target = $region136
        $region135: #{pointfilter_forward.1} parent=131 // pred_region
          %p9560 = scmp.lt.s32.totalorder %s34, 1
          %s9561 = scalar_select %p9560, %s34, 1
          %s9562 = smul.addr %s9561, 4
          %s9563 = scalar_lea.vmem %s17, %s9562
        $region136: #{pointfilter_forward.1} parent=131 // pred_fallthru
          _
      $region132: #{pointfilter_forward.1} parent=5 // pred_fallthru
        _
    $region6: #{pointfilter_forward.1} parent=1 // loop_footer
      %s32 = sadd.s32 1, %s28
    $region7: #{pointfilter_forward.1} parent=1 // loop_footer_branch
      %27 = sbr.rel target = $region3
    $region8: #{pointfilter_forward.1} parent=1 // loop_exit
      _
    %9564 = vsyncpa [#allocation3], 1
    %s9565 = scalar_lea.sflag [#allocation3], 1
    %9566 = vsyncpa %s9565, 1
    %9567 = vsyncpa [#allocation5], 1
    %9568 = vsyncpa [#allocation8], 1
    %9569 = vsyncpa [#allocation11], 1
    %9570 = vsyncpa [#allocation14], 1

</llo_original>
